<compile_context>
chip_gen: v6e
topology: v6e:2x2x1
jax: 0.10.0
libtpu: 0.0.40
codegen_flags: <defaults>
</compile_context>

<pallas_src>
import functools

import jax
import jax.numpy as jnp
from jax.experimental import pallas as pl
from jax.experimental.pallas import tpu as pltpu

_CHUNK = 128  # timesteps per grid step == one f32 vreg of spike lanes


def _snn_chunk_kernel(x_ref, scal_ref, spikes_ref, state_ref, *,
                      leak, threshold, chunk, n_chunks, tail):
    """One grid step == `chunk` consecutive timesteps.

    x_ref:      SMEM (L,)  f32  -- all scalar inputs, zero-padded to L = n_chunks*chunk
    scal_ref:   SMEM (3,)  f32  -- [w, membrane0, a_membrane0]
    spikes_ref: VMEM (1, chunk) -- this chunk's spike outputs (lane t == local step t)
    state_ref:  VMEM (2, 128)   -- resident carry: [membrane; a_membrane] (lane splat)
    """
    ci = pl.program_id(0)
    base = ci * chunk

    # Hoisted constants / broadcasts (JAX does not CSE broadcast_in_dim in loops).
    zeros = jnp.zeros((1, chunk), jnp.float32)
    lane = jax.lax.broadcasted_iota(jnp.int32, (1, chunk), 1)
    onehot0 = (lane == 0).astype(jnp.float32)
    w_b = zeros + scal_ref[0]
    keep = 1.0 - leak

    # First chunk: initialize the resident state block from the packed scalars (P3).
    @pl.when(ci == 0)
    def _():
        state_ref[...] = jnp.concatenate(
            [zeros[:, :128] + scal_ref[1], zeros[:, :128] + scal_ref[2]], axis=0)

    mem0 = state_ref[0:1, :]
    amem0 = state_ref[1:2, :]

    def step(t, carry):
        mem, amem, spikes, onehot = carry
        x_b = zeros + x_ref[base + t]                 # scalar SMEM load + lane splat
        amem = leak * amem + keep * x_b               # leaky input integration
        mem = leak * mem + amem * w_b                 # 1x1 fc == elementwise multiply
        fire = mem > threshold
        spikes = spikes + jnp.where(fire, 1.0, 0.0) * onehot   # off critical path
        mem = jnp.where(fire, 0.0, mem)               # reset on spike
        onehot = pltpu.roll(onehot, shift=1, axis=1)  # XLU slot, off critical path
        return mem, amem, spikes, onehot

    carry = (mem0, amem0, zeros, onehot0)
    # Steps [0, tail): valid in every chunk.  Fully unrolled for LLO visibility.
    carry = jax.lax.fori_loop(0, tail, step, carry, unroll=True)
    mem_valid, amem_valid = carry[0], carry[1]        # state snapshot after step tail-1
    if tail < chunk:
        # Steps [tail, chunk): real steps for every chunk except the last one.
        # For the last chunk their spike lanes are sliced off by the wrapper and
        # their state is never committed (the snapshot above is committed instead).
        carry = jax.lax.fori_loop(tail, chunk, step, carry, unroll=True)
    mem_end, amem_end, spikes, _ = carry

    # Lane-dense single store of this chunk's spikes.
    spikes_ref[...] = spikes

    # Commit the carried state: full-chunk value for non-last chunks, snapshot for
    # the last chunk (so zero-padded trailing steps never touch the state).
    @pl.when(ci < n_chunks - 1)
    def _():
        state_ref[...] = jnp.concatenate(
            [mem_end[:, :128], amem_end[:, :128]], axis=0)

    @pl.when(ci == n_chunks - 1)
    def _():
        state_ref[...] = jnp.concatenate(
            [mem_valid[:, :128], amem_valid[:, :128]], axis=0)


def snn_forward(x_seq, w, membrane, a_membrane, *, leak_mem=0.95, threshold=1.0):
    """Run T consecutive Net.forward() steps in one fused kernel.

    x_seq: (T,)-reshapeable sequence of scalar inputs (one per forward call).
    Returns (out_seq[(T,1,1)], new_membrane[(1,1)], new_a_membrane[(1,1)])."""
    in_dim, num_cls = membrane.shape
    # Original PyTorch code is only well-defined for (1,1) state.
    assert (in_dim, num_cls) == (1, 1), "exact semantics require in_dim=num_cls=1"
    assert w.shape == (num_cls, in_dim)
    assert a_membrane.shape == membrane.shape

    x_flat = jnp.reshape(x_seq, (-1,)).astype(jnp.float32)
    T = int(x_flat.shape[0])
    assert T >= 1

    chunk = _CHUNK
    n_chunks = -(-T // chunk)
    L = n_chunks * chunk
    tail = T - (n_chunks - 1) * chunk     # valid steps in the last chunk, in [1, chunk]

    x_pad = jnp.pad(x_flat, (0, L - T))
    # TODO(synk): for very long sequences (T >> 10k) move x to a chunked VMEM input
    # instead of one SMEM array (1-D SMEM pads to next_pow2(4*T) bytes).

    # Pack the three (1,1) scalars into one SMEM array -> one DMA.
    scal = jnp.stack([jnp.reshape(w, ()),
                      jnp.reshape(membrane, ()),
                      jnp.reshape(a_membrane, ())]).astype(jnp.float32)

    kernel = functools.partial(_snn_chunk_kernel,
                               leak=float(leak_mem), threshold=float(threshold),
                               chunk=chunk, n_chunks=n_chunks, tail=tail)

    smem = pl.BlockSpec(memory_space=pltpu.MemorySpace.SMEM)

    spikes_pad, state = pl.pallas_call(
        kernel,
        grid=(n_chunks,),
        out_shape=(jax.ShapeDtypeStruct((1, L), jnp.float32),    # spikes, lane-dense
                   jax.ShapeDtypeStruct((2, 128), jnp.float32)), # [membrane; a_membrane]
        in_specs=[smem, smem],
        out_specs=(pl.BlockSpec((1, chunk), lambda i: (0, i)),
                   pl.BlockSpec((2, 128), lambda i: (0, 0))),    # resident carry block
        compiler_params=pltpu.CompilerParams(dimension_semantics=("arbitrary",)),
    )(x_pad, scal)

    out_seq = spikes_pad[0, :T].reshape(T, 1, 1)
    new_mem = state[0, 0].reshape(1, 1)
    new_amem = state[1, 0].reshape(1, 1)
    return out_seq, new_mem, new_amem


def snn_step(x, w, membrane, a_membrane, *, leak_mem=0.95, threshold=1.0):
    """Exactly one Net.forward() call: returns (out(1,1), membrane(1,1), a_membrane(1,1))."""
    out_seq, new_mem, new_amem = snn_forward(jnp.reshape(x, (1,)), w, membrane, a_membrane,
                                             leak_mem=leak_mem, threshold=threshold)
    return out_seq[0], new_mem, new_amem


def _reference_loop(x_seq, w, membrane, a_membrane, leak_mem, threshold):
    """Pure-JAX reference: T sequential Net.forward() calls (fc(a)=a*w for the 1x1 case)."""
    x_flat = jnp.reshape(x_seq, (-1,))
    mem, amem = membrane, a_membrane
    outs = []
    for t in range(int(x_flat.shape[0])):
        x = jnp.full((1, 1), x_flat[t], jnp.float32)
        amem = leak_mem * amem + (1.0 - leak_mem) * x
        mem = leak_mem * mem + amem * w[0, 0]
        spike = mem > threshold
        outs.append(jnp.where(spike, 1.0, 0.0))
        mem = jnp.where(spike, 0.0, mem)
    return jnp.stack(outs), mem, amem


if __name__ == "__main__":
    key = jax.random.PRNGKey(0)
    k_w, k_x = jax.random.split(key)

    in_dim, num_cls = 1, 1
    leak_mem, threshold = 0.95, 1.0

    # nn.Linear(in_dim, num_cls, bias=False) default init: U(-1/sqrt(in_dim), 1/sqrt(in_dim))
    bound = 1.0 / (in_dim ** 0.5)
    w = jax.random.uniform(k_w, (num_cls, in_dim), jnp.float32, -bound, bound)

    # Persistent state starts at zero, as in __init__.
    membrane = jnp.zeros((in_dim, num_cls), jnp.float32)
    a_membrane = jnp.zeros((in_dim, num_cls), jnp.float32)

    # T=64 exercises the single-chunk tail path; T=200 exercises the cross-chunk carry.
    for T in (64, 200):
        x_seq = 25.0 * jax.random.normal(jax.random.fold_in(k_x, T), (T,), jnp.float32)
        out_seq, new_mem, new_amem = snn_forward(x_seq, w, membrane, a_membrane,
                                                 leak_mem=leak_mem, threshold=threshold)
        jax.block_until_ready((out_seq, new_mem, new_amem))

        ref_out, ref_mem, ref_amem = _reference_loop(x_seq, w, membrane, a_membrane,
                                                     leak_mem, threshold)
        assert out_seq.shape == (T, 1, 1)
        assert jnp.allclose(out_seq, ref_out, atol=1e-5, rtol=1e-5)
        assert jnp.allclose(new_mem, ref_mem, atol=1e-4, rtol=1e-4)
        assert jnp.allclose(new_amem, ref_amem, atol=1e-4, rtol=1e-4)

    # Single forward() call (T=1) also matches.
    x1 = 25.0 * jax.random.normal(jax.random.fold_in(k_x, 1), (1,), jnp.float32)
    o1, m1, a1 = snn_step(x1[0], w, membrane, a_membrane,
                          leak_mem=leak_mem, threshold=threshold)
    r_o, r_m, r_a = _reference_loop(x1, w, membrane, a_membrane, leak_mem, threshold)
    assert jnp.allclose(o1, r_o[0], atol=1e-6)
    assert jnp.allclose(m1, r_m, atol=1e-6)
    assert jnp.allclose(a1, r_a, atol=1e-6)

    print("KERNEL_OK")
</pallas_src>

<mosaic_0001>
module attributes {stable_mosaic.version = 11 : i64} {
  func.func @_snn_chunk_kernel(%arg0: i32, %arg1: memref<128xf32, #tpu.memory_space<smem>>, %arg2: memref<3xf32, #tpu.memory_space<smem>>, %arg3: memref<1x128xf32, #tpu.memory_space<vmem>>, %arg4: memref<2x128xf32, #tpu.memory_space<vmem>>) attributes {dimension_semantics = [#tpu.dimension_semantics<arbitrary>], iteration_bounds = array<i64: 1>, scalar_prefetch = 0 : i64, scratch_operands = 0 : i64, tpu.core_type = #tpu.core_type<tc>, window_params = [{transform_indices = @transform_0, window_bounds = array<i64: 128>}, {transform_indices = @transform_1, window_bounds = array<i64: 3>}, {transform_indices = @transform_2, window_bounds = array<i64: 1, 128>}, {pipeline_mode = #tpu.pipeline_mode<synchronous>, transform_indices = @transform_3, window_bounds = array<i64: 2, 128>}]} {
    %c128_i32 = arith.constant 128 : i32
    %0 = arith.muli %arg0, %c128_i32 : i32
    %cst = arith.constant 0.000000e+00 : f32
    %1 = vector.broadcast %cst : f32 to vector<1x128xf32>
    %2 = tpu.iota {dimensions = array<i32: 1>} : vector<1x128xi32>
    %c0_i32 = arith.constant 0 : i32
    %3 = vector.broadcast %c0_i32 : i32 to vector<1x128xi32>
    %4 = arith.cmpi eq, %2, %3 : vector<1x128xi32>
    %5 = arith.extui %4 : vector<1x128xi1> to vector<1x128xi32>
    %6 = arith.sitofp %5 : vector<1x128xi32> to vector<1x128xf32>
    %c0 = arith.constant 0 : index
    %7 = memref.load %arg2[%c0] : memref<3xf32, #tpu.memory_space<smem>>
    %8 = vector.broadcast %7 : f32 to vector<1x128xf32>
    %9 = arith.addf %1, %8 : vector<1x128xf32>
    %c0_i32_0 = arith.constant 0 : i32
    %10 = arith.cmpi eq, %arg0, %c0_i32_0 : i32
    %11 = arith.extui %10 : i1 to i32
    %c0_i32_1 = arith.constant 0 : i32
    %12 = arith.cmpi ne, %11, %c0_i32_1 : i32
    scf.if %12 {
      %c1_1038 = arith.constant 1 : index
      %3094 = memref.load %arg2[%c1_1038] : memref<3xf32, #tpu.memory_space<smem>>
      %3095 = vector.broadcast %3094 : f32 to vector<1x128xf32>
      %3096 = arith.addf %1, %3095 : vector<1x128xf32>
      %c2 = arith.constant 2 : index
      %3097 = memref.load %arg2[%c2] : memref<3xf32, #tpu.memory_space<smem>>
      %3098 = vector.broadcast %3097 : f32 to vector<1x128xf32>
      %3099 = arith.addf %1, %3098 : vector<1x128xf32>
      %3100 = tpu.concatenate %3096, %3099 in 0 : vector<1x128xf32>, vector<1x128xf32> -> vector<2x128xf32>
      %c0_1039 = arith.constant 0 : index
      %c0_1040 = arith.constant 0 : index
      %3101 = vector.load %arg4[%c0_1039, %c0_1040] : memref<2x128xf32, #tpu.memory_space<vmem>>, vector<2x128xf32>
      tpu.vector_store %arg4[%c0_1039, %c0_1040], %3100 {strides = array<i32>} : memref<2x128xf32, #tpu.memory_space<vmem>>, vector<2x128xf32>,
    } else {
    }
    %c0_2 = arith.constant 0 : index
    %c0_3 = arith.constant 0 : index
    %13 = vector.load %arg4[%c0_2, %c0_3] : memref<2x128xf32, #tpu.memory_space<vmem>>, vector<1x128xf32>
    %c1 = arith.constant 1 : index
    %c0_4 = arith.constant 0 : index
    %14 = vector.load %arg4[%c1, %c0_4] : memref<2x128xf32, #tpu.memory_space<vmem>>, vector<1x128xf32>
    %c0_i32_5 = arith.constant 0 : i32
    %15 = arith.addi %0, %c0_i32_5 : i32
    %16 = arith.index_cast %15 : i32 to index
    %17 = memref.load %arg1[%16] : memref<128xf32, #tpu.memory_space<smem>>
    %18 = vector.broadcast %17 : f32 to vector<1x128xf32>
    %19 = arith.addf %1, %18 : vector<1x128xf32>
    %cst_6 = arith.constant 0.949999988 : f32
    %20 = vector.broadcast %cst_6 : f32 to vector<1x128xf32>
    %21 = arith.mulf %20, %14 : vector<1x128xf32>
    %cst_7 = arith.constant 5.000000e-02 : f32
    %22 = vector.broadcast %cst_7 : f32 to vector<1x128xf32>
    %23 = arith.mulf %22, %19 : vector<1x128xf32>
    %24 = arith.addf %21, %23 : vector<1x128xf32>
    %cst_8 = arith.constant 0.949999988 : f32
    %25 = vector.broadcast %cst_8 : f32 to vector<1x128xf32>
    %26 = arith.mulf %25, %13 : vector<1x128xf32>
    %27 = arith.mulf %24, %9 : vector<1x128xf32>
    %28 = arith.addf %26, %27 : vector<1x128xf32>
    %cst_9 = arith.constant 1.000000e+00 : f32
    %29 = vector.broadcast %cst_9 : f32 to vector<1x128xf32>
    %30 = arith.cmpf ogt, %28, %29 : vector<1x128xf32>
    %cst_10 = arith.constant 1.000000e+00 : f32
    %cst_11 = arith.constant 0.000000e+00 : f32
    %31 = vector.broadcast %cst_10 : f32 to vector<1x128xf32>
    %32 = vector.broadcast %cst_11 : f32 to vector<1x128xf32>
    %33 = arith.select %30, %31, %32 : vector<1x128xi1>, vector<1x128xf32>
    %34 = arith.mulf %33, %6 : vector<1x128xf32>
    %35 = arith.addf %1, %34 : vector<1x128xf32>
    %cst_12 = arith.constant 0.000000e+00 : f32
    %36 = vector.broadcast %cst_12 : f32 to vector<1x128xf32>
    %37 = arith.select %30, %36, %28 : vector<1x128xi1>, vector<1x128xf32>
    %c1_i32 = arith.constant 1 : i32
    %38 = tpu.dynamic_rotate %6 by %c1_i32 dim 1 : vector<1x128xf32>, i32 -> vector<1x128xf32>
    %c1_i32_13 = arith.constant 1 : i32
    %39 = arith.addi %0, %c1_i32_13 : i32
    %40 = arith.index_cast %39 : i32 to index
    %41 = memref.load %arg1[%40] : memref<128xf32, #tpu.memory_space<smem>>
    %42 = vector.broadcast %41 : f32 to vector<1x128xf32>
    %43 = arith.addf %1, %42 : vector<1x128xf32>
    %cst_14 = arith.constant 0.949999988 : f32
    %44 = vector.broadcast %cst_14 : f32 to vector<1x128xf32>
    %45 = arith.mulf %44, %24 : vector<1x128xf32>
    %cst_15 = arith.constant 5.000000e-02 : f32
    %46 = vector.broadcast %cst_15 : f32 to vector<1x128xf32>
    %47 = arith.mulf %46, %43 : vector<1x128xf32>
    %48 = arith.addf %45, %47 : vector<1x128xf32>
    %cst_16 = arith.constant 0.949999988 : f32
    %49 = vector.broadcast %cst_16 : f32 to vector<1x128xf32>
    %50 = arith.mulf %49, %37 : vector<1x128xf32>
    %51 = arith.mulf %48, %9 : vector<1x128xf32>
    %52 = arith.addf %50, %51 : vector<1x128xf32>
    %cst_17 = arith.constant 1.000000e+00 : f32
    %53 = vector.broadcast %cst_17 : f32 to vector<1x128xf32>
    %54 = arith.cmpf ogt, %52, %53 : vector<1x128xf32>
    %cst_18 = arith.constant 1.000000e+00 : f32
    %cst_19 = arith.constant 0.000000e+00 : f32
    %55 = vector.broadcast %cst_18 : f32 to vector<1x128xf32>
    %56 = vector.broadcast %cst_19 : f32 to vector<1x128xf32>
    %57 = arith.select %54, %55, %56 : vector<1x128xi1>, vector<1x128xf32>
    %58 = arith.mulf %57, %38 : vector<1x128xf32>
    %59 = arith.addf %35, %58 : vector<1x128xf32>
    %cst_20 = arith.constant 0.000000e+00 : f32
    %60 = vector.broadcast %cst_20 : f32 to vector<1x128xf32>
    %61 = arith.select %54, %60, %52 : vector<1x128xi1>, vector<1x128xf32>
    %c1_i32_21 = arith.constant 1 : i32
    %62 = tpu.dynamic_rotate %38 by %c1_i32_21 dim 1 : vector<1x128xf32>, i32 -> vector<1x128xf32>
    %c2_i32 = arith.constant 2 : i32
    %63 = arith.addi %0, %c2_i32 : i32
    %64 = arith.index_cast %63 : i32 to index
    %65 = memref.load %arg1[%64] : memref<128xf32, #tpu.memory_space<smem>>
    %66 = vector.broadcast %65 : f32 to vector<1x128xf32>
    %67 = arith.addf %1, %66 : vector<1x128xf32>
    %cst_22 = arith.constant 0.949999988 : f32
    %68 = vector.broadcast %cst_22 : f32 to vector<1x128xf32>
    %69 = arith.mulf %68, %48 : vector<1x128xf32>
    %cst_23 = arith.constant 5.000000e-02 : f32
    %70 = vector.broadcast %cst_23 : f32 to vector<1x128xf32>
    %71 = arith.mulf %70, %67 : vector<1x128xf32>
    %72 = arith.addf %69, %71 : vector<1x128xf32>
    %cst_24 = arith.constant 0.949999988 : f32
    %73 = vector.broadcast %cst_24 : f32 to vector<1x128xf32>
    %74 = arith.mulf %73, %61 : vector<1x128xf32>
    %75 = arith.mulf %72, %9 : vector<1x128xf32>
    %76 = arith.addf %74, %75 : vector<1x128xf32>
    %cst_25 = arith.constant 1.000000e+00 : f32
    %77 = vector.broadcast %cst_25 : f32 to vector<1x128xf32>
    %78 = arith.cmpf ogt, %76, %77 : vector<1x128xf32>
    %cst_26 = arith.constant 1.000000e+00 : f32
    %cst_27 = arith.constant 0.000000e+00 : f32
    %79 = vector.broadcast %cst_26 : f32 to vector<1x128xf32>
    %80 = vector.broadcast %cst_27 : f32 to vector<1x128xf32>
    %81 = arith.select %78, %79, %80 : vector<1x128xi1>, vector<1x128xf32>
    %82 = arith.mulf %81, %62 : vector<1x128xf32>
    %83 = arith.addf %59, %82 : vector<1x128xf32>
    %cst_28 = arith.constant 0.000000e+00 : f32
    %84 = vector.broadcast %cst_28 : f32 to vector<1x128xf32>
    %85 = arith.select %78, %84, %76 : vector<1x128xi1>, vector<1x128xf32>
    %c1_i32_29 = arith.constant 1 : i32
    %86 = tpu.dynamic_rotate %62 by %c1_i32_29 dim 1 : vector<1x128xf32>, i32 -> vector<1x128xf32>
    %c3_i32 = arith.constant 3 : i32
    %87 = arith.addi %0, %c3_i32 : i32
    %88 = arith.index_cast %87 : i32 to index
    %89 = memref.load %arg1[%88] : memref<128xf32, #tpu.memory_space<smem>>
    %90 = vector.broadcast %89 : f32 to vector<1x128xf32>
    %91 = arith.addf %1, %90 : vector<1x128xf32>
    %cst_30 = arith.constant 0.949999988 : f32
    %92 = vector.broadcast %cst_30 : f32 to vector<1x128xf32>
    %93 = arith.mulf %92, %72 : vector<1x128xf32>
    %cst_31 = arith.constant 5.000000e-02 : f32
    %94 = vector.broadcast %cst_31 : f32 to vector<1x128xf32>
    %95 = arith.mulf %94, %91 : vector<1x128xf32>
    %96 = arith.addf %93, %95 : vector<1x128xf32>
    %cst_32 = arith.constant 0.949999988 : f32
    %97 = vector.broadcast %cst_32 : f32 to vector<1x128xf32>
    %98 = arith.mulf %97, %85 : vector<1x128xf32>
    %99 = arith.mulf %96, %9 : vector<1x128xf32>
    %100 = arith.addf %98, %99 : vector<1x128xf32>
    %cst_33 = arith.constant 1.000000e+00 : f32
    %101 = vector.broadcast %cst_33 : f32 to vector<1x128xf32>
    %102 = arith.cmpf ogt, %100, %101 : vector<1x128xf32>
    %cst_34 = arith.constant 1.000000e+00 : f32
    %cst_35 = arith.constant 0.000000e+00 : f32
    %103 = vector.broadcast %cst_34 : f32 to vector<1x128xf32>
    %104 = vector.broadcast %cst_35 : f32 to vector<1x128xf32>
    %105 = arith.select %102, %103, %104 : vector<1x128xi1>, vector<1x128xf32>
    %106 = arith.mulf %105, %86 : vector<1x128xf32>
    %107 = arith.addf %83, %106 : vector<1x128xf32>
    %cst_36 = arith.constant 0.000000e+00 : f32
    %108 = vector.broadcast %cst_36 : f32 to vector<1x128xf32>
    %109 = arith.select %102, %108, %100 : vector<1x128xi1>, vector<1x128xf32>
    %c1_i32_37 = arith.constant 1 : i32
    %110 = tpu.dynamic_rotate %86 by %c1_i32_37 dim 1 : vector<1x128xf32>, i32 -> vector<1x128xf32>
    %c4_i32 = arith.constant 4 : i32
    %111 = arith.addi %0, %c4_i32 : i32
    %112 = arith.index_cast %111 : i32 to index
    %113 = memref.load %arg1[%112] : memref<128xf32, #tpu.memory_space<smem>>
    %114 = vector.broadcast %113 : f32 to vector<1x128xf32>
    %115 = arith.addf %1, %114 : vector<1x128xf32>
    %cst_38 = arith.constant 0.949999988 : f32
    %116 = vector.broadcast %cst_38 : f32 to vector<1x128xf32>
    %117 = arith.mulf %116, %96 : vector<1x128xf32>
    %cst_39 = arith.constant 5.000000e-02 : f32
    %118 = vector.broadcast %cst_39 : f32 to vector<1x128xf32>
    %119 = arith.mulf %118, %115 : vector<1x128xf32>
    %120 = arith.addf %117, %119 : vector<1x128xf32>
    %cst_40 = arith.constant 0.949999988 : f32
    %121 = vector.broadcast %cst_40 : f32 to vector<1x128xf32>
    %122 = arith.mulf %121, %109 : vector<1x128xf32>
    %123 = arith.mulf %120, %9 : vector<1x128xf32>
    %124 = arith.addf %122, %123 : vector<1x128xf32>
    %cst_41 = arith.constant 1.000000e+00 : f32
    %125 = vector.broadcast %cst_41 : f32 to vector<1x128xf32>
    %126 = arith.cmpf ogt, %124, %125 : vector<1x128xf32>
    %cst_42 = arith.constant 1.000000e+00 : f32
    %cst_43 = arith.constant 0.000000e+00 : f32
    %127 = vector.broadcast %cst_42 : f32 to vector<1x128xf32>
    %128 = vector.broadcast %cst_43 : f32 to vector<1x128xf32>
    %129 = arith.select %126, %127, %128 : vector<1x128xi1>, vector<1x128xf32>
    %130 = arith.mulf %129, %110 : vector<1x128xf32>
    %131 = arith.addf %107, %130 : vector<1x128xf32>
    %cst_44 = arith.constant 0.000000e+00 : f32
    %132 = vector.broadcast %cst_44 : f32 to vector<1x128xf32>
    %133 = arith.select %126, %132, %124 : vector<1x128xi1>, vector<1x128xf32>
    %c1_i32_45 = arith.constant 1 : i32
    %134 = tpu.dynamic_rotate %110 by %c1_i32_45 dim 1 : vector<1x128xf32>, i32 -> vector<1x128xf32>
    %c5_i32 = arith.constant 5 : i32
    %135 = arith.addi %0, %c5_i32 : i32
    %136 = arith.index_cast %135 : i32 to index
    %137 = memref.load %arg1[%136] : memref<128xf32, #tpu.memory_space<smem>>
    %138 = vector.broadcast %137 : f32 to vector<1x128xf32>
    %139 = arith.addf %1, %138 : vector<1x128xf32>
    %cst_46 = arith.constant 0.949999988 : f32
    %140 = vector.broadcast %cst_46 : f32 to vector<1x128xf32>
    %141 = arith.mulf %140, %120 : vector<1x128xf32>
    %cst_47 = arith.constant 5.000000e-02 : f32
    %142 = vector.broadcast %cst_47 : f32 to vector<1x128xf32>
    %143 = arith.mulf %142, %139 : vector<1x128xf32>
    %144 = arith.addf %141, %143 : vector<1x128xf32>
    %cst_48 = arith.constant 0.949999988 : f32
    %145 = vector.broadcast %cst_48 : f32 to vector<1x128xf32>
    %146 = arith.mulf %145, %133 : vector<1x128xf32>
    %147 = arith.mulf %144, %9 : vector<1x128xf32>
    %148 = arith.addf %146, %147 : vector<1x128xf32>
    %cst_49 = arith.constant 1.000000e+00 : f32
    %149 = vector.broadcast %cst_49 : f32 to vector<1x128xf32>
    %150 = arith.cmpf ogt, %148, %149 : vector<1x128xf32>
    %cst_50 = arith.constant 1.000000e+00 : f32
    %cst_51 = arith.constant 0.000000e+00 : f32
    %151 = vector.broadcast %cst_50 : f32 to vector<1x128xf32>
    %152 = vector.broadcast %cst_51 : f32 to vector<1x128xf32>
    %153 = arith.select %150, %151, %152 : vector<1x128xi1>, vector<1x128xf32>
    %154 = arith.mulf %153, %134 : vector<1x128xf32>
    %155 = arith.addf %131, %154 : vector<1x128xf32>
    %cst_52 = arith.constant 0.000000e+00 : f32
    %156 = vector.broadcast %cst_52 : f32 to vector<1x128xf32>
    %157 = arith.select %150, %156, %148 : vector<1x128xi1>, vector<1x128xf32>
    %c1_i32_53 = arith.constant 1 : i32
    %158 = tpu.dynamic_rotate %134 by %c1_i32_53 dim 1 : vector<1x128xf32>, i32 -> vector<1x128xf32>
    %c6_i32 = arith.constant 6 : i32
    %159 = arith.addi %0, %c6_i32 : i32
    %160 = arith.index_cast %159 : i32 to index
    %161 = memref.load %arg1[%160] : memref<128xf32, #tpu.memory_space<smem>>
    %162 = vector.broadcast %161 : f32 to vector<1x128xf32>
    %163 = arith.addf %1, %162 : vector<1x128xf32>
    %cst_54 = arith.constant 0.949999988 : f32
    %164 = vector.broadcast %cst_54 : f32 to vector<1x128xf32>
    %165 = arith.mulf %164, %144 : vector<1x128xf32>
    %cst_55 = arith.constant 5.000000e-02 : f32
    %166 = vector.broadcast %cst_55 : f32 to vector<1x128xf32>
    %167 = arith.mulf %166, %163 : vector<1x128xf32>
    %168 = arith.addf %165, %167 : vector<1x128xf32>
    %cst_56 = arith.constant 0.949999988 : f32
    %169 = vector.broadcast %cst_56 : f32 to vector<1x128xf32>
    %170 = arith.mulf %169, %157 : vector<1x128xf32>
    %171 = arith.mulf %168, %9 : vector<1x128xf32>
    %172 = arith.addf %170, %171 : vector<1x128xf32>
    %cst_57 = arith.constant 1.000000e+00 : f32
    %173 = vector.broadcast %cst_57 : f32 to vector<1x128xf32>
    %174 = arith.cmpf ogt, %172, %173 : vector<1x128xf32>
    %cst_58 = arith.constant 1.000000e+00 : f32
    %cst_59 = arith.constant 0.000000e+00 : f32
    %175 = vector.broadcast %cst_58 : f32 to vector<1x128xf32>
    %176 = vector.broadcast %cst_59 : f32 to vector<1x128xf32>
    %177 = arith.select %174, %175, %176 : vector<1x128xi1>, vector<1x128xf32>
    %178 = arith.mulf %177, %158 : vector<1x128xf32>
    %179 = arith.addf %155, %178 : vector<1x128xf32>
    %cst_60 = arith.constant 0.000000e+00 : f32
    %180 = vector.broadcast %cst_60 : f32 to vector<1x128xf32>
    %181 = arith.select %174, %180, %172 : vector<1x128xi1>, vector<1x128xf32>
    %c1_i32_61 = arith.constant 1 : i32
    %182 = tpu.dynamic_rotate %158 by %c1_i32_61 dim 1 : vector<1x128xf32>, i32 -> vector<1x128xf32>
    %c7_i32 = arith.constant 7 : i32
    %183 = arith.addi %0, %c7_i32 : i32
    %184 = arith.index_cast %183 : i32 to index
    %185 = memref.load %arg1[%184] : memref<128xf32, #tpu.memory_space<smem>>
    %186 = vector.broadcast %185 : f32 to vector<1x128xf32>
    %187 = arith.addf %1, %186 : vector<1x128xf32>
    %cst_62 = arith.constant 0.949999988 : f32
    %188 = vector.broadcast %cst_62 : f32 to vector<1x128xf32>
    %189 = arith.mulf %188, %168 : vector<1x128xf32>
    %cst_63 = arith.constant 5.000000e-02 : f32
    %190 = vector.broadcast %cst_63 : f32 to vector<1x128xf32>
    %191 = arith.mulf %190, %187 : vector<1x128xf32>
    %192 = arith.addf %189, %191 : vector<1x128xf32>
    %cst_64 = arith.constant 0.949999988 : f32
    %193 = vector.broadcast %cst_64 : f32 to vector<1x128xf32>
    %194 = arith.mulf %193, %181 : vector<1x128xf32>
    %195 = arith.mulf %192, %9 : vector<1x128xf32>
    %196 = arith.addf %194, %195 : vector<1x128xf32>
    %cst_65 = arith.constant 1.000000e+00 : f32
    %197 = vector.broadcast %cst_65 : f32 to vector<1x128xf32>
    %198 = arith.cmpf ogt, %196, %197 : vector<1x128xf32>
    %cst_66 = arith.constant 1.000000e+00 : f32
    %cst_67 = arith.constant 0.000000e+00 : f32
    %199 = vector.broadcast %cst_66 : f32 to vector<1x128xf32>
    %200 = vector.broadcast %cst_67 : f32 to vector<1x128xf32>
    %201 = arith.select %198, %199, %200 : vector<1x128xi1>, vector<1x128xf32>
    %202 = arith.mulf %201, %182 : vector<1x128xf32>
    %203 = arith.addf %179, %202 : vector<1x128xf32>
    %cst_68 = arith.constant 0.000000e+00 : f32
    %204 = vector.broadcast %cst_68 : f32 to vector<1x128xf32>
    %205 = arith.select %198, %204, %196 : vector<1x128xi1>, vector<1x128xf32>
    %c1_i32_69 = arith.constant 1 : i32
    %206 = tpu.dynamic_rotate %182 by %c1_i32_69 dim 1 : vector<1x128xf32>, i32 -> vector<1x128xf32>
    %c8_i32 = arith.constant 8 : i32
    %207 = arith.addi %0, %c8_i32 : i32
    %208 = arith.index_cast %207 : i32 to index
    %209 = memref.load %arg1[%208] : memref<128xf32, #tpu.memory_space<smem>>
    %210 = vector.broadcast %209 : f32 to vector<1x128xf32>
    %211 = arith.addf %1, %210 : vector<1x128xf32>
    %cst_70 = arith.constant 0.949999988 : f32
    %212 = vector.broadcast %cst_70 : f32 to vector<1x128xf32>
    %213 = arith.mulf %212, %192 : vector<1x128xf32>
    %cst_71 = arith.constant 5.000000e-02 : f32
    %214 = vector.broadcast %cst_71 : f32 to vector<1x128xf32>
    %215 = arith.mulf %214, %211 : vector<1x128xf32>
    %216 = arith.addf %213, %215 : vector<1x128xf32>
    %cst_72 = arith.constant 0.949999988 : f32
    %217 = vector.broadcast %cst_72 : f32 to vector<1x128xf32>
    %218 = arith.mulf %217, %205 : vector<1x128xf32>
    %219 = arith.mulf %216, %9 : vector<1x128xf32>
    %220 = arith.addf %218, %219 : vector<1x128xf32>
    %cst_73 = arith.constant 1.000000e+00 : f32
    %221 = vector.broadcast %cst_73 : f32 to vector<1x128xf32>
    %222 = arith.cmpf ogt, %220, %221 : vector<1x128xf32>
    %cst_74 = arith.constant 1.000000e+00 : f32
    %cst_75 = arith.constant 0.000000e+00 : f32
    %223 = vector.broadcast %cst_74 : f32 to vector<1x128xf32>
    %224 = vector.broadcast %cst_75 : f32 to vector<1x128xf32>
    %225 = arith.select %222, %223, %224 : vector<1x128xi1>, vector<1x128xf32>
    %226 = arith.mulf %225, %206 : vector<1x128xf32>
    %227 = arith.addf %203, %226 : vector<1x128xf32>
    %cst_76 = arith.constant 0.000000e+00 : f32
    %228 = vector.broadcast %cst_76 : f32 to vector<1x128xf32>
    %229 = arith.select %222, %228, %220 : vector<1x128xi1>, vector<1x128xf32>
    %c1_i32_77 = arith.constant 1 : i32
    %230 = tpu.dynamic_rotate %206 by %c1_i32_77 dim 1 : vector<1x128xf32>, i32 -> vector<1x128xf32>
    %c9_i32 = arith.constant 9 : i32
    %231 = arith.addi %0, %c9_i32 : i32
    %232 = arith.index_cast %231 : i32 to index
    %233 = memref.load %arg1[%232] : memref<128xf32, #tpu.memory_space<smem>>
    %234 = vector.broadcast %233 : f32 to vector<1x128xf32>
    %235 = arith.addf %1, %234 : vector<1x128xf32>
    %cst_78 = arith.constant 0.949999988 : f32
    %236 = vector.broadcast %cst_78 : f32 to vector<1x128xf32>
    %237 = arith.mulf %236, %216 : vector<1x128xf32>
    %cst_79 = arith.constant 5.000000e-02 : f32
    %238 = vector.broadcast %cst_79 : f32 to vector<1x128xf32>
    %239 = arith.mulf %238, %235 : vector<1x128xf32>
    %240 = arith.addf %237, %239 : vector<1x128xf32>
    %cst_80 = arith.constant 0.949999988 : f32
    %241 = vector.broadcast %cst_80 : f32 to vector<1x128xf32>
    %242 = arith.mulf %241, %229 : vector<1x128xf32>
    %243 = arith.mulf %240, %9 : vector<1x128xf32>
    %244 = arith.addf %242, %243 : vector<1x128xf32>
    %cst_81 = arith.constant 1.000000e+00 : f32
    %245 = vector.broadcast %cst_81 : f32 to vector<1x128xf32>
    %246 = arith.cmpf ogt, %244, %245 : vector<1x128xf32>
    %cst_82 = arith.constant 1.000000e+00 : f32
    %cst_83 = arith.constant 0.000000e+00 : f32
    %247 = vector.broadcast %cst_82 : f32 to vector<1x128xf32>
    %248 = vector.broadcast %cst_83 : f32 to vector<1x128xf32>
    %249 = arith.select %246, %247, %248 : vector<1x128xi1>, vector<1x128xf32>
    %250 = arith.mulf %249, %230 : vector<1x128xf32>
    %251 = arith.addf %227, %250 : vector<1x128xf32>
    %cst_84 = arith.constant 0.000000e+00 : f32
    %252 = vector.broadcast %cst_84 : f32 to vector<1x128xf32>
    %253 = arith.select %246, %252, %244 : vector<1x128xi1>, vector<1x128xf32>
    %c1_i32_85 = arith.constant 1 : i32
    %254 = tpu.dynamic_rotate %230 by %c1_i32_85 dim 1 : vector<1x128xf32>, i32 -> vector<1x128xf32>
    %c10_i32 = arith.constant 10 : i32
    %255 = arith.addi %0, %c10_i32 : i32
    %256 = arith.index_cast %255 : i32 to index
    %257 = memref.load %arg1[%256] : memref<128xf32, #tpu.memory_space<smem>>
    %258 = vector.broadcast %257 : f32 to vector<1x128xf32>
    %259 = arith.addf %1, %258 : vector<1x128xf32>
    %cst_86 = arith.constant 0.949999988 : f32
    %260 = vector.broadcast %cst_86 : f32 to vector<1x128xf32>
    %261 = arith.mulf %260, %240 : vector<1x128xf32>
    %cst_87 = arith.constant 5.000000e-02 : f32
    %262 = vector.broadcast %cst_87 : f32 to vector<1x128xf32>
    %263 = arith.mulf %262, %259 : vector<1x128xf32>
    %264 = arith.addf %261, %263 : vector<1x128xf32>
    %cst_88 = arith.constant 0.949999988 : f32
    %265 = vector.broadcast %cst_88 : f32 to vector<1x128xf32>
    %266 = arith.mulf %265, %253 : vector<1x128xf32>
    %267 = arith.mulf %264, %9 : vector<1x128xf32>
    %268 = arith.addf %266, %267 : vector<1x128xf32>
    %cst_89 = arith.constant 1.000000e+00 : f32
    %269 = vector.broadcast %cst_89 : f32 to vector<1x128xf32>
    %270 = arith.cmpf ogt, %268, %269 : vector<1x128xf32>
    %cst_90 = arith.constant 1.000000e+00 : f32
    %cst_91 = arith.constant 0.000000e+00 : f32
    %271 = vector.broadcast %cst_90 : f32 to vector<1x128xf32>
    %272 = vector.broadcast %cst_91 : f32 to vector<1x128xf32>
    %273 = arith.select %270, %271, %272 : vector<1x128xi1>, vector<1x128xf32>
    %274 = arith.mulf %273, %254 : vector<1x128xf32>
    %275 = arith.addf %251, %274 : vector<1x128xf32>
    %cst_92 = arith.constant 0.000000e+00 : f32
    %276 = vector.broadcast %cst_92 : f32 to vector<1x128xf32>
    %277 = arith.select %270, %276, %268 : vector<1x128xi1>, vector<1x128xf32>
    %c1_i32_93 = arith.constant 1 : i32
    %278 = tpu.dynamic_rotate %254 by %c1_i32_93 dim 1 : vector<1x128xf32>, i32 -> vector<1x128xf32>
    %c11_i32 = arith.constant 11 : i32
    %279 = arith.addi %0, %c11_i32 : i32
    %280 = arith.index_cast %279 : i32 to index
    %281 = memref.load %arg1[%280] : memref<128xf32, #tpu.memory_space<smem>>
    %282 = vector.broadcast %281 : f32 to vector<1x128xf32>
    %283 = arith.addf %1, %282 : vector<1x128xf32>
    %cst_94 = arith.constant 0.949999988 : f32
    %284 = vector.broadcast %cst_94 : f32 to vector<1x128xf32>
    %285 = arith.mulf %284, %264 : vector<1x128xf32>
    %cst_95 = arith.constant 5.000000e-02 : f32
    %286 = vector.broadcast %cst_95 : f32 to vector<1x128xf32>
    %287 = arith.mulf %286, %283 : vector<1x128xf32>
    %288 = arith.addf %285, %287 : vector<1x128xf32>
    %cst_96 = arith.constant 0.949999988 : f32
    %289 = vector.broadcast %cst_96 : f32 to vector<1x128xf32>
    %290 = arith.mulf %289, %277 : vector<1x128xf32>
    %291 = arith.mulf %288, %9 : vector<1x128xf32>
    %292 = arith.addf %290, %291 : vector<1x128xf32>
    %cst_97 = arith.constant 1.000000e+00 : f32
    %293 = vector.broadcast %cst_97 : f32 to vector<1x128xf32>
    %294 = arith.cmpf ogt, %292, %293 : vector<1x128xf32>
    %cst_98 = arith.constant 1.000000e+00 : f32
    %cst_99 = arith.constant 0.000000e+00 : f32
    %295 = vector.broadcast %cst_98 : f32 to vector<1x128xf32>
    %296 = vector.broadcast %cst_99 : f32 to vector<1x128xf32>
    %297 = arith.select %294, %295, %296 : vector<1x128xi1>, vector<1x128xf32>
    %298 = arith.mulf %297, %278 : vector<1x128xf32>
    %299 = arith.addf %275, %298 : vector<1x128xf32>
    %cst_100 = arith.constant 0.000000e+00 : f32
    %300 = vector.broadcast %cst_100 : f32 to vector<1x128xf32>
    %301 = arith.select %294, %300, %292 : vector<1x128xi1>, vector<1x128xf32>
    %c1_i32_101 = arith.constant 1 : i32
    %302 = tpu.dynamic_rotate %278 by %c1_i32_101 dim 1 : vector<1x128xf32>, i32 -> vector<1x128xf32>
    %c12_i32 = arith.constant 12 : i32
    %303 = arith.addi %0, %c12_i32 : i32
    %304 = arith.index_cast %303 : i32 to index
    %305 = memref.load %arg1[%304] : memref<128xf32, #tpu.memory_space<smem>>
    %306 = vector.broadcast %305 : f32 to vector<1x128xf32>
    %307 = arith.addf %1, %306 : vector<1x128xf32>
    %cst_102 = arith.constant 0.949999988 : f32
    %308 = vector.broadcast %cst_102 : f32 to vector<1x128xf32>
    %309 = arith.mulf %308, %288 : vector<1x128xf32>
    %cst_103 = arith.constant 5.000000e-02 : f32
    %310 = vector.broadcast %cst_103 : f32 to vector<1x128xf32>
    %311 = arith.mulf %310, %307 : vector<1x128xf32>
    %312 = arith.addf %309, %311 : vector<1x128xf32>
    %cst_104 = arith.constant 0.949999988 : f32
    %313 = vector.broadcast %cst_104 : f32 to vector<1x128xf32>
    %314 = arith.mulf %313, %301 : vector<1x128xf32>
    %315 = arith.mulf %312, %9 : vector<1x128xf32>
    %316 = arith.addf %314, %315 : vector<1x128xf32>
    %cst_105 = arith.constant 1.000000e+00 : f32
    %317 = vector.broadcast %cst_105 : f32 to vector<1x128xf32>
    %318 = arith.cmpf ogt, %316, %317 : vector<1x128xf32>
    %cst_106 = arith.constant 1.000000e+00 : f32
    %cst_107 = arith.constant 0.000000e+00 : f32
    %319 = vector.broadcast %cst_106 : f32 to vector<1x128xf32>
    %320 = vector.broadcast %cst_107 : f32 to vector<1x128xf32>
    %321 = arith.select %318, %319, %320 : vector<1x128xi1>, vector<1x128xf32>
    %322 = arith.mulf %321, %302 : vector<1x128xf32>
    %323 = arith.addf %299, %322 : vector<1x128xf32>
    %cst_108 = arith.constant 0.000000e+00 : f32
    %324 = vector.broadcast %cst_108 : f32 to vector<1x128xf32>
    %325 = arith.select %318, %324, %316 : vector<1x128xi1>, vector<1x128xf32>
    %c1_i32_109 = arith.constant 1 : i32
    %326 = tpu.dynamic_rotate %302 by %c1_i32_109 dim 1 : vector<1x128xf32>, i32 -> vector<1x128xf32>
    %c13_i32 = arith.constant 13 : i32
    %327 = arith.addi %0, %c13_i32 : i32
    %328 = arith.index_cast %327 : i32 to index
    %329 = memref.load %arg1[%328] : memref<128xf32, #tpu.memory_space<smem>>
    %330 = vector.broadcast %329 : f32 to vector<1x128xf32>
    %331 = arith.addf %1, %330 : vector<1x128xf32>
    %cst_110 = arith.constant 0.949999988 : f32
    %332 = vector.broadcast %cst_110 : f32 to vector<1x128xf32>
    %333 = arith.mulf %332, %312 : vector<1x128xf32>
    %cst_111 = arith.constant 5.000000e-02 : f32
    %334 = vector.broadcast %cst_111 : f32 to vector<1x128xf32>
    %335 = arith.mulf %334, %331 : vector<1x128xf32>
    %336 = arith.addf %333, %335 : vector<1x128xf32>
    %cst_112 = arith.constant 0.949999988 : f32
    %337 = vector.broadcast %cst_112 : f32 to vector<1x128xf32>
    %338 = arith.mulf %337, %325 : vector<1x128xf32>
    %339 = arith.mulf %336, %9 : vector<1x128xf32>
    %340 = arith.addf %338, %339 : vector<1x128xf32>
    %cst_113 = arith.constant 1.000000e+00 : f32
    %341 = vector.broadcast %cst_113 : f32 to vector<1x128xf32>
    %342 = arith.cmpf ogt, %340, %341 : vector<1x128xf32>
    %cst_114 = arith.constant 1.000000e+00 : f32
    %cst_115 = arith.constant 0.000000e+00 : f32
    %343 = vector.broadcast %cst_114 : f32 to vector<1x128xf32>
    %344 = vector.broadcast %cst_115 : f32 to vector<1x128xf32>
    %345 = arith.select %342, %343, %344 : vector<1x128xi1>, vector<1x128xf32>
    %346 = arith.mulf %345, %326 : vector<1x128xf32>
    %347 = arith.addf %323, %346 : vector<1x128xf32>
    %cst_116 = arith.constant 0.000000e+00 : f32
    %348 = vector.broadcast %cst_116 : f32 to vector<1x128xf32>
    %349 = arith.select %342, %348, %340 : vector<1x128xi1>, vector<1x128xf32>
    %c1_i32_117 = arith.constant 1 : i32
    %350 = tpu.dynamic_rotate %326 by %c1_i32_117 dim 1 : vector<1x128xf32>, i32 -> vector<1x128xf32>
    %c14_i32 = arith.constant 14 : i32
    %351 = arith.addi %0, %c14_i32 : i32
    %352 = arith.index_cast %351 : i32 to index
    %353 = memref.load %arg1[%352] : memref<128xf32, #tpu.memory_space<smem>>
    %354 = vector.broadcast %353 : f32 to vector<1x128xf32>
    %355 = arith.addf %1, %354 : vector<1x128xf32>
    %cst_118 = arith.constant 0.949999988 : f32
    %356 = vector.broadcast %cst_118 : f32 to vector<1x128xf32>
    %357 = arith.mulf %356, %336 : vector<1x128xf32>
    %cst_119 = arith.constant 5.000000e-02 : f32
    %358 = vector.broadcast %cst_119 : f32 to vector<1x128xf32>
    %359 = arith.mulf %358, %355 : vector<1x128xf32>
    %360 = arith.addf %357, %359 : vector<1x128xf32>
    %cst_120 = arith.constant 0.949999988 : f32
    %361 = vector.broadcast %cst_120 : f32 to vector<1x128xf32>
    %362 = arith.mulf %361, %349 : vector<1x128xf32>
    %363 = arith.mulf %360, %9 : vector<1x128xf32>
    %364 = arith.addf %362, %363 : vector<1x128xf32>
    %cst_121 = arith.constant 1.000000e+00 : f32
    %365 = vector.broadcast %cst_121 : f32 to vector<1x128xf32>
    %366 = arith.cmpf ogt, %364, %365 : vector<1x128xf32>
    %cst_122 = arith.constant 1.000000e+00 : f32
    %cst_123 = arith.constant 0.000000e+00 : f32
    %367 = vector.broadcast %cst_122 : f32 to vector<1x128xf32>
    %368 = vector.broadcast %cst_123 : f32 to vector<1x128xf32>
    %369 = arith.select %366, %367, %368 : vector<1x128xi1>, vector<1x128xf32>
    %370 = arith.mulf %369, %350 : vector<1x128xf32>
    %371 = arith.addf %347, %370 : vector<1x128xf32>
    %cst_124 = arith.constant 0.000000e+00 : f32
    %372 = vector.broadcast %cst_124 : f32 to vector<1x128xf32>
    %373 = arith.select %366, %372, %364 : vector<1x128xi1>, vector<1x128xf32>
    %c1_i32_125 = arith.constant 1 : i32
    %374 = tpu.dynamic_rotate %350 by %c1_i32_125 dim 1 : vector<1x128xf32>, i32 -> vector<1x128xf32>
    %c15_i32 = arith.constant 15 : i32
    %375 = arith.addi %0, %c15_i32 : i32
    %376 = arith.index_cast %375 : i32 to index
    %377 = memref.load %arg1[%376] : memref<128xf32, #tpu.memory_space<smem>>
    %378 = vector.broadcast %377 : f32 to vector<1x128xf32>
    %379 = arith.addf %1, %378 : vector<1x128xf32>
    %cst_126 = arith.constant 0.949999988 : f32
    %380 = vector.broadcast %cst_126 : f32 to vector<1x128xf32>
    %381 = arith.mulf %380, %360 : vector<1x128xf32>
    %cst_127 = arith.constant 5.000000e-02 : f32
    %382 = vector.broadcast %cst_127 : f32 to vector<1x128xf32>
    %383 = arith.mulf %382, %379 : vector<1x128xf32>
    %384 = arith.addf %381, %383 : vector<1x128xf32>
    %cst_128 = arith.constant 0.949999988 : f32
    %385 = vector.broadcast %cst_128 : f32 to vector<1x128xf32>
    %386 = arith.mulf %385, %373 : vector<1x128xf32>
    %387 = arith.mulf %384, %9 : vector<1x128xf32>
    %388 = arith.addf %386, %387 : vector<1x128xf32>
    %cst_129 = arith.constant 1.000000e+00 : f32
    %389 = vector.broadcast %cst_129 : f32 to vector<1x128xf32>
    %390 = arith.cmpf ogt, %388, %389 : vector<1x128xf32>
    %cst_130 = arith.constant 1.000000e+00 : f32
    %cst_131 = arith.constant 0.000000e+00 : f32
    %391 = vector.broadcast %cst_130 : f32 to vector<1x128xf32>
    %392 = vector.broadcast %cst_131 : f32 to vector<1x128xf32>
    %393 = arith.select %390, %391, %392 : vector<1x128xi1>, vector<1x128xf32>
    %394 = arith.mulf %393, %374 : vector<1x128xf32>
    %395 = arith.addf %371, %394 : vector<1x128xf32>
    %cst_132 = arith.constant 0.000000e+00 : f32
    %396 = vector.broadcast %cst_132 : f32 to vector<1x128xf32>
    %397 = arith.select %390, %396, %388 : vector<1x128xi1>, vector<1x128xf32>
    %c1_i32_133 = arith.constant 1 : i32
    %398 = tpu.dynamic_rotate %374 by %c1_i32_133 dim 1 : vector<1x128xf32>, i32 -> vector<1x128xf32>
    %c16_i32 = arith.constant 16 : i32
    %399 = arith.addi %0, %c16_i32 : i32
    %400 = arith.index_cast %399 : i32 to index
    %401 = memref.load %arg1[%400] : memref<128xf32, #tpu.memory_space<smem>>
    %402 = vector.broadcast %401 : f32 to vector<1x128xf32>
    %403 = arith.addf %1, %402 : vector<1x128xf32>
    %cst_134 = arith.constant 0.949999988 : f32
    %404 = vector.broadcast %cst_134 : f32 to vector<1x128xf32>
    %405 = arith.mulf %404, %384 : vector<1x128xf32>
    %cst_135 = arith.constant 5.000000e-02 : f32
    %406 = vector.broadcast %cst_135 : f32 to vector<1x128xf32>
    %407 = arith.mulf %406, %403 : vector<1x128xf32>
    %408 = arith.addf %405, %407 : vector<1x128xf32>
    %cst_136 = arith.constant 0.949999988 : f32
    %409 = vector.broadcast %cst_136 : f32 to vector<1x128xf32>
    %410 = arith.mulf %409, %397 : vector<1x128xf32>
    %411 = arith.mulf %408, %9 : vector<1x128xf32>
    %412 = arith.addf %410, %411 : vector<1x128xf32>
    %cst_137 = arith.constant 1.000000e+00 : f32
    %413 = vector.broadcast %cst_137 : f32 to vector<1x128xf32>
    %414 = arith.cmpf ogt, %412, %413 : vector<1x128xf32>
    %cst_138 = arith.constant 1.000000e+00 : f32
    %cst_139 = arith.constant 0.000000e+00 : f32
    %415 = vector.broadcast %cst_138 : f32 to vector<1x128xf32>
    %416 = vector.broadcast %cst_139 : f32 to vector<1x128xf32>
    %417 = arith.select %414, %415, %416 : vector<1x128xi1>, vector<1x128xf32>
    %418 = arith.mulf %417, %398 : vector<1x128xf32>
    %419 = arith.addf %395, %418 : vector<1x128xf32>
    %cst_140 = arith.constant 0.000000e+00 : f32
    %420 = vector.broadcast %cst_140 : f32 to vector<1x128xf32>
    %421 = arith.select %414, %420, %412 : vector<1x128xi1>, vector<1x128xf32>
    %c1_i32_141 = arith.constant 1 : i32
    %422 = tpu.dynamic_rotate %398 by %c1_i32_141 dim 1 : vector<1x128xf32>, i32 -> vector<1x128xf32>
    %c17_i32 = arith.constant 17 : i32
    %423 = arith.addi %0, %c17_i32 : i32
    %424 = arith.index_cast %423 : i32 to index
    %425 = memref.load %arg1[%424] : memref<128xf32, #tpu.memory_space<smem>>
    %426 = vector.broadcast %425 : f32 to vector<1x128xf32>
    %427 = arith.addf %1, %426 : vector<1x128xf32>
    %cst_142 = arith.constant 0.949999988 : f32
    %428 = vector.broadcast %cst_142 : f32 to vector<1x128xf32>
    %429 = arith.mulf %428, %408 : vector<1x128xf32>
    %cst_143 = arith.constant 5.000000e-02 : f32
    %430 = vector.broadcast %cst_143 : f32 to vector<1x128xf32>
    %431 = arith.mulf %430, %427 : vector<1x128xf32>
    %432 = arith.addf %429, %431 : vector<1x128xf32>
    %cst_144 = arith.constant 0.949999988 : f32
    %433 = vector.broadcast %cst_144 : f32 to vector<1x128xf32>
    %434 = arith.mulf %433, %421 : vector<1x128xf32>
    %435 = arith.mulf %432, %9 : vector<1x128xf32>
    %436 = arith.addf %434, %435 : vector<1x128xf32>
    %cst_145 = arith.constant 1.000000e+00 : f32
    %437 = vector.broadcast %cst_145 : f32 to vector<1x128xf32>
    %438 = arith.cmpf ogt, %436, %437 : vector<1x128xf32>
    %cst_146 = arith.constant 1.000000e+00 : f32
    %cst_147 = arith.constant 0.000000e+00 : f32
    %439 = vector.broadcast %cst_146 : f32 to vector<1x128xf32>
    %440 = vector.broadcast %cst_147 : f32 to vector<1x128xf32>
    %441 = arith.select %438, %439, %440 : vector<1x128xi1>, vector<1x128xf32>
    %442 = arith.mulf %441, %422 : vector<1x128xf32>
    %443 = arith.addf %419, %442 : vector<1x128xf32>
    %cst_148 = arith.constant 0.000000e+00 : f32
    %444 = vector.broadcast %cst_148 : f32 to vector<1x128xf32>
    %445 = arith.select %438, %444, %436 : vector<1x128xi1>, vector<1x128xf32>
    %c1_i32_149 = arith.constant 1 : i32
    %446 = tpu.dynamic_rotate %422 by %c1_i32_149 dim 1 : vector<1x128xf32>, i32 -> vector<1x128xf32>
    %c18_i32 = arith.constant 18 : i32
    %447 = arith.addi %0, %c18_i32 : i32
    %448 = arith.index_cast %447 : i32 to index
    %449 = memref.load %arg1[%448] : memref<128xf32, #tpu.memory_space<smem>>
    %450 = vector.broadcast %449 : f32 to vector<1x128xf32>
    %451 = arith.addf %1, %450 : vector<1x128xf32>
    %cst_150 = arith.constant 0.949999988 : f32
    %452 = vector.broadcast %cst_150 : f32 to vector<1x128xf32>
    %453 = arith.mulf %452, %432 : vector<1x128xf32>
    %cst_151 = arith.constant 5.000000e-02 : f32
    %454 = vector.broadcast %cst_151 : f32 to vector<1x128xf32>
    %455 = arith.mulf %454, %451 : vector<1x128xf32>
    %456 = arith.addf %453, %455 : vector<1x128xf32>
    %cst_152 = arith.constant 0.949999988 : f32
    %457 = vector.broadcast %cst_152 : f32 to vector<1x128xf32>
    %458 = arith.mulf %457, %445 : vector<1x128xf32>
    %459 = arith.mulf %456, %9 : vector<1x128xf32>
    %460 = arith.addf %458, %459 : vector<1x128xf32>
    %cst_153 = arith.constant 1.000000e+00 : f32
    %461 = vector.broadcast %cst_153 : f32 to vector<1x128xf32>
    %462 = arith.cmpf ogt, %460, %461 : vector<1x128xf32>
    %cst_154 = arith.constant 1.000000e+00 : f32
    %cst_155 = arith.constant 0.000000e+00 : f32
    %463 = vector.broadcast %cst_154 : f32 to vector<1x128xf32>
    %464 = vector.broadcast %cst_155 : f32 to vector<1x128xf32>
    %465 = arith.select %462, %463, %464 : vector<1x128xi1>, vector<1x128xf32>
    %466 = arith.mulf %465, %446 : vector<1x128xf32>
    %467 = arith.addf %443, %466 : vector<1x128xf32>
    %cst_156 = arith.constant 0.000000e+00 : f32
    %468 = vector.broadcast %cst_156 : f32 to vector<1x128xf32>
    %469 = arith.select %462, %468, %460 : vector<1x128xi1>, vector<1x128xf32>
    %c1_i32_157 = arith.constant 1 : i32
    %470 = tpu.dynamic_rotate %446 by %c1_i32_157 dim 1 : vector<1x128xf32>, i32 -> vector<1x128xf32>
    %c19_i32 = arith.constant 19 : i32
    %471 = arith.addi %0, %c19_i32 : i32
    %472 = arith.index_cast %471 : i32 to index
    %473 = memref.load %arg1[%472] : memref<128xf32, #tpu.memory_space<smem>>
    %474 = vector.broadcast %473 : f32 to vector<1x128xf32>
    %475 = arith.addf %1, %474 : vector<1x128xf32>
    %cst_158 = arith.constant 0.949999988 : f32
    %476 = vector.broadcast %cst_158 : f32 to vector<1x128xf32>
    %477 = arith.mulf %476, %456 : vector<1x128xf32>
    %cst_159 = arith.constant 5.000000e-02 : f32
    %478 = vector.broadcast %cst_159 : f32 to vector<1x128xf32>
    %479 = arith.mulf %478, %475 : vector<1x128xf32>
    %480 = arith.addf %477, %479 : vector<1x128xf32>
    %cst_160 = arith.constant 0.949999988 : f32
    %481 = vector.broadcast %cst_160 : f32 to vector<1x128xf32>
    %482 = arith.mulf %481, %469 : vector<1x128xf32>
    %483 = arith.mulf %480, %9 : vector<1x128xf32>
    %484 = arith.addf %482, %483 : vector<1x128xf32>
    %cst_161 = arith.constant 1.000000e+00 : f32
    %485 = vector.broadcast %cst_161 : f32 to vector<1x128xf32>
    %486 = arith.cmpf ogt, %484, %485 : vector<1x128xf32>
    %cst_162 = arith.constant 1.000000e+00 : f32
    %cst_163 = arith.constant 0.000000e+00 : f32
    %487 = vector.broadcast %cst_162 : f32 to vector<1x128xf32>
    %488 = vector.broadcast %cst_163 : f32 to vector<1x128xf32>
    %489 = arith.select %486, %487, %488 : vector<1x128xi1>, vector<1x128xf32>
    %490 = arith.mulf %489, %470 : vector<1x128xf32>
    %491 = arith.addf %467, %490 : vector<1x128xf32>
    %cst_164 = arith.constant 0.000000e+00 : f32
    %492 = vector.broadcast %cst_164 : f32 to vector<1x128xf32>
    %493 = arith.select %486, %492, %484 : vector<1x128xi1>, vector<1x128xf32>
    %c1_i32_165 = arith.constant 1 : i32
    %494 = tpu.dynamic_rotate %470 by %c1_i32_165 dim 1 : vector<1x128xf32>, i32 -> vector<1x128xf32>
    %c20_i32 = arith.constant 20 : i32
    %495 = arith.addi %0, %c20_i32 : i32
    %496 = arith.index_cast %495 : i32 to index
    %497 = memref.load %arg1[%496] : memref<128xf32, #tpu.memory_space<smem>>
    %498 = vector.broadcast %497 : f32 to vector<1x128xf32>
    %499 = arith.addf %1, %498 : vector<1x128xf32>
    %cst_166 = arith.constant 0.949999988 : f32
    %500 = vector.broadcast %cst_166 : f32 to vector<1x128xf32>
    %501 = arith.mulf %500, %480 : vector<1x128xf32>
    %cst_167 = arith.constant 5.000000e-02 : f32
    %502 = vector.broadcast %cst_167 : f32 to vector<1x128xf32>
    %503 = arith.mulf %502, %499 : vector<1x128xf32>
    %504 = arith.addf %501, %503 : vector<1x128xf32>
    %cst_168 = arith.constant 0.949999988 : f32
    %505 = vector.broadcast %cst_168 : f32 to vector<1x128xf32>
    %506 = arith.mulf %505, %493 : vector<1x128xf32>
    %507 = arith.mulf %504, %9 : vector<1x128xf32>
    %508 = arith.addf %506, %507 : vector<1x128xf32>
    %cst_169 = arith.constant 1.000000e+00 : f32
    %509 = vector.broadcast %cst_169 : f32 to vector<1x128xf32>
    %510 = arith.cmpf ogt, %508, %509 : vector<1x128xf32>
    %cst_170 = arith.constant 1.000000e+00 : f32
    %cst_171 = arith.constant 0.000000e+00 : f32
    %511 = vector.broadcast %cst_170 : f32 to vector<1x128xf32>
    %512 = vector.broadcast %cst_171 : f32 to vector<1x128xf32>
    %513 = arith.select %510, %511, %512 : vector<1x128xi1>, vector<1x128xf32>
    %514 = arith.mulf %513, %494 : vector<1x128xf32>
    %515 = arith.addf %491, %514 : vector<1x128xf32>
    %cst_172 = arith.constant 0.000000e+00 : f32
    %516 = vector.broadcast %cst_172 : f32 to vector<1x128xf32>
    %517 = arith.select %510, %516, %508 : vector<1x128xi1>, vector<1x128xf32>
    %c1_i32_173 = arith.constant 1 : i32
    %518 = tpu.dynamic_rotate %494 by %c1_i32_173 dim 1 : vector<1x128xf32>, i32 -> vector<1x128xf32>
    %c21_i32 = arith.constant 21 : i32
    %519 = arith.addi %0, %c21_i32 : i32
    %520 = arith.index_cast %519 : i32 to index
    %521 = memref.load %arg1[%520] : memref<128xf32, #tpu.memory_space<smem>>
    %522 = vector.broadcast %521 : f32 to vector<1x128xf32>
    %523 = arith.addf %1, %522 : vector<1x128xf32>
    %cst_174 = arith.constant 0.949999988 : f32
    %524 = vector.broadcast %cst_174 : f32 to vector<1x128xf32>
    %525 = arith.mulf %524, %504 : vector<1x128xf32>
    %cst_175 = arith.constant 5.000000e-02 : f32
    %526 = vector.broadcast %cst_175 : f32 to vector<1x128xf32>
    %527 = arith.mulf %526, %523 : vector<1x128xf32>
    %528 = arith.addf %525, %527 : vector<1x128xf32>
    %cst_176 = arith.constant 0.949999988 : f32
    %529 = vector.broadcast %cst_176 : f32 to vector<1x128xf32>
    %530 = arith.mulf %529, %517 : vector<1x128xf32>
    %531 = arith.mulf %528, %9 : vector<1x128xf32>
    %532 = arith.addf %530, %531 : vector<1x128xf32>
    %cst_177 = arith.constant 1.000000e+00 : f32
    %533 = vector.broadcast %cst_177 : f32 to vector<1x128xf32>
    %534 = arith.cmpf ogt, %532, %533 : vector<1x128xf32>
    %cst_178 = arith.constant 1.000000e+00 : f32
    %cst_179 = arith.constant 0.000000e+00 : f32
    %535 = vector.broadcast %cst_178 : f32 to vector<1x128xf32>
    %536 = vector.broadcast %cst_179 : f32 to vector<1x128xf32>
    %537 = arith.select %534, %535, %536 : vector<1x128xi1>, vector<1x128xf32>
    %538 = arith.mulf %537, %518 : vector<1x128xf32>
    %539 = arith.addf %515, %538 : vector<1x128xf32>
    %cst_180 = arith.constant 0.000000e+00 : f32
    %540 = vector.broadcast %cst_180 : f32 to vector<1x128xf32>
    %541 = arith.select %534, %540, %532 : vector<1x128xi1>, vector<1x128xf32>
    %c1_i32_181 = arith.constant 1 : i32
    %542 = tpu.dynamic_rotate %518 by %c1_i32_181 dim 1 : vector<1x128xf32>, i32 -> vector<1x128xf32>
    %c22_i32 = arith.constant 22 : i32
    %543 = arith.addi %0, %c22_i32 : i32
    %544 = arith.index_cast %543 : i32 to index
    %545 = memref.load %arg1[%544] : memref<128xf32, #tpu.memory_space<smem>>
    %546 = vector.broadcast %545 : f32 to vector<1x128xf32>
    %547 = arith.addf %1, %546 : vector<1x128xf32>
    %cst_182 = arith.constant 0.949999988 : f32
    %548 = vector.broadcast %cst_182 : f32 to vector<1x128xf32>
    %549 = arith.mulf %548, %528 : vector<1x128xf32>
    %cst_183 = arith.constant 5.000000e-02 : f32
    %550 = vector.broadcast %cst_183 : f32 to vector<1x128xf32>
    %551 = arith.mulf %550, %547 : vector<1x128xf32>
    %552 = arith.addf %549, %551 : vector<1x128xf32>
    %cst_184 = arith.constant 0.949999988 : f32
    %553 = vector.broadcast %cst_184 : f32 to vector<1x128xf32>
    %554 = arith.mulf %553, %541 : vector<1x128xf32>
    %555 = arith.mulf %552, %9 : vector<1x128xf32>
    %556 = arith.addf %554, %555 : vector<1x128xf32>
    %cst_185 = arith.constant 1.000000e+00 : f32
    %557 = vector.broadcast %cst_185 : f32 to vector<1x128xf32>
    %558 = arith.cmpf ogt, %556, %557 : vector<1x128xf32>
    %cst_186 = arith.constant 1.000000e+00 : f32
    %cst_187 = arith.constant 0.000000e+00 : f32
    %559 = vector.broadcast %cst_186 : f32 to vector<1x128xf32>
    %560 = vector.broadcast %cst_187 : f32 to vector<1x128xf32>
    %561 = arith.select %558, %559, %560 : vector<1x128xi1>, vector<1x128xf32>
    %562 = arith.mulf %561, %542 : vector<1x128xf32>
    %563 = arith.addf %539, %562 : vector<1x128xf32>
    %cst_188 = arith.constant 0.000000e+00 : f32
    %564 = vector.broadcast %cst_188 : f32 to vector<1x128xf32>
    %565 = arith.select %558, %564, %556 : vector<1x128xi1>, vector<1x128xf32>
    %c1_i32_189 = arith.constant 1 : i32
    %566 = tpu.dynamic_rotate %542 by %c1_i32_189 dim 1 : vector<1x128xf32>, i32 -> vector<1x128xf32>
    %c23_i32 = arith.constant 23 : i32
    %567 = arith.addi %0, %c23_i32 : i32
    %568 = arith.index_cast %567 : i32 to index
    %569 = memref.load %arg1[%568] : memref<128xf32, #tpu.memory_space<smem>>
    %570 = vector.broadcast %569 : f32 to vector<1x128xf32>
    %571 = arith.addf %1, %570 : vector<1x128xf32>
    %cst_190 = arith.constant 0.949999988 : f32
    %572 = vector.broadcast %cst_190 : f32 to vector<1x128xf32>
    %573 = arith.mulf %572, %552 : vector<1x128xf32>
    %cst_191 = arith.constant 5.000000e-02 : f32
    %574 = vector.broadcast %cst_191 : f32 to vector<1x128xf32>
    %575 = arith.mulf %574, %571 : vector<1x128xf32>
    %576 = arith.addf %573, %575 : vector<1x128xf32>
    %cst_192 = arith.constant 0.949999988 : f32
    %577 = vector.broadcast %cst_192 : f32 to vector<1x128xf32>
    %578 = arith.mulf %577, %565 : vector<1x128xf32>
    %579 = arith.mulf %576, %9 : vector<1x128xf32>
    %580 = arith.addf %578, %579 : vector<1x128xf32>
    %cst_193 = arith.constant 1.000000e+00 : f32
    %581 = vector.broadcast %cst_193 : f32 to vector<1x128xf32>
    %582 = arith.cmpf ogt, %580, %581 : vector<1x128xf32>
    %cst_194 = arith.constant 1.000000e+00 : f32
    %cst_195 = arith.constant 0.000000e+00 : f32
    %583 = vector.broadcast %cst_194 : f32 to vector<1x128xf32>
    %584 = vector.broadcast %cst_195 : f32 to vector<1x128xf32>
    %585 = arith.select %582, %583, %584 : vector<1x128xi1>, vector<1x128xf32>
    %586 = arith.mulf %585, %566 : vector<1x128xf32>
    %587 = arith.addf %563, %586 : vector<1x128xf32>
    %cst_196 = arith.constant 0.000000e+00 : f32
    %588 = vector.broadcast %cst_196 : f32 to vector<1x128xf32>
    %589 = arith.select %582, %588, %580 : vector<1x128xi1>, vector<1x128xf32>
    %c1_i32_197 = arith.constant 1 : i32
    %590 = tpu.dynamic_rotate %566 by %c1_i32_197 dim 1 : vector<1x128xf32>, i32 -> vector<1x128xf32>
    %c24_i32 = arith.constant 24 : i32
    %591 = arith.addi %0, %c24_i32 : i32
    %592 = arith.index_cast %591 : i32 to index
    %593 = memref.load %arg1[%592] : memref<128xf32, #tpu.memory_space<smem>>
    %594 = vector.broadcast %593 : f32 to vector<1x128xf32>
    %595 = arith.addf %1, %594 : vector<1x128xf32>
    %cst_198 = arith.constant 0.949999988 : f32
    %596 = vector.broadcast %cst_198 : f32 to vector<1x128xf32>
    %597 = arith.mulf %596, %576 : vector<1x128xf32>
    %cst_199 = arith.constant 5.000000e-02 : f32
    %598 = vector.broadcast %cst_199 : f32 to vector<1x128xf32>
    %599 = arith.mulf %598, %595 : vector<1x128xf32>
    %600 = arith.addf %597, %599 : vector<1x128xf32>
    %cst_200 = arith.constant 0.949999988 : f32
    %601 = vector.broadcast %cst_200 : f32 to vector<1x128xf32>
    %602 = arith.mulf %601, %589 : vector<1x128xf32>
    %603 = arith.mulf %600, %9 : vector<1x128xf32>
    %604 = arith.addf %602, %603 : vector<1x128xf32>
    %cst_201 = arith.constant 1.000000e+00 : f32
    %605 = vector.broadcast %cst_201 : f32 to vector<1x128xf32>
    %606 = arith.cmpf ogt, %604, %605 : vector<1x128xf32>
    %cst_202 = arith.constant 1.000000e+00 : f32
    %cst_203 = arith.constant 0.000000e+00 : f32
    %607 = vector.broadcast %cst_202 : f32 to vector<1x128xf32>
    %608 = vector.broadcast %cst_203 : f32 to vector<1x128xf32>
    %609 = arith.select %606, %607, %608 : vector<1x128xi1>, vector<1x128xf32>
    %610 = arith.mulf %609, %590 : vector<1x128xf32>
    %611 = arith.addf %587, %610 : vector<1x128xf32>
    %cst_204 = arith.constant 0.000000e+00 : f32
    %612 = vector.broadcast %cst_204 : f32 to vector<1x128xf32>
    %613 = arith.select %606, %612, %604 : vector<1x128xi1>, vector<1x128xf32>
    %c1_i32_205 = arith.constant 1 : i32
    %614 = tpu.dynamic_rotate %590 by %c1_i32_205 dim 1 : vector<1x128xf32>, i32 -> vector<1x128xf32>
    %c25_i32 = arith.constant 25 : i32
    %615 = arith.addi %0, %c25_i32 : i32
    %616 = arith.index_cast %615 : i32 to index
    %617 = memref.load %arg1[%616] : memref<128xf32, #tpu.memory_space<smem>>
    %618 = vector.broadcast %617 : f32 to vector<1x128xf32>
    %619 = arith.addf %1, %618 : vector<1x128xf32>
    %cst_206 = arith.constant 0.949999988 : f32
    %620 = vector.broadcast %cst_206 : f32 to vector<1x128xf32>
    %621 = arith.mulf %620, %600 : vector<1x128xf32>
    %cst_207 = arith.constant 5.000000e-02 : f32
    %622 = vector.broadcast %cst_207 : f32 to vector<1x128xf32>
    %623 = arith.mulf %622, %619 : vector<1x128xf32>
    %624 = arith.addf %621, %623 : vector<1x128xf32>
    %cst_208 = arith.constant 0.949999988 : f32
    %625 = vector.broadcast %cst_208 : f32 to vector<1x128xf32>
    %626 = arith.mulf %625, %613 : vector<1x128xf32>
    %627 = arith.mulf %624, %9 : vector<1x128xf32>
    %628 = arith.addf %626, %627 : vector<1x128xf32>
    %cst_209 = arith.constant 1.000000e+00 : f32
    %629 = vector.broadcast %cst_209 : f32 to vector<1x128xf32>
    %630 = arith.cmpf ogt, %628, %629 : vector<1x128xf32>
    %cst_210 = arith.constant 1.000000e+00 : f32
    %cst_211 = arith.constant 0.000000e+00 : f32
    %631 = vector.broadcast %cst_210 : f32 to vector<1x128xf32>
    %632 = vector.broadcast %cst_211 : f32 to vector<1x128xf32>
    %633 = arith.select %630, %631, %632 : vector<1x128xi1>, vector<1x128xf32>
    %634 = arith.mulf %633, %614 : vector<1x128xf32>
    %635 = arith.addf %611, %634 : vector<1x128xf32>
    %cst_212 = arith.constant 0.000000e+00 : f32
    %636 = vector.broadcast %cst_212 : f32 to vector<1x128xf32>
    %637 = arith.select %630, %636, %628 : vector<1x128xi1>, vector<1x128xf32>
    %c1_i32_213 = arith.constant 1 : i32
    %638 = tpu.dynamic_rotate %614 by %c1_i32_213 dim 1 : vector<1x128xf32>, i32 -> vector<1x128xf32>
    %c26_i32 = arith.constant 26 : i32
    %639 = arith.addi %0, %c26_i32 : i32
    %640 = arith.index_cast %639 : i32 to index
    %641 = memref.load %arg1[%640] : memref<128xf32, #tpu.memory_space<smem>>
    %642 = vector.broadcast %641 : f32 to vector<1x128xf32>
    %643 = arith.addf %1, %642 : vector<1x128xf32>
    %cst_214 = arith.constant 0.949999988 : f32
    %644 = vector.broadcast %cst_214 : f32 to vector<1x128xf32>
    %645 = arith.mulf %644, %624 : vector<1x128xf32>
    %cst_215 = arith.constant 5.000000e-02 : f32
    %646 = vector.broadcast %cst_215 : f32 to vector<1x128xf32>
    %647 = arith.mulf %646, %643 : vector<1x128xf32>
    %648 = arith.addf %645, %647 : vector<1x128xf32>
    %cst_216 = arith.constant 0.949999988 : f32
    %649 = vector.broadcast %cst_216 : f32 to vector<1x128xf32>
    %650 = arith.mulf %649, %637 : vector<1x128xf32>
    %651 = arith.mulf %648, %9 : vector<1x128xf32>
    %652 = arith.addf %650, %651 : vector<1x128xf32>
    %cst_217 = arith.constant 1.000000e+00 : f32
    %653 = vector.broadcast %cst_217 : f32 to vector<1x128xf32>
    %654 = arith.cmpf ogt, %652, %653 : vector<1x128xf32>
    %cst_218 = arith.constant 1.000000e+00 : f32
    %cst_219 = arith.constant 0.000000e+00 : f32
    %655 = vector.broadcast %cst_218 : f32 to vector<1x128xf32>
    %656 = vector.broadcast %cst_219 : f32 to vector<1x128xf32>
    %657 = arith.select %654, %655, %656 : vector<1x128xi1>, vector<1x128xf32>
    %658 = arith.mulf %657, %638 : vector<1x128xf32>
    %659 = arith.addf %635, %658 : vector<1x128xf32>
    %cst_220 = arith.constant 0.000000e+00 : f32
    %660 = vector.broadcast %cst_220 : f32 to vector<1x128xf32>
    %661 = arith.select %654, %660, %652 : vector<1x128xi1>, vector<1x128xf32>
    %c1_i32_221 = arith.constant 1 : i32
    %662 = tpu.dynamic_rotate %638 by %c1_i32_221 dim 1 : vector<1x128xf32>, i32 -> vector<1x128xf32>
    %c27_i32 = arith.constant 27 : i32
    %663 = arith.addi %0, %c27_i32 : i32
    %664 = arith.index_cast %663 : i32 to index
    %665 = memref.load %arg1[%664] : memref<128xf32, #tpu.memory_space<smem>>
    %666 = vector.broadcast %665 : f32 to vector<1x128xf32>
    %667 = arith.addf %1, %666 : vector<1x128xf32>
    %cst_222 = arith.constant 0.949999988 : f32
    %668 = vector.broadcast %cst_222 : f32 to vector<1x128xf32>
    %669 = arith.mulf %668, %648 : vector<1x128xf32>
    %cst_223 = arith.constant 5.000000e-02 : f32
    %670 = vector.broadcast %cst_223 : f32 to vector<1x128xf32>
    %671 = arith.mulf %670, %667 : vector<1x128xf32>
    %672 = arith.addf %669, %671 : vector<1x128xf32>
    %cst_224 = arith.constant 0.949999988 : f32
    %673 = vector.broadcast %cst_224 : f32 to vector<1x128xf32>
    %674 = arith.mulf %673, %661 : vector<1x128xf32>
    %675 = arith.mulf %672, %9 : vector<1x128xf32>
    %676 = arith.addf %674, %675 : vector<1x128xf32>
    %cst_225 = arith.constant 1.000000e+00 : f32
    %677 = vector.broadcast %cst_225 : f32 to vector<1x128xf32>
    %678 = arith.cmpf ogt, %676, %677 : vector<1x128xf32>
    %cst_226 = arith.constant 1.000000e+00 : f32
    %cst_227 = arith.constant 0.000000e+00 : f32
    %679 = vector.broadcast %cst_226 : f32 to vector<1x128xf32>
    %680 = vector.broadcast %cst_227 : f32 to vector<1x128xf32>
    %681 = arith.select %678, %679, %680 : vector<1x128xi1>, vector<1x128xf32>
    %682 = arith.mulf %681, %662 : vector<1x128xf32>
    %683 = arith.addf %659, %682 : vector<1x128xf32>
    %cst_228 = arith.constant 0.000000e+00 : f32
    %684 = vector.broadcast %cst_228 : f32 to vector<1x128xf32>
    %685 = arith.select %678, %684, %676 : vector<1x128xi1>, vector<1x128xf32>
    %c1_i32_229 = arith.constant 1 : i32
    %686 = tpu.dynamic_rotate %662 by %c1_i32_229 dim 1 : vector<1x128xf32>, i32 -> vector<1x128xf32>
    %c28_i32 = arith.constant 28 : i32
    %687 = arith.addi %0, %c28_i32 : i32
    %688 = arith.index_cast %687 : i32 to index
    %689 = memref.load %arg1[%688] : memref<128xf32, #tpu.memory_space<smem>>
    %690 = vector.broadcast %689 : f32 to vector<1x128xf32>
    %691 = arith.addf %1, %690 : vector<1x128xf32>
    %cst_230 = arith.constant 0.949999988 : f32
    %692 = vector.broadcast %cst_230 : f32 to vector<1x128xf32>
    %693 = arith.mulf %692, %672 : vector<1x128xf32>
    %cst_231 = arith.constant 5.000000e-02 : f32
    %694 = vector.broadcast %cst_231 : f32 to vector<1x128xf32>
    %695 = arith.mulf %694, %691 : vector<1x128xf32>
    %696 = arith.addf %693, %695 : vector<1x128xf32>
    %cst_232 = arith.constant 0.949999988 : f32
    %697 = vector.broadcast %cst_232 : f32 to vector<1x128xf32>
    %698 = arith.mulf %697, %685 : vector<1x128xf32>
    %699 = arith.mulf %696, %9 : vector<1x128xf32>
    %700 = arith.addf %698, %699 : vector<1x128xf32>
    %cst_233 = arith.constant 1.000000e+00 : f32
    %701 = vector.broadcast %cst_233 : f32 to vector<1x128xf32>
    %702 = arith.cmpf ogt, %700, %701 : vector<1x128xf32>
    %cst_234 = arith.constant 1.000000e+00 : f32
    %cst_235 = arith.constant 0.000000e+00 : f32
    %703 = vector.broadcast %cst_234 : f32 to vector<1x128xf32>
    %704 = vector.broadcast %cst_235 : f32 to vector<1x128xf32>
    %705 = arith.select %702, %703, %704 : vector<1x128xi1>, vector<1x128xf32>
    %706 = arith.mulf %705, %686 : vector<1x128xf32>
    %707 = arith.addf %683, %706 : vector<1x128xf32>
    %cst_236 = arith.constant 0.000000e+00 : f32
    %708 = vector.broadcast %cst_236 : f32 to vector<1x128xf32>
    %709 = arith.select %702, %708, %700 : vector<1x128xi1>, vector<1x128xf32>
    %c1_i32_237 = arith.constant 1 : i32
    %710 = tpu.dynamic_rotate %686 by %c1_i32_237 dim 1 : vector<1x128xf32>, i32 -> vector<1x128xf32>
    %c29_i32 = arith.constant 29 : i32
    %711 = arith.addi %0, %c29_i32 : i32
    %712 = arith.index_cast %711 : i32 to index
    %713 = memref.load %arg1[%712] : memref<128xf32, #tpu.memory_space<smem>>
    %714 = vector.broadcast %713 : f32 to vector<1x128xf32>
    %715 = arith.addf %1, %714 : vector<1x128xf32>
    %cst_238 = arith.constant 0.949999988 : f32
    %716 = vector.broadcast %cst_238 : f32 to vector<1x128xf32>
    %717 = arith.mulf %716, %696 : vector<1x128xf32>
    %cst_239 = arith.constant 5.000000e-02 : f32
    %718 = vector.broadcast %cst_239 : f32 to vector<1x128xf32>
    %719 = arith.mulf %718, %715 : vector<1x128xf32>
    %720 = arith.addf %717, %719 : vector<1x128xf32>
    %cst_240 = arith.constant 0.949999988 : f32
    %721 = vector.broadcast %cst_240 : f32 to vector<1x128xf32>
    %722 = arith.mulf %721, %709 : vector<1x128xf32>
    %723 = arith.mulf %720, %9 : vector<1x128xf32>
    %724 = arith.addf %722, %723 : vector<1x128xf32>
    %cst_241 = arith.constant 1.000000e+00 : f32
    %725 = vector.broadcast %cst_241 : f32 to vector<1x128xf32>
    %726 = arith.cmpf ogt, %724, %725 : vector<1x128xf32>
    %cst_242 = arith.constant 1.000000e+00 : f32
    %cst_243 = arith.constant 0.000000e+00 : f32
    %727 = vector.broadcast %cst_242 : f32 to vector<1x128xf32>
    %728 = vector.broadcast %cst_243 : f32 to vector<1x128xf32>
    %729 = arith.select %726, %727, %728 : vector<1x128xi1>, vector<1x128xf32>
    %730 = arith.mulf %729, %710 : vector<1x128xf32>
    %731 = arith.addf %707, %730 : vector<1x128xf32>
    %cst_244 = arith.constant 0.000000e+00 : f32
    %732 = vector.broadcast %cst_244 : f32 to vector<1x128xf32>
    %733 = arith.select %726, %732, %724 : vector<1x128xi1>, vector<1x128xf32>
    %c1_i32_245 = arith.constant 1 : i32
    %734 = tpu.dynamic_rotate %710 by %c1_i32_245 dim 1 : vector<1x128xf32>, i32 -> vector<1x128xf32>
    %c30_i32 = arith.constant 30 : i32
    %735 = arith.addi %0, %c30_i32 : i32
    %736 = arith.index_cast %735 : i32 to index
    %737 = memref.load %arg1[%736] : memref<128xf32, #tpu.memory_space<smem>>
    %738 = vector.broadcast %737 : f32 to vector<1x128xf32>
    %739 = arith.addf %1, %738 : vector<1x128xf32>
    %cst_246 = arith.constant 0.949999988 : f32
    %740 = vector.broadcast %cst_246 : f32 to vector<1x128xf32>
    %741 = arith.mulf %740, %720 : vector<1x128xf32>
    %cst_247 = arith.constant 5.000000e-02 : f32
    %742 = vector.broadcast %cst_247 : f32 to vector<1x128xf32>
    %743 = arith.mulf %742, %739 : vector<1x128xf32>
    %744 = arith.addf %741, %743 : vector<1x128xf32>
    %cst_248 = arith.constant 0.949999988 : f32
    %745 = vector.broadcast %cst_248 : f32 to vector<1x128xf32>
    %746 = arith.mulf %745, %733 : vector<1x128xf32>
    %747 = arith.mulf %744, %9 : vector<1x128xf32>
    %748 = arith.addf %746, %747 : vector<1x128xf32>
    %cst_249 = arith.constant 1.000000e+00 : f32
    %749 = vector.broadcast %cst_249 : f32 to vector<1x128xf32>
    %750 = arith.cmpf ogt, %748, %749 : vector<1x128xf32>
    %cst_250 = arith.constant 1.000000e+00 : f32
    %cst_251 = arith.constant 0.000000e+00 : f32
    %751 = vector.broadcast %cst_250 : f32 to vector<1x128xf32>
    %752 = vector.broadcast %cst_251 : f32 to vector<1x128xf32>
    %753 = arith.select %750, %751, %752 : vector<1x128xi1>, vector<1x128xf32>
    %754 = arith.mulf %753, %734 : vector<1x128xf32>
    %755 = arith.addf %731, %754 : vector<1x128xf32>
    %cst_252 = arith.constant 0.000000e+00 : f32
    %756 = vector.broadcast %cst_252 : f32 to vector<1x128xf32>
    %757 = arith.select %750, %756, %748 : vector<1x128xi1>, vector<1x128xf32>
    %c1_i32_253 = arith.constant 1 : i32
    %758 = tpu.dynamic_rotate %734 by %c1_i32_253 dim 1 : vector<1x128xf32>, i32 -> vector<1x128xf32>
    %c31_i32 = arith.constant 31 : i32
    %759 = arith.addi %0, %c31_i32 : i32
    %760 = arith.index_cast %759 : i32 to index
    %761 = memref.load %arg1[%760] : memref<128xf32, #tpu.memory_space<smem>>
    %762 = vector.broadcast %761 : f32 to vector<1x128xf32>
    %763 = arith.addf %1, %762 : vector<1x128xf32>
    %cst_254 = arith.constant 0.949999988 : f32
    %764 = vector.broadcast %cst_254 : f32 to vector<1x128xf32>
    %765 = arith.mulf %764, %744 : vector<1x128xf32>
    %cst_255 = arith.constant 5.000000e-02 : f32
    %766 = vector.broadcast %cst_255 : f32 to vector<1x128xf32>
    %767 = arith.mulf %766, %763 : vector<1x128xf32>
    %768 = arith.addf %765, %767 : vector<1x128xf32>
    %cst_256 = arith.constant 0.949999988 : f32
    %769 = vector.broadcast %cst_256 : f32 to vector<1x128xf32>
    %770 = arith.mulf %769, %757 : vector<1x128xf32>
    %771 = arith.mulf %768, %9 : vector<1x128xf32>
    %772 = arith.addf %770, %771 : vector<1x128xf32>
    %cst_257 = arith.constant 1.000000e+00 : f32
    %773 = vector.broadcast %cst_257 : f32 to vector<1x128xf32>
    %774 = arith.cmpf ogt, %772, %773 : vector<1x128xf32>
    %cst_258 = arith.constant 1.000000e+00 : f32
    %cst_259 = arith.constant 0.000000e+00 : f32
    %775 = vector.broadcast %cst_258 : f32 to vector<1x128xf32>
    %776 = vector.broadcast %cst_259 : f32 to vector<1x128xf32>
    %777 = arith.select %774, %775, %776 : vector<1x128xi1>, vector<1x128xf32>
    %778 = arith.mulf %777, %758 : vector<1x128xf32>
    %779 = arith.addf %755, %778 : vector<1x128xf32>
    %cst_260 = arith.constant 0.000000e+00 : f32
    %780 = vector.broadcast %cst_260 : f32 to vector<1x128xf32>
    %781 = arith.select %774, %780, %772 : vector<1x128xi1>, vector<1x128xf32>
    %c1_i32_261 = arith.constant 1 : i32
    %782 = tpu.dynamic_rotate %758 by %c1_i32_261 dim 1 : vector<1x128xf32>, i32 -> vector<1x128xf32>
    %c32_i32 = arith.constant 32 : i32
    %783 = arith.addi %0, %c32_i32 : i32
    %784 = arith.index_cast %783 : i32 to index
    %785 = memref.load %arg1[%784] : memref<128xf32, #tpu.memory_space<smem>>
    %786 = vector.broadcast %785 : f32 to vector<1x128xf32>
    %787 = arith.addf %1, %786 : vector<1x128xf32>
    %cst_262 = arith.constant 0.949999988 : f32
    %788 = vector.broadcast %cst_262 : f32 to vector<1x128xf32>
    %789 = arith.mulf %788, %768 : vector<1x128xf32>
    %cst_263 = arith.constant 5.000000e-02 : f32
    %790 = vector.broadcast %cst_263 : f32 to vector<1x128xf32>
    %791 = arith.mulf %790, %787 : vector<1x128xf32>
    %792 = arith.addf %789, %791 : vector<1x128xf32>
    %cst_264 = arith.constant 0.949999988 : f32
    %793 = vector.broadcast %cst_264 : f32 to vector<1x128xf32>
    %794 = arith.mulf %793, %781 : vector<1x128xf32>
    %795 = arith.mulf %792, %9 : vector<1x128xf32>
    %796 = arith.addf %794, %795 : vector<1x128xf32>
    %cst_265 = arith.constant 1.000000e+00 : f32
    %797 = vector.broadcast %cst_265 : f32 to vector<1x128xf32>
    %798 = arith.cmpf ogt, %796, %797 : vector<1x128xf32>
    %cst_266 = arith.constant 1.000000e+00 : f32
    %cst_267 = arith.constant 0.000000e+00 : f32
    %799 = vector.broadcast %cst_266 : f32 to vector<1x128xf32>
    %800 = vector.broadcast %cst_267 : f32 to vector<1x128xf32>
    %801 = arith.select %798, %799, %800 : vector<1x128xi1>, vector<1x128xf32>
    %802 = arith.mulf %801, %782 : vector<1x128xf32>
    %803 = arith.addf %779, %802 : vector<1x128xf32>
    %cst_268 = arith.constant 0.000000e+00 : f32
    %804 = vector.broadcast %cst_268 : f32 to vector<1x128xf32>
    %805 = arith.select %798, %804, %796 : vector<1x128xi1>, vector<1x128xf32>
    %c1_i32_269 = arith.constant 1 : i32
    %806 = tpu.dynamic_rotate %782 by %c1_i32_269 dim 1 : vector<1x128xf32>, i32 -> vector<1x128xf32>
    %c33_i32 = arith.constant 33 : i32
    %807 = arith.addi %0, %c33_i32 : i32
    %808 = arith.index_cast %807 : i32 to index
    %809 = memref.load %arg1[%808] : memref<128xf32, #tpu.memory_space<smem>>
    %810 = vector.broadcast %809 : f32 to vector<1x128xf32>
    %811 = arith.addf %1, %810 : vector<1x128xf32>
    %cst_270 = arith.constant 0.949999988 : f32
    %812 = vector.broadcast %cst_270 : f32 to vector<1x128xf32>
    %813 = arith.mulf %812, %792 : vector<1x128xf32>
    %cst_271 = arith.constant 5.000000e-02 : f32
    %814 = vector.broadcast %cst_271 : f32 to vector<1x128xf32>
    %815 = arith.mulf %814, %811 : vector<1x128xf32>
    %816 = arith.addf %813, %815 : vector<1x128xf32>
    %cst_272 = arith.constant 0.949999988 : f32
    %817 = vector.broadcast %cst_272 : f32 to vector<1x128xf32>
    %818 = arith.mulf %817, %805 : vector<1x128xf32>
    %819 = arith.mulf %816, %9 : vector<1x128xf32>
    %820 = arith.addf %818, %819 : vector<1x128xf32>
    %cst_273 = arith.constant 1.000000e+00 : f32
    %821 = vector.broadcast %cst_273 : f32 to vector<1x128xf32>
    %822 = arith.cmpf ogt, %820, %821 : vector<1x128xf32>
    %cst_274 = arith.constant 1.000000e+00 : f32
    %cst_275 = arith.constant 0.000000e+00 : f32
    %823 = vector.broadcast %cst_274 : f32 to vector<1x128xf32>
    %824 = vector.broadcast %cst_275 : f32 to vector<1x128xf32>
    %825 = arith.select %822, %823, %824 : vector<1x128xi1>, vector<1x128xf32>
    %826 = arith.mulf %825, %806 : vector<1x128xf32>
    %827 = arith.addf %803, %826 : vector<1x128xf32>
    %cst_276 = arith.constant 0.000000e+00 : f32
    %828 = vector.broadcast %cst_276 : f32 to vector<1x128xf32>
    %829 = arith.select %822, %828, %820 : vector<1x128xi1>, vector<1x128xf32>
    %c1_i32_277 = arith.constant 1 : i32
    %830 = tpu.dynamic_rotate %806 by %c1_i32_277 dim 1 : vector<1x128xf32>, i32 -> vector<1x128xf32>
    %c34_i32 = arith.constant 34 : i32
    %831 = arith.addi %0, %c34_i32 : i32
    %832 = arith.index_cast %831 : i32 to index
    %833 = memref.load %arg1[%832] : memref<128xf32, #tpu.memory_space<smem>>
    %834 = vector.broadcast %833 : f32 to vector<1x128xf32>
    %835 = arith.addf %1, %834 : vector<1x128xf32>
    %cst_278 = arith.constant 0.949999988 : f32
    %836 = vector.broadcast %cst_278 : f32 to vector<1x128xf32>
    %837 = arith.mulf %836, %816 : vector<1x128xf32>
    %cst_279 = arith.constant 5.000000e-02 : f32
    %838 = vector.broadcast %cst_279 : f32 to vector<1x128xf32>
    %839 = arith.mulf %838, %835 : vector<1x128xf32>
    %840 = arith.addf %837, %839 : vector<1x128xf32>
    %cst_280 = arith.constant 0.949999988 : f32
    %841 = vector.broadcast %cst_280 : f32 to vector<1x128xf32>
    %842 = arith.mulf %841, %829 : vector<1x128xf32>
    %843 = arith.mulf %840, %9 : vector<1x128xf32>
    %844 = arith.addf %842, %843 : vector<1x128xf32>
    %cst_281 = arith.constant 1.000000e+00 : f32
    %845 = vector.broadcast %cst_281 : f32 to vector<1x128xf32>
    %846 = arith.cmpf ogt, %844, %845 : vector<1x128xf32>
    %cst_282 = arith.constant 1.000000e+00 : f32
    %cst_283 = arith.constant 0.000000e+00 : f32
    %847 = vector.broadcast %cst_282 : f32 to vector<1x128xf32>
    %848 = vector.broadcast %cst_283 : f32 to vector<1x128xf32>
    %849 = arith.select %846, %847, %848 : vector<1x128xi1>, vector<1x128xf32>
    %850 = arith.mulf %849, %830 : vector<1x128xf32>
    %851 = arith.addf %827, %850 : vector<1x128xf32>
    %cst_284 = arith.constant 0.000000e+00 : f32
    %852 = vector.broadcast %cst_284 : f32 to vector<1x128xf32>
    %853 = arith.select %846, %852, %844 : vector<1x128xi1>, vector<1x128xf32>
    %c1_i32_285 = arith.constant 1 : i32
    %854 = tpu.dynamic_rotate %830 by %c1_i32_285 dim 1 : vector<1x128xf32>, i32 -> vector<1x128xf32>
    %c35_i32 = arith.constant 35 : i32
    %855 = arith.addi %0, %c35_i32 : i32
    %856 = arith.index_cast %855 : i32 to index
    %857 = memref.load %arg1[%856] : memref<128xf32, #tpu.memory_space<smem>>
    %858 = vector.broadcast %857 : f32 to vector<1x128xf32>
    %859 = arith.addf %1, %858 : vector<1x128xf32>
    %cst_286 = arith.constant 0.949999988 : f32
    %860 = vector.broadcast %cst_286 : f32 to vector<1x128xf32>
    %861 = arith.mulf %860, %840 : vector<1x128xf32>
    %cst_287 = arith.constant 5.000000e-02 : f32
    %862 = vector.broadcast %cst_287 : f32 to vector<1x128xf32>
    %863 = arith.mulf %862, %859 : vector<1x128xf32>
    %864 = arith.addf %861, %863 : vector<1x128xf32>
    %cst_288 = arith.constant 0.949999988 : f32
    %865 = vector.broadcast %cst_288 : f32 to vector<1x128xf32>
    %866 = arith.mulf %865, %853 : vector<1x128xf32>
    %867 = arith.mulf %864, %9 : vector<1x128xf32>
    %868 = arith.addf %866, %867 : vector<1x128xf32>
    %cst_289 = arith.constant 1.000000e+00 : f32
    %869 = vector.broadcast %cst_289 : f32 to vector<1x128xf32>
    %870 = arith.cmpf ogt, %868, %869 : vector<1x128xf32>
    %cst_290 = arith.constant 1.000000e+00 : f32
    %cst_291 = arith.constant 0.000000e+00 : f32
    %871 = vector.broadcast %cst_290 : f32 to vector<1x128xf32>
    %872 = vector.broadcast %cst_291 : f32 to vector<1x128xf32>
    %873 = arith.select %870, %871, %872 : vector<1x128xi1>, vector<1x128xf32>
    %874 = arith.mulf %873, %854 : vector<1x128xf32>
    %875 = arith.addf %851, %874 : vector<1x128xf32>
    %cst_292 = arith.constant 0.000000e+00 : f32
    %876 = vector.broadcast %cst_292 : f32 to vector<1x128xf32>
    %877 = arith.select %870, %876, %868 : vector<1x128xi1>, vector<1x128xf32>
    %c1_i32_293 = arith.constant 1 : i32
    %878 = tpu.dynamic_rotate %854 by %c1_i32_293 dim 1 : vector<1x128xf32>, i32 -> vector<1x128xf32>
    %c36_i32 = arith.constant 36 : i32
    %879 = arith.addi %0, %c36_i32 : i32
    %880 = arith.index_cast %879 : i32 to index
    %881 = memref.load %arg1[%880] : memref<128xf32, #tpu.memory_space<smem>>
    %882 = vector.broadcast %881 : f32 to vector<1x128xf32>
    %883 = arith.addf %1, %882 : vector<1x128xf32>
    %cst_294 = arith.constant 0.949999988 : f32
    %884 = vector.broadcast %cst_294 : f32 to vector<1x128xf32>
    %885 = arith.mulf %884, %864 : vector<1x128xf32>
    %cst_295 = arith.constant 5.000000e-02 : f32
    %886 = vector.broadcast %cst_295 : f32 to vector<1x128xf32>
    %887 = arith.mulf %886, %883 : vector<1x128xf32>
    %888 = arith.addf %885, %887 : vector<1x128xf32>
    %cst_296 = arith.constant 0.949999988 : f32
    %889 = vector.broadcast %cst_296 : f32 to vector<1x128xf32>
    %890 = arith.mulf %889, %877 : vector<1x128xf32>
    %891 = arith.mulf %888, %9 : vector<1x128xf32>
    %892 = arith.addf %890, %891 : vector<1x128xf32>
    %cst_297 = arith.constant 1.000000e+00 : f32
    %893 = vector.broadcast %cst_297 : f32 to vector<1x128xf32>
    %894 = arith.cmpf ogt, %892, %893 : vector<1x128xf32>
    %cst_298 = arith.constant 1.000000e+00 : f32
    %cst_299 = arith.constant 0.000000e+00 : f32
    %895 = vector.broadcast %cst_298 : f32 to vector<1x128xf32>
    %896 = vector.broadcast %cst_299 : f32 to vector<1x128xf32>
    %897 = arith.select %894, %895, %896 : vector<1x128xi1>, vector<1x128xf32>
    %898 = arith.mulf %897, %878 : vector<1x128xf32>
    %899 = arith.addf %875, %898 : vector<1x128xf32>
    %cst_300 = arith.constant 0.000000e+00 : f32
    %900 = vector.broadcast %cst_300 : f32 to vector<1x128xf32>
    %901 = arith.select %894, %900, %892 : vector<1x128xi1>, vector<1x128xf32>
    %c1_i32_301 = arith.constant 1 : i32
    %902 = tpu.dynamic_rotate %878 by %c1_i32_301 dim 1 : vector<1x128xf32>, i32 -> vector<1x128xf32>
    %c37_i32 = arith.constant 37 : i32
    %903 = arith.addi %0, %c37_i32 : i32
    %904 = arith.index_cast %903 : i32 to index
    %905 = memref.load %arg1[%904] : memref<128xf32, #tpu.memory_space<smem>>
    %906 = vector.broadcast %905 : f32 to vector<1x128xf32>
    %907 = arith.addf %1, %906 : vector<1x128xf32>
    %cst_302 = arith.constant 0.949999988 : f32
    %908 = vector.broadcast %cst_302 : f32 to vector<1x128xf32>
    %909 = arith.mulf %908, %888 : vector<1x128xf32>
    %cst_303 = arith.constant 5.000000e-02 : f32
    %910 = vector.broadcast %cst_303 : f32 to vector<1x128xf32>
    %911 = arith.mulf %910, %907 : vector<1x128xf32>
    %912 = arith.addf %909, %911 : vector<1x128xf32>
    %cst_304 = arith.constant 0.949999988 : f32
    %913 = vector.broadcast %cst_304 : f32 to vector<1x128xf32>
    %914 = arith.mulf %913, %901 : vector<1x128xf32>
    %915 = arith.mulf %912, %9 : vector<1x128xf32>
    %916 = arith.addf %914, %915 : vector<1x128xf32>
    %cst_305 = arith.constant 1.000000e+00 : f32
    %917 = vector.broadcast %cst_305 : f32 to vector<1x128xf32>
    %918 = arith.cmpf ogt, %916, %917 : vector<1x128xf32>
    %cst_306 = arith.constant 1.000000e+00 : f32
    %cst_307 = arith.constant 0.000000e+00 : f32
    %919 = vector.broadcast %cst_306 : f32 to vector<1x128xf32>
    %920 = vector.broadcast %cst_307 : f32 to vector<1x128xf32>
    %921 = arith.select %918, %919, %920 : vector<1x128xi1>, vector<1x128xf32>
    %922 = arith.mulf %921, %902 : vector<1x128xf32>
    %923 = arith.addf %899, %922 : vector<1x128xf32>
    %cst_308 = arith.constant 0.000000e+00 : f32
    %924 = vector.broadcast %cst_308 : f32 to vector<1x128xf32>
    %925 = arith.select %918, %924, %916 : vector<1x128xi1>, vector<1x128xf32>
    %c1_i32_309 = arith.constant 1 : i32
    %926 = tpu.dynamic_rotate %902 by %c1_i32_309 dim 1 : vector<1x128xf32>, i32 -> vector<1x128xf32>
    %c38_i32 = arith.constant 38 : i32
    %927 = arith.addi %0, %c38_i32 : i32
    %928 = arith.index_cast %927 : i32 to index
    %929 = memref.load %arg1[%928] : memref<128xf32, #tpu.memory_space<smem>>
    %930 = vector.broadcast %929 : f32 to vector<1x128xf32>
    %931 = arith.addf %1, %930 : vector<1x128xf32>
    %cst_310 = arith.constant 0.949999988 : f32
    %932 = vector.broadcast %cst_310 : f32 to vector<1x128xf32>
    %933 = arith.mulf %932, %912 : vector<1x128xf32>
    %cst_311 = arith.constant 5.000000e-02 : f32
    %934 = vector.broadcast %cst_311 : f32 to vector<1x128xf32>
    %935 = arith.mulf %934, %931 : vector<1x128xf32>
    %936 = arith.addf %933, %935 : vector<1x128xf32>
    %cst_312 = arith.constant 0.949999988 : f32
    %937 = vector.broadcast %cst_312 : f32 to vector<1x128xf32>
    %938 = arith.mulf %937, %925 : vector<1x128xf32>
    %939 = arith.mulf %936, %9 : vector<1x128xf32>
    %940 = arith.addf %938, %939 : vector<1x128xf32>
    %cst_313 = arith.constant 1.000000e+00 : f32
    %941 = vector.broadcast %cst_313 : f32 to vector<1x128xf32>
    %942 = arith.cmpf ogt, %940, %941 : vector<1x128xf32>
    %cst_314 = arith.constant 1.000000e+00 : f32
    %cst_315 = arith.constant 0.000000e+00 : f32
    %943 = vector.broadcast %cst_314 : f32 to vector<1x128xf32>
    %944 = vector.broadcast %cst_315 : f32 to vector<1x128xf32>
    %945 = arith.select %942, %943, %944 : vector<1x128xi1>, vector<1x128xf32>
    %946 = arith.mulf %945, %926 : vector<1x128xf32>
    %947 = arith.addf %923, %946 : vector<1x128xf32>
    %cst_316 = arith.constant 0.000000e+00 : f32
    %948 = vector.broadcast %cst_316 : f32 to vector<1x128xf32>
    %949 = arith.select %942, %948, %940 : vector<1x128xi1>, vector<1x128xf32>
    %c1_i32_317 = arith.constant 1 : i32
    %950 = tpu.dynamic_rotate %926 by %c1_i32_317 dim 1 : vector<1x128xf32>, i32 -> vector<1x128xf32>
    %c39_i32 = arith.constant 39 : i32
    %951 = arith.addi %0, %c39_i32 : i32
    %952 = arith.index_cast %951 : i32 to index
    %953 = memref.load %arg1[%952] : memref<128xf32, #tpu.memory_space<smem>>
    %954 = vector.broadcast %953 : f32 to vector<1x128xf32>
    %955 = arith.addf %1, %954 : vector<1x128xf32>
    %cst_318 = arith.constant 0.949999988 : f32
    %956 = vector.broadcast %cst_318 : f32 to vector<1x128xf32>
    %957 = arith.mulf %956, %936 : vector<1x128xf32>
    %cst_319 = arith.constant 5.000000e-02 : f32
    %958 = vector.broadcast %cst_319 : f32 to vector<1x128xf32>
    %959 = arith.mulf %958, %955 : vector<1x128xf32>
    %960 = arith.addf %957, %959 : vector<1x128xf32>
    %cst_320 = arith.constant 0.949999988 : f32
    %961 = vector.broadcast %cst_320 : f32 to vector<1x128xf32>
    %962 = arith.mulf %961, %949 : vector<1x128xf32>
    %963 = arith.mulf %960, %9 : vector<1x128xf32>
    %964 = arith.addf %962, %963 : vector<1x128xf32>
    %cst_321 = arith.constant 1.000000e+00 : f32
    %965 = vector.broadcast %cst_321 : f32 to vector<1x128xf32>
    %966 = arith.cmpf ogt, %964, %965 : vector<1x128xf32>
    %cst_322 = arith.constant 1.000000e+00 : f32
    %cst_323 = arith.constant 0.000000e+00 : f32
    %967 = vector.broadcast %cst_322 : f32 to vector<1x128xf32>
    %968 = vector.broadcast %cst_323 : f32 to vector<1x128xf32>
    %969 = arith.select %966, %967, %968 : vector<1x128xi1>, vector<1x128xf32>
    %970 = arith.mulf %969, %950 : vector<1x128xf32>
    %971 = arith.addf %947, %970 : vector<1x128xf32>
    %cst_324 = arith.constant 0.000000e+00 : f32
    %972 = vector.broadcast %cst_324 : f32 to vector<1x128xf32>
    %973 = arith.select %966, %972, %964 : vector<1x128xi1>, vector<1x128xf32>
    %c1_i32_325 = arith.constant 1 : i32
    %974 = tpu.dynamic_rotate %950 by %c1_i32_325 dim 1 : vector<1x128xf32>, i32 -> vector<1x128xf32>
    %c40_i32 = arith.constant 40 : i32
    %975 = arith.addi %0, %c40_i32 : i32
    %976 = arith.index_cast %975 : i32 to index
    %977 = memref.load %arg1[%976] : memref<128xf32, #tpu.memory_space<smem>>
    %978 = vector.broadcast %977 : f32 to vector<1x128xf32>
    %979 = arith.addf %1, %978 : vector<1x128xf32>
    %cst_326 = arith.constant 0.949999988 : f32
    %980 = vector.broadcast %cst_326 : f32 to vector<1x128xf32>
    %981 = arith.mulf %980, %960 : vector<1x128xf32>
    %cst_327 = arith.constant 5.000000e-02 : f32
    %982 = vector.broadcast %cst_327 : f32 to vector<1x128xf32>
    %983 = arith.mulf %982, %979 : vector<1x128xf32>
    %984 = arith.addf %981, %983 : vector<1x128xf32>
    %cst_328 = arith.constant 0.949999988 : f32
    %985 = vector.broadcast %cst_328 : f32 to vector<1x128xf32>
    %986 = arith.mulf %985, %973 : vector<1x128xf32>
    %987 = arith.mulf %984, %9 : vector<1x128xf32>
    %988 = arith.addf %986, %987 : vector<1x128xf32>
    %cst_329 = arith.constant 1.000000e+00 : f32
    %989 = vector.broadcast %cst_329 : f32 to vector<1x128xf32>
    %990 = arith.cmpf ogt, %988, %989 : vector<1x128xf32>
    %cst_330 = arith.constant 1.000000e+00 : f32
    %cst_331 = arith.constant 0.000000e+00 : f32
    %991 = vector.broadcast %cst_330 : f32 to vector<1x128xf32>
    %992 = vector.broadcast %cst_331 : f32 to vector<1x128xf32>
    %993 = arith.select %990, %991, %992 : vector<1x128xi1>, vector<1x128xf32>
    %994 = arith.mulf %993, %974 : vector<1x128xf32>
    %995 = arith.addf %971, %994 : vector<1x128xf32>
    %cst_332 = arith.constant 0.000000e+00 : f32
    %996 = vector.broadcast %cst_332 : f32 to vector<1x128xf32>
    %997 = arith.select %990, %996, %988 : vector<1x128xi1>, vector<1x128xf32>
    %c1_i32_333 = arith.constant 1 : i32
    %998 = tpu.dynamic_rotate %974 by %c1_i32_333 dim 1 : vector<1x128xf32>, i32 -> vector<1x128xf32>
    %c41_i32 = arith.constant 41 : i32
    %999 = arith.addi %0, %c41_i32 : i32
    %1000 = arith.index_cast %999 : i32 to index
    %1001 = memref.load %arg1[%1000] : memref<128xf32, #tpu.memory_space<smem>>
    %1002 = vector.broadcast %1001 : f32 to vector<1x128xf32>
    %1003 = arith.addf %1, %1002 : vector<1x128xf32>
    %cst_334 = arith.constant 0.949999988 : f32
    %1004 = vector.broadcast %cst_334 : f32 to vector<1x128xf32>
    %1005 = arith.mulf %1004, %984 : vector<1x128xf32>
    %cst_335 = arith.constant 5.000000e-02 : f32
    %1006 = vector.broadcast %cst_335 : f32 to vector<1x128xf32>
    %1007 = arith.mulf %1006, %1003 : vector<1x128xf32>
    %1008 = arith.addf %1005, %1007 : vector<1x128xf32>
    %cst_336 = arith.constant 0.949999988 : f32
    %1009 = vector.broadcast %cst_336 : f32 to vector<1x128xf32>
    %1010 = arith.mulf %1009, %997 : vector<1x128xf32>
    %1011 = arith.mulf %1008, %9 : vector<1x128xf32>
    %1012 = arith.addf %1010, %1011 : vector<1x128xf32>
    %cst_337 = arith.constant 1.000000e+00 : f32
    %1013 = vector.broadcast %cst_337 : f32 to vector<1x128xf32>
    %1014 = arith.cmpf ogt, %1012, %1013 : vector<1x128xf32>
    %cst_338 = arith.constant 1.000000e+00 : f32
    %cst_339 = arith.constant 0.000000e+00 : f32
    %1015 = vector.broadcast %cst_338 : f32 to vector<1x128xf32>
    %1016 = vector.broadcast %cst_339 : f32 to vector<1x128xf32>
    %1017 = arith.select %1014, %1015, %1016 : vector<1x128xi1>, vector<1x128xf32>
    %1018 = arith.mulf %1017, %998 : vector<1x128xf32>
    %1019 = arith.addf %995, %1018 : vector<1x128xf32>
    %cst_340 = arith.constant 0.000000e+00 : f32
    %1020 = vector.broadcast %cst_340 : f32 to vector<1x128xf32>
    %1021 = arith.select %1014, %1020, %1012 : vector<1x128xi1>, vector<1x128xf32>
    %c1_i32_341 = arith.constant 1 : i32
    %1022 = tpu.dynamic_rotate %998 by %c1_i32_341 dim 1 : vector<1x128xf32>, i32 -> vector<1x128xf32>
    %c42_i32 = arith.constant 42 : i32
    %1023 = arith.addi %0, %c42_i32 : i32
    %1024 = arith.index_cast %1023 : i32 to index
    %1025 = memref.load %arg1[%1024] : memref<128xf32, #tpu.memory_space<smem>>
    %1026 = vector.broadcast %1025 : f32 to vector<1x128xf32>
    %1027 = arith.addf %1, %1026 : vector<1x128xf32>
    %cst_342 = arith.constant 0.949999988 : f32
    %1028 = vector.broadcast %cst_342 : f32 to vector<1x128xf32>
    %1029 = arith.mulf %1028, %1008 : vector<1x128xf32>
    %cst_343 = arith.constant 5.000000e-02 : f32
    %1030 = vector.broadcast %cst_343 : f32 to vector<1x128xf32>
    %1031 = arith.mulf %1030, %1027 : vector<1x128xf32>
    %1032 = arith.addf %1029, %1031 : vector<1x128xf32>
    %cst_344 = arith.constant 0.949999988 : f32
    %1033 = vector.broadcast %cst_344 : f32 to vector<1x128xf32>
    %1034 = arith.mulf %1033, %1021 : vector<1x128xf32>
    %1035 = arith.mulf %1032, %9 : vector<1x128xf32>
    %1036 = arith.addf %1034, %1035 : vector<1x128xf32>
    %cst_345 = arith.constant 1.000000e+00 : f32
    %1037 = vector.broadcast %cst_345 : f32 to vector<1x128xf32>
    %1038 = arith.cmpf ogt, %1036, %1037 : vector<1x128xf32>
    %cst_346 = arith.constant 1.000000e+00 : f32
    %cst_347 = arith.constant 0.000000e+00 : f32
    %1039 = vector.broadcast %cst_346 : f32 to vector<1x128xf32>
    %1040 = vector.broadcast %cst_347 : f32 to vector<1x128xf32>
    %1041 = arith.select %1038, %1039, %1040 : vector<1x128xi1>, vector<1x128xf32>
    %1042 = arith.mulf %1041, %1022 : vector<1x128xf32>
    %1043 = arith.addf %1019, %1042 : vector<1x128xf32>
    %cst_348 = arith.constant 0.000000e+00 : f32
    %1044 = vector.broadcast %cst_348 : f32 to vector<1x128xf32>
    %1045 = arith.select %1038, %1044, %1036 : vector<1x128xi1>, vector<1x128xf32>
    %c1_i32_349 = arith.constant 1 : i32
    %1046 = tpu.dynamic_rotate %1022 by %c1_i32_349 dim 1 : vector<1x128xf32>, i32 -> vector<1x128xf32>
    %c43_i32 = arith.constant 43 : i32
    %1047 = arith.addi %0, %c43_i32 : i32
    %1048 = arith.index_cast %1047 : i32 to index
    %1049 = memref.load %arg1[%1048] : memref<128xf32, #tpu.memory_space<smem>>
    %1050 = vector.broadcast %1049 : f32 to vector<1x128xf32>
    %1051 = arith.addf %1, %1050 : vector<1x128xf32>
    %cst_350 = arith.constant 0.949999988 : f32
    %1052 = vector.broadcast %cst_350 : f32 to vector<1x128xf32>
    %1053 = arith.mulf %1052, %1032 : vector<1x128xf32>
    %cst_351 = arith.constant 5.000000e-02 : f32
    %1054 = vector.broadcast %cst_351 : f32 to vector<1x128xf32>
    %1055 = arith.mulf %1054, %1051 : vector<1x128xf32>
    %1056 = arith.addf %1053, %1055 : vector<1x128xf32>
    %cst_352 = arith.constant 0.949999988 : f32
    %1057 = vector.broadcast %cst_352 : f32 to vector<1x128xf32>
    %1058 = arith.mulf %1057, %1045 : vector<1x128xf32>
    %1059 = arith.mulf %1056, %9 : vector<1x128xf32>
    %1060 = arith.addf %1058, %1059 : vector<1x128xf32>
    %cst_353 = arith.constant 1.000000e+00 : f32
    %1061 = vector.broadcast %cst_353 : f32 to vector<1x128xf32>
    %1062 = arith.cmpf ogt, %1060, %1061 : vector<1x128xf32>
    %cst_354 = arith.constant 1.000000e+00 : f32
    %cst_355 = arith.constant 0.000000e+00 : f32
    %1063 = vector.broadcast %cst_354 : f32 to vector<1x128xf32>
    %1064 = vector.broadcast %cst_355 : f32 to vector<1x128xf32>
    %1065 = arith.select %1062, %1063, %1064 : vector<1x128xi1>, vector<1x128xf32>
    %1066 = arith.mulf %1065, %1046 : vector<1x128xf32>
    %1067 = arith.addf %1043, %1066 : vector<1x128xf32>
    %cst_356 = arith.constant 0.000000e+00 : f32
    %1068 = vector.broadcast %cst_356 : f32 to vector<1x128xf32>
    %1069 = arith.select %1062, %1068, %1060 : vector<1x128xi1>, vector<1x128xf32>
    %c1_i32_357 = arith.constant 1 : i32
    %1070 = tpu.dynamic_rotate %1046 by %c1_i32_357 dim 1 : vector<1x128xf32>, i32 -> vector<1x128xf32>
    %c44_i32 = arith.constant 44 : i32
    %1071 = arith.addi %0, %c44_i32 : i32
    %1072 = arith.index_cast %1071 : i32 to index
    %1073 = memref.load %arg1[%1072] : memref<128xf32, #tpu.memory_space<smem>>
    %1074 = vector.broadcast %1073 : f32 to vector<1x128xf32>
    %1075 = arith.addf %1, %1074 : vector<1x128xf32>
    %cst_358 = arith.constant 0.949999988 : f32
    %1076 = vector.broadcast %cst_358 : f32 to vector<1x128xf32>
    %1077 = arith.mulf %1076, %1056 : vector<1x128xf32>
    %cst_359 = arith.constant 5.000000e-02 : f32
    %1078 = vector.broadcast %cst_359 : f32 to vector<1x128xf32>
    %1079 = arith.mulf %1078, %1075 : vector<1x128xf32>
    %1080 = arith.addf %1077, %1079 : vector<1x128xf32>
    %cst_360 = arith.constant 0.949999988 : f32
    %1081 = vector.broadcast %cst_360 : f32 to vector<1x128xf32>
    %1082 = arith.mulf %1081, %1069 : vector<1x128xf32>
    %1083 = arith.mulf %1080, %9 : vector<1x128xf32>
    %1084 = arith.addf %1082, %1083 : vector<1x128xf32>
    %cst_361 = arith.constant 1.000000e+00 : f32
    %1085 = vector.broadcast %cst_361 : f32 to vector<1x128xf32>
    %1086 = arith.cmpf ogt, %1084, %1085 : vector<1x128xf32>
    %cst_362 = arith.constant 1.000000e+00 : f32
    %cst_363 = arith.constant 0.000000e+00 : f32
    %1087 = vector.broadcast %cst_362 : f32 to vector<1x128xf32>
    %1088 = vector.broadcast %cst_363 : f32 to vector<1x128xf32>
    %1089 = arith.select %1086, %1087, %1088 : vector<1x128xi1>, vector<1x128xf32>
    %1090 = arith.mulf %1089, %1070 : vector<1x128xf32>
    %1091 = arith.addf %1067, %1090 : vector<1x128xf32>
    %cst_364 = arith.constant 0.000000e+00 : f32
    %1092 = vector.broadcast %cst_364 : f32 to vector<1x128xf32>
    %1093 = arith.select %1086, %1092, %1084 : vector<1x128xi1>, vector<1x128xf32>
    %c1_i32_365 = arith.constant 1 : i32
    %1094 = tpu.dynamic_rotate %1070 by %c1_i32_365 dim 1 : vector<1x128xf32>, i32 -> vector<1x128xf32>
    %c45_i32 = arith.constant 45 : i32
    %1095 = arith.addi %0, %c45_i32 : i32
    %1096 = arith.index_cast %1095 : i32 to index
    %1097 = memref.load %arg1[%1096] : memref<128xf32, #tpu.memory_space<smem>>
    %1098 = vector.broadcast %1097 : f32 to vector<1x128xf32>
    %1099 = arith.addf %1, %1098 : vector<1x128xf32>
    %cst_366 = arith.constant 0.949999988 : f32
    %1100 = vector.broadcast %cst_366 : f32 to vector<1x128xf32>
    %1101 = arith.mulf %1100, %1080 : vector<1x128xf32>
    %cst_367 = arith.constant 5.000000e-02 : f32
    %1102 = vector.broadcast %cst_367 : f32 to vector<1x128xf32>
    %1103 = arith.mulf %1102, %1099 : vector<1x128xf32>
    %1104 = arith.addf %1101, %1103 : vector<1x128xf32>
    %cst_368 = arith.constant 0.949999988 : f32
    %1105 = vector.broadcast %cst_368 : f32 to vector<1x128xf32>
    %1106 = arith.mulf %1105, %1093 : vector<1x128xf32>
    %1107 = arith.mulf %1104, %9 : vector<1x128xf32>
    %1108 = arith.addf %1106, %1107 : vector<1x128xf32>
    %cst_369 = arith.constant 1.000000e+00 : f32
    %1109 = vector.broadcast %cst_369 : f32 to vector<1x128xf32>
    %1110 = arith.cmpf ogt, %1108, %1109 : vector<1x128xf32>
    %cst_370 = arith.constant 1.000000e+00 : f32
    %cst_371 = arith.constant 0.000000e+00 : f32
    %1111 = vector.broadcast %cst_370 : f32 to vector<1x128xf32>
    %1112 = vector.broadcast %cst_371 : f32 to vector<1x128xf32>
    %1113 = arith.select %1110, %1111, %1112 : vector<1x128xi1>, vector<1x128xf32>
    %1114 = arith.mulf %1113, %1094 : vector<1x128xf32>
    %1115 = arith.addf %1091, %1114 : vector<1x128xf32>
    %cst_372 = arith.constant 0.000000e+00 : f32
    %1116 = vector.broadcast %cst_372 : f32 to vector<1x128xf32>
    %1117 = arith.select %1110, %1116, %1108 : vector<1x128xi1>, vector<1x128xf32>
    %c1_i32_373 = arith.constant 1 : i32
    %1118 = tpu.dynamic_rotate %1094 by %c1_i32_373 dim 1 : vector<1x128xf32>, i32 -> vector<1x128xf32>
    %c46_i32 = arith.constant 46 : i32
    %1119 = arith.addi %0, %c46_i32 : i32
    %1120 = arith.index_cast %1119 : i32 to index
    %1121 = memref.load %arg1[%1120] : memref<128xf32, #tpu.memory_space<smem>>
    %1122 = vector.broadcast %1121 : f32 to vector<1x128xf32>
    %1123 = arith.addf %1, %1122 : vector<1x128xf32>
    %cst_374 = arith.constant 0.949999988 : f32
    %1124 = vector.broadcast %cst_374 : f32 to vector<1x128xf32>
    %1125 = arith.mulf %1124, %1104 : vector<1x128xf32>
    %cst_375 = arith.constant 5.000000e-02 : f32
    %1126 = vector.broadcast %cst_375 : f32 to vector<1x128xf32>
    %1127 = arith.mulf %1126, %1123 : vector<1x128xf32>
    %1128 = arith.addf %1125, %1127 : vector<1x128xf32>
    %cst_376 = arith.constant 0.949999988 : f32
    %1129 = vector.broadcast %cst_376 : f32 to vector<1x128xf32>
    %1130 = arith.mulf %1129, %1117 : vector<1x128xf32>
    %1131 = arith.mulf %1128, %9 : vector<1x128xf32>
    %1132 = arith.addf %1130, %1131 : vector<1x128xf32>
    %cst_377 = arith.constant 1.000000e+00 : f32
    %1133 = vector.broadcast %cst_377 : f32 to vector<1x128xf32>
    %1134 = arith.cmpf ogt, %1132, %1133 : vector<1x128xf32>
    %cst_378 = arith.constant 1.000000e+00 : f32
    %cst_379 = arith.constant 0.000000e+00 : f32
    %1135 = vector.broadcast %cst_378 : f32 to vector<1x128xf32>
    %1136 = vector.broadcast %cst_379 : f32 to vector<1x128xf32>
    %1137 = arith.select %1134, %1135, %1136 : vector<1x128xi1>, vector<1x128xf32>
    %1138 = arith.mulf %1137, %1118 : vector<1x128xf32>
    %1139 = arith.addf %1115, %1138 : vector<1x128xf32>
    %cst_380 = arith.constant 0.000000e+00 : f32
    %1140 = vector.broadcast %cst_380 : f32 to vector<1x128xf32>
    %1141 = arith.select %1134, %1140, %1132 : vector<1x128xi1>, vector<1x128xf32>
    %c1_i32_381 = arith.constant 1 : i32
    %1142 = tpu.dynamic_rotate %1118 by %c1_i32_381 dim 1 : vector<1x128xf32>, i32 -> vector<1x128xf32>
    %c47_i32 = arith.constant 47 : i32
    %1143 = arith.addi %0, %c47_i32 : i32
    %1144 = arith.index_cast %1143 : i32 to index
    %1145 = memref.load %arg1[%1144] : memref<128xf32, #tpu.memory_space<smem>>
    %1146 = vector.broadcast %1145 : f32 to vector<1x128xf32>
    %1147 = arith.addf %1, %1146 : vector<1x128xf32>
    %cst_382 = arith.constant 0.949999988 : f32
    %1148 = vector.broadcast %cst_382 : f32 to vector<1x128xf32>
    %1149 = arith.mulf %1148, %1128 : vector<1x128xf32>
    %cst_383 = arith.constant 5.000000e-02 : f32
    %1150 = vector.broadcast %cst_383 : f32 to vector<1x128xf32>
    %1151 = arith.mulf %1150, %1147 : vector<1x128xf32>
    %1152 = arith.addf %1149, %1151 : vector<1x128xf32>
    %cst_384 = arith.constant 0.949999988 : f32
    %1153 = vector.broadcast %cst_384 : f32 to vector<1x128xf32>
    %1154 = arith.mulf %1153, %1141 : vector<1x128xf32>
    %1155 = arith.mulf %1152, %9 : vector<1x128xf32>
    %1156 = arith.addf %1154, %1155 : vector<1x128xf32>
    %cst_385 = arith.constant 1.000000e+00 : f32
    %1157 = vector.broadcast %cst_385 : f32 to vector<1x128xf32>
    %1158 = arith.cmpf ogt, %1156, %1157 : vector<1x128xf32>
    %cst_386 = arith.constant 1.000000e+00 : f32
    %cst_387 = arith.constant 0.000000e+00 : f32
    %1159 = vector.broadcast %cst_386 : f32 to vector<1x128xf32>
    %1160 = vector.broadcast %cst_387 : f32 to vector<1x128xf32>
    %1161 = arith.select %1158, %1159, %1160 : vector<1x128xi1>, vector<1x128xf32>
    %1162 = arith.mulf %1161, %1142 : vector<1x128xf32>
    %1163 = arith.addf %1139, %1162 : vector<1x128xf32>
    %cst_388 = arith.constant 0.000000e+00 : f32
    %1164 = vector.broadcast %cst_388 : f32 to vector<1x128xf32>
    %1165 = arith.select %1158, %1164, %1156 : vector<1x128xi1>, vector<1x128xf32>
    %c1_i32_389 = arith.constant 1 : i32
    %1166 = tpu.dynamic_rotate %1142 by %c1_i32_389 dim 1 : vector<1x128xf32>, i32 -> vector<1x128xf32>
    %c48_i32 = arith.constant 48 : i32
    %1167 = arith.addi %0, %c48_i32 : i32
    %1168 = arith.index_cast %1167 : i32 to index
    %1169 = memref.load %arg1[%1168] : memref<128xf32, #tpu.memory_space<smem>>
    %1170 = vector.broadcast %1169 : f32 to vector<1x128xf32>
    %1171 = arith.addf %1, %1170 : vector<1x128xf32>
    %cst_390 = arith.constant 0.949999988 : f32
    %1172 = vector.broadcast %cst_390 : f32 to vector<1x128xf32>
    %1173 = arith.mulf %1172, %1152 : vector<1x128xf32>
    %cst_391 = arith.constant 5.000000e-02 : f32
    %1174 = vector.broadcast %cst_391 : f32 to vector<1x128xf32>
    %1175 = arith.mulf %1174, %1171 : vector<1x128xf32>
    %1176 = arith.addf %1173, %1175 : vector<1x128xf32>
    %cst_392 = arith.constant 0.949999988 : f32
    %1177 = vector.broadcast %cst_392 : f32 to vector<1x128xf32>
    %1178 = arith.mulf %1177, %1165 : vector<1x128xf32>
    %1179 = arith.mulf %1176, %9 : vector<1x128xf32>
    %1180 = arith.addf %1178, %1179 : vector<1x128xf32>
    %cst_393 = arith.constant 1.000000e+00 : f32
    %1181 = vector.broadcast %cst_393 : f32 to vector<1x128xf32>
    %1182 = arith.cmpf ogt, %1180, %1181 : vector<1x128xf32>
    %cst_394 = arith.constant 1.000000e+00 : f32
    %cst_395 = arith.constant 0.000000e+00 : f32
    %1183 = vector.broadcast %cst_394 : f32 to vector<1x128xf32>
    %1184 = vector.broadcast %cst_395 : f32 to vector<1x128xf32>
    %1185 = arith.select %1182, %1183, %1184 : vector<1x128xi1>, vector<1x128xf32>
    %1186 = arith.mulf %1185, %1166 : vector<1x128xf32>
    %1187 = arith.addf %1163, %1186 : vector<1x128xf32>
    %cst_396 = arith.constant 0.000000e+00 : f32
    %1188 = vector.broadcast %cst_396 : f32 to vector<1x128xf32>
    %1189 = arith.select %1182, %1188, %1180 : vector<1x128xi1>, vector<1x128xf32>
    %c1_i32_397 = arith.constant 1 : i32
    %1190 = tpu.dynamic_rotate %1166 by %c1_i32_397 dim 1 : vector<1x128xf32>, i32 -> vector<1x128xf32>
    %c49_i32 = arith.constant 49 : i32
    %1191 = arith.addi %0, %c49_i32 : i32
    %1192 = arith.index_cast %1191 : i32 to index
    %1193 = memref.load %arg1[%1192] : memref<128xf32, #tpu.memory_space<smem>>
    %1194 = vector.broadcast %1193 : f32 to vector<1x128xf32>
    %1195 = arith.addf %1, %1194 : vector<1x128xf32>
    %cst_398 = arith.constant 0.949999988 : f32
    %1196 = vector.broadcast %cst_398 : f32 to vector<1x128xf32>
    %1197 = arith.mulf %1196, %1176 : vector<1x128xf32>
    %cst_399 = arith.constant 5.000000e-02 : f32
    %1198 = vector.broadcast %cst_399 : f32 to vector<1x128xf32>
    %1199 = arith.mulf %1198, %1195 : vector<1x128xf32>
    %1200 = arith.addf %1197, %1199 : vector<1x128xf32>
    %cst_400 = arith.constant 0.949999988 : f32
    %1201 = vector.broadcast %cst_400 : f32 to vector<1x128xf32>
    %1202 = arith.mulf %1201, %1189 : vector<1x128xf32>
    %1203 = arith.mulf %1200, %9 : vector<1x128xf32>
    %1204 = arith.addf %1202, %1203 : vector<1x128xf32>
    %cst_401 = arith.constant 1.000000e+00 : f32
    %1205 = vector.broadcast %cst_401 : f32 to vector<1x128xf32>
    %1206 = arith.cmpf ogt, %1204, %1205 : vector<1x128xf32>
    %cst_402 = arith.constant 1.000000e+00 : f32
    %cst_403 = arith.constant 0.000000e+00 : f32
    %1207 = vector.broadcast %cst_402 : f32 to vector<1x128xf32>
    %1208 = vector.broadcast %cst_403 : f32 to vector<1x128xf32>
    %1209 = arith.select %1206, %1207, %1208 : vector<1x128xi1>, vector<1x128xf32>
    %1210 = arith.mulf %1209, %1190 : vector<1x128xf32>
    %1211 = arith.addf %1187, %1210 : vector<1x128xf32>
    %cst_404 = arith.constant 0.000000e+00 : f32
    %1212 = vector.broadcast %cst_404 : f32 to vector<1x128xf32>
    %1213 = arith.select %1206, %1212, %1204 : vector<1x128xi1>, vector<1x128xf32>
    %c1_i32_405 = arith.constant 1 : i32
    %1214 = tpu.dynamic_rotate %1190 by %c1_i32_405 dim 1 : vector<1x128xf32>, i32 -> vector<1x128xf32>
    %c50_i32 = arith.constant 50 : i32
    %1215 = arith.addi %0, %c50_i32 : i32
    %1216 = arith.index_cast %1215 : i32 to index
    %1217 = memref.load %arg1[%1216] : memref<128xf32, #tpu.memory_space<smem>>
    %1218 = vector.broadcast %1217 : f32 to vector<1x128xf32>
    %1219 = arith.addf %1, %1218 : vector<1x128xf32>
    %cst_406 = arith.constant 0.949999988 : f32
    %1220 = vector.broadcast %cst_406 : f32 to vector<1x128xf32>
    %1221 = arith.mulf %1220, %1200 : vector<1x128xf32>
    %cst_407 = arith.constant 5.000000e-02 : f32
    %1222 = vector.broadcast %cst_407 : f32 to vector<1x128xf32>
    %1223 = arith.mulf %1222, %1219 : vector<1x128xf32>
    %1224 = arith.addf %1221, %1223 : vector<1x128xf32>
    %cst_408 = arith.constant 0.949999988 : f32
    %1225 = vector.broadcast %cst_408 : f32 to vector<1x128xf32>
    %1226 = arith.mulf %1225, %1213 : vector<1x128xf32>
    %1227 = arith.mulf %1224, %9 : vector<1x128xf32>
    %1228 = arith.addf %1226, %1227 : vector<1x128xf32>
    %cst_409 = arith.constant 1.000000e+00 : f32
    %1229 = vector.broadcast %cst_409 : f32 to vector<1x128xf32>
    %1230 = arith.cmpf ogt, %1228, %1229 : vector<1x128xf32>
    %cst_410 = arith.constant 1.000000e+00 : f32
    %cst_411 = arith.constant 0.000000e+00 : f32
    %1231 = vector.broadcast %cst_410 : f32 to vector<1x128xf32>
    %1232 = vector.broadcast %cst_411 : f32 to vector<1x128xf32>
    %1233 = arith.select %1230, %1231, %1232 : vector<1x128xi1>, vector<1x128xf32>
    %1234 = arith.mulf %1233, %1214 : vector<1x128xf32>
    %1235 = arith.addf %1211, %1234 : vector<1x128xf32>
    %cst_412 = arith.constant 0.000000e+00 : f32
    %1236 = vector.broadcast %cst_412 : f32 to vector<1x128xf32>
    %1237 = arith.select %1230, %1236, %1228 : vector<1x128xi1>, vector<1x128xf32>
    %c1_i32_413 = arith.constant 1 : i32
    %1238 = tpu.dynamic_rotate %1214 by %c1_i32_413 dim 1 : vector<1x128xf32>, i32 -> vector<1x128xf32>
    %c51_i32 = arith.constant 51 : i32
    %1239 = arith.addi %0, %c51_i32 : i32
    %1240 = arith.index_cast %1239 : i32 to index
    %1241 = memref.load %arg1[%1240] : memref<128xf32, #tpu.memory_space<smem>>
    %1242 = vector.broadcast %1241 : f32 to vector<1x128xf32>
    %1243 = arith.addf %1, %1242 : vector<1x128xf32>
    %cst_414 = arith.constant 0.949999988 : f32
    %1244 = vector.broadcast %cst_414 : f32 to vector<1x128xf32>
    %1245 = arith.mulf %1244, %1224 : vector<1x128xf32>
    %cst_415 = arith.constant 5.000000e-02 : f32
    %1246 = vector.broadcast %cst_415 : f32 to vector<1x128xf32>
    %1247 = arith.mulf %1246, %1243 : vector<1x128xf32>
    %1248 = arith.addf %1245, %1247 : vector<1x128xf32>
    %cst_416 = arith.constant 0.949999988 : f32
    %1249 = vector.broadcast %cst_416 : f32 to vector<1x128xf32>
    %1250 = arith.mulf %1249, %1237 : vector<1x128xf32>
    %1251 = arith.mulf %1248, %9 : vector<1x128xf32>
    %1252 = arith.addf %1250, %1251 : vector<1x128xf32>
    %cst_417 = arith.constant 1.000000e+00 : f32
    %1253 = vector.broadcast %cst_417 : f32 to vector<1x128xf32>
    %1254 = arith.cmpf ogt, %1252, %1253 : vector<1x128xf32>
    %cst_418 = arith.constant 1.000000e+00 : f32
    %cst_419 = arith.constant 0.000000e+00 : f32
    %1255 = vector.broadcast %cst_418 : f32 to vector<1x128xf32>
    %1256 = vector.broadcast %cst_419 : f32 to vector<1x128xf32>
    %1257 = arith.select %1254, %1255, %1256 : vector<1x128xi1>, vector<1x128xf32>
    %1258 = arith.mulf %1257, %1238 : vector<1x128xf32>
    %1259 = arith.addf %1235, %1258 : vector<1x128xf32>
    %cst_420 = arith.constant 0.000000e+00 : f32
    %1260 = vector.broadcast %cst_420 : f32 to vector<1x128xf32>
    %1261 = arith.select %1254, %1260, %1252 : vector<1x128xi1>, vector<1x128xf32>
    %c1_i32_421 = arith.constant 1 : i32
    %1262 = tpu.dynamic_rotate %1238 by %c1_i32_421 dim 1 : vector<1x128xf32>, i32 -> vector<1x128xf32>
    %c52_i32 = arith.constant 52 : i32
    %1263 = arith.addi %0, %c52_i32 : i32
    %1264 = arith.index_cast %1263 : i32 to index
    %1265 = memref.load %arg1[%1264] : memref<128xf32, #tpu.memory_space<smem>>
    %1266 = vector.broadcast %1265 : f32 to vector<1x128xf32>
    %1267 = arith.addf %1, %1266 : vector<1x128xf32>
    %cst_422 = arith.constant 0.949999988 : f32
    %1268 = vector.broadcast %cst_422 : f32 to vector<1x128xf32>
    %1269 = arith.mulf %1268, %1248 : vector<1x128xf32>
    %cst_423 = arith.constant 5.000000e-02 : f32
    %1270 = vector.broadcast %cst_423 : f32 to vector<1x128xf32>
    %1271 = arith.mulf %1270, %1267 : vector<1x128xf32>
    %1272 = arith.addf %1269, %1271 : vector<1x128xf32>
    %cst_424 = arith.constant 0.949999988 : f32
    %1273 = vector.broadcast %cst_424 : f32 to vector<1x128xf32>
    %1274 = arith.mulf %1273, %1261 : vector<1x128xf32>
    %1275 = arith.mulf %1272, %9 : vector<1x128xf32>
    %1276 = arith.addf %1274, %1275 : vector<1x128xf32>
    %cst_425 = arith.constant 1.000000e+00 : f32
    %1277 = vector.broadcast %cst_425 : f32 to vector<1x128xf32>
    %1278 = arith.cmpf ogt, %1276, %1277 : vector<1x128xf32>
    %cst_426 = arith.constant 1.000000e+00 : f32
    %cst_427 = arith.constant 0.000000e+00 : f32
    %1279 = vector.broadcast %cst_426 : f32 to vector<1x128xf32>
    %1280 = vector.broadcast %cst_427 : f32 to vector<1x128xf32>
    %1281 = arith.select %1278, %1279, %1280 : vector<1x128xi1>, vector<1x128xf32>
    %1282 = arith.mulf %1281, %1262 : vector<1x128xf32>
    %1283 = arith.addf %1259, %1282 : vector<1x128xf32>
    %cst_428 = arith.constant 0.000000e+00 : f32
    %1284 = vector.broadcast %cst_428 : f32 to vector<1x128xf32>
    %1285 = arith.select %1278, %1284, %1276 : vector<1x128xi1>, vector<1x128xf32>
    %c1_i32_429 = arith.constant 1 : i32
    %1286 = tpu.dynamic_rotate %1262 by %c1_i32_429 dim 1 : vector<1x128xf32>, i32 -> vector<1x128xf32>
    %c53_i32 = arith.constant 53 : i32
    %1287 = arith.addi %0, %c53_i32 : i32
    %1288 = arith.index_cast %1287 : i32 to index
    %1289 = memref.load %arg1[%1288] : memref<128xf32, #tpu.memory_space<smem>>
    %1290 = vector.broadcast %1289 : f32 to vector<1x128xf32>
    %1291 = arith.addf %1, %1290 : vector<1x128xf32>
    %cst_430 = arith.constant 0.949999988 : f32
    %1292 = vector.broadcast %cst_430 : f32 to vector<1x128xf32>
    %1293 = arith.mulf %1292, %1272 : vector<1x128xf32>
    %cst_431 = arith.constant 5.000000e-02 : f32
    %1294 = vector.broadcast %cst_431 : f32 to vector<1x128xf32>
    %1295 = arith.mulf %1294, %1291 : vector<1x128xf32>
    %1296 = arith.addf %1293, %1295 : vector<1x128xf32>
    %cst_432 = arith.constant 0.949999988 : f32
    %1297 = vector.broadcast %cst_432 : f32 to vector<1x128xf32>
    %1298 = arith.mulf %1297, %1285 : vector<1x128xf32>
    %1299 = arith.mulf %1296, %9 : vector<1x128xf32>
    %1300 = arith.addf %1298, %1299 : vector<1x128xf32>
    %cst_433 = arith.constant 1.000000e+00 : f32
    %1301 = vector.broadcast %cst_433 : f32 to vector<1x128xf32>
    %1302 = arith.cmpf ogt, %1300, %1301 : vector<1x128xf32>
    %cst_434 = arith.constant 1.000000e+00 : f32
    %cst_435 = arith.constant 0.000000e+00 : f32
    %1303 = vector.broadcast %cst_434 : f32 to vector<1x128xf32>
    %1304 = vector.broadcast %cst_435 : f32 to vector<1x128xf32>
    %1305 = arith.select %1302, %1303, %1304 : vector<1x128xi1>, vector<1x128xf32>
    %1306 = arith.mulf %1305, %1286 : vector<1x128xf32>
    %1307 = arith.addf %1283, %1306 : vector<1x128xf32>
    %cst_436 = arith.constant 0.000000e+00 : f32
    %1308 = vector.broadcast %cst_436 : f32 to vector<1x128xf32>
    %1309 = arith.select %1302, %1308, %1300 : vector<1x128xi1>, vector<1x128xf32>
    %c1_i32_437 = arith.constant 1 : i32
    %1310 = tpu.dynamic_rotate %1286 by %c1_i32_437 dim 1 : vector<1x128xf32>, i32 -> vector<1x128xf32>
    %c54_i32 = arith.constant 54 : i32
    %1311 = arith.addi %0, %c54_i32 : i32
    %1312 = arith.index_cast %1311 : i32 to index
    %1313 = memref.load %arg1[%1312] : memref<128xf32, #tpu.memory_space<smem>>
    %1314 = vector.broadcast %1313 : f32 to vector<1x128xf32>
    %1315 = arith.addf %1, %1314 : vector<1x128xf32>
    %cst_438 = arith.constant 0.949999988 : f32
    %1316 = vector.broadcast %cst_438 : f32 to vector<1x128xf32>
    %1317 = arith.mulf %1316, %1296 : vector<1x128xf32>
    %cst_439 = arith.constant 5.000000e-02 : f32
    %1318 = vector.broadcast %cst_439 : f32 to vector<1x128xf32>
    %1319 = arith.mulf %1318, %1315 : vector<1x128xf32>
    %1320 = arith.addf %1317, %1319 : vector<1x128xf32>
    %cst_440 = arith.constant 0.949999988 : f32
    %1321 = vector.broadcast %cst_440 : f32 to vector<1x128xf32>
    %1322 = arith.mulf %1321, %1309 : vector<1x128xf32>
    %1323 = arith.mulf %1320, %9 : vector<1x128xf32>
    %1324 = arith.addf %1322, %1323 : vector<1x128xf32>
    %cst_441 = arith.constant 1.000000e+00 : f32
    %1325 = vector.broadcast %cst_441 : f32 to vector<1x128xf32>
    %1326 = arith.cmpf ogt, %1324, %1325 : vector<1x128xf32>
    %cst_442 = arith.constant 1.000000e+00 : f32
    %cst_443 = arith.constant 0.000000e+00 : f32
    %1327 = vector.broadcast %cst_442 : f32 to vector<1x128xf32>
    %1328 = vector.broadcast %cst_443 : f32 to vector<1x128xf32>
    %1329 = arith.select %1326, %1327, %1328 : vector<1x128xi1>, vector<1x128xf32>
    %1330 = arith.mulf %1329, %1310 : vector<1x128xf32>
    %1331 = arith.addf %1307, %1330 : vector<1x128xf32>
    %cst_444 = arith.constant 0.000000e+00 : f32
    %1332 = vector.broadcast %cst_444 : f32 to vector<1x128xf32>
    %1333 = arith.select %1326, %1332, %1324 : vector<1x128xi1>, vector<1x128xf32>
    %c1_i32_445 = arith.constant 1 : i32
    %1334 = tpu.dynamic_rotate %1310 by %c1_i32_445 dim 1 : vector<1x128xf32>, i32 -> vector<1x128xf32>
    %c55_i32 = arith.constant 55 : i32
    %1335 = arith.addi %0, %c55_i32 : i32
    %1336 = arith.index_cast %1335 : i32 to index
    %1337 = memref.load %arg1[%1336] : memref<128xf32, #tpu.memory_space<smem>>
    %1338 = vector.broadcast %1337 : f32 to vector<1x128xf32>
    %1339 = arith.addf %1, %1338 : vector<1x128xf32>
    %cst_446 = arith.constant 0.949999988 : f32
    %1340 = vector.broadcast %cst_446 : f32 to vector<1x128xf32>
    %1341 = arith.mulf %1340, %1320 : vector<1x128xf32>
    %cst_447 = arith.constant 5.000000e-02 : f32
    %1342 = vector.broadcast %cst_447 : f32 to vector<1x128xf32>
    %1343 = arith.mulf %1342, %1339 : vector<1x128xf32>
    %1344 = arith.addf %1341, %1343 : vector<1x128xf32>
    %cst_448 = arith.constant 0.949999988 : f32
    %1345 = vector.broadcast %cst_448 : f32 to vector<1x128xf32>
    %1346 = arith.mulf %1345, %1333 : vector<1x128xf32>
    %1347 = arith.mulf %1344, %9 : vector<1x128xf32>
    %1348 = arith.addf %1346, %1347 : vector<1x128xf32>
    %cst_449 = arith.constant 1.000000e+00 : f32
    %1349 = vector.broadcast %cst_449 : f32 to vector<1x128xf32>
    %1350 = arith.cmpf ogt, %1348, %1349 : vector<1x128xf32>
    %cst_450 = arith.constant 1.000000e+00 : f32
    %cst_451 = arith.constant 0.000000e+00 : f32
    %1351 = vector.broadcast %cst_450 : f32 to vector<1x128xf32>
    %1352 = vector.broadcast %cst_451 : f32 to vector<1x128xf32>
    %1353 = arith.select %1350, %1351, %1352 : vector<1x128xi1>, vector<1x128xf32>
    %1354 = arith.mulf %1353, %1334 : vector<1x128xf32>
    %1355 = arith.addf %1331, %1354 : vector<1x128xf32>
    %cst_452 = arith.constant 0.000000e+00 : f32
    %1356 = vector.broadcast %cst_452 : f32 to vector<1x128xf32>
    %1357 = arith.select %1350, %1356, %1348 : vector<1x128xi1>, vector<1x128xf32>
    %c1_i32_453 = arith.constant 1 : i32
    %1358 = tpu.dynamic_rotate %1334 by %c1_i32_453 dim 1 : vector<1x128xf32>, i32 -> vector<1x128xf32>
    %c56_i32 = arith.constant 56 : i32
    %1359 = arith.addi %0, %c56_i32 : i32
    %1360 = arith.index_cast %1359 : i32 to index
    %1361 = memref.load %arg1[%1360] : memref<128xf32, #tpu.memory_space<smem>>
    %1362 = vector.broadcast %1361 : f32 to vector<1x128xf32>
    %1363 = arith.addf %1, %1362 : vector<1x128xf32>
    %cst_454 = arith.constant 0.949999988 : f32
    %1364 = vector.broadcast %cst_454 : f32 to vector<1x128xf32>
    %1365 = arith.mulf %1364, %1344 : vector<1x128xf32>
    %cst_455 = arith.constant 5.000000e-02 : f32
    %1366 = vector.broadcast %cst_455 : f32 to vector<1x128xf32>
    %1367 = arith.mulf %1366, %1363 : vector<1x128xf32>
    %1368 = arith.addf %1365, %1367 : vector<1x128xf32>
    %cst_456 = arith.constant 0.949999988 : f32
    %1369 = vector.broadcast %cst_456 : f32 to vector<1x128xf32>
    %1370 = arith.mulf %1369, %1357 : vector<1x128xf32>
    %1371 = arith.mulf %1368, %9 : vector<1x128xf32>
    %1372 = arith.addf %1370, %1371 : vector<1x128xf32>
    %cst_457 = arith.constant 1.000000e+00 : f32
    %1373 = vector.broadcast %cst_457 : f32 to vector<1x128xf32>
    %1374 = arith.cmpf ogt, %1372, %1373 : vector<1x128xf32>
    %cst_458 = arith.constant 1.000000e+00 : f32
    %cst_459 = arith.constant 0.000000e+00 : f32
    %1375 = vector.broadcast %cst_458 : f32 to vector<1x128xf32>
    %1376 = vector.broadcast %cst_459 : f32 to vector<1x128xf32>
    %1377 = arith.select %1374, %1375, %1376 : vector<1x128xi1>, vector<1x128xf32>
    %1378 = arith.mulf %1377, %1358 : vector<1x128xf32>
    %1379 = arith.addf %1355, %1378 : vector<1x128xf32>
    %cst_460 = arith.constant 0.000000e+00 : f32
    %1380 = vector.broadcast %cst_460 : f32 to vector<1x128xf32>
    %1381 = arith.select %1374, %1380, %1372 : vector<1x128xi1>, vector<1x128xf32>
    %c1_i32_461 = arith.constant 1 : i32
    %1382 = tpu.dynamic_rotate %1358 by %c1_i32_461 dim 1 : vector<1x128xf32>, i32 -> vector<1x128xf32>
    %c57_i32 = arith.constant 57 : i32
    %1383 = arith.addi %0, %c57_i32 : i32
    %1384 = arith.index_cast %1383 : i32 to index
    %1385 = memref.load %arg1[%1384] : memref<128xf32, #tpu.memory_space<smem>>
    %1386 = vector.broadcast %1385 : f32 to vector<1x128xf32>
    %1387 = arith.addf %1, %1386 : vector<1x128xf32>
    %cst_462 = arith.constant 0.949999988 : f32
    %1388 = vector.broadcast %cst_462 : f32 to vector<1x128xf32>
    %1389 = arith.mulf %1388, %1368 : vector<1x128xf32>
    %cst_463 = arith.constant 5.000000e-02 : f32
    %1390 = vector.broadcast %cst_463 : f32 to vector<1x128xf32>
    %1391 = arith.mulf %1390, %1387 : vector<1x128xf32>
    %1392 = arith.addf %1389, %1391 : vector<1x128xf32>
    %cst_464 = arith.constant 0.949999988 : f32
    %1393 = vector.broadcast %cst_464 : f32 to vector<1x128xf32>
    %1394 = arith.mulf %1393, %1381 : vector<1x128xf32>
    %1395 = arith.mulf %1392, %9 : vector<1x128xf32>
    %1396 = arith.addf %1394, %1395 : vector<1x128xf32>
    %cst_465 = arith.constant 1.000000e+00 : f32
    %1397 = vector.broadcast %cst_465 : f32 to vector<1x128xf32>
    %1398 = arith.cmpf ogt, %1396, %1397 : vector<1x128xf32>
    %cst_466 = arith.constant 1.000000e+00 : f32
    %cst_467 = arith.constant 0.000000e+00 : f32
    %1399 = vector.broadcast %cst_466 : f32 to vector<1x128xf32>
    %1400 = vector.broadcast %cst_467 : f32 to vector<1x128xf32>
    %1401 = arith.select %1398, %1399, %1400 : vector<1x128xi1>, vector<1x128xf32>
    %1402 = arith.mulf %1401, %1382 : vector<1x128xf32>
    %1403 = arith.addf %1379, %1402 : vector<1x128xf32>
    %cst_468 = arith.constant 0.000000e+00 : f32
    %1404 = vector.broadcast %cst_468 : f32 to vector<1x128xf32>
    %1405 = arith.select %1398, %1404, %1396 : vector<1x128xi1>, vector<1x128xf32>
    %c1_i32_469 = arith.constant 1 : i32
    %1406 = tpu.dynamic_rotate %1382 by %c1_i32_469 dim 1 : vector<1x128xf32>, i32 -> vector<1x128xf32>
    %c58_i32 = arith.constant 58 : i32
    %1407 = arith.addi %0, %c58_i32 : i32
    %1408 = arith.index_cast %1407 : i32 to index
    %1409 = memref.load %arg1[%1408] : memref<128xf32, #tpu.memory_space<smem>>
    %1410 = vector.broadcast %1409 : f32 to vector<1x128xf32>
    %1411 = arith.addf %1, %1410 : vector<1x128xf32>
    %cst_470 = arith.constant 0.949999988 : f32
    %1412 = vector.broadcast %cst_470 : f32 to vector<1x128xf32>
    %1413 = arith.mulf %1412, %1392 : vector<1x128xf32>
    %cst_471 = arith.constant 5.000000e-02 : f32
    %1414 = vector.broadcast %cst_471 : f32 to vector<1x128xf32>
    %1415 = arith.mulf %1414, %1411 : vector<1x128xf32>
    %1416 = arith.addf %1413, %1415 : vector<1x128xf32>
    %cst_472 = arith.constant 0.949999988 : f32
    %1417 = vector.broadcast %cst_472 : f32 to vector<1x128xf32>
    %1418 = arith.mulf %1417, %1405 : vector<1x128xf32>
    %1419 = arith.mulf %1416, %9 : vector<1x128xf32>
    %1420 = arith.addf %1418, %1419 : vector<1x128xf32>
    %cst_473 = arith.constant 1.000000e+00 : f32
    %1421 = vector.broadcast %cst_473 : f32 to vector<1x128xf32>
    %1422 = arith.cmpf ogt, %1420, %1421 : vector<1x128xf32>
    %cst_474 = arith.constant 1.000000e+00 : f32
    %cst_475 = arith.constant 0.000000e+00 : f32
    %1423 = vector.broadcast %cst_474 : f32 to vector<1x128xf32>
    %1424 = vector.broadcast %cst_475 : f32 to vector<1x128xf32>
    %1425 = arith.select %1422, %1423, %1424 : vector<1x128xi1>, vector<1x128xf32>
    %1426 = arith.mulf %1425, %1406 : vector<1x128xf32>
    %1427 = arith.addf %1403, %1426 : vector<1x128xf32>
    %cst_476 = arith.constant 0.000000e+00 : f32
    %1428 = vector.broadcast %cst_476 : f32 to vector<1x128xf32>
    %1429 = arith.select %1422, %1428, %1420 : vector<1x128xi1>, vector<1x128xf32>
    %c1_i32_477 = arith.constant 1 : i32
    %1430 = tpu.dynamic_rotate %1406 by %c1_i32_477 dim 1 : vector<1x128xf32>, i32 -> vector<1x128xf32>
    %c59_i32 = arith.constant 59 : i32
    %1431 = arith.addi %0, %c59_i32 : i32
    %1432 = arith.index_cast %1431 : i32 to index
    %1433 = memref.load %arg1[%1432] : memref<128xf32, #tpu.memory_space<smem>>
    %1434 = vector.broadcast %1433 : f32 to vector<1x128xf32>
    %1435 = arith.addf %1, %1434 : vector<1x128xf32>
    %cst_478 = arith.constant 0.949999988 : f32
    %1436 = vector.broadcast %cst_478 : f32 to vector<1x128xf32>
    %1437 = arith.mulf %1436, %1416 : vector<1x128xf32>
    %cst_479 = arith.constant 5.000000e-02 : f32
    %1438 = vector.broadcast %cst_479 : f32 to vector<1x128xf32>
    %1439 = arith.mulf %1438, %1435 : vector<1x128xf32>
    %1440 = arith.addf %1437, %1439 : vector<1x128xf32>
    %cst_480 = arith.constant 0.949999988 : f32
    %1441 = vector.broadcast %cst_480 : f32 to vector<1x128xf32>
    %1442 = arith.mulf %1441, %1429 : vector<1x128xf32>
    %1443 = arith.mulf %1440, %9 : vector<1x128xf32>
    %1444 = arith.addf %1442, %1443 : vector<1x128xf32>
    %cst_481 = arith.constant 1.000000e+00 : f32
    %1445 = vector.broadcast %cst_481 : f32 to vector<1x128xf32>
    %1446 = arith.cmpf ogt, %1444, %1445 : vector<1x128xf32>
    %cst_482 = arith.constant 1.000000e+00 : f32
    %cst_483 = arith.constant 0.000000e+00 : f32
    %1447 = vector.broadcast %cst_482 : f32 to vector<1x128xf32>
    %1448 = vector.broadcast %cst_483 : f32 to vector<1x128xf32>
    %1449 = arith.select %1446, %1447, %1448 : vector<1x128xi1>, vector<1x128xf32>
    %1450 = arith.mulf %1449, %1430 : vector<1x128xf32>
    %1451 = arith.addf %1427, %1450 : vector<1x128xf32>
    %cst_484 = arith.constant 0.000000e+00 : f32
    %1452 = vector.broadcast %cst_484 : f32 to vector<1x128xf32>
    %1453 = arith.select %1446, %1452, %1444 : vector<1x128xi1>, vector<1x128xf32>
    %c1_i32_485 = arith.constant 1 : i32
    %1454 = tpu.dynamic_rotate %1430 by %c1_i32_485 dim 1 : vector<1x128xf32>, i32 -> vector<1x128xf32>
    %c60_i32 = arith.constant 60 : i32
    %1455 = arith.addi %0, %c60_i32 : i32
    %1456 = arith.index_cast %1455 : i32 to index
    %1457 = memref.load %arg1[%1456] : memref<128xf32, #tpu.memory_space<smem>>
    %1458 = vector.broadcast %1457 : f32 to vector<1x128xf32>
    %1459 = arith.addf %1, %1458 : vector<1x128xf32>
    %cst_486 = arith.constant 0.949999988 : f32
    %1460 = vector.broadcast %cst_486 : f32 to vector<1x128xf32>
    %1461 = arith.mulf %1460, %1440 : vector<1x128xf32>
    %cst_487 = arith.constant 5.000000e-02 : f32
    %1462 = vector.broadcast %cst_487 : f32 to vector<1x128xf32>
    %1463 = arith.mulf %1462, %1459 : vector<1x128xf32>
    %1464 = arith.addf %1461, %1463 : vector<1x128xf32>
    %cst_488 = arith.constant 0.949999988 : f32
    %1465 = vector.broadcast %cst_488 : f32 to vector<1x128xf32>
    %1466 = arith.mulf %1465, %1453 : vector<1x128xf32>
    %1467 = arith.mulf %1464, %9 : vector<1x128xf32>
    %1468 = arith.addf %1466, %1467 : vector<1x128xf32>
    %cst_489 = arith.constant 1.000000e+00 : f32
    %1469 = vector.broadcast %cst_489 : f32 to vector<1x128xf32>
    %1470 = arith.cmpf ogt, %1468, %1469 : vector<1x128xf32>
    %cst_490 = arith.constant 1.000000e+00 : f32
    %cst_491 = arith.constant 0.000000e+00 : f32
    %1471 = vector.broadcast %cst_490 : f32 to vector<1x128xf32>
    %1472 = vector.broadcast %cst_491 : f32 to vector<1x128xf32>
    %1473 = arith.select %1470, %1471, %1472 : vector<1x128xi1>, vector<1x128xf32>
    %1474 = arith.mulf %1473, %1454 : vector<1x128xf32>
    %1475 = arith.addf %1451, %1474 : vector<1x128xf32>
    %cst_492 = arith.constant 0.000000e+00 : f32
    %1476 = vector.broadcast %cst_492 : f32 to vector<1x128xf32>
    %1477 = arith.select %1470, %1476, %1468 : vector<1x128xi1>, vector<1x128xf32>
    %c1_i32_493 = arith.constant 1 : i32
    %1478 = tpu.dynamic_rotate %1454 by %c1_i32_493 dim 1 : vector<1x128xf32>, i32 -> vector<1x128xf32>
    %c61_i32 = arith.constant 61 : i32
    %1479 = arith.addi %0, %c61_i32 : i32
    %1480 = arith.index_cast %1479 : i32 to index
    %1481 = memref.load %arg1[%1480] : memref<128xf32, #tpu.memory_space<smem>>
    %1482 = vector.broadcast %1481 : f32 to vector<1x128xf32>
    %1483 = arith.addf %1, %1482 : vector<1x128xf32>
    %cst_494 = arith.constant 0.949999988 : f32
    %1484 = vector.broadcast %cst_494 : f32 to vector<1x128xf32>
    %1485 = arith.mulf %1484, %1464 : vector<1x128xf32>
    %cst_495 = arith.constant 5.000000e-02 : f32
    %1486 = vector.broadcast %cst_495 : f32 to vector<1x128xf32>
    %1487 = arith.mulf %1486, %1483 : vector<1x128xf32>
    %1488 = arith.addf %1485, %1487 : vector<1x128xf32>
    %cst_496 = arith.constant 0.949999988 : f32
    %1489 = vector.broadcast %cst_496 : f32 to vector<1x128xf32>
    %1490 = arith.mulf %1489, %1477 : vector<1x128xf32>
    %1491 = arith.mulf %1488, %9 : vector<1x128xf32>
    %1492 = arith.addf %1490, %1491 : vector<1x128xf32>
    %cst_497 = arith.constant 1.000000e+00 : f32
    %1493 = vector.broadcast %cst_497 : f32 to vector<1x128xf32>
    %1494 = arith.cmpf ogt, %1492, %1493 : vector<1x128xf32>
    %cst_498 = arith.constant 1.000000e+00 : f32
    %cst_499 = arith.constant 0.000000e+00 : f32
    %1495 = vector.broadcast %cst_498 : f32 to vector<1x128xf32>
    %1496 = vector.broadcast %cst_499 : f32 to vector<1x128xf32>
    %1497 = arith.select %1494, %1495, %1496 : vector<1x128xi1>, vector<1x128xf32>
    %1498 = arith.mulf %1497, %1478 : vector<1x128xf32>
    %1499 = arith.addf %1475, %1498 : vector<1x128xf32>
    %cst_500 = arith.constant 0.000000e+00 : f32
    %1500 = vector.broadcast %cst_500 : f32 to vector<1x128xf32>
    %1501 = arith.select %1494, %1500, %1492 : vector<1x128xi1>, vector<1x128xf32>
    %c1_i32_501 = arith.constant 1 : i32
    %1502 = tpu.dynamic_rotate %1478 by %c1_i32_501 dim 1 : vector<1x128xf32>, i32 -> vector<1x128xf32>
    %c62_i32 = arith.constant 62 : i32
    %1503 = arith.addi %0, %c62_i32 : i32
    %1504 = arith.index_cast %1503 : i32 to index
    %1505 = memref.load %arg1[%1504] : memref<128xf32, #tpu.memory_space<smem>>
    %1506 = vector.broadcast %1505 : f32 to vector<1x128xf32>
    %1507 = arith.addf %1, %1506 : vector<1x128xf32>
    %cst_502 = arith.constant 0.949999988 : f32
    %1508 = vector.broadcast %cst_502 : f32 to vector<1x128xf32>
    %1509 = arith.mulf %1508, %1488 : vector<1x128xf32>
    %cst_503 = arith.constant 5.000000e-02 : f32
    %1510 = vector.broadcast %cst_503 : f32 to vector<1x128xf32>
    %1511 = arith.mulf %1510, %1507 : vector<1x128xf32>
    %1512 = arith.addf %1509, %1511 : vector<1x128xf32>
    %cst_504 = arith.constant 0.949999988 : f32
    %1513 = vector.broadcast %cst_504 : f32 to vector<1x128xf32>
    %1514 = arith.mulf %1513, %1501 : vector<1x128xf32>
    %1515 = arith.mulf %1512, %9 : vector<1x128xf32>
    %1516 = arith.addf %1514, %1515 : vector<1x128xf32>
    %cst_505 = arith.constant 1.000000e+00 : f32
    %1517 = vector.broadcast %cst_505 : f32 to vector<1x128xf32>
    %1518 = arith.cmpf ogt, %1516, %1517 : vector<1x128xf32>
    %cst_506 = arith.constant 1.000000e+00 : f32
    %cst_507 = arith.constant 0.000000e+00 : f32
    %1519 = vector.broadcast %cst_506 : f32 to vector<1x128xf32>
    %1520 = vector.broadcast %cst_507 : f32 to vector<1x128xf32>
    %1521 = arith.select %1518, %1519, %1520 : vector<1x128xi1>, vector<1x128xf32>
    %1522 = arith.mulf %1521, %1502 : vector<1x128xf32>
    %1523 = arith.addf %1499, %1522 : vector<1x128xf32>
    %cst_508 = arith.constant 0.000000e+00 : f32
    %1524 = vector.broadcast %cst_508 : f32 to vector<1x128xf32>
    %1525 = arith.select %1518, %1524, %1516 : vector<1x128xi1>, vector<1x128xf32>
    %c1_i32_509 = arith.constant 1 : i32
    %1526 = tpu.dynamic_rotate %1502 by %c1_i32_509 dim 1 : vector<1x128xf32>, i32 -> vector<1x128xf32>
    %c63_i32 = arith.constant 63 : i32
    %1527 = arith.addi %0, %c63_i32 : i32
    %1528 = arith.index_cast %1527 : i32 to index
    %1529 = memref.load %arg1[%1528] : memref<128xf32, #tpu.memory_space<smem>>
    %1530 = vector.broadcast %1529 : f32 to vector<1x128xf32>
    %1531 = arith.addf %1, %1530 : vector<1x128xf32>
    %cst_510 = arith.constant 0.949999988 : f32
    %1532 = vector.broadcast %cst_510 : f32 to vector<1x128xf32>
    %1533 = arith.mulf %1532, %1512 : vector<1x128xf32>
    %cst_511 = arith.constant 5.000000e-02 : f32
    %1534 = vector.broadcast %cst_511 : f32 to vector<1x128xf32>
    %1535 = arith.mulf %1534, %1531 : vector<1x128xf32>
    %1536 = arith.addf %1533, %1535 : vector<1x128xf32>
    %cst_512 = arith.constant 0.949999988 : f32
    %1537 = vector.broadcast %cst_512 : f32 to vector<1x128xf32>
    %1538 = arith.mulf %1537, %1525 : vector<1x128xf32>
    %1539 = arith.mulf %1536, %9 : vector<1x128xf32>
    %1540 = arith.addf %1538, %1539 : vector<1x128xf32>
    %cst_513 = arith.constant 1.000000e+00 : f32
    %1541 = vector.broadcast %cst_513 : f32 to vector<1x128xf32>
    %1542 = arith.cmpf ogt, %1540, %1541 : vector<1x128xf32>
    %cst_514 = arith.constant 1.000000e+00 : f32
    %cst_515 = arith.constant 0.000000e+00 : f32
    %1543 = vector.broadcast %cst_514 : f32 to vector<1x128xf32>
    %1544 = vector.broadcast %cst_515 : f32 to vector<1x128xf32>
    %1545 = arith.select %1542, %1543, %1544 : vector<1x128xi1>, vector<1x128xf32>
    %1546 = arith.mulf %1545, %1526 : vector<1x128xf32>
    %1547 = arith.addf %1523, %1546 : vector<1x128xf32>
    %cst_516 = arith.constant 0.000000e+00 : f32
    %1548 = vector.broadcast %cst_516 : f32 to vector<1x128xf32>
    %1549 = arith.select %1542, %1548, %1540 : vector<1x128xi1>, vector<1x128xf32>
    %c1_i32_517 = arith.constant 1 : i32
    %1550 = tpu.dynamic_rotate %1526 by %c1_i32_517 dim 1 : vector<1x128xf32>, i32 -> vector<1x128xf32>
    %c64_i32 = arith.constant 64 : i32
    %c64_i32_518 = arith.constant 64 : i32
    %1551 = arith.addi %0, %c64_i32_518 : i32
    %1552 = arith.index_cast %1551 : i32 to index
    %1553 = memref.load %arg1[%1552] : memref<128xf32, #tpu.memory_space<smem>>
    %1554 = vector.broadcast %1553 : f32 to vector<1x128xf32>
    %1555 = arith.addf %1, %1554 : vector<1x128xf32>
    %cst_519 = arith.constant 0.949999988 : f32
    %1556 = vector.broadcast %cst_519 : f32 to vector<1x128xf32>
    %1557 = arith.mulf %1556, %1536 : vector<1x128xf32>
    %cst_520 = arith.constant 5.000000e-02 : f32
    %1558 = vector.broadcast %cst_520 : f32 to vector<1x128xf32>
    %1559 = arith.mulf %1558, %1555 : vector<1x128xf32>
    %1560 = arith.addf %1557, %1559 : vector<1x128xf32>
    %cst_521 = arith.constant 0.949999988 : f32
    %1561 = vector.broadcast %cst_521 : f32 to vector<1x128xf32>
    %1562 = arith.mulf %1561, %1549 : vector<1x128xf32>
    %1563 = arith.mulf %1560, %9 : vector<1x128xf32>
    %1564 = arith.addf %1562, %1563 : vector<1x128xf32>
    %cst_522 = arith.constant 1.000000e+00 : f32
    %1565 = vector.broadcast %cst_522 : f32 to vector<1x128xf32>
    %1566 = arith.cmpf ogt, %1564, %1565 : vector<1x128xf32>
    %cst_523 = arith.constant 1.000000e+00 : f32
    %cst_524 = arith.constant 0.000000e+00 : f32
    %1567 = vector.broadcast %cst_523 : f32 to vector<1x128xf32>
    %1568 = vector.broadcast %cst_524 : f32 to vector<1x128xf32>
    %1569 = arith.select %1566, %1567, %1568 : vector<1x128xi1>, vector<1x128xf32>
    %1570 = arith.mulf %1569, %1550 : vector<1x128xf32>
    %1571 = arith.addf %1547, %1570 : vector<1x128xf32>
    %cst_525 = arith.constant 0.000000e+00 : f32
    %1572 = vector.broadcast %cst_525 : f32 to vector<1x128xf32>
    %1573 = arith.select %1566, %1572, %1564 : vector<1x128xi1>, vector<1x128xf32>
    %c1_i32_526 = arith.constant 1 : i32
    %1574 = tpu.dynamic_rotate %1550 by %c1_i32_526 dim 1 : vector<1x128xf32>, i32 -> vector<1x128xf32>
    %c65_i32 = arith.constant 65 : i32
    %1575 = arith.addi %0, %c65_i32 : i32
    %1576 = arith.index_cast %1575 : i32 to index
    %1577 = memref.load %arg1[%1576] : memref<128xf32, #tpu.memory_space<smem>>
    %1578 = vector.broadcast %1577 : f32 to vector<1x128xf32>
    %1579 = arith.addf %1, %1578 : vector<1x128xf32>
    %cst_527 = arith.constant 0.949999988 : f32
    %1580 = vector.broadcast %cst_527 : f32 to vector<1x128xf32>
    %1581 = arith.mulf %1580, %1560 : vector<1x128xf32>
    %cst_528 = arith.constant 5.000000e-02 : f32
    %1582 = vector.broadcast %cst_528 : f32 to vector<1x128xf32>
    %1583 = arith.mulf %1582, %1579 : vector<1x128xf32>
    %1584 = arith.addf %1581, %1583 : vector<1x128xf32>
    %cst_529 = arith.constant 0.949999988 : f32
    %1585 = vector.broadcast %cst_529 : f32 to vector<1x128xf32>
    %1586 = arith.mulf %1585, %1573 : vector<1x128xf32>
    %1587 = arith.mulf %1584, %9 : vector<1x128xf32>
    %1588 = arith.addf %1586, %1587 : vector<1x128xf32>
    %cst_530 = arith.constant 1.000000e+00 : f32
    %1589 = vector.broadcast %cst_530 : f32 to vector<1x128xf32>
    %1590 = arith.cmpf ogt, %1588, %1589 : vector<1x128xf32>
    %cst_531 = arith.constant 1.000000e+00 : f32
    %cst_532 = arith.constant 0.000000e+00 : f32
    %1591 = vector.broadcast %cst_531 : f32 to vector<1x128xf32>
    %1592 = vector.broadcast %cst_532 : f32 to vector<1x128xf32>
    %1593 = arith.select %1590, %1591, %1592 : vector<1x128xi1>, vector<1x128xf32>
    %1594 = arith.mulf %1593, %1574 : vector<1x128xf32>
    %1595 = arith.addf %1571, %1594 : vector<1x128xf32>
    %cst_533 = arith.constant 0.000000e+00 : f32
    %1596 = vector.broadcast %cst_533 : f32 to vector<1x128xf32>
    %1597 = arith.select %1590, %1596, %1588 : vector<1x128xi1>, vector<1x128xf32>
    %c1_i32_534 = arith.constant 1 : i32
    %1598 = tpu.dynamic_rotate %1574 by %c1_i32_534 dim 1 : vector<1x128xf32>, i32 -> vector<1x128xf32>
    %c66_i32 = arith.constant 66 : i32
    %1599 = arith.addi %0, %c66_i32 : i32
    %1600 = arith.index_cast %1599 : i32 to index
    %1601 = memref.load %arg1[%1600] : memref<128xf32, #tpu.memory_space<smem>>
    %1602 = vector.broadcast %1601 : f32 to vector<1x128xf32>
    %1603 = arith.addf %1, %1602 : vector<1x128xf32>
    %cst_535 = arith.constant 0.949999988 : f32
    %1604 = vector.broadcast %cst_535 : f32 to vector<1x128xf32>
    %1605 = arith.mulf %1604, %1584 : vector<1x128xf32>
    %cst_536 = arith.constant 5.000000e-02 : f32
    %1606 = vector.broadcast %cst_536 : f32 to vector<1x128xf32>
    %1607 = arith.mulf %1606, %1603 : vector<1x128xf32>
    %1608 = arith.addf %1605, %1607 : vector<1x128xf32>
    %cst_537 = arith.constant 0.949999988 : f32
    %1609 = vector.broadcast %cst_537 : f32 to vector<1x128xf32>
    %1610 = arith.mulf %1609, %1597 : vector<1x128xf32>
    %1611 = arith.mulf %1608, %9 : vector<1x128xf32>
    %1612 = arith.addf %1610, %1611 : vector<1x128xf32>
    %cst_538 = arith.constant 1.000000e+00 : f32
    %1613 = vector.broadcast %cst_538 : f32 to vector<1x128xf32>
    %1614 = arith.cmpf ogt, %1612, %1613 : vector<1x128xf32>
    %cst_539 = arith.constant 1.000000e+00 : f32
    %cst_540 = arith.constant 0.000000e+00 : f32
    %1615 = vector.broadcast %cst_539 : f32 to vector<1x128xf32>
    %1616 = vector.broadcast %cst_540 : f32 to vector<1x128xf32>
    %1617 = arith.select %1614, %1615, %1616 : vector<1x128xi1>, vector<1x128xf32>
    %1618 = arith.mulf %1617, %1598 : vector<1x128xf32>
    %1619 = arith.addf %1595, %1618 : vector<1x128xf32>
    %cst_541 = arith.constant 0.000000e+00 : f32
    %1620 = vector.broadcast %cst_541 : f32 to vector<1x128xf32>
    %1621 = arith.select %1614, %1620, %1612 : vector<1x128xi1>, vector<1x128xf32>
    %c1_i32_542 = arith.constant 1 : i32
    %1622 = tpu.dynamic_rotate %1598 by %c1_i32_542 dim 1 : vector<1x128xf32>, i32 -> vector<1x128xf32>
    %c67_i32 = arith.constant 67 : i32
    %1623 = arith.addi %0, %c67_i32 : i32
    %1624 = arith.index_cast %1623 : i32 to index
    %1625 = memref.load %arg1[%1624] : memref<128xf32, #tpu.memory_space<smem>>
    %1626 = vector.broadcast %1625 : f32 to vector<1x128xf32>
    %1627 = arith.addf %1, %1626 : vector<1x128xf32>
    %cst_543 = arith.constant 0.949999988 : f32
    %1628 = vector.broadcast %cst_543 : f32 to vector<1x128xf32>
    %1629 = arith.mulf %1628, %1608 : vector<1x128xf32>
    %cst_544 = arith.constant 5.000000e-02 : f32
    %1630 = vector.broadcast %cst_544 : f32 to vector<1x128xf32>
    %1631 = arith.mulf %1630, %1627 : vector<1x128xf32>
    %1632 = arith.addf %1629, %1631 : vector<1x128xf32>
    %cst_545 = arith.constant 0.949999988 : f32
    %1633 = vector.broadcast %cst_545 : f32 to vector<1x128xf32>
    %1634 = arith.mulf %1633, %1621 : vector<1x128xf32>
    %1635 = arith.mulf %1632, %9 : vector<1x128xf32>
    %1636 = arith.addf %1634, %1635 : vector<1x128xf32>
    %cst_546 = arith.constant 1.000000e+00 : f32
    %1637 = vector.broadcast %cst_546 : f32 to vector<1x128xf32>
    %1638 = arith.cmpf ogt, %1636, %1637 : vector<1x128xf32>
    %cst_547 = arith.constant 1.000000e+00 : f32
    %cst_548 = arith.constant 0.000000e+00 : f32
    %1639 = vector.broadcast %cst_547 : f32 to vector<1x128xf32>
    %1640 = vector.broadcast %cst_548 : f32 to vector<1x128xf32>
    %1641 = arith.select %1638, %1639, %1640 : vector<1x128xi1>, vector<1x128xf32>
    %1642 = arith.mulf %1641, %1622 : vector<1x128xf32>
    %1643 = arith.addf %1619, %1642 : vector<1x128xf32>
    %cst_549 = arith.constant 0.000000e+00 : f32
    %1644 = vector.broadcast %cst_549 : f32 to vector<1x128xf32>
    %1645 = arith.select %1638, %1644, %1636 : vector<1x128xi1>, vector<1x128xf32>
    %c1_i32_550 = arith.constant 1 : i32
    %1646 = tpu.dynamic_rotate %1622 by %c1_i32_550 dim 1 : vector<1x128xf32>, i32 -> vector<1x128xf32>
    %c68_i32 = arith.constant 68 : i32
    %1647 = arith.addi %0, %c68_i32 : i32
    %1648 = arith.index_cast %1647 : i32 to index
    %1649 = memref.load %arg1[%1648] : memref<128xf32, #tpu.memory_space<smem>>
    %1650 = vector.broadcast %1649 : f32 to vector<1x128xf32>
    %1651 = arith.addf %1, %1650 : vector<1x128xf32>
    %cst_551 = arith.constant 0.949999988 : f32
    %1652 = vector.broadcast %cst_551 : f32 to vector<1x128xf32>
    %1653 = arith.mulf %1652, %1632 : vector<1x128xf32>
    %cst_552 = arith.constant 5.000000e-02 : f32
    %1654 = vector.broadcast %cst_552 : f32 to vector<1x128xf32>
    %1655 = arith.mulf %1654, %1651 : vector<1x128xf32>
    %1656 = arith.addf %1653, %1655 : vector<1x128xf32>
    %cst_553 = arith.constant 0.949999988 : f32
    %1657 = vector.broadcast %cst_553 : f32 to vector<1x128xf32>
    %1658 = arith.mulf %1657, %1645 : vector<1x128xf32>
    %1659 = arith.mulf %1656, %9 : vector<1x128xf32>
    %1660 = arith.addf %1658, %1659 : vector<1x128xf32>
    %cst_554 = arith.constant 1.000000e+00 : f32
    %1661 = vector.broadcast %cst_554 : f32 to vector<1x128xf32>
    %1662 = arith.cmpf ogt, %1660, %1661 : vector<1x128xf32>
    %cst_555 = arith.constant 1.000000e+00 : f32
    %cst_556 = arith.constant 0.000000e+00 : f32
    %1663 = vector.broadcast %cst_555 : f32 to vector<1x128xf32>
    %1664 = vector.broadcast %cst_556 : f32 to vector<1x128xf32>
    %1665 = arith.select %1662, %1663, %1664 : vector<1x128xi1>, vector<1x128xf32>
    %1666 = arith.mulf %1665, %1646 : vector<1x128xf32>
    %1667 = arith.addf %1643, %1666 : vector<1x128xf32>
    %cst_557 = arith.constant 0.000000e+00 : f32
    %1668 = vector.broadcast %cst_557 : f32 to vector<1x128xf32>
    %1669 = arith.select %1662, %1668, %1660 : vector<1x128xi1>, vector<1x128xf32>
    %c1_i32_558 = arith.constant 1 : i32
    %1670 = tpu.dynamic_rotate %1646 by %c1_i32_558 dim 1 : vector<1x128xf32>, i32 -> vector<1x128xf32>
    %c69_i32 = arith.constant 69 : i32
    %1671 = arith.addi %0, %c69_i32 : i32
    %1672 = arith.index_cast %1671 : i32 to index
    %1673 = memref.load %arg1[%1672] : memref<128xf32, #tpu.memory_space<smem>>
    %1674 = vector.broadcast %1673 : f32 to vector<1x128xf32>
    %1675 = arith.addf %1, %1674 : vector<1x128xf32>
    %cst_559 = arith.constant 0.949999988 : f32
    %1676 = vector.broadcast %cst_559 : f32 to vector<1x128xf32>
    %1677 = arith.mulf %1676, %1656 : vector<1x128xf32>
    %cst_560 = arith.constant 5.000000e-02 : f32
    %1678 = vector.broadcast %cst_560 : f32 to vector<1x128xf32>
    %1679 = arith.mulf %1678, %1675 : vector<1x128xf32>
    %1680 = arith.addf %1677, %1679 : vector<1x128xf32>
    %cst_561 = arith.constant 0.949999988 : f32
    %1681 = vector.broadcast %cst_561 : f32 to vector<1x128xf32>
    %1682 = arith.mulf %1681, %1669 : vector<1x128xf32>
    %1683 = arith.mulf %1680, %9 : vector<1x128xf32>
    %1684 = arith.addf %1682, %1683 : vector<1x128xf32>
    %cst_562 = arith.constant 1.000000e+00 : f32
    %1685 = vector.broadcast %cst_562 : f32 to vector<1x128xf32>
    %1686 = arith.cmpf ogt, %1684, %1685 : vector<1x128xf32>
    %cst_563 = arith.constant 1.000000e+00 : f32
    %cst_564 = arith.constant 0.000000e+00 : f32
    %1687 = vector.broadcast %cst_563 : f32 to vector<1x128xf32>
    %1688 = vector.broadcast %cst_564 : f32 to vector<1x128xf32>
    %1689 = arith.select %1686, %1687, %1688 : vector<1x128xi1>, vector<1x128xf32>
    %1690 = arith.mulf %1689, %1670 : vector<1x128xf32>
    %1691 = arith.addf %1667, %1690 : vector<1x128xf32>
    %cst_565 = arith.constant 0.000000e+00 : f32
    %1692 = vector.broadcast %cst_565 : f32 to vector<1x128xf32>
    %1693 = arith.select %1686, %1692, %1684 : vector<1x128xi1>, vector<1x128xf32>
    %c1_i32_566 = arith.constant 1 : i32
    %1694 = tpu.dynamic_rotate %1670 by %c1_i32_566 dim 1 : vector<1x128xf32>, i32 -> vector<1x128xf32>
    %c70_i32 = arith.constant 70 : i32
    %1695 = arith.addi %0, %c70_i32 : i32
    %1696 = arith.index_cast %1695 : i32 to index
    %1697 = memref.load %arg1[%1696] : memref<128xf32, #tpu.memory_space<smem>>
    %1698 = vector.broadcast %1697 : f32 to vector<1x128xf32>
    %1699 = arith.addf %1, %1698 : vector<1x128xf32>
    %cst_567 = arith.constant 0.949999988 : f32
    %1700 = vector.broadcast %cst_567 : f32 to vector<1x128xf32>
    %1701 = arith.mulf %1700, %1680 : vector<1x128xf32>
    %cst_568 = arith.constant 5.000000e-02 : f32
    %1702 = vector.broadcast %cst_568 : f32 to vector<1x128xf32>
    %1703 = arith.mulf %1702, %1699 : vector<1x128xf32>
    %1704 = arith.addf %1701, %1703 : vector<1x128xf32>
    %cst_569 = arith.constant 0.949999988 : f32
    %1705 = vector.broadcast %cst_569 : f32 to vector<1x128xf32>
    %1706 = arith.mulf %1705, %1693 : vector<1x128xf32>
    %1707 = arith.mulf %1704, %9 : vector<1x128xf32>
    %1708 = arith.addf %1706, %1707 : vector<1x128xf32>
    %cst_570 = arith.constant 1.000000e+00 : f32
    %1709 = vector.broadcast %cst_570 : f32 to vector<1x128xf32>
    %1710 = arith.cmpf ogt, %1708, %1709 : vector<1x128xf32>
    %cst_571 = arith.constant 1.000000e+00 : f32
    %cst_572 = arith.constant 0.000000e+00 : f32
    %1711 = vector.broadcast %cst_571 : f32 to vector<1x128xf32>
    %1712 = vector.broadcast %cst_572 : f32 to vector<1x128xf32>
    %1713 = arith.select %1710, %1711, %1712 : vector<1x128xi1>, vector<1x128xf32>
    %1714 = arith.mulf %1713, %1694 : vector<1x128xf32>
    %1715 = arith.addf %1691, %1714 : vector<1x128xf32>
    %cst_573 = arith.constant 0.000000e+00 : f32
    %1716 = vector.broadcast %cst_573 : f32 to vector<1x128xf32>
    %1717 = arith.select %1710, %1716, %1708 : vector<1x128xi1>, vector<1x128xf32>
    %c1_i32_574 = arith.constant 1 : i32
    %1718 = tpu.dynamic_rotate %1694 by %c1_i32_574 dim 1 : vector<1x128xf32>, i32 -> vector<1x128xf32>
    %c71_i32 = arith.constant 71 : i32
    %1719 = arith.addi %0, %c71_i32 : i32
    %1720 = arith.index_cast %1719 : i32 to index
    %1721 = memref.load %arg1[%1720] : memref<128xf32, #tpu.memory_space<smem>>
    %1722 = vector.broadcast %1721 : f32 to vector<1x128xf32>
    %1723 = arith.addf %1, %1722 : vector<1x128xf32>
    %cst_575 = arith.constant 0.949999988 : f32
    %1724 = vector.broadcast %cst_575 : f32 to vector<1x128xf32>
    %1725 = arith.mulf %1724, %1704 : vector<1x128xf32>
    %cst_576 = arith.constant 5.000000e-02 : f32
    %1726 = vector.broadcast %cst_576 : f32 to vector<1x128xf32>
    %1727 = arith.mulf %1726, %1723 : vector<1x128xf32>
    %1728 = arith.addf %1725, %1727 : vector<1x128xf32>
    %cst_577 = arith.constant 0.949999988 : f32
    %1729 = vector.broadcast %cst_577 : f32 to vector<1x128xf32>
    %1730 = arith.mulf %1729, %1717 : vector<1x128xf32>
    %1731 = arith.mulf %1728, %9 : vector<1x128xf32>
    %1732 = arith.addf %1730, %1731 : vector<1x128xf32>
    %cst_578 = arith.constant 1.000000e+00 : f32
    %1733 = vector.broadcast %cst_578 : f32 to vector<1x128xf32>
    %1734 = arith.cmpf ogt, %1732, %1733 : vector<1x128xf32>
    %cst_579 = arith.constant 1.000000e+00 : f32
    %cst_580 = arith.constant 0.000000e+00 : f32
    %1735 = vector.broadcast %cst_579 : f32 to vector<1x128xf32>
    %1736 = vector.broadcast %cst_580 : f32 to vector<1x128xf32>
    %1737 = arith.select %1734, %1735, %1736 : vector<1x128xi1>, vector<1x128xf32>
    %1738 = arith.mulf %1737, %1718 : vector<1x128xf32>
    %1739 = arith.addf %1715, %1738 : vector<1x128xf32>
    %cst_581 = arith.constant 0.000000e+00 : f32
    %1740 = vector.broadcast %cst_581 : f32 to vector<1x128xf32>
    %1741 = arith.select %1734, %1740, %1732 : vector<1x128xi1>, vector<1x128xf32>
    %c1_i32_582 = arith.constant 1 : i32
    %1742 = tpu.dynamic_rotate %1718 by %c1_i32_582 dim 1 : vector<1x128xf32>, i32 -> vector<1x128xf32>
    %c72_i32 = arith.constant 72 : i32
    %1743 = arith.addi %0, %c72_i32 : i32
    %1744 = arith.index_cast %1743 : i32 to index
    %1745 = memref.load %arg1[%1744] : memref<128xf32, #tpu.memory_space<smem>>
    %1746 = vector.broadcast %1745 : f32 to vector<1x128xf32>
    %1747 = arith.addf %1, %1746 : vector<1x128xf32>
    %cst_583 = arith.constant 0.949999988 : f32
    %1748 = vector.broadcast %cst_583 : f32 to vector<1x128xf32>
    %1749 = arith.mulf %1748, %1728 : vector<1x128xf32>
    %cst_584 = arith.constant 5.000000e-02 : f32
    %1750 = vector.broadcast %cst_584 : f32 to vector<1x128xf32>
    %1751 = arith.mulf %1750, %1747 : vector<1x128xf32>
    %1752 = arith.addf %1749, %1751 : vector<1x128xf32>
    %cst_585 = arith.constant 0.949999988 : f32
    %1753 = vector.broadcast %cst_585 : f32 to vector<1x128xf32>
    %1754 = arith.mulf %1753, %1741 : vector<1x128xf32>
    %1755 = arith.mulf %1752, %9 : vector<1x128xf32>
    %1756 = arith.addf %1754, %1755 : vector<1x128xf32>
    %cst_586 = arith.constant 1.000000e+00 : f32
    %1757 = vector.broadcast %cst_586 : f32 to vector<1x128xf32>
    %1758 = arith.cmpf ogt, %1756, %1757 : vector<1x128xf32>
    %cst_587 = arith.constant 1.000000e+00 : f32
    %cst_588 = arith.constant 0.000000e+00 : f32
    %1759 = vector.broadcast %cst_587 : f32 to vector<1x128xf32>
    %1760 = vector.broadcast %cst_588 : f32 to vector<1x128xf32>
    %1761 = arith.select %1758, %1759, %1760 : vector<1x128xi1>, vector<1x128xf32>
    %1762 = arith.mulf %1761, %1742 : vector<1x128xf32>
    %1763 = arith.addf %1739, %1762 : vector<1x128xf32>
    %cst_589 = arith.constant 0.000000e+00 : f32
    %1764 = vector.broadcast %cst_589 : f32 to vector<1x128xf32>
    %1765 = arith.select %1758, %1764, %1756 : vector<1x128xi1>, vector<1x128xf32>
    %c1_i32_590 = arith.constant 1 : i32
    %1766 = tpu.dynamic_rotate %1742 by %c1_i32_590 dim 1 : vector<1x128xf32>, i32 -> vector<1x128xf32>
    %c73_i32 = arith.constant 73 : i32
    %1767 = arith.addi %0, %c73_i32 : i32
    %1768 = arith.index_cast %1767 : i32 to index
    %1769 = memref.load %arg1[%1768] : memref<128xf32, #tpu.memory_space<smem>>
    %1770 = vector.broadcast %1769 : f32 to vector<1x128xf32>
    %1771 = arith.addf %1, %1770 : vector<1x128xf32>
    %cst_591 = arith.constant 0.949999988 : f32
    %1772 = vector.broadcast %cst_591 : f32 to vector<1x128xf32>
    %1773 = arith.mulf %1772, %1752 : vector<1x128xf32>
    %cst_592 = arith.constant 5.000000e-02 : f32
    %1774 = vector.broadcast %cst_592 : f32 to vector<1x128xf32>
    %1775 = arith.mulf %1774, %1771 : vector<1x128xf32>
    %1776 = arith.addf %1773, %1775 : vector<1x128xf32>
    %cst_593 = arith.constant 0.949999988 : f32
    %1777 = vector.broadcast %cst_593 : f32 to vector<1x128xf32>
    %1778 = arith.mulf %1777, %1765 : vector<1x128xf32>
    %1779 = arith.mulf %1776, %9 : vector<1x128xf32>
    %1780 = arith.addf %1778, %1779 : vector<1x128xf32>
    %cst_594 = arith.constant 1.000000e+00 : f32
    %1781 = vector.broadcast %cst_594 : f32 to vector<1x128xf32>
    %1782 = arith.cmpf ogt, %1780, %1781 : vector<1x128xf32>
    %cst_595 = arith.constant 1.000000e+00 : f32
    %cst_596 = arith.constant 0.000000e+00 : f32
    %1783 = vector.broadcast %cst_595 : f32 to vector<1x128xf32>
    %1784 = vector.broadcast %cst_596 : f32 to vector<1x128xf32>
    %1785 = arith.select %1782, %1783, %1784 : vector<1x128xi1>, vector<1x128xf32>
    %1786 = arith.mulf %1785, %1766 : vector<1x128xf32>
    %1787 = arith.addf %1763, %1786 : vector<1x128xf32>
    %cst_597 = arith.constant 0.000000e+00 : f32
    %1788 = vector.broadcast %cst_597 : f32 to vector<1x128xf32>
    %1789 = arith.select %1782, %1788, %1780 : vector<1x128xi1>, vector<1x128xf32>
    %c1_i32_598 = arith.constant 1 : i32
    %1790 = tpu.dynamic_rotate %1766 by %c1_i32_598 dim 1 : vector<1x128xf32>, i32 -> vector<1x128xf32>
    %c74_i32 = arith.constant 74 : i32
    %1791 = arith.addi %0, %c74_i32 : i32
    %1792 = arith.index_cast %1791 : i32 to index
    %1793 = memref.load %arg1[%1792] : memref<128xf32, #tpu.memory_space<smem>>
    %1794 = vector.broadcast %1793 : f32 to vector<1x128xf32>
    %1795 = arith.addf %1, %1794 : vector<1x128xf32>
    %cst_599 = arith.constant 0.949999988 : f32
    %1796 = vector.broadcast %cst_599 : f32 to vector<1x128xf32>
    %1797 = arith.mulf %1796, %1776 : vector<1x128xf32>
    %cst_600 = arith.constant 5.000000e-02 : f32
    %1798 = vector.broadcast %cst_600 : f32 to vector<1x128xf32>
    %1799 = arith.mulf %1798, %1795 : vector<1x128xf32>
    %1800 = arith.addf %1797, %1799 : vector<1x128xf32>
    %cst_601 = arith.constant 0.949999988 : f32
    %1801 = vector.broadcast %cst_601 : f32 to vector<1x128xf32>
    %1802 = arith.mulf %1801, %1789 : vector<1x128xf32>
    %1803 = arith.mulf %1800, %9 : vector<1x128xf32>
    %1804 = arith.addf %1802, %1803 : vector<1x128xf32>
    %cst_602 = arith.constant 1.000000e+00 : f32
    %1805 = vector.broadcast %cst_602 : f32 to vector<1x128xf32>
    %1806 = arith.cmpf ogt, %1804, %1805 : vector<1x128xf32>
    %cst_603 = arith.constant 1.000000e+00 : f32
    %cst_604 = arith.constant 0.000000e+00 : f32
    %1807 = vector.broadcast %cst_603 : f32 to vector<1x128xf32>
    %1808 = vector.broadcast %cst_604 : f32 to vector<1x128xf32>
    %1809 = arith.select %1806, %1807, %1808 : vector<1x128xi1>, vector<1x128xf32>
    %1810 = arith.mulf %1809, %1790 : vector<1x128xf32>
    %1811 = arith.addf %1787, %1810 : vector<1x128xf32>
    %cst_605 = arith.constant 0.000000e+00 : f32
    %1812 = vector.broadcast %cst_605 : f32 to vector<1x128xf32>
    %1813 = arith.select %1806, %1812, %1804 : vector<1x128xi1>, vector<1x128xf32>
    %c1_i32_606 = arith.constant 1 : i32
    %1814 = tpu.dynamic_rotate %1790 by %c1_i32_606 dim 1 : vector<1x128xf32>, i32 -> vector<1x128xf32>
    %c75_i32 = arith.constant 75 : i32
    %1815 = arith.addi %0, %c75_i32 : i32
    %1816 = arith.index_cast %1815 : i32 to index
    %1817 = memref.load %arg1[%1816] : memref<128xf32, #tpu.memory_space<smem>>
    %1818 = vector.broadcast %1817 : f32 to vector<1x128xf32>
    %1819 = arith.addf %1, %1818 : vector<1x128xf32>
    %cst_607 = arith.constant 0.949999988 : f32
    %1820 = vector.broadcast %cst_607 : f32 to vector<1x128xf32>
    %1821 = arith.mulf %1820, %1800 : vector<1x128xf32>
    %cst_608 = arith.constant 5.000000e-02 : f32
    %1822 = vector.broadcast %cst_608 : f32 to vector<1x128xf32>
    %1823 = arith.mulf %1822, %1819 : vector<1x128xf32>
    %1824 = arith.addf %1821, %1823 : vector<1x128xf32>
    %cst_609 = arith.constant 0.949999988 : f32
    %1825 = vector.broadcast %cst_609 : f32 to vector<1x128xf32>
    %1826 = arith.mulf %1825, %1813 : vector<1x128xf32>
    %1827 = arith.mulf %1824, %9 : vector<1x128xf32>
    %1828 = arith.addf %1826, %1827 : vector<1x128xf32>
    %cst_610 = arith.constant 1.000000e+00 : f32
    %1829 = vector.broadcast %cst_610 : f32 to vector<1x128xf32>
    %1830 = arith.cmpf ogt, %1828, %1829 : vector<1x128xf32>
    %cst_611 = arith.constant 1.000000e+00 : f32
    %cst_612 = arith.constant 0.000000e+00 : f32
    %1831 = vector.broadcast %cst_611 : f32 to vector<1x128xf32>
    %1832 = vector.broadcast %cst_612 : f32 to vector<1x128xf32>
    %1833 = arith.select %1830, %1831, %1832 : vector<1x128xi1>, vector<1x128xf32>
    %1834 = arith.mulf %1833, %1814 : vector<1x128xf32>
    %1835 = arith.addf %1811, %1834 : vector<1x128xf32>
    %cst_613 = arith.constant 0.000000e+00 : f32
    %1836 = vector.broadcast %cst_613 : f32 to vector<1x128xf32>
    %1837 = arith.select %1830, %1836, %1828 : vector<1x128xi1>, vector<1x128xf32>
    %c1_i32_614 = arith.constant 1 : i32
    %1838 = tpu.dynamic_rotate %1814 by %c1_i32_614 dim 1 : vector<1x128xf32>, i32 -> vector<1x128xf32>
    %c76_i32 = arith.constant 76 : i32
    %1839 = arith.addi %0, %c76_i32 : i32
    %1840 = arith.index_cast %1839 : i32 to index
    %1841 = memref.load %arg1[%1840] : memref<128xf32, #tpu.memory_space<smem>>
    %1842 = vector.broadcast %1841 : f32 to vector<1x128xf32>
    %1843 = arith.addf %1, %1842 : vector<1x128xf32>
    %cst_615 = arith.constant 0.949999988 : f32
    %1844 = vector.broadcast %cst_615 : f32 to vector<1x128xf32>
    %1845 = arith.mulf %1844, %1824 : vector<1x128xf32>
    %cst_616 = arith.constant 5.000000e-02 : f32
    %1846 = vector.broadcast %cst_616 : f32 to vector<1x128xf32>
    %1847 = arith.mulf %1846, %1843 : vector<1x128xf32>
    %1848 = arith.addf %1845, %1847 : vector<1x128xf32>
    %cst_617 = arith.constant 0.949999988 : f32
    %1849 = vector.broadcast %cst_617 : f32 to vector<1x128xf32>
    %1850 = arith.mulf %1849, %1837 : vector<1x128xf32>
    %1851 = arith.mulf %1848, %9 : vector<1x128xf32>
    %1852 = arith.addf %1850, %1851 : vector<1x128xf32>
    %cst_618 = arith.constant 1.000000e+00 : f32
    %1853 = vector.broadcast %cst_618 : f32 to vector<1x128xf32>
    %1854 = arith.cmpf ogt, %1852, %1853 : vector<1x128xf32>
    %cst_619 = arith.constant 1.000000e+00 : f32
    %cst_620 = arith.constant 0.000000e+00 : f32
    %1855 = vector.broadcast %cst_619 : f32 to vector<1x128xf32>
    %1856 = vector.broadcast %cst_620 : f32 to vector<1x128xf32>
    %1857 = arith.select %1854, %1855, %1856 : vector<1x128xi1>, vector<1x128xf32>
    %1858 = arith.mulf %1857, %1838 : vector<1x128xf32>
    %1859 = arith.addf %1835, %1858 : vector<1x128xf32>
    %cst_621 = arith.constant 0.000000e+00 : f32
    %1860 = vector.broadcast %cst_621 : f32 to vector<1x128xf32>
    %1861 = arith.select %1854, %1860, %1852 : vector<1x128xi1>, vector<1x128xf32>
    %c1_i32_622 = arith.constant 1 : i32
    %1862 = tpu.dynamic_rotate %1838 by %c1_i32_622 dim 1 : vector<1x128xf32>, i32 -> vector<1x128xf32>
    %c77_i32 = arith.constant 77 : i32
    %1863 = arith.addi %0, %c77_i32 : i32
    %1864 = arith.index_cast %1863 : i32 to index
    %1865 = memref.load %arg1[%1864] : memref<128xf32, #tpu.memory_space<smem>>
    %1866 = vector.broadcast %1865 : f32 to vector<1x128xf32>
    %1867 = arith.addf %1, %1866 : vector<1x128xf32>
    %cst_623 = arith.constant 0.949999988 : f32
    %1868 = vector.broadcast %cst_623 : f32 to vector<1x128xf32>
    %1869 = arith.mulf %1868, %1848 : vector<1x128xf32>
    %cst_624 = arith.constant 5.000000e-02 : f32
    %1870 = vector.broadcast %cst_624 : f32 to vector<1x128xf32>
    %1871 = arith.mulf %1870, %1867 : vector<1x128xf32>
    %1872 = arith.addf %1869, %1871 : vector<1x128xf32>
    %cst_625 = arith.constant 0.949999988 : f32
    %1873 = vector.broadcast %cst_625 : f32 to vector<1x128xf32>
    %1874 = arith.mulf %1873, %1861 : vector<1x128xf32>
    %1875 = arith.mulf %1872, %9 : vector<1x128xf32>
    %1876 = arith.addf %1874, %1875 : vector<1x128xf32>
    %cst_626 = arith.constant 1.000000e+00 : f32
    %1877 = vector.broadcast %cst_626 : f32 to vector<1x128xf32>
    %1878 = arith.cmpf ogt, %1876, %1877 : vector<1x128xf32>
    %cst_627 = arith.constant 1.000000e+00 : f32
    %cst_628 = arith.constant 0.000000e+00 : f32
    %1879 = vector.broadcast %cst_627 : f32 to vector<1x128xf32>
    %1880 = vector.broadcast %cst_628 : f32 to vector<1x128xf32>
    %1881 = arith.select %1878, %1879, %1880 : vector<1x128xi1>, vector<1x128xf32>
    %1882 = arith.mulf %1881, %1862 : vector<1x128xf32>
    %1883 = arith.addf %1859, %1882 : vector<1x128xf32>
    %cst_629 = arith.constant 0.000000e+00 : f32
    %1884 = vector.broadcast %cst_629 : f32 to vector<1x128xf32>
    %1885 = arith.select %1878, %1884, %1876 : vector<1x128xi1>, vector<1x128xf32>
    %c1_i32_630 = arith.constant 1 : i32
    %1886 = tpu.dynamic_rotate %1862 by %c1_i32_630 dim 1 : vector<1x128xf32>, i32 -> vector<1x128xf32>
    %c78_i32 = arith.constant 78 : i32
    %1887 = arith.addi %0, %c78_i32 : i32
    %1888 = arith.index_cast %1887 : i32 to index
    %1889 = memref.load %arg1[%1888] : memref<128xf32, #tpu.memory_space<smem>>
    %1890 = vector.broadcast %1889 : f32 to vector<1x128xf32>
    %1891 = arith.addf %1, %1890 : vector<1x128xf32>
    %cst_631 = arith.constant 0.949999988 : f32
    %1892 = vector.broadcast %cst_631 : f32 to vector<1x128xf32>
    %1893 = arith.mulf %1892, %1872 : vector<1x128xf32>
    %cst_632 = arith.constant 5.000000e-02 : f32
    %1894 = vector.broadcast %cst_632 : f32 to vector<1x128xf32>
    %1895 = arith.mulf %1894, %1891 : vector<1x128xf32>
    %1896 = arith.addf %1893, %1895 : vector<1x128xf32>
    %cst_633 = arith.constant 0.949999988 : f32
    %1897 = vector.broadcast %cst_633 : f32 to vector<1x128xf32>
    %1898 = arith.mulf %1897, %1885 : vector<1x128xf32>
    %1899 = arith.mulf %1896, %9 : vector<1x128xf32>
    %1900 = arith.addf %1898, %1899 : vector<1x128xf32>
    %cst_634 = arith.constant 1.000000e+00 : f32
    %1901 = vector.broadcast %cst_634 : f32 to vector<1x128xf32>
    %1902 = arith.cmpf ogt, %1900, %1901 : vector<1x128xf32>
    %cst_635 = arith.constant 1.000000e+00 : f32
    %cst_636 = arith.constant 0.000000e+00 : f32
    %1903 = vector.broadcast %cst_635 : f32 to vector<1x128xf32>
    %1904 = vector.broadcast %cst_636 : f32 to vector<1x128xf32>
    %1905 = arith.select %1902, %1903, %1904 : vector<1x128xi1>, vector<1x128xf32>
    %1906 = arith.mulf %1905, %1886 : vector<1x128xf32>
    %1907 = arith.addf %1883, %1906 : vector<1x128xf32>
    %cst_637 = arith.constant 0.000000e+00 : f32
    %1908 = vector.broadcast %cst_637 : f32 to vector<1x128xf32>
    %1909 = arith.select %1902, %1908, %1900 : vector<1x128xi1>, vector<1x128xf32>
    %c1_i32_638 = arith.constant 1 : i32
    %1910 = tpu.dynamic_rotate %1886 by %c1_i32_638 dim 1 : vector<1x128xf32>, i32 -> vector<1x128xf32>
    %c79_i32 = arith.constant 79 : i32
    %1911 = arith.addi %0, %c79_i32 : i32
    %1912 = arith.index_cast %1911 : i32 to index
    %1913 = memref.load %arg1[%1912] : memref<128xf32, #tpu.memory_space<smem>>
    %1914 = vector.broadcast %1913 : f32 to vector<1x128xf32>
    %1915 = arith.addf %1, %1914 : vector<1x128xf32>
    %cst_639 = arith.constant 0.949999988 : f32
    %1916 = vector.broadcast %cst_639 : f32 to vector<1x128xf32>
    %1917 = arith.mulf %1916, %1896 : vector<1x128xf32>
    %cst_640 = arith.constant 5.000000e-02 : f32
    %1918 = vector.broadcast %cst_640 : f32 to vector<1x128xf32>
    %1919 = arith.mulf %1918, %1915 : vector<1x128xf32>
    %1920 = arith.addf %1917, %1919 : vector<1x128xf32>
    %cst_641 = arith.constant 0.949999988 : f32
    %1921 = vector.broadcast %cst_641 : f32 to vector<1x128xf32>
    %1922 = arith.mulf %1921, %1909 : vector<1x128xf32>
    %1923 = arith.mulf %1920, %9 : vector<1x128xf32>
    %1924 = arith.addf %1922, %1923 : vector<1x128xf32>
    %cst_642 = arith.constant 1.000000e+00 : f32
    %1925 = vector.broadcast %cst_642 : f32 to vector<1x128xf32>
    %1926 = arith.cmpf ogt, %1924, %1925 : vector<1x128xf32>
    %cst_643 = arith.constant 1.000000e+00 : f32
    %cst_644 = arith.constant 0.000000e+00 : f32
    %1927 = vector.broadcast %cst_643 : f32 to vector<1x128xf32>
    %1928 = vector.broadcast %cst_644 : f32 to vector<1x128xf32>
    %1929 = arith.select %1926, %1927, %1928 : vector<1x128xi1>, vector<1x128xf32>
    %1930 = arith.mulf %1929, %1910 : vector<1x128xf32>
    %1931 = arith.addf %1907, %1930 : vector<1x128xf32>
    %cst_645 = arith.constant 0.000000e+00 : f32
    %1932 = vector.broadcast %cst_645 : f32 to vector<1x128xf32>
    %1933 = arith.select %1926, %1932, %1924 : vector<1x128xi1>, vector<1x128xf32>
    %c1_i32_646 = arith.constant 1 : i32
    %1934 = tpu.dynamic_rotate %1910 by %c1_i32_646 dim 1 : vector<1x128xf32>, i32 -> vector<1x128xf32>
    %c80_i32 = arith.constant 80 : i32
    %1935 = arith.addi %0, %c80_i32 : i32
    %1936 = arith.index_cast %1935 : i32 to index
    %1937 = memref.load %arg1[%1936] : memref<128xf32, #tpu.memory_space<smem>>
    %1938 = vector.broadcast %1937 : f32 to vector<1x128xf32>
    %1939 = arith.addf %1, %1938 : vector<1x128xf32>
    %cst_647 = arith.constant 0.949999988 : f32
    %1940 = vector.broadcast %cst_647 : f32 to vector<1x128xf32>
    %1941 = arith.mulf %1940, %1920 : vector<1x128xf32>
    %cst_648 = arith.constant 5.000000e-02 : f32
    %1942 = vector.broadcast %cst_648 : f32 to vector<1x128xf32>
    %1943 = arith.mulf %1942, %1939 : vector<1x128xf32>
    %1944 = arith.addf %1941, %1943 : vector<1x128xf32>
    %cst_649 = arith.constant 0.949999988 : f32
    %1945 = vector.broadcast %cst_649 : f32 to vector<1x128xf32>
    %1946 = arith.mulf %1945, %1933 : vector<1x128xf32>
    %1947 = arith.mulf %1944, %9 : vector<1x128xf32>
    %1948 = arith.addf %1946, %1947 : vector<1x128xf32>
    %cst_650 = arith.constant 1.000000e+00 : f32
    %1949 = vector.broadcast %cst_650 : f32 to vector<1x128xf32>
    %1950 = arith.cmpf ogt, %1948, %1949 : vector<1x128xf32>
    %cst_651 = arith.constant 1.000000e+00 : f32
    %cst_652 = arith.constant 0.000000e+00 : f32
    %1951 = vector.broadcast %cst_651 : f32 to vector<1x128xf32>
    %1952 = vector.broadcast %cst_652 : f32 to vector<1x128xf32>
    %1953 = arith.select %1950, %1951, %1952 : vector<1x128xi1>, vector<1x128xf32>
    %1954 = arith.mulf %1953, %1934 : vector<1x128xf32>
    %1955 = arith.addf %1931, %1954 : vector<1x128xf32>
    %cst_653 = arith.constant 0.000000e+00 : f32
    %1956 = vector.broadcast %cst_653 : f32 to vector<1x128xf32>
    %1957 = arith.select %1950, %1956, %1948 : vector<1x128xi1>, vector<1x128xf32>
    %c1_i32_654 = arith.constant 1 : i32
    %1958 = tpu.dynamic_rotate %1934 by %c1_i32_654 dim 1 : vector<1x128xf32>, i32 -> vector<1x128xf32>
    %c81_i32 = arith.constant 81 : i32
    %1959 = arith.addi %0, %c81_i32 : i32
    %1960 = arith.index_cast %1959 : i32 to index
    %1961 = memref.load %arg1[%1960] : memref<128xf32, #tpu.memory_space<smem>>
    %1962 = vector.broadcast %1961 : f32 to vector<1x128xf32>
    %1963 = arith.addf %1, %1962 : vector<1x128xf32>
    %cst_655 = arith.constant 0.949999988 : f32
    %1964 = vector.broadcast %cst_655 : f32 to vector<1x128xf32>
    %1965 = arith.mulf %1964, %1944 : vector<1x128xf32>
    %cst_656 = arith.constant 5.000000e-02 : f32
    %1966 = vector.broadcast %cst_656 : f32 to vector<1x128xf32>
    %1967 = arith.mulf %1966, %1963 : vector<1x128xf32>
    %1968 = arith.addf %1965, %1967 : vector<1x128xf32>
    %cst_657 = arith.constant 0.949999988 : f32
    %1969 = vector.broadcast %cst_657 : f32 to vector<1x128xf32>
    %1970 = arith.mulf %1969, %1957 : vector<1x128xf32>
    %1971 = arith.mulf %1968, %9 : vector<1x128xf32>
    %1972 = arith.addf %1970, %1971 : vector<1x128xf32>
    %cst_658 = arith.constant 1.000000e+00 : f32
    %1973 = vector.broadcast %cst_658 : f32 to vector<1x128xf32>
    %1974 = arith.cmpf ogt, %1972, %1973 : vector<1x128xf32>
    %cst_659 = arith.constant 1.000000e+00 : f32
    %cst_660 = arith.constant 0.000000e+00 : f32
    %1975 = vector.broadcast %cst_659 : f32 to vector<1x128xf32>
    %1976 = vector.broadcast %cst_660 : f32 to vector<1x128xf32>
    %1977 = arith.select %1974, %1975, %1976 : vector<1x128xi1>, vector<1x128xf32>
    %1978 = arith.mulf %1977, %1958 : vector<1x128xf32>
    %1979 = arith.addf %1955, %1978 : vector<1x128xf32>
    %cst_661 = arith.constant 0.000000e+00 : f32
    %1980 = vector.broadcast %cst_661 : f32 to vector<1x128xf32>
    %1981 = arith.select %1974, %1980, %1972 : vector<1x128xi1>, vector<1x128xf32>
    %c1_i32_662 = arith.constant 1 : i32
    %1982 = tpu.dynamic_rotate %1958 by %c1_i32_662 dim 1 : vector<1x128xf32>, i32 -> vector<1x128xf32>
    %c82_i32 = arith.constant 82 : i32
    %1983 = arith.addi %0, %c82_i32 : i32
    %1984 = arith.index_cast %1983 : i32 to index
    %1985 = memref.load %arg1[%1984] : memref<128xf32, #tpu.memory_space<smem>>
    %1986 = vector.broadcast %1985 : f32 to vector<1x128xf32>
    %1987 = arith.addf %1, %1986 : vector<1x128xf32>
    %cst_663 = arith.constant 0.949999988 : f32
    %1988 = vector.broadcast %cst_663 : f32 to vector<1x128xf32>
    %1989 = arith.mulf %1988, %1968 : vector<1x128xf32>
    %cst_664 = arith.constant 5.000000e-02 : f32
    %1990 = vector.broadcast %cst_664 : f32 to vector<1x128xf32>
    %1991 = arith.mulf %1990, %1987 : vector<1x128xf32>
    %1992 = arith.addf %1989, %1991 : vector<1x128xf32>
    %cst_665 = arith.constant 0.949999988 : f32
    %1993 = vector.broadcast %cst_665 : f32 to vector<1x128xf32>
    %1994 = arith.mulf %1993, %1981 : vector<1x128xf32>
    %1995 = arith.mulf %1992, %9 : vector<1x128xf32>
    %1996 = arith.addf %1994, %1995 : vector<1x128xf32>
    %cst_666 = arith.constant 1.000000e+00 : f32
    %1997 = vector.broadcast %cst_666 : f32 to vector<1x128xf32>
    %1998 = arith.cmpf ogt, %1996, %1997 : vector<1x128xf32>
    %cst_667 = arith.constant 1.000000e+00 : f32
    %cst_668 = arith.constant 0.000000e+00 : f32
    %1999 = vector.broadcast %cst_667 : f32 to vector<1x128xf32>
    %2000 = vector.broadcast %cst_668 : f32 to vector<1x128xf32>
    %2001 = arith.select %1998, %1999, %2000 : vector<1x128xi1>, vector<1x128xf32>
    %2002 = arith.mulf %2001, %1982 : vector<1x128xf32>
    %2003 = arith.addf %1979, %2002 : vector<1x128xf32>
    %cst_669 = arith.constant 0.000000e+00 : f32
    %2004 = vector.broadcast %cst_669 : f32 to vector<1x128xf32>
    %2005 = arith.select %1998, %2004, %1996 : vector<1x128xi1>, vector<1x128xf32>
    %c1_i32_670 = arith.constant 1 : i32
    %2006 = tpu.dynamic_rotate %1982 by %c1_i32_670 dim 1 : vector<1x128xf32>, i32 -> vector<1x128xf32>
    %c83_i32 = arith.constant 83 : i32
    %2007 = arith.addi %0, %c83_i32 : i32
    %2008 = arith.index_cast %2007 : i32 to index
    %2009 = memref.load %arg1[%2008] : memref<128xf32, #tpu.memory_space<smem>>
    %2010 = vector.broadcast %2009 : f32 to vector<1x128xf32>
    %2011 = arith.addf %1, %2010 : vector<1x128xf32>
    %cst_671 = arith.constant 0.949999988 : f32
    %2012 = vector.broadcast %cst_671 : f32 to vector<1x128xf32>
    %2013 = arith.mulf %2012, %1992 : vector<1x128xf32>
    %cst_672 = arith.constant 5.000000e-02 : f32
    %2014 = vector.broadcast %cst_672 : f32 to vector<1x128xf32>
    %2015 = arith.mulf %2014, %2011 : vector<1x128xf32>
    %2016 = arith.addf %2013, %2015 : vector<1x128xf32>
    %cst_673 = arith.constant 0.949999988 : f32
    %2017 = vector.broadcast %cst_673 : f32 to vector<1x128xf32>
    %2018 = arith.mulf %2017, %2005 : vector<1x128xf32>
    %2019 = arith.mulf %2016, %9 : vector<1x128xf32>
    %2020 = arith.addf %2018, %2019 : vector<1x128xf32>
    %cst_674 = arith.constant 1.000000e+00 : f32
    %2021 = vector.broadcast %cst_674 : f32 to vector<1x128xf32>
    %2022 = arith.cmpf ogt, %2020, %2021 : vector<1x128xf32>
    %cst_675 = arith.constant 1.000000e+00 : f32
    %cst_676 = arith.constant 0.000000e+00 : f32
    %2023 = vector.broadcast %cst_675 : f32 to vector<1x128xf32>
    %2024 = vector.broadcast %cst_676 : f32 to vector<1x128xf32>
    %2025 = arith.select %2022, %2023, %2024 : vector<1x128xi1>, vector<1x128xf32>
    %2026 = arith.mulf %2025, %2006 : vector<1x128xf32>
    %2027 = arith.addf %2003, %2026 : vector<1x128xf32>
    %cst_677 = arith.constant 0.000000e+00 : f32
    %2028 = vector.broadcast %cst_677 : f32 to vector<1x128xf32>
    %2029 = arith.select %2022, %2028, %2020 : vector<1x128xi1>, vector<1x128xf32>
    %c1_i32_678 = arith.constant 1 : i32
    %2030 = tpu.dynamic_rotate %2006 by %c1_i32_678 dim 1 : vector<1x128xf32>, i32 -> vector<1x128xf32>
    %c84_i32 = arith.constant 84 : i32
    %2031 = arith.addi %0, %c84_i32 : i32
    %2032 = arith.index_cast %2031 : i32 to index
    %2033 = memref.load %arg1[%2032] : memref<128xf32, #tpu.memory_space<smem>>
    %2034 = vector.broadcast %2033 : f32 to vector<1x128xf32>
    %2035 = arith.addf %1, %2034 : vector<1x128xf32>
    %cst_679 = arith.constant 0.949999988 : f32
    %2036 = vector.broadcast %cst_679 : f32 to vector<1x128xf32>
    %2037 = arith.mulf %2036, %2016 : vector<1x128xf32>
    %cst_680 = arith.constant 5.000000e-02 : f32
    %2038 = vector.broadcast %cst_680 : f32 to vector<1x128xf32>
    %2039 = arith.mulf %2038, %2035 : vector<1x128xf32>
    %2040 = arith.addf %2037, %2039 : vector<1x128xf32>
    %cst_681 = arith.constant 0.949999988 : f32
    %2041 = vector.broadcast %cst_681 : f32 to vector<1x128xf32>
    %2042 = arith.mulf %2041, %2029 : vector<1x128xf32>
    %2043 = arith.mulf %2040, %9 : vector<1x128xf32>
    %2044 = arith.addf %2042, %2043 : vector<1x128xf32>
    %cst_682 = arith.constant 1.000000e+00 : f32
    %2045 = vector.broadcast %cst_682 : f32 to vector<1x128xf32>
    %2046 = arith.cmpf ogt, %2044, %2045 : vector<1x128xf32>
    %cst_683 = arith.constant 1.000000e+00 : f32
    %cst_684 = arith.constant 0.000000e+00 : f32
    %2047 = vector.broadcast %cst_683 : f32 to vector<1x128xf32>
    %2048 = vector.broadcast %cst_684 : f32 to vector<1x128xf32>
    %2049 = arith.select %2046, %2047, %2048 : vector<1x128xi1>, vector<1x128xf32>
    %2050 = arith.mulf %2049, %2030 : vector<1x128xf32>
    %2051 = arith.addf %2027, %2050 : vector<1x128xf32>
    %cst_685 = arith.constant 0.000000e+00 : f32
    %2052 = vector.broadcast %cst_685 : f32 to vector<1x128xf32>
    %2053 = arith.select %2046, %2052, %2044 : vector<1x128xi1>, vector<1x128xf32>
    %c1_i32_686 = arith.constant 1 : i32
    %2054 = tpu.dynamic_rotate %2030 by %c1_i32_686 dim 1 : vector<1x128xf32>, i32 -> vector<1x128xf32>
    %c85_i32 = arith.constant 85 : i32
    %2055 = arith.addi %0, %c85_i32 : i32
    %2056 = arith.index_cast %2055 : i32 to index
    %2057 = memref.load %arg1[%2056] : memref<128xf32, #tpu.memory_space<smem>>
    %2058 = vector.broadcast %2057 : f32 to vector<1x128xf32>
    %2059 = arith.addf %1, %2058 : vector<1x128xf32>
    %cst_687 = arith.constant 0.949999988 : f32
    %2060 = vector.broadcast %cst_687 : f32 to vector<1x128xf32>
    %2061 = arith.mulf %2060, %2040 : vector<1x128xf32>
    %cst_688 = arith.constant 5.000000e-02 : f32
    %2062 = vector.broadcast %cst_688 : f32 to vector<1x128xf32>
    %2063 = arith.mulf %2062, %2059 : vector<1x128xf32>
    %2064 = arith.addf %2061, %2063 : vector<1x128xf32>
    %cst_689 = arith.constant 0.949999988 : f32
    %2065 = vector.broadcast %cst_689 : f32 to vector<1x128xf32>
    %2066 = arith.mulf %2065, %2053 : vector<1x128xf32>
    %2067 = arith.mulf %2064, %9 : vector<1x128xf32>
    %2068 = arith.addf %2066, %2067 : vector<1x128xf32>
    %cst_690 = arith.constant 1.000000e+00 : f32
    %2069 = vector.broadcast %cst_690 : f32 to vector<1x128xf32>
    %2070 = arith.cmpf ogt, %2068, %2069 : vector<1x128xf32>
    %cst_691 = arith.constant 1.000000e+00 : f32
    %cst_692 = arith.constant 0.000000e+00 : f32
    %2071 = vector.broadcast %cst_691 : f32 to vector<1x128xf32>
    %2072 = vector.broadcast %cst_692 : f32 to vector<1x128xf32>
    %2073 = arith.select %2070, %2071, %2072 : vector<1x128xi1>, vector<1x128xf32>
    %2074 = arith.mulf %2073, %2054 : vector<1x128xf32>
    %2075 = arith.addf %2051, %2074 : vector<1x128xf32>
    %cst_693 = arith.constant 0.000000e+00 : f32
    %2076 = vector.broadcast %cst_693 : f32 to vector<1x128xf32>
    %2077 = arith.select %2070, %2076, %2068 : vector<1x128xi1>, vector<1x128xf32>
    %c1_i32_694 = arith.constant 1 : i32
    %2078 = tpu.dynamic_rotate %2054 by %c1_i32_694 dim 1 : vector<1x128xf32>, i32 -> vector<1x128xf32>
    %c86_i32 = arith.constant 86 : i32
    %2079 = arith.addi %0, %c86_i32 : i32
    %2080 = arith.index_cast %2079 : i32 to index
    %2081 = memref.load %arg1[%2080] : memref<128xf32, #tpu.memory_space<smem>>
    %2082 = vector.broadcast %2081 : f32 to vector<1x128xf32>
    %2083 = arith.addf %1, %2082 : vector<1x128xf32>
    %cst_695 = arith.constant 0.949999988 : f32
    %2084 = vector.broadcast %cst_695 : f32 to vector<1x128xf32>
    %2085 = arith.mulf %2084, %2064 : vector<1x128xf32>
    %cst_696 = arith.constant 5.000000e-02 : f32
    %2086 = vector.broadcast %cst_696 : f32 to vector<1x128xf32>
    %2087 = arith.mulf %2086, %2083 : vector<1x128xf32>
    %2088 = arith.addf %2085, %2087 : vector<1x128xf32>
    %cst_697 = arith.constant 0.949999988 : f32
    %2089 = vector.broadcast %cst_697 : f32 to vector<1x128xf32>
    %2090 = arith.mulf %2089, %2077 : vector<1x128xf32>
    %2091 = arith.mulf %2088, %9 : vector<1x128xf32>
    %2092 = arith.addf %2090, %2091 : vector<1x128xf32>
    %cst_698 = arith.constant 1.000000e+00 : f32
    %2093 = vector.broadcast %cst_698 : f32 to vector<1x128xf32>
    %2094 = arith.cmpf ogt, %2092, %2093 : vector<1x128xf32>
    %cst_699 = arith.constant 1.000000e+00 : f32
    %cst_700 = arith.constant 0.000000e+00 : f32
    %2095 = vector.broadcast %cst_699 : f32 to vector<1x128xf32>
    %2096 = vector.broadcast %cst_700 : f32 to vector<1x128xf32>
    %2097 = arith.select %2094, %2095, %2096 : vector<1x128xi1>, vector<1x128xf32>
    %2098 = arith.mulf %2097, %2078 : vector<1x128xf32>
    %2099 = arith.addf %2075, %2098 : vector<1x128xf32>
    %cst_701 = arith.constant 0.000000e+00 : f32
    %2100 = vector.broadcast %cst_701 : f32 to vector<1x128xf32>
    %2101 = arith.select %2094, %2100, %2092 : vector<1x128xi1>, vector<1x128xf32>
    %c1_i32_702 = arith.constant 1 : i32
    %2102 = tpu.dynamic_rotate %2078 by %c1_i32_702 dim 1 : vector<1x128xf32>, i32 -> vector<1x128xf32>
    %c87_i32 = arith.constant 87 : i32
    %2103 = arith.addi %0, %c87_i32 : i32
    %2104 = arith.index_cast %2103 : i32 to index
    %2105 = memref.load %arg1[%2104] : memref<128xf32, #tpu.memory_space<smem>>
    %2106 = vector.broadcast %2105 : f32 to vector<1x128xf32>
    %2107 = arith.addf %1, %2106 : vector<1x128xf32>
    %cst_703 = arith.constant 0.949999988 : f32
    %2108 = vector.broadcast %cst_703 : f32 to vector<1x128xf32>
    %2109 = arith.mulf %2108, %2088 : vector<1x128xf32>
    %cst_704 = arith.constant 5.000000e-02 : f32
    %2110 = vector.broadcast %cst_704 : f32 to vector<1x128xf32>
    %2111 = arith.mulf %2110, %2107 : vector<1x128xf32>
    %2112 = arith.addf %2109, %2111 : vector<1x128xf32>
    %cst_705 = arith.constant 0.949999988 : f32
    %2113 = vector.broadcast %cst_705 : f32 to vector<1x128xf32>
    %2114 = arith.mulf %2113, %2101 : vector<1x128xf32>
    %2115 = arith.mulf %2112, %9 : vector<1x128xf32>
    %2116 = arith.addf %2114, %2115 : vector<1x128xf32>
    %cst_706 = arith.constant 1.000000e+00 : f32
    %2117 = vector.broadcast %cst_706 : f32 to vector<1x128xf32>
    %2118 = arith.cmpf ogt, %2116, %2117 : vector<1x128xf32>
    %cst_707 = arith.constant 1.000000e+00 : f32
    %cst_708 = arith.constant 0.000000e+00 : f32
    %2119 = vector.broadcast %cst_707 : f32 to vector<1x128xf32>
    %2120 = vector.broadcast %cst_708 : f32 to vector<1x128xf32>
    %2121 = arith.select %2118, %2119, %2120 : vector<1x128xi1>, vector<1x128xf32>
    %2122 = arith.mulf %2121, %2102 : vector<1x128xf32>
    %2123 = arith.addf %2099, %2122 : vector<1x128xf32>
    %cst_709 = arith.constant 0.000000e+00 : f32
    %2124 = vector.broadcast %cst_709 : f32 to vector<1x128xf32>
    %2125 = arith.select %2118, %2124, %2116 : vector<1x128xi1>, vector<1x128xf32>
    %c1_i32_710 = arith.constant 1 : i32
    %2126 = tpu.dynamic_rotate %2102 by %c1_i32_710 dim 1 : vector<1x128xf32>, i32 -> vector<1x128xf32>
    %c88_i32 = arith.constant 88 : i32
    %2127 = arith.addi %0, %c88_i32 : i32
    %2128 = arith.index_cast %2127 : i32 to index
    %2129 = memref.load %arg1[%2128] : memref<128xf32, #tpu.memory_space<smem>>
    %2130 = vector.broadcast %2129 : f32 to vector<1x128xf32>
    %2131 = arith.addf %1, %2130 : vector<1x128xf32>
    %cst_711 = arith.constant 0.949999988 : f32
    %2132 = vector.broadcast %cst_711 : f32 to vector<1x128xf32>
    %2133 = arith.mulf %2132, %2112 : vector<1x128xf32>
    %cst_712 = arith.constant 5.000000e-02 : f32
    %2134 = vector.broadcast %cst_712 : f32 to vector<1x128xf32>
    %2135 = arith.mulf %2134, %2131 : vector<1x128xf32>
    %2136 = arith.addf %2133, %2135 : vector<1x128xf32>
    %cst_713 = arith.constant 0.949999988 : f32
    %2137 = vector.broadcast %cst_713 : f32 to vector<1x128xf32>
    %2138 = arith.mulf %2137, %2125 : vector<1x128xf32>
    %2139 = arith.mulf %2136, %9 : vector<1x128xf32>
    %2140 = arith.addf %2138, %2139 : vector<1x128xf32>
    %cst_714 = arith.constant 1.000000e+00 : f32
    %2141 = vector.broadcast %cst_714 : f32 to vector<1x128xf32>
    %2142 = arith.cmpf ogt, %2140, %2141 : vector<1x128xf32>
    %cst_715 = arith.constant 1.000000e+00 : f32
    %cst_716 = arith.constant 0.000000e+00 : f32
    %2143 = vector.broadcast %cst_715 : f32 to vector<1x128xf32>
    %2144 = vector.broadcast %cst_716 : f32 to vector<1x128xf32>
    %2145 = arith.select %2142, %2143, %2144 : vector<1x128xi1>, vector<1x128xf32>
    %2146 = arith.mulf %2145, %2126 : vector<1x128xf32>
    %2147 = arith.addf %2123, %2146 : vector<1x128xf32>
    %cst_717 = arith.constant 0.000000e+00 : f32
    %2148 = vector.broadcast %cst_717 : f32 to vector<1x128xf32>
    %2149 = arith.select %2142, %2148, %2140 : vector<1x128xi1>, vector<1x128xf32>
    %c1_i32_718 = arith.constant 1 : i32
    %2150 = tpu.dynamic_rotate %2126 by %c1_i32_718 dim 1 : vector<1x128xf32>, i32 -> vector<1x128xf32>
    %c89_i32 = arith.constant 89 : i32
    %2151 = arith.addi %0, %c89_i32 : i32
    %2152 = arith.index_cast %2151 : i32 to index
    %2153 = memref.load %arg1[%2152] : memref<128xf32, #tpu.memory_space<smem>>
    %2154 = vector.broadcast %2153 : f32 to vector<1x128xf32>
    %2155 = arith.addf %1, %2154 : vector<1x128xf32>
    %cst_719 = arith.constant 0.949999988 : f32
    %2156 = vector.broadcast %cst_719 : f32 to vector<1x128xf32>
    %2157 = arith.mulf %2156, %2136 : vector<1x128xf32>
    %cst_720 = arith.constant 5.000000e-02 : f32
    %2158 = vector.broadcast %cst_720 : f32 to vector<1x128xf32>
    %2159 = arith.mulf %2158, %2155 : vector<1x128xf32>
    %2160 = arith.addf %2157, %2159 : vector<1x128xf32>
    %cst_721 = arith.constant 0.949999988 : f32
    %2161 = vector.broadcast %cst_721 : f32 to vector<1x128xf32>
    %2162 = arith.mulf %2161, %2149 : vector<1x128xf32>
    %2163 = arith.mulf %2160, %9 : vector<1x128xf32>
    %2164 = arith.addf %2162, %2163 : vector<1x128xf32>
    %cst_722 = arith.constant 1.000000e+00 : f32
    %2165 = vector.broadcast %cst_722 : f32 to vector<1x128xf32>
    %2166 = arith.cmpf ogt, %2164, %2165 : vector<1x128xf32>
    %cst_723 = arith.constant 1.000000e+00 : f32
    %cst_724 = arith.constant 0.000000e+00 : f32
    %2167 = vector.broadcast %cst_723 : f32 to vector<1x128xf32>
    %2168 = vector.broadcast %cst_724 : f32 to vector<1x128xf32>
    %2169 = arith.select %2166, %2167, %2168 : vector<1x128xi1>, vector<1x128xf32>
    %2170 = arith.mulf %2169, %2150 : vector<1x128xf32>
    %2171 = arith.addf %2147, %2170 : vector<1x128xf32>
    %cst_725 = arith.constant 0.000000e+00 : f32
    %2172 = vector.broadcast %cst_725 : f32 to vector<1x128xf32>
    %2173 = arith.select %2166, %2172, %2164 : vector<1x128xi1>, vector<1x128xf32>
    %c1_i32_726 = arith.constant 1 : i32
    %2174 = tpu.dynamic_rotate %2150 by %c1_i32_726 dim 1 : vector<1x128xf32>, i32 -> vector<1x128xf32>
    %c90_i32 = arith.constant 90 : i32
    %2175 = arith.addi %0, %c90_i32 : i32
    %2176 = arith.index_cast %2175 : i32 to index
    %2177 = memref.load %arg1[%2176] : memref<128xf32, #tpu.memory_space<smem>>
    %2178 = vector.broadcast %2177 : f32 to vector<1x128xf32>
    %2179 = arith.addf %1, %2178 : vector<1x128xf32>
    %cst_727 = arith.constant 0.949999988 : f32
    %2180 = vector.broadcast %cst_727 : f32 to vector<1x128xf32>
    %2181 = arith.mulf %2180, %2160 : vector<1x128xf32>
    %cst_728 = arith.constant 5.000000e-02 : f32
    %2182 = vector.broadcast %cst_728 : f32 to vector<1x128xf32>
    %2183 = arith.mulf %2182, %2179 : vector<1x128xf32>
    %2184 = arith.addf %2181, %2183 : vector<1x128xf32>
    %cst_729 = arith.constant 0.949999988 : f32
    %2185 = vector.broadcast %cst_729 : f32 to vector<1x128xf32>
    %2186 = arith.mulf %2185, %2173 : vector<1x128xf32>
    %2187 = arith.mulf %2184, %9 : vector<1x128xf32>
    %2188 = arith.addf %2186, %2187 : vector<1x128xf32>
    %cst_730 = arith.constant 1.000000e+00 : f32
    %2189 = vector.broadcast %cst_730 : f32 to vector<1x128xf32>
    %2190 = arith.cmpf ogt, %2188, %2189 : vector<1x128xf32>
    %cst_731 = arith.constant 1.000000e+00 : f32
    %cst_732 = arith.constant 0.000000e+00 : f32
    %2191 = vector.broadcast %cst_731 : f32 to vector<1x128xf32>
    %2192 = vector.broadcast %cst_732 : f32 to vector<1x128xf32>
    %2193 = arith.select %2190, %2191, %2192 : vector<1x128xi1>, vector<1x128xf32>
    %2194 = arith.mulf %2193, %2174 : vector<1x128xf32>
    %2195 = arith.addf %2171, %2194 : vector<1x128xf32>
    %cst_733 = arith.constant 0.000000e+00 : f32
    %2196 = vector.broadcast %cst_733 : f32 to vector<1x128xf32>
    %2197 = arith.select %2190, %2196, %2188 : vector<1x128xi1>, vector<1x128xf32>
    %c1_i32_734 = arith.constant 1 : i32
    %2198 = tpu.dynamic_rotate %2174 by %c1_i32_734 dim 1 : vector<1x128xf32>, i32 -> vector<1x128xf32>
    %c91_i32 = arith.constant 91 : i32
    %2199 = arith.addi %0, %c91_i32 : i32
    %2200 = arith.index_cast %2199 : i32 to index
    %2201 = memref.load %arg1[%2200] : memref<128xf32, #tpu.memory_space<smem>>
    %2202 = vector.broadcast %2201 : f32 to vector<1x128xf32>
    %2203 = arith.addf %1, %2202 : vector<1x128xf32>
    %cst_735 = arith.constant 0.949999988 : f32
    %2204 = vector.broadcast %cst_735 : f32 to vector<1x128xf32>
    %2205 = arith.mulf %2204, %2184 : vector<1x128xf32>
    %cst_736 = arith.constant 5.000000e-02 : f32
    %2206 = vector.broadcast %cst_736 : f32 to vector<1x128xf32>
    %2207 = arith.mulf %2206, %2203 : vector<1x128xf32>
    %2208 = arith.addf %2205, %2207 : vector<1x128xf32>
    %cst_737 = arith.constant 0.949999988 : f32
    %2209 = vector.broadcast %cst_737 : f32 to vector<1x128xf32>
    %2210 = arith.mulf %2209, %2197 : vector<1x128xf32>
    %2211 = arith.mulf %2208, %9 : vector<1x128xf32>
    %2212 = arith.addf %2210, %2211 : vector<1x128xf32>
    %cst_738 = arith.constant 1.000000e+00 : f32
    %2213 = vector.broadcast %cst_738 : f32 to vector<1x128xf32>
    %2214 = arith.cmpf ogt, %2212, %2213 : vector<1x128xf32>
    %cst_739 = arith.constant 1.000000e+00 : f32
    %cst_740 = arith.constant 0.000000e+00 : f32
    %2215 = vector.broadcast %cst_739 : f32 to vector<1x128xf32>
    %2216 = vector.broadcast %cst_740 : f32 to vector<1x128xf32>
    %2217 = arith.select %2214, %2215, %2216 : vector<1x128xi1>, vector<1x128xf32>
    %2218 = arith.mulf %2217, %2198 : vector<1x128xf32>
    %2219 = arith.addf %2195, %2218 : vector<1x128xf32>
    %cst_741 = arith.constant 0.000000e+00 : f32
    %2220 = vector.broadcast %cst_741 : f32 to vector<1x128xf32>
    %2221 = arith.select %2214, %2220, %2212 : vector<1x128xi1>, vector<1x128xf32>
    %c1_i32_742 = arith.constant 1 : i32
    %2222 = tpu.dynamic_rotate %2198 by %c1_i32_742 dim 1 : vector<1x128xf32>, i32 -> vector<1x128xf32>
    %c92_i32 = arith.constant 92 : i32
    %2223 = arith.addi %0, %c92_i32 : i32
    %2224 = arith.index_cast %2223 : i32 to index
    %2225 = memref.load %arg1[%2224] : memref<128xf32, #tpu.memory_space<smem>>
    %2226 = vector.broadcast %2225 : f32 to vector<1x128xf32>
    %2227 = arith.addf %1, %2226 : vector<1x128xf32>
    %cst_743 = arith.constant 0.949999988 : f32
    %2228 = vector.broadcast %cst_743 : f32 to vector<1x128xf32>
    %2229 = arith.mulf %2228, %2208 : vector<1x128xf32>
    %cst_744 = arith.constant 5.000000e-02 : f32
    %2230 = vector.broadcast %cst_744 : f32 to vector<1x128xf32>
    %2231 = arith.mulf %2230, %2227 : vector<1x128xf32>
    %2232 = arith.addf %2229, %2231 : vector<1x128xf32>
    %cst_745 = arith.constant 0.949999988 : f32
    %2233 = vector.broadcast %cst_745 : f32 to vector<1x128xf32>
    %2234 = arith.mulf %2233, %2221 : vector<1x128xf32>
    %2235 = arith.mulf %2232, %9 : vector<1x128xf32>
    %2236 = arith.addf %2234, %2235 : vector<1x128xf32>
    %cst_746 = arith.constant 1.000000e+00 : f32
    %2237 = vector.broadcast %cst_746 : f32 to vector<1x128xf32>
    %2238 = arith.cmpf ogt, %2236, %2237 : vector<1x128xf32>
    %cst_747 = arith.constant 1.000000e+00 : f32
    %cst_748 = arith.constant 0.000000e+00 : f32
    %2239 = vector.broadcast %cst_747 : f32 to vector<1x128xf32>
    %2240 = vector.broadcast %cst_748 : f32 to vector<1x128xf32>
    %2241 = arith.select %2238, %2239, %2240 : vector<1x128xi1>, vector<1x128xf32>
    %2242 = arith.mulf %2241, %2222 : vector<1x128xf32>
    %2243 = arith.addf %2219, %2242 : vector<1x128xf32>
    %cst_749 = arith.constant 0.000000e+00 : f32
    %2244 = vector.broadcast %cst_749 : f32 to vector<1x128xf32>
    %2245 = arith.select %2238, %2244, %2236 : vector<1x128xi1>, vector<1x128xf32>
    %c1_i32_750 = arith.constant 1 : i32
    %2246 = tpu.dynamic_rotate %2222 by %c1_i32_750 dim 1 : vector<1x128xf32>, i32 -> vector<1x128xf32>
    %c93_i32 = arith.constant 93 : i32
    %2247 = arith.addi %0, %c93_i32 : i32
    %2248 = arith.index_cast %2247 : i32 to index
    %2249 = memref.load %arg1[%2248] : memref<128xf32, #tpu.memory_space<smem>>
    %2250 = vector.broadcast %2249 : f32 to vector<1x128xf32>
    %2251 = arith.addf %1, %2250 : vector<1x128xf32>
    %cst_751 = arith.constant 0.949999988 : f32
    %2252 = vector.broadcast %cst_751 : f32 to vector<1x128xf32>
    %2253 = arith.mulf %2252, %2232 : vector<1x128xf32>
    %cst_752 = arith.constant 5.000000e-02 : f32
    %2254 = vector.broadcast %cst_752 : f32 to vector<1x128xf32>
    %2255 = arith.mulf %2254, %2251 : vector<1x128xf32>
    %2256 = arith.addf %2253, %2255 : vector<1x128xf32>
    %cst_753 = arith.constant 0.949999988 : f32
    %2257 = vector.broadcast %cst_753 : f32 to vector<1x128xf32>
    %2258 = arith.mulf %2257, %2245 : vector<1x128xf32>
    %2259 = arith.mulf %2256, %9 : vector<1x128xf32>
    %2260 = arith.addf %2258, %2259 : vector<1x128xf32>
    %cst_754 = arith.constant 1.000000e+00 : f32
    %2261 = vector.broadcast %cst_754 : f32 to vector<1x128xf32>
    %2262 = arith.cmpf ogt, %2260, %2261 : vector<1x128xf32>
    %cst_755 = arith.constant 1.000000e+00 : f32
    %cst_756 = arith.constant 0.000000e+00 : f32
    %2263 = vector.broadcast %cst_755 : f32 to vector<1x128xf32>
    %2264 = vector.broadcast %cst_756 : f32 to vector<1x128xf32>
    %2265 = arith.select %2262, %2263, %2264 : vector<1x128xi1>, vector<1x128xf32>
    %2266 = arith.mulf %2265, %2246 : vector<1x128xf32>
    %2267 = arith.addf %2243, %2266 : vector<1x128xf32>
    %cst_757 = arith.constant 0.000000e+00 : f32
    %2268 = vector.broadcast %cst_757 : f32 to vector<1x128xf32>
    %2269 = arith.select %2262, %2268, %2260 : vector<1x128xi1>, vector<1x128xf32>
    %c1_i32_758 = arith.constant 1 : i32
    %2270 = tpu.dynamic_rotate %2246 by %c1_i32_758 dim 1 : vector<1x128xf32>, i32 -> vector<1x128xf32>
    %c94_i32 = arith.constant 94 : i32
    %2271 = arith.addi %0, %c94_i32 : i32
    %2272 = arith.index_cast %2271 : i32 to index
    %2273 = memref.load %arg1[%2272] : memref<128xf32, #tpu.memory_space<smem>>
    %2274 = vector.broadcast %2273 : f32 to vector<1x128xf32>
    %2275 = arith.addf %1, %2274 : vector<1x128xf32>
    %cst_759 = arith.constant 0.949999988 : f32
    %2276 = vector.broadcast %cst_759 : f32 to vector<1x128xf32>
    %2277 = arith.mulf %2276, %2256 : vector<1x128xf32>
    %cst_760 = arith.constant 5.000000e-02 : f32
    %2278 = vector.broadcast %cst_760 : f32 to vector<1x128xf32>
    %2279 = arith.mulf %2278, %2275 : vector<1x128xf32>
    %2280 = arith.addf %2277, %2279 : vector<1x128xf32>
    %cst_761 = arith.constant 0.949999988 : f32
    %2281 = vector.broadcast %cst_761 : f32 to vector<1x128xf32>
    %2282 = arith.mulf %2281, %2269 : vector<1x128xf32>
    %2283 = arith.mulf %2280, %9 : vector<1x128xf32>
    %2284 = arith.addf %2282, %2283 : vector<1x128xf32>
    %cst_762 = arith.constant 1.000000e+00 : f32
    %2285 = vector.broadcast %cst_762 : f32 to vector<1x128xf32>
    %2286 = arith.cmpf ogt, %2284, %2285 : vector<1x128xf32>
    %cst_763 = arith.constant 1.000000e+00 : f32
    %cst_764 = arith.constant 0.000000e+00 : f32
    %2287 = vector.broadcast %cst_763 : f32 to vector<1x128xf32>
    %2288 = vector.broadcast %cst_764 : f32 to vector<1x128xf32>
    %2289 = arith.select %2286, %2287, %2288 : vector<1x128xi1>, vector<1x128xf32>
    %2290 = arith.mulf %2289, %2270 : vector<1x128xf32>
    %2291 = arith.addf %2267, %2290 : vector<1x128xf32>
    %cst_765 = arith.constant 0.000000e+00 : f32
    %2292 = vector.broadcast %cst_765 : f32 to vector<1x128xf32>
    %2293 = arith.select %2286, %2292, %2284 : vector<1x128xi1>, vector<1x128xf32>
    %c1_i32_766 = arith.constant 1 : i32
    %2294 = tpu.dynamic_rotate %2270 by %c1_i32_766 dim 1 : vector<1x128xf32>, i32 -> vector<1x128xf32>
    %c95_i32 = arith.constant 95 : i32
    %2295 = arith.addi %0, %c95_i32 : i32
    %2296 = arith.index_cast %2295 : i32 to index
    %2297 = memref.load %arg1[%2296] : memref<128xf32, #tpu.memory_space<smem>>
    %2298 = vector.broadcast %2297 : f32 to vector<1x128xf32>
    %2299 = arith.addf %1, %2298 : vector<1x128xf32>
    %cst_767 = arith.constant 0.949999988 : f32
    %2300 = vector.broadcast %cst_767 : f32 to vector<1x128xf32>
    %2301 = arith.mulf %2300, %2280 : vector<1x128xf32>
    %cst_768 = arith.constant 5.000000e-02 : f32
    %2302 = vector.broadcast %cst_768 : f32 to vector<1x128xf32>
    %2303 = arith.mulf %2302, %2299 : vector<1x128xf32>
    %2304 = arith.addf %2301, %2303 : vector<1x128xf32>
    %cst_769 = arith.constant 0.949999988 : f32
    %2305 = vector.broadcast %cst_769 : f32 to vector<1x128xf32>
    %2306 = arith.mulf %2305, %2293 : vector<1x128xf32>
    %2307 = arith.mulf %2304, %9 : vector<1x128xf32>
    %2308 = arith.addf %2306, %2307 : vector<1x128xf32>
    %cst_770 = arith.constant 1.000000e+00 : f32
    %2309 = vector.broadcast %cst_770 : f32 to vector<1x128xf32>
    %2310 = arith.cmpf ogt, %2308, %2309 : vector<1x128xf32>
    %cst_771 = arith.constant 1.000000e+00 : f32
    %cst_772 = arith.constant 0.000000e+00 : f32
    %2311 = vector.broadcast %cst_771 : f32 to vector<1x128xf32>
    %2312 = vector.broadcast %cst_772 : f32 to vector<1x128xf32>
    %2313 = arith.select %2310, %2311, %2312 : vector<1x128xi1>, vector<1x128xf32>
    %2314 = arith.mulf %2313, %2294 : vector<1x128xf32>
    %2315 = arith.addf %2291, %2314 : vector<1x128xf32>
    %cst_773 = arith.constant 0.000000e+00 : f32
    %2316 = vector.broadcast %cst_773 : f32 to vector<1x128xf32>
    %2317 = arith.select %2310, %2316, %2308 : vector<1x128xi1>, vector<1x128xf32>
    %c1_i32_774 = arith.constant 1 : i32
    %2318 = tpu.dynamic_rotate %2294 by %c1_i32_774 dim 1 : vector<1x128xf32>, i32 -> vector<1x128xf32>
    %c96_i32 = arith.constant 96 : i32
    %2319 = arith.addi %0, %c96_i32 : i32
    %2320 = arith.index_cast %2319 : i32 to index
    %2321 = memref.load %arg1[%2320] : memref<128xf32, #tpu.memory_space<smem>>
    %2322 = vector.broadcast %2321 : f32 to vector<1x128xf32>
    %2323 = arith.addf %1, %2322 : vector<1x128xf32>
    %cst_775 = arith.constant 0.949999988 : f32
    %2324 = vector.broadcast %cst_775 : f32 to vector<1x128xf32>
    %2325 = arith.mulf %2324, %2304 : vector<1x128xf32>
    %cst_776 = arith.constant 5.000000e-02 : f32
    %2326 = vector.broadcast %cst_776 : f32 to vector<1x128xf32>
    %2327 = arith.mulf %2326, %2323 : vector<1x128xf32>
    %2328 = arith.addf %2325, %2327 : vector<1x128xf32>
    %cst_777 = arith.constant 0.949999988 : f32
    %2329 = vector.broadcast %cst_777 : f32 to vector<1x128xf32>
    %2330 = arith.mulf %2329, %2317 : vector<1x128xf32>
    %2331 = arith.mulf %2328, %9 : vector<1x128xf32>
    %2332 = arith.addf %2330, %2331 : vector<1x128xf32>
    %cst_778 = arith.constant 1.000000e+00 : f32
    %2333 = vector.broadcast %cst_778 : f32 to vector<1x128xf32>
    %2334 = arith.cmpf ogt, %2332, %2333 : vector<1x128xf32>
    %cst_779 = arith.constant 1.000000e+00 : f32
    %cst_780 = arith.constant 0.000000e+00 : f32
    %2335 = vector.broadcast %cst_779 : f32 to vector<1x128xf32>
    %2336 = vector.broadcast %cst_780 : f32 to vector<1x128xf32>
    %2337 = arith.select %2334, %2335, %2336 : vector<1x128xi1>, vector<1x128xf32>
    %2338 = arith.mulf %2337, %2318 : vector<1x128xf32>
    %2339 = arith.addf %2315, %2338 : vector<1x128xf32>
    %cst_781 = arith.constant 0.000000e+00 : f32
    %2340 = vector.broadcast %cst_781 : f32 to vector<1x128xf32>
    %2341 = arith.select %2334, %2340, %2332 : vector<1x128xi1>, vector<1x128xf32>
    %c1_i32_782 = arith.constant 1 : i32
    %2342 = tpu.dynamic_rotate %2318 by %c1_i32_782 dim 1 : vector<1x128xf32>, i32 -> vector<1x128xf32>
    %c97_i32 = arith.constant 97 : i32
    %2343 = arith.addi %0, %c97_i32 : i32
    %2344 = arith.index_cast %2343 : i32 to index
    %2345 = memref.load %arg1[%2344] : memref<128xf32, #tpu.memory_space<smem>>
    %2346 = vector.broadcast %2345 : f32 to vector<1x128xf32>
    %2347 = arith.addf %1, %2346 : vector<1x128xf32>
    %cst_783 = arith.constant 0.949999988 : f32
    %2348 = vector.broadcast %cst_783 : f32 to vector<1x128xf32>
    %2349 = arith.mulf %2348, %2328 : vector<1x128xf32>
    %cst_784 = arith.constant 5.000000e-02 : f32
    %2350 = vector.broadcast %cst_784 : f32 to vector<1x128xf32>
    %2351 = arith.mulf %2350, %2347 : vector<1x128xf32>
    %2352 = arith.addf %2349, %2351 : vector<1x128xf32>
    %cst_785 = arith.constant 0.949999988 : f32
    %2353 = vector.broadcast %cst_785 : f32 to vector<1x128xf32>
    %2354 = arith.mulf %2353, %2341 : vector<1x128xf32>
    %2355 = arith.mulf %2352, %9 : vector<1x128xf32>
    %2356 = arith.addf %2354, %2355 : vector<1x128xf32>
    %cst_786 = arith.constant 1.000000e+00 : f32
    %2357 = vector.broadcast %cst_786 : f32 to vector<1x128xf32>
    %2358 = arith.cmpf ogt, %2356, %2357 : vector<1x128xf32>
    %cst_787 = arith.constant 1.000000e+00 : f32
    %cst_788 = arith.constant 0.000000e+00 : f32
    %2359 = vector.broadcast %cst_787 : f32 to vector<1x128xf32>
    %2360 = vector.broadcast %cst_788 : f32 to vector<1x128xf32>
    %2361 = arith.select %2358, %2359, %2360 : vector<1x128xi1>, vector<1x128xf32>
    %2362 = arith.mulf %2361, %2342 : vector<1x128xf32>
    %2363 = arith.addf %2339, %2362 : vector<1x128xf32>
    %cst_789 = arith.constant 0.000000e+00 : f32
    %2364 = vector.broadcast %cst_789 : f32 to vector<1x128xf32>
    %2365 = arith.select %2358, %2364, %2356 : vector<1x128xi1>, vector<1x128xf32>
    %c1_i32_790 = arith.constant 1 : i32
    %2366 = tpu.dynamic_rotate %2342 by %c1_i32_790 dim 1 : vector<1x128xf32>, i32 -> vector<1x128xf32>
    %c98_i32 = arith.constant 98 : i32
    %2367 = arith.addi %0, %c98_i32 : i32
    %2368 = arith.index_cast %2367 : i32 to index
    %2369 = memref.load %arg1[%2368] : memref<128xf32, #tpu.memory_space<smem>>
    %2370 = vector.broadcast %2369 : f32 to vector<1x128xf32>
    %2371 = arith.addf %1, %2370 : vector<1x128xf32>
    %cst_791 = arith.constant 0.949999988 : f32
    %2372 = vector.broadcast %cst_791 : f32 to vector<1x128xf32>
    %2373 = arith.mulf %2372, %2352 : vector<1x128xf32>
    %cst_792 = arith.constant 5.000000e-02 : f32
    %2374 = vector.broadcast %cst_792 : f32 to vector<1x128xf32>
    %2375 = arith.mulf %2374, %2371 : vector<1x128xf32>
    %2376 = arith.addf %2373, %2375 : vector<1x128xf32>
    %cst_793 = arith.constant 0.949999988 : f32
    %2377 = vector.broadcast %cst_793 : f32 to vector<1x128xf32>
    %2378 = arith.mulf %2377, %2365 : vector<1x128xf32>
    %2379 = arith.mulf %2376, %9 : vector<1x128xf32>
    %2380 = arith.addf %2378, %2379 : vector<1x128xf32>
    %cst_794 = arith.constant 1.000000e+00 : f32
    %2381 = vector.broadcast %cst_794 : f32 to vector<1x128xf32>
    %2382 = arith.cmpf ogt, %2380, %2381 : vector<1x128xf32>
    %cst_795 = arith.constant 1.000000e+00 : f32
    %cst_796 = arith.constant 0.000000e+00 : f32
    %2383 = vector.broadcast %cst_795 : f32 to vector<1x128xf32>
    %2384 = vector.broadcast %cst_796 : f32 to vector<1x128xf32>
    %2385 = arith.select %2382, %2383, %2384 : vector<1x128xi1>, vector<1x128xf32>
    %2386 = arith.mulf %2385, %2366 : vector<1x128xf32>
    %2387 = arith.addf %2363, %2386 : vector<1x128xf32>
    %cst_797 = arith.constant 0.000000e+00 : f32
    %2388 = vector.broadcast %cst_797 : f32 to vector<1x128xf32>
    %2389 = arith.select %2382, %2388, %2380 : vector<1x128xi1>, vector<1x128xf32>
    %c1_i32_798 = arith.constant 1 : i32
    %2390 = tpu.dynamic_rotate %2366 by %c1_i32_798 dim 1 : vector<1x128xf32>, i32 -> vector<1x128xf32>
    %c99_i32 = arith.constant 99 : i32
    %2391 = arith.addi %0, %c99_i32 : i32
    %2392 = arith.index_cast %2391 : i32 to index
    %2393 = memref.load %arg1[%2392] : memref<128xf32, #tpu.memory_space<smem>>
    %2394 = vector.broadcast %2393 : f32 to vector<1x128xf32>
    %2395 = arith.addf %1, %2394 : vector<1x128xf32>
    %cst_799 = arith.constant 0.949999988 : f32
    %2396 = vector.broadcast %cst_799 : f32 to vector<1x128xf32>
    %2397 = arith.mulf %2396, %2376 : vector<1x128xf32>
    %cst_800 = arith.constant 5.000000e-02 : f32
    %2398 = vector.broadcast %cst_800 : f32 to vector<1x128xf32>
    %2399 = arith.mulf %2398, %2395 : vector<1x128xf32>
    %2400 = arith.addf %2397, %2399 : vector<1x128xf32>
    %cst_801 = arith.constant 0.949999988 : f32
    %2401 = vector.broadcast %cst_801 : f32 to vector<1x128xf32>
    %2402 = arith.mulf %2401, %2389 : vector<1x128xf32>
    %2403 = arith.mulf %2400, %9 : vector<1x128xf32>
    %2404 = arith.addf %2402, %2403 : vector<1x128xf32>
    %cst_802 = arith.constant 1.000000e+00 : f32
    %2405 = vector.broadcast %cst_802 : f32 to vector<1x128xf32>
    %2406 = arith.cmpf ogt, %2404, %2405 : vector<1x128xf32>
    %cst_803 = arith.constant 1.000000e+00 : f32
    %cst_804 = arith.constant 0.000000e+00 : f32
    %2407 = vector.broadcast %cst_803 : f32 to vector<1x128xf32>
    %2408 = vector.broadcast %cst_804 : f32 to vector<1x128xf32>
    %2409 = arith.select %2406, %2407, %2408 : vector<1x128xi1>, vector<1x128xf32>
    %2410 = arith.mulf %2409, %2390 : vector<1x128xf32>
    %2411 = arith.addf %2387, %2410 : vector<1x128xf32>
    %cst_805 = arith.constant 0.000000e+00 : f32
    %2412 = vector.broadcast %cst_805 : f32 to vector<1x128xf32>
    %2413 = arith.select %2406, %2412, %2404 : vector<1x128xi1>, vector<1x128xf32>
    %c1_i32_806 = arith.constant 1 : i32
    %2414 = tpu.dynamic_rotate %2390 by %c1_i32_806 dim 1 : vector<1x128xf32>, i32 -> vector<1x128xf32>
    %c100_i32 = arith.constant 100 : i32
    %2415 = arith.addi %0, %c100_i32 : i32
    %2416 = arith.index_cast %2415 : i32 to index
    %2417 = memref.load %arg1[%2416] : memref<128xf32, #tpu.memory_space<smem>>
    %2418 = vector.broadcast %2417 : f32 to vector<1x128xf32>
    %2419 = arith.addf %1, %2418 : vector<1x128xf32>
    %cst_807 = arith.constant 0.949999988 : f32
    %2420 = vector.broadcast %cst_807 : f32 to vector<1x128xf32>
    %2421 = arith.mulf %2420, %2400 : vector<1x128xf32>
    %cst_808 = arith.constant 5.000000e-02 : f32
    %2422 = vector.broadcast %cst_808 : f32 to vector<1x128xf32>
    %2423 = arith.mulf %2422, %2419 : vector<1x128xf32>
    %2424 = arith.addf %2421, %2423 : vector<1x128xf32>
    %cst_809 = arith.constant 0.949999988 : f32
    %2425 = vector.broadcast %cst_809 : f32 to vector<1x128xf32>
    %2426 = arith.mulf %2425, %2413 : vector<1x128xf32>
    %2427 = arith.mulf %2424, %9 : vector<1x128xf32>
    %2428 = arith.addf %2426, %2427 : vector<1x128xf32>
    %cst_810 = arith.constant 1.000000e+00 : f32
    %2429 = vector.broadcast %cst_810 : f32 to vector<1x128xf32>
    %2430 = arith.cmpf ogt, %2428, %2429 : vector<1x128xf32>
    %cst_811 = arith.constant 1.000000e+00 : f32
    %cst_812 = arith.constant 0.000000e+00 : f32
    %2431 = vector.broadcast %cst_811 : f32 to vector<1x128xf32>
    %2432 = vector.broadcast %cst_812 : f32 to vector<1x128xf32>
    %2433 = arith.select %2430, %2431, %2432 : vector<1x128xi1>, vector<1x128xf32>
    %2434 = arith.mulf %2433, %2414 : vector<1x128xf32>
    %2435 = arith.addf %2411, %2434 : vector<1x128xf32>
    %cst_813 = arith.constant 0.000000e+00 : f32
    %2436 = vector.broadcast %cst_813 : f32 to vector<1x128xf32>
    %2437 = arith.select %2430, %2436, %2428 : vector<1x128xi1>, vector<1x128xf32>
    %c1_i32_814 = arith.constant 1 : i32
    %2438 = tpu.dynamic_rotate %2414 by %c1_i32_814 dim 1 : vector<1x128xf32>, i32 -> vector<1x128xf32>
    %c101_i32 = arith.constant 101 : i32
    %2439 = arith.addi %0, %c101_i32 : i32
    %2440 = arith.index_cast %2439 : i32 to index
    %2441 = memref.load %arg1[%2440] : memref<128xf32, #tpu.memory_space<smem>>
    %2442 = vector.broadcast %2441 : f32 to vector<1x128xf32>
    %2443 = arith.addf %1, %2442 : vector<1x128xf32>
    %cst_815 = arith.constant 0.949999988 : f32
    %2444 = vector.broadcast %cst_815 : f32 to vector<1x128xf32>
    %2445 = arith.mulf %2444, %2424 : vector<1x128xf32>
    %cst_816 = arith.constant 5.000000e-02 : f32
    %2446 = vector.broadcast %cst_816 : f32 to vector<1x128xf32>
    %2447 = arith.mulf %2446, %2443 : vector<1x128xf32>
    %2448 = arith.addf %2445, %2447 : vector<1x128xf32>
    %cst_817 = arith.constant 0.949999988 : f32
    %2449 = vector.broadcast %cst_817 : f32 to vector<1x128xf32>
    %2450 = arith.mulf %2449, %2437 : vector<1x128xf32>
    %2451 = arith.mulf %2448, %9 : vector<1x128xf32>
    %2452 = arith.addf %2450, %2451 : vector<1x128xf32>
    %cst_818 = arith.constant 1.000000e+00 : f32
    %2453 = vector.broadcast %cst_818 : f32 to vector<1x128xf32>
    %2454 = arith.cmpf ogt, %2452, %2453 : vector<1x128xf32>
    %cst_819 = arith.constant 1.000000e+00 : f32
    %cst_820 = arith.constant 0.000000e+00 : f32
    %2455 = vector.broadcast %cst_819 : f32 to vector<1x128xf32>
    %2456 = vector.broadcast %cst_820 : f32 to vector<1x128xf32>
    %2457 = arith.select %2454, %2455, %2456 : vector<1x128xi1>, vector<1x128xf32>
    %2458 = arith.mulf %2457, %2438 : vector<1x128xf32>
    %2459 = arith.addf %2435, %2458 : vector<1x128xf32>
    %cst_821 = arith.constant 0.000000e+00 : f32
    %2460 = vector.broadcast %cst_821 : f32 to vector<1x128xf32>
    %2461 = arith.select %2454, %2460, %2452 : vector<1x128xi1>, vector<1x128xf32>
    %c1_i32_822 = arith.constant 1 : i32
    %2462 = tpu.dynamic_rotate %2438 by %c1_i32_822 dim 1 : vector<1x128xf32>, i32 -> vector<1x128xf32>
    %c102_i32 = arith.constant 102 : i32
    %2463 = arith.addi %0, %c102_i32 : i32
    %2464 = arith.index_cast %2463 : i32 to index
    %2465 = memref.load %arg1[%2464] : memref<128xf32, #tpu.memory_space<smem>>
    %2466 = vector.broadcast %2465 : f32 to vector<1x128xf32>
    %2467 = arith.addf %1, %2466 : vector<1x128xf32>
    %cst_823 = arith.constant 0.949999988 : f32
    %2468 = vector.broadcast %cst_823 : f32 to vector<1x128xf32>
    %2469 = arith.mulf %2468, %2448 : vector<1x128xf32>
    %cst_824 = arith.constant 5.000000e-02 : f32
    %2470 = vector.broadcast %cst_824 : f32 to vector<1x128xf32>
    %2471 = arith.mulf %2470, %2467 : vector<1x128xf32>
    %2472 = arith.addf %2469, %2471 : vector<1x128xf32>
    %cst_825 = arith.constant 0.949999988 : f32
    %2473 = vector.broadcast %cst_825 : f32 to vector<1x128xf32>
    %2474 = arith.mulf %2473, %2461 : vector<1x128xf32>
    %2475 = arith.mulf %2472, %9 : vector<1x128xf32>
    %2476 = arith.addf %2474, %2475 : vector<1x128xf32>
    %cst_826 = arith.constant 1.000000e+00 : f32
    %2477 = vector.broadcast %cst_826 : f32 to vector<1x128xf32>
    %2478 = arith.cmpf ogt, %2476, %2477 : vector<1x128xf32>
    %cst_827 = arith.constant 1.000000e+00 : f32
    %cst_828 = arith.constant 0.000000e+00 : f32
    %2479 = vector.broadcast %cst_827 : f32 to vector<1x128xf32>
    %2480 = vector.broadcast %cst_828 : f32 to vector<1x128xf32>
    %2481 = arith.select %2478, %2479, %2480 : vector<1x128xi1>, vector<1x128xf32>
    %2482 = arith.mulf %2481, %2462 : vector<1x128xf32>
    %2483 = arith.addf %2459, %2482 : vector<1x128xf32>
    %cst_829 = arith.constant 0.000000e+00 : f32
    %2484 = vector.broadcast %cst_829 : f32 to vector<1x128xf32>
    %2485 = arith.select %2478, %2484, %2476 : vector<1x128xi1>, vector<1x128xf32>
    %c1_i32_830 = arith.constant 1 : i32
    %2486 = tpu.dynamic_rotate %2462 by %c1_i32_830 dim 1 : vector<1x128xf32>, i32 -> vector<1x128xf32>
    %c103_i32 = arith.constant 103 : i32
    %2487 = arith.addi %0, %c103_i32 : i32
    %2488 = arith.index_cast %2487 : i32 to index
    %2489 = memref.load %arg1[%2488] : memref<128xf32, #tpu.memory_space<smem>>
    %2490 = vector.broadcast %2489 : f32 to vector<1x128xf32>
    %2491 = arith.addf %1, %2490 : vector<1x128xf32>
    %cst_831 = arith.constant 0.949999988 : f32
    %2492 = vector.broadcast %cst_831 : f32 to vector<1x128xf32>
    %2493 = arith.mulf %2492, %2472 : vector<1x128xf32>
    %cst_832 = arith.constant 5.000000e-02 : f32
    %2494 = vector.broadcast %cst_832 : f32 to vector<1x128xf32>
    %2495 = arith.mulf %2494, %2491 : vector<1x128xf32>
    %2496 = arith.addf %2493, %2495 : vector<1x128xf32>
    %cst_833 = arith.constant 0.949999988 : f32
    %2497 = vector.broadcast %cst_833 : f32 to vector<1x128xf32>
    %2498 = arith.mulf %2497, %2485 : vector<1x128xf32>
    %2499 = arith.mulf %2496, %9 : vector<1x128xf32>
    %2500 = arith.addf %2498, %2499 : vector<1x128xf32>
    %cst_834 = arith.constant 1.000000e+00 : f32
    %2501 = vector.broadcast %cst_834 : f32 to vector<1x128xf32>
    %2502 = arith.cmpf ogt, %2500, %2501 : vector<1x128xf32>
    %cst_835 = arith.constant 1.000000e+00 : f32
    %cst_836 = arith.constant 0.000000e+00 : f32
    %2503 = vector.broadcast %cst_835 : f32 to vector<1x128xf32>
    %2504 = vector.broadcast %cst_836 : f32 to vector<1x128xf32>
    %2505 = arith.select %2502, %2503, %2504 : vector<1x128xi1>, vector<1x128xf32>
    %2506 = arith.mulf %2505, %2486 : vector<1x128xf32>
    %2507 = arith.addf %2483, %2506 : vector<1x128xf32>
    %cst_837 = arith.constant 0.000000e+00 : f32
    %2508 = vector.broadcast %cst_837 : f32 to vector<1x128xf32>
    %2509 = arith.select %2502, %2508, %2500 : vector<1x128xi1>, vector<1x128xf32>
    %c1_i32_838 = arith.constant 1 : i32
    %2510 = tpu.dynamic_rotate %2486 by %c1_i32_838 dim 1 : vector<1x128xf32>, i32 -> vector<1x128xf32>
    %c104_i32 = arith.constant 104 : i32
    %2511 = arith.addi %0, %c104_i32 : i32
    %2512 = arith.index_cast %2511 : i32 to index
    %2513 = memref.load %arg1[%2512] : memref<128xf32, #tpu.memory_space<smem>>
    %2514 = vector.broadcast %2513 : f32 to vector<1x128xf32>
    %2515 = arith.addf %1, %2514 : vector<1x128xf32>
    %cst_839 = arith.constant 0.949999988 : f32
    %2516 = vector.broadcast %cst_839 : f32 to vector<1x128xf32>
    %2517 = arith.mulf %2516, %2496 : vector<1x128xf32>
    %cst_840 = arith.constant 5.000000e-02 : f32
    %2518 = vector.broadcast %cst_840 : f32 to vector<1x128xf32>
    %2519 = arith.mulf %2518, %2515 : vector<1x128xf32>
    %2520 = arith.addf %2517, %2519 : vector<1x128xf32>
    %cst_841 = arith.constant 0.949999988 : f32
    %2521 = vector.broadcast %cst_841 : f32 to vector<1x128xf32>
    %2522 = arith.mulf %2521, %2509 : vector<1x128xf32>
    %2523 = arith.mulf %2520, %9 : vector<1x128xf32>
    %2524 = arith.addf %2522, %2523 : vector<1x128xf32>
    %cst_842 = arith.constant 1.000000e+00 : f32
    %2525 = vector.broadcast %cst_842 : f32 to vector<1x128xf32>
    %2526 = arith.cmpf ogt, %2524, %2525 : vector<1x128xf32>
    %cst_843 = arith.constant 1.000000e+00 : f32
    %cst_844 = arith.constant 0.000000e+00 : f32
    %2527 = vector.broadcast %cst_843 : f32 to vector<1x128xf32>
    %2528 = vector.broadcast %cst_844 : f32 to vector<1x128xf32>
    %2529 = arith.select %2526, %2527, %2528 : vector<1x128xi1>, vector<1x128xf32>
    %2530 = arith.mulf %2529, %2510 : vector<1x128xf32>
    %2531 = arith.addf %2507, %2530 : vector<1x128xf32>
    %cst_845 = arith.constant 0.000000e+00 : f32
    %2532 = vector.broadcast %cst_845 : f32 to vector<1x128xf32>
    %2533 = arith.select %2526, %2532, %2524 : vector<1x128xi1>, vector<1x128xf32>
    %c1_i32_846 = arith.constant 1 : i32
    %2534 = tpu.dynamic_rotate %2510 by %c1_i32_846 dim 1 : vector<1x128xf32>, i32 -> vector<1x128xf32>
    %c105_i32 = arith.constant 105 : i32
    %2535 = arith.addi %0, %c105_i32 : i32
    %2536 = arith.index_cast %2535 : i32 to index
    %2537 = memref.load %arg1[%2536] : memref<128xf32, #tpu.memory_space<smem>>
    %2538 = vector.broadcast %2537 : f32 to vector<1x128xf32>
    %2539 = arith.addf %1, %2538 : vector<1x128xf32>
    %cst_847 = arith.constant 0.949999988 : f32
    %2540 = vector.broadcast %cst_847 : f32 to vector<1x128xf32>
    %2541 = arith.mulf %2540, %2520 : vector<1x128xf32>
    %cst_848 = arith.constant 5.000000e-02 : f32
    %2542 = vector.broadcast %cst_848 : f32 to vector<1x128xf32>
    %2543 = arith.mulf %2542, %2539 : vector<1x128xf32>
    %2544 = arith.addf %2541, %2543 : vector<1x128xf32>
    %cst_849 = arith.constant 0.949999988 : f32
    %2545 = vector.broadcast %cst_849 : f32 to vector<1x128xf32>
    %2546 = arith.mulf %2545, %2533 : vector<1x128xf32>
    %2547 = arith.mulf %2544, %9 : vector<1x128xf32>
    %2548 = arith.addf %2546, %2547 : vector<1x128xf32>
    %cst_850 = arith.constant 1.000000e+00 : f32
    %2549 = vector.broadcast %cst_850 : f32 to vector<1x128xf32>
    %2550 = arith.cmpf ogt, %2548, %2549 : vector<1x128xf32>
    %cst_851 = arith.constant 1.000000e+00 : f32
    %cst_852 = arith.constant 0.000000e+00 : f32
    %2551 = vector.broadcast %cst_851 : f32 to vector<1x128xf32>
    %2552 = vector.broadcast %cst_852 : f32 to vector<1x128xf32>
    %2553 = arith.select %2550, %2551, %2552 : vector<1x128xi1>, vector<1x128xf32>
    %2554 = arith.mulf %2553, %2534 : vector<1x128xf32>
    %2555 = arith.addf %2531, %2554 : vector<1x128xf32>
    %cst_853 = arith.constant 0.000000e+00 : f32
    %2556 = vector.broadcast %cst_853 : f32 to vector<1x128xf32>
    %2557 = arith.select %2550, %2556, %2548 : vector<1x128xi1>, vector<1x128xf32>
    %c1_i32_854 = arith.constant 1 : i32
    %2558 = tpu.dynamic_rotate %2534 by %c1_i32_854 dim 1 : vector<1x128xf32>, i32 -> vector<1x128xf32>
    %c106_i32 = arith.constant 106 : i32
    %2559 = arith.addi %0, %c106_i32 : i32
    %2560 = arith.index_cast %2559 : i32 to index
    %2561 = memref.load %arg1[%2560] : memref<128xf32, #tpu.memory_space<smem>>
    %2562 = vector.broadcast %2561 : f32 to vector<1x128xf32>
    %2563 = arith.addf %1, %2562 : vector<1x128xf32>
    %cst_855 = arith.constant 0.949999988 : f32
    %2564 = vector.broadcast %cst_855 : f32 to vector<1x128xf32>
    %2565 = arith.mulf %2564, %2544 : vector<1x128xf32>
    %cst_856 = arith.constant 5.000000e-02 : f32
    %2566 = vector.broadcast %cst_856 : f32 to vector<1x128xf32>
    %2567 = arith.mulf %2566, %2563 : vector<1x128xf32>
    %2568 = arith.addf %2565, %2567 : vector<1x128xf32>
    %cst_857 = arith.constant 0.949999988 : f32
    %2569 = vector.broadcast %cst_857 : f32 to vector<1x128xf32>
    %2570 = arith.mulf %2569, %2557 : vector<1x128xf32>
    %2571 = arith.mulf %2568, %9 : vector<1x128xf32>
    %2572 = arith.addf %2570, %2571 : vector<1x128xf32>
    %cst_858 = arith.constant 1.000000e+00 : f32
    %2573 = vector.broadcast %cst_858 : f32 to vector<1x128xf32>
    %2574 = arith.cmpf ogt, %2572, %2573 : vector<1x128xf32>
    %cst_859 = arith.constant 1.000000e+00 : f32
    %cst_860 = arith.constant 0.000000e+00 : f32
    %2575 = vector.broadcast %cst_859 : f32 to vector<1x128xf32>
    %2576 = vector.broadcast %cst_860 : f32 to vector<1x128xf32>
    %2577 = arith.select %2574, %2575, %2576 : vector<1x128xi1>, vector<1x128xf32>
    %2578 = arith.mulf %2577, %2558 : vector<1x128xf32>
    %2579 = arith.addf %2555, %2578 : vector<1x128xf32>
    %cst_861 = arith.constant 0.000000e+00 : f32
    %2580 = vector.broadcast %cst_861 : f32 to vector<1x128xf32>
    %2581 = arith.select %2574, %2580, %2572 : vector<1x128xi1>, vector<1x128xf32>
    %c1_i32_862 = arith.constant 1 : i32
    %2582 = tpu.dynamic_rotate %2558 by %c1_i32_862 dim 1 : vector<1x128xf32>, i32 -> vector<1x128xf32>
    %c107_i32 = arith.constant 107 : i32
    %2583 = arith.addi %0, %c107_i32 : i32
    %2584 = arith.index_cast %2583 : i32 to index
    %2585 = memref.load %arg1[%2584] : memref<128xf32, #tpu.memory_space<smem>>
    %2586 = vector.broadcast %2585 : f32 to vector<1x128xf32>
    %2587 = arith.addf %1, %2586 : vector<1x128xf32>
    %cst_863 = arith.constant 0.949999988 : f32
    %2588 = vector.broadcast %cst_863 : f32 to vector<1x128xf32>
    %2589 = arith.mulf %2588, %2568 : vector<1x128xf32>
    %cst_864 = arith.constant 5.000000e-02 : f32
    %2590 = vector.broadcast %cst_864 : f32 to vector<1x128xf32>
    %2591 = arith.mulf %2590, %2587 : vector<1x128xf32>
    %2592 = arith.addf %2589, %2591 : vector<1x128xf32>
    %cst_865 = arith.constant 0.949999988 : f32
    %2593 = vector.broadcast %cst_865 : f32 to vector<1x128xf32>
    %2594 = arith.mulf %2593, %2581 : vector<1x128xf32>
    %2595 = arith.mulf %2592, %9 : vector<1x128xf32>
    %2596 = arith.addf %2594, %2595 : vector<1x128xf32>
    %cst_866 = arith.constant 1.000000e+00 : f32
    %2597 = vector.broadcast %cst_866 : f32 to vector<1x128xf32>
    %2598 = arith.cmpf ogt, %2596, %2597 : vector<1x128xf32>
    %cst_867 = arith.constant 1.000000e+00 : f32
    %cst_868 = arith.constant 0.000000e+00 : f32
    %2599 = vector.broadcast %cst_867 : f32 to vector<1x128xf32>
    %2600 = vector.broadcast %cst_868 : f32 to vector<1x128xf32>
    %2601 = arith.select %2598, %2599, %2600 : vector<1x128xi1>, vector<1x128xf32>
    %2602 = arith.mulf %2601, %2582 : vector<1x128xf32>
    %2603 = arith.addf %2579, %2602 : vector<1x128xf32>
    %cst_869 = arith.constant 0.000000e+00 : f32
    %2604 = vector.broadcast %cst_869 : f32 to vector<1x128xf32>
    %2605 = arith.select %2598, %2604, %2596 : vector<1x128xi1>, vector<1x128xf32>
    %c1_i32_870 = arith.constant 1 : i32
    %2606 = tpu.dynamic_rotate %2582 by %c1_i32_870 dim 1 : vector<1x128xf32>, i32 -> vector<1x128xf32>
    %c108_i32 = arith.constant 108 : i32
    %2607 = arith.addi %0, %c108_i32 : i32
    %2608 = arith.index_cast %2607 : i32 to index
    %2609 = memref.load %arg1[%2608] : memref<128xf32, #tpu.memory_space<smem>>
    %2610 = vector.broadcast %2609 : f32 to vector<1x128xf32>
    %2611 = arith.addf %1, %2610 : vector<1x128xf32>
    %cst_871 = arith.constant 0.949999988 : f32
    %2612 = vector.broadcast %cst_871 : f32 to vector<1x128xf32>
    %2613 = arith.mulf %2612, %2592 : vector<1x128xf32>
    %cst_872 = arith.constant 5.000000e-02 : f32
    %2614 = vector.broadcast %cst_872 : f32 to vector<1x128xf32>
    %2615 = arith.mulf %2614, %2611 : vector<1x128xf32>
    %2616 = arith.addf %2613, %2615 : vector<1x128xf32>
    %cst_873 = arith.constant 0.949999988 : f32
    %2617 = vector.broadcast %cst_873 : f32 to vector<1x128xf32>
    %2618 = arith.mulf %2617, %2605 : vector<1x128xf32>
    %2619 = arith.mulf %2616, %9 : vector<1x128xf32>
    %2620 = arith.addf %2618, %2619 : vector<1x128xf32>
    %cst_874 = arith.constant 1.000000e+00 : f32
    %2621 = vector.broadcast %cst_874 : f32 to vector<1x128xf32>
    %2622 = arith.cmpf ogt, %2620, %2621 : vector<1x128xf32>
    %cst_875 = arith.constant 1.000000e+00 : f32
    %cst_876 = arith.constant 0.000000e+00 : f32
    %2623 = vector.broadcast %cst_875 : f32 to vector<1x128xf32>
    %2624 = vector.broadcast %cst_876 : f32 to vector<1x128xf32>
    %2625 = arith.select %2622, %2623, %2624 : vector<1x128xi1>, vector<1x128xf32>
    %2626 = arith.mulf %2625, %2606 : vector<1x128xf32>
    %2627 = arith.addf %2603, %2626 : vector<1x128xf32>
    %cst_877 = arith.constant 0.000000e+00 : f32
    %2628 = vector.broadcast %cst_877 : f32 to vector<1x128xf32>
    %2629 = arith.select %2622, %2628, %2620 : vector<1x128xi1>, vector<1x128xf32>
    %c1_i32_878 = arith.constant 1 : i32
    %2630 = tpu.dynamic_rotate %2606 by %c1_i32_878 dim 1 : vector<1x128xf32>, i32 -> vector<1x128xf32>
    %c109_i32 = arith.constant 109 : i32
    %2631 = arith.addi %0, %c109_i32 : i32
    %2632 = arith.index_cast %2631 : i32 to index
    %2633 = memref.load %arg1[%2632] : memref<128xf32, #tpu.memory_space<smem>>
    %2634 = vector.broadcast %2633 : f32 to vector<1x128xf32>
    %2635 = arith.addf %1, %2634 : vector<1x128xf32>
    %cst_879 = arith.constant 0.949999988 : f32
    %2636 = vector.broadcast %cst_879 : f32 to vector<1x128xf32>
    %2637 = arith.mulf %2636, %2616 : vector<1x128xf32>
    %cst_880 = arith.constant 5.000000e-02 : f32
    %2638 = vector.broadcast %cst_880 : f32 to vector<1x128xf32>
    %2639 = arith.mulf %2638, %2635 : vector<1x128xf32>
    %2640 = arith.addf %2637, %2639 : vector<1x128xf32>
    %cst_881 = arith.constant 0.949999988 : f32
    %2641 = vector.broadcast %cst_881 : f32 to vector<1x128xf32>
    %2642 = arith.mulf %2641, %2629 : vector<1x128xf32>
    %2643 = arith.mulf %2640, %9 : vector<1x128xf32>
    %2644 = arith.addf %2642, %2643 : vector<1x128xf32>
    %cst_882 = arith.constant 1.000000e+00 : f32
    %2645 = vector.broadcast %cst_882 : f32 to vector<1x128xf32>
    %2646 = arith.cmpf ogt, %2644, %2645 : vector<1x128xf32>
    %cst_883 = arith.constant 1.000000e+00 : f32
    %cst_884 = arith.constant 0.000000e+00 : f32
    %2647 = vector.broadcast %cst_883 : f32 to vector<1x128xf32>
    %2648 = vector.broadcast %cst_884 : f32 to vector<1x128xf32>
    %2649 = arith.select %2646, %2647, %2648 : vector<1x128xi1>, vector<1x128xf32>
    %2650 = arith.mulf %2649, %2630 : vector<1x128xf32>
    %2651 = arith.addf %2627, %2650 : vector<1x128xf32>
    %cst_885 = arith.constant 0.000000e+00 : f32
    %2652 = vector.broadcast %cst_885 : f32 to vector<1x128xf32>
    %2653 = arith.select %2646, %2652, %2644 : vector<1x128xi1>, vector<1x128xf32>
    %c1_i32_886 = arith.constant 1 : i32
    %2654 = tpu.dynamic_rotate %2630 by %c1_i32_886 dim 1 : vector<1x128xf32>, i32 -> vector<1x128xf32>
    %c110_i32 = arith.constant 110 : i32
    %2655 = arith.addi %0, %c110_i32 : i32
    %2656 = arith.index_cast %2655 : i32 to index
    %2657 = memref.load %arg1[%2656] : memref<128xf32, #tpu.memory_space<smem>>
    %2658 = vector.broadcast %2657 : f32 to vector<1x128xf32>
    %2659 = arith.addf %1, %2658 : vector<1x128xf32>
    %cst_887 = arith.constant 0.949999988 : f32
    %2660 = vector.broadcast %cst_887 : f32 to vector<1x128xf32>
    %2661 = arith.mulf %2660, %2640 : vector<1x128xf32>
    %cst_888 = arith.constant 5.000000e-02 : f32
    %2662 = vector.broadcast %cst_888 : f32 to vector<1x128xf32>
    %2663 = arith.mulf %2662, %2659 : vector<1x128xf32>
    %2664 = arith.addf %2661, %2663 : vector<1x128xf32>
    %cst_889 = arith.constant 0.949999988 : f32
    %2665 = vector.broadcast %cst_889 : f32 to vector<1x128xf32>
    %2666 = arith.mulf %2665, %2653 : vector<1x128xf32>
    %2667 = arith.mulf %2664, %9 : vector<1x128xf32>
    %2668 = arith.addf %2666, %2667 : vector<1x128xf32>
    %cst_890 = arith.constant 1.000000e+00 : f32
    %2669 = vector.broadcast %cst_890 : f32 to vector<1x128xf32>
    %2670 = arith.cmpf ogt, %2668, %2669 : vector<1x128xf32>
    %cst_891 = arith.constant 1.000000e+00 : f32
    %cst_892 = arith.constant 0.000000e+00 : f32
    %2671 = vector.broadcast %cst_891 : f32 to vector<1x128xf32>
    %2672 = vector.broadcast %cst_892 : f32 to vector<1x128xf32>
    %2673 = arith.select %2670, %2671, %2672 : vector<1x128xi1>, vector<1x128xf32>
    %2674 = arith.mulf %2673, %2654 : vector<1x128xf32>
    %2675 = arith.addf %2651, %2674 : vector<1x128xf32>
    %cst_893 = arith.constant 0.000000e+00 : f32
    %2676 = vector.broadcast %cst_893 : f32 to vector<1x128xf32>
    %2677 = arith.select %2670, %2676, %2668 : vector<1x128xi1>, vector<1x128xf32>
    %c1_i32_894 = arith.constant 1 : i32
    %2678 = tpu.dynamic_rotate %2654 by %c1_i32_894 dim 1 : vector<1x128xf32>, i32 -> vector<1x128xf32>
    %c111_i32 = arith.constant 111 : i32
    %2679 = arith.addi %0, %c111_i32 : i32
    %2680 = arith.index_cast %2679 : i32 to index
    %2681 = memref.load %arg1[%2680] : memref<128xf32, #tpu.memory_space<smem>>
    %2682 = vector.broadcast %2681 : f32 to vector<1x128xf32>
    %2683 = arith.addf %1, %2682 : vector<1x128xf32>
    %cst_895 = arith.constant 0.949999988 : f32
    %2684 = vector.broadcast %cst_895 : f32 to vector<1x128xf32>
    %2685 = arith.mulf %2684, %2664 : vector<1x128xf32>
    %cst_896 = arith.constant 5.000000e-02 : f32
    %2686 = vector.broadcast %cst_896 : f32 to vector<1x128xf32>
    %2687 = arith.mulf %2686, %2683 : vector<1x128xf32>
    %2688 = arith.addf %2685, %2687 : vector<1x128xf32>
    %cst_897 = arith.constant 0.949999988 : f32
    %2689 = vector.broadcast %cst_897 : f32 to vector<1x128xf32>
    %2690 = arith.mulf %2689, %2677 : vector<1x128xf32>
    %2691 = arith.mulf %2688, %9 : vector<1x128xf32>
    %2692 = arith.addf %2690, %2691 : vector<1x128xf32>
    %cst_898 = arith.constant 1.000000e+00 : f32
    %2693 = vector.broadcast %cst_898 : f32 to vector<1x128xf32>
    %2694 = arith.cmpf ogt, %2692, %2693 : vector<1x128xf32>
    %cst_899 = arith.constant 1.000000e+00 : f32
    %cst_900 = arith.constant 0.000000e+00 : f32
    %2695 = vector.broadcast %cst_899 : f32 to vector<1x128xf32>
    %2696 = vector.broadcast %cst_900 : f32 to vector<1x128xf32>
    %2697 = arith.select %2694, %2695, %2696 : vector<1x128xi1>, vector<1x128xf32>
    %2698 = arith.mulf %2697, %2678 : vector<1x128xf32>
    %2699 = arith.addf %2675, %2698 : vector<1x128xf32>
    %cst_901 = arith.constant 0.000000e+00 : f32
    %2700 = vector.broadcast %cst_901 : f32 to vector<1x128xf32>
    %2701 = arith.select %2694, %2700, %2692 : vector<1x128xi1>, vector<1x128xf32>
    %c1_i32_902 = arith.constant 1 : i32
    %2702 = tpu.dynamic_rotate %2678 by %c1_i32_902 dim 1 : vector<1x128xf32>, i32 -> vector<1x128xf32>
    %c112_i32 = arith.constant 112 : i32
    %2703 = arith.addi %0, %c112_i32 : i32
    %2704 = arith.index_cast %2703 : i32 to index
    %2705 = memref.load %arg1[%2704] : memref<128xf32, #tpu.memory_space<smem>>
    %2706 = vector.broadcast %2705 : f32 to vector<1x128xf32>
    %2707 = arith.addf %1, %2706 : vector<1x128xf32>
    %cst_903 = arith.constant 0.949999988 : f32
    %2708 = vector.broadcast %cst_903 : f32 to vector<1x128xf32>
    %2709 = arith.mulf %2708, %2688 : vector<1x128xf32>
    %cst_904 = arith.constant 5.000000e-02 : f32
    %2710 = vector.broadcast %cst_904 : f32 to vector<1x128xf32>
    %2711 = arith.mulf %2710, %2707 : vector<1x128xf32>
    %2712 = arith.addf %2709, %2711 : vector<1x128xf32>
    %cst_905 = arith.constant 0.949999988 : f32
    %2713 = vector.broadcast %cst_905 : f32 to vector<1x128xf32>
    %2714 = arith.mulf %2713, %2701 : vector<1x128xf32>
    %2715 = arith.mulf %2712, %9 : vector<1x128xf32>
    %2716 = arith.addf %2714, %2715 : vector<1x128xf32>
    %cst_906 = arith.constant 1.000000e+00 : f32
    %2717 = vector.broadcast %cst_906 : f32 to vector<1x128xf32>
    %2718 = arith.cmpf ogt, %2716, %2717 : vector<1x128xf32>
    %cst_907 = arith.constant 1.000000e+00 : f32
    %cst_908 = arith.constant 0.000000e+00 : f32
    %2719 = vector.broadcast %cst_907 : f32 to vector<1x128xf32>
    %2720 = vector.broadcast %cst_908 : f32 to vector<1x128xf32>
    %2721 = arith.select %2718, %2719, %2720 : vector<1x128xi1>, vector<1x128xf32>
    %2722 = arith.mulf %2721, %2702 : vector<1x128xf32>
    %2723 = arith.addf %2699, %2722 : vector<1x128xf32>
    %cst_909 = arith.constant 0.000000e+00 : f32
    %2724 = vector.broadcast %cst_909 : f32 to vector<1x128xf32>
    %2725 = arith.select %2718, %2724, %2716 : vector<1x128xi1>, vector<1x128xf32>
    %c1_i32_910 = arith.constant 1 : i32
    %2726 = tpu.dynamic_rotate %2702 by %c1_i32_910 dim 1 : vector<1x128xf32>, i32 -> vector<1x128xf32>
    %c113_i32 = arith.constant 113 : i32
    %2727 = arith.addi %0, %c113_i32 : i32
    %2728 = arith.index_cast %2727 : i32 to index
    %2729 = memref.load %arg1[%2728] : memref<128xf32, #tpu.memory_space<smem>>
    %2730 = vector.broadcast %2729 : f32 to vector<1x128xf32>
    %2731 = arith.addf %1, %2730 : vector<1x128xf32>
    %cst_911 = arith.constant 0.949999988 : f32
    %2732 = vector.broadcast %cst_911 : f32 to vector<1x128xf32>
    %2733 = arith.mulf %2732, %2712 : vector<1x128xf32>
    %cst_912 = arith.constant 5.000000e-02 : f32
    %2734 = vector.broadcast %cst_912 : f32 to vector<1x128xf32>
    %2735 = arith.mulf %2734, %2731 : vector<1x128xf32>
    %2736 = arith.addf %2733, %2735 : vector<1x128xf32>
    %cst_913 = arith.constant 0.949999988 : f32
    %2737 = vector.broadcast %cst_913 : f32 to vector<1x128xf32>
    %2738 = arith.mulf %2737, %2725 : vector<1x128xf32>
    %2739 = arith.mulf %2736, %9 : vector<1x128xf32>
    %2740 = arith.addf %2738, %2739 : vector<1x128xf32>
    %cst_914 = arith.constant 1.000000e+00 : f32
    %2741 = vector.broadcast %cst_914 : f32 to vector<1x128xf32>
    %2742 = arith.cmpf ogt, %2740, %2741 : vector<1x128xf32>
    %cst_915 = arith.constant 1.000000e+00 : f32
    %cst_916 = arith.constant 0.000000e+00 : f32
    %2743 = vector.broadcast %cst_915 : f32 to vector<1x128xf32>
    %2744 = vector.broadcast %cst_916 : f32 to vector<1x128xf32>
    %2745 = arith.select %2742, %2743, %2744 : vector<1x128xi1>, vector<1x128xf32>
    %2746 = arith.mulf %2745, %2726 : vector<1x128xf32>
    %2747 = arith.addf %2723, %2746 : vector<1x128xf32>
    %cst_917 = arith.constant 0.000000e+00 : f32
    %2748 = vector.broadcast %cst_917 : f32 to vector<1x128xf32>
    %2749 = arith.select %2742, %2748, %2740 : vector<1x128xi1>, vector<1x128xf32>
    %c1_i32_918 = arith.constant 1 : i32
    %2750 = tpu.dynamic_rotate %2726 by %c1_i32_918 dim 1 : vector<1x128xf32>, i32 -> vector<1x128xf32>
    %c114_i32 = arith.constant 114 : i32
    %2751 = arith.addi %0, %c114_i32 : i32
    %2752 = arith.index_cast %2751 : i32 to index
    %2753 = memref.load %arg1[%2752] : memref<128xf32, #tpu.memory_space<smem>>
    %2754 = vector.broadcast %2753 : f32 to vector<1x128xf32>
    %2755 = arith.addf %1, %2754 : vector<1x128xf32>
    %cst_919 = arith.constant 0.949999988 : f32
    %2756 = vector.broadcast %cst_919 : f32 to vector<1x128xf32>
    %2757 = arith.mulf %2756, %2736 : vector<1x128xf32>
    %cst_920 = arith.constant 5.000000e-02 : f32
    %2758 = vector.broadcast %cst_920 : f32 to vector<1x128xf32>
    %2759 = arith.mulf %2758, %2755 : vector<1x128xf32>
    %2760 = arith.addf %2757, %2759 : vector<1x128xf32>
    %cst_921 = arith.constant 0.949999988 : f32
    %2761 = vector.broadcast %cst_921 : f32 to vector<1x128xf32>
    %2762 = arith.mulf %2761, %2749 : vector<1x128xf32>
    %2763 = arith.mulf %2760, %9 : vector<1x128xf32>
    %2764 = arith.addf %2762, %2763 : vector<1x128xf32>
    %cst_922 = arith.constant 1.000000e+00 : f32
    %2765 = vector.broadcast %cst_922 : f32 to vector<1x128xf32>
    %2766 = arith.cmpf ogt, %2764, %2765 : vector<1x128xf32>
    %cst_923 = arith.constant 1.000000e+00 : f32
    %cst_924 = arith.constant 0.000000e+00 : f32
    %2767 = vector.broadcast %cst_923 : f32 to vector<1x128xf32>
    %2768 = vector.broadcast %cst_924 : f32 to vector<1x128xf32>
    %2769 = arith.select %2766, %2767, %2768 : vector<1x128xi1>, vector<1x128xf32>
    %2770 = arith.mulf %2769, %2750 : vector<1x128xf32>
    %2771 = arith.addf %2747, %2770 : vector<1x128xf32>
    %cst_925 = arith.constant 0.000000e+00 : f32
    %2772 = vector.broadcast %cst_925 : f32 to vector<1x128xf32>
    %2773 = arith.select %2766, %2772, %2764 : vector<1x128xi1>, vector<1x128xf32>
    %c1_i32_926 = arith.constant 1 : i32
    %2774 = tpu.dynamic_rotate %2750 by %c1_i32_926 dim 1 : vector<1x128xf32>, i32 -> vector<1x128xf32>
    %c115_i32 = arith.constant 115 : i32
    %2775 = arith.addi %0, %c115_i32 : i32
    %2776 = arith.index_cast %2775 : i32 to index
    %2777 = memref.load %arg1[%2776] : memref<128xf32, #tpu.memory_space<smem>>
    %2778 = vector.broadcast %2777 : f32 to vector<1x128xf32>
    %2779 = arith.addf %1, %2778 : vector<1x128xf32>
    %cst_927 = arith.constant 0.949999988 : f32
    %2780 = vector.broadcast %cst_927 : f32 to vector<1x128xf32>
    %2781 = arith.mulf %2780, %2760 : vector<1x128xf32>
    %cst_928 = arith.constant 5.000000e-02 : f32
    %2782 = vector.broadcast %cst_928 : f32 to vector<1x128xf32>
    %2783 = arith.mulf %2782, %2779 : vector<1x128xf32>
    %2784 = arith.addf %2781, %2783 : vector<1x128xf32>
    %cst_929 = arith.constant 0.949999988 : f32
    %2785 = vector.broadcast %cst_929 : f32 to vector<1x128xf32>
    %2786 = arith.mulf %2785, %2773 : vector<1x128xf32>
    %2787 = arith.mulf %2784, %9 : vector<1x128xf32>
    %2788 = arith.addf %2786, %2787 : vector<1x128xf32>
    %cst_930 = arith.constant 1.000000e+00 : f32
    %2789 = vector.broadcast %cst_930 : f32 to vector<1x128xf32>
    %2790 = arith.cmpf ogt, %2788, %2789 : vector<1x128xf32>
    %cst_931 = arith.constant 1.000000e+00 : f32
    %cst_932 = arith.constant 0.000000e+00 : f32
    %2791 = vector.broadcast %cst_931 : f32 to vector<1x128xf32>
    %2792 = vector.broadcast %cst_932 : f32 to vector<1x128xf32>
    %2793 = arith.select %2790, %2791, %2792 : vector<1x128xi1>, vector<1x128xf32>
    %2794 = arith.mulf %2793, %2774 : vector<1x128xf32>
    %2795 = arith.addf %2771, %2794 : vector<1x128xf32>
    %cst_933 = arith.constant 0.000000e+00 : f32
    %2796 = vector.broadcast %cst_933 : f32 to vector<1x128xf32>
    %2797 = arith.select %2790, %2796, %2788 : vector<1x128xi1>, vector<1x128xf32>
    %c1_i32_934 = arith.constant 1 : i32
    %2798 = tpu.dynamic_rotate %2774 by %c1_i32_934 dim 1 : vector<1x128xf32>, i32 -> vector<1x128xf32>
    %c116_i32 = arith.constant 116 : i32
    %2799 = arith.addi %0, %c116_i32 : i32
    %2800 = arith.index_cast %2799 : i32 to index
    %2801 = memref.load %arg1[%2800] : memref<128xf32, #tpu.memory_space<smem>>
    %2802 = vector.broadcast %2801 : f32 to vector<1x128xf32>
    %2803 = arith.addf %1, %2802 : vector<1x128xf32>
    %cst_935 = arith.constant 0.949999988 : f32
    %2804 = vector.broadcast %cst_935 : f32 to vector<1x128xf32>
    %2805 = arith.mulf %2804, %2784 : vector<1x128xf32>
    %cst_936 = arith.constant 5.000000e-02 : f32
    %2806 = vector.broadcast %cst_936 : f32 to vector<1x128xf32>
    %2807 = arith.mulf %2806, %2803 : vector<1x128xf32>
    %2808 = arith.addf %2805, %2807 : vector<1x128xf32>
    %cst_937 = arith.constant 0.949999988 : f32
    %2809 = vector.broadcast %cst_937 : f32 to vector<1x128xf32>
    %2810 = arith.mulf %2809, %2797 : vector<1x128xf32>
    %2811 = arith.mulf %2808, %9 : vector<1x128xf32>
    %2812 = arith.addf %2810, %2811 : vector<1x128xf32>
    %cst_938 = arith.constant 1.000000e+00 : f32
    %2813 = vector.broadcast %cst_938 : f32 to vector<1x128xf32>
    %2814 = arith.cmpf ogt, %2812, %2813 : vector<1x128xf32>
    %cst_939 = arith.constant 1.000000e+00 : f32
    %cst_940 = arith.constant 0.000000e+00 : f32
    %2815 = vector.broadcast %cst_939 : f32 to vector<1x128xf32>
    %2816 = vector.broadcast %cst_940 : f32 to vector<1x128xf32>
    %2817 = arith.select %2814, %2815, %2816 : vector<1x128xi1>, vector<1x128xf32>
    %2818 = arith.mulf %2817, %2798 : vector<1x128xf32>
    %2819 = arith.addf %2795, %2818 : vector<1x128xf32>
    %cst_941 = arith.constant 0.000000e+00 : f32
    %2820 = vector.broadcast %cst_941 : f32 to vector<1x128xf32>
    %2821 = arith.select %2814, %2820, %2812 : vector<1x128xi1>, vector<1x128xf32>
    %c1_i32_942 = arith.constant 1 : i32
    %2822 = tpu.dynamic_rotate %2798 by %c1_i32_942 dim 1 : vector<1x128xf32>, i32 -> vector<1x128xf32>
    %c117_i32 = arith.constant 117 : i32
    %2823 = arith.addi %0, %c117_i32 : i32
    %2824 = arith.index_cast %2823 : i32 to index
    %2825 = memref.load %arg1[%2824] : memref<128xf32, #tpu.memory_space<smem>>
    %2826 = vector.broadcast %2825 : f32 to vector<1x128xf32>
    %2827 = arith.addf %1, %2826 : vector<1x128xf32>
    %cst_943 = arith.constant 0.949999988 : f32
    %2828 = vector.broadcast %cst_943 : f32 to vector<1x128xf32>
    %2829 = arith.mulf %2828, %2808 : vector<1x128xf32>
    %cst_944 = arith.constant 5.000000e-02 : f32
    %2830 = vector.broadcast %cst_944 : f32 to vector<1x128xf32>
    %2831 = arith.mulf %2830, %2827 : vector<1x128xf32>
    %2832 = arith.addf %2829, %2831 : vector<1x128xf32>
    %cst_945 = arith.constant 0.949999988 : f32
    %2833 = vector.broadcast %cst_945 : f32 to vector<1x128xf32>
    %2834 = arith.mulf %2833, %2821 : vector<1x128xf32>
    %2835 = arith.mulf %2832, %9 : vector<1x128xf32>
    %2836 = arith.addf %2834, %2835 : vector<1x128xf32>
    %cst_946 = arith.constant 1.000000e+00 : f32
    %2837 = vector.broadcast %cst_946 : f32 to vector<1x128xf32>
    %2838 = arith.cmpf ogt, %2836, %2837 : vector<1x128xf32>
    %cst_947 = arith.constant 1.000000e+00 : f32
    %cst_948 = arith.constant 0.000000e+00 : f32
    %2839 = vector.broadcast %cst_947 : f32 to vector<1x128xf32>
    %2840 = vector.broadcast %cst_948 : f32 to vector<1x128xf32>
    %2841 = arith.select %2838, %2839, %2840 : vector<1x128xi1>, vector<1x128xf32>
    %2842 = arith.mulf %2841, %2822 : vector<1x128xf32>
    %2843 = arith.addf %2819, %2842 : vector<1x128xf32>
    %cst_949 = arith.constant 0.000000e+00 : f32
    %2844 = vector.broadcast %cst_949 : f32 to vector<1x128xf32>
    %2845 = arith.select %2838, %2844, %2836 : vector<1x128xi1>, vector<1x128xf32>
    %c1_i32_950 = arith.constant 1 : i32
    %2846 = tpu.dynamic_rotate %2822 by %c1_i32_950 dim 1 : vector<1x128xf32>, i32 -> vector<1x128xf32>
    %c118_i32 = arith.constant 118 : i32
    %2847 = arith.addi %0, %c118_i32 : i32
    %2848 = arith.index_cast %2847 : i32 to index
    %2849 = memref.load %arg1[%2848] : memref<128xf32, #tpu.memory_space<smem>>
    %2850 = vector.broadcast %2849 : f32 to vector<1x128xf32>
    %2851 = arith.addf %1, %2850 : vector<1x128xf32>
    %cst_951 = arith.constant 0.949999988 : f32
    %2852 = vector.broadcast %cst_951 : f32 to vector<1x128xf32>
    %2853 = arith.mulf %2852, %2832 : vector<1x128xf32>
    %cst_952 = arith.constant 5.000000e-02 : f32
    %2854 = vector.broadcast %cst_952 : f32 to vector<1x128xf32>
    %2855 = arith.mulf %2854, %2851 : vector<1x128xf32>
    %2856 = arith.addf %2853, %2855 : vector<1x128xf32>
    %cst_953 = arith.constant 0.949999988 : f32
    %2857 = vector.broadcast %cst_953 : f32 to vector<1x128xf32>
    %2858 = arith.mulf %2857, %2845 : vector<1x128xf32>
    %2859 = arith.mulf %2856, %9 : vector<1x128xf32>
    %2860 = arith.addf %2858, %2859 : vector<1x128xf32>
    %cst_954 = arith.constant 1.000000e+00 : f32
    %2861 = vector.broadcast %cst_954 : f32 to vector<1x128xf32>
    %2862 = arith.cmpf ogt, %2860, %2861 : vector<1x128xf32>
    %cst_955 = arith.constant 1.000000e+00 : f32
    %cst_956 = arith.constant 0.000000e+00 : f32
    %2863 = vector.broadcast %cst_955 : f32 to vector<1x128xf32>
    %2864 = vector.broadcast %cst_956 : f32 to vector<1x128xf32>
    %2865 = arith.select %2862, %2863, %2864 : vector<1x128xi1>, vector<1x128xf32>
    %2866 = arith.mulf %2865, %2846 : vector<1x128xf32>
    %2867 = arith.addf %2843, %2866 : vector<1x128xf32>
    %cst_957 = arith.constant 0.000000e+00 : f32
    %2868 = vector.broadcast %cst_957 : f32 to vector<1x128xf32>
    %2869 = arith.select %2862, %2868, %2860 : vector<1x128xi1>, vector<1x128xf32>
    %c1_i32_958 = arith.constant 1 : i32
    %2870 = tpu.dynamic_rotate %2846 by %c1_i32_958 dim 1 : vector<1x128xf32>, i32 -> vector<1x128xf32>
    %c119_i32 = arith.constant 119 : i32
    %2871 = arith.addi %0, %c119_i32 : i32
    %2872 = arith.index_cast %2871 : i32 to index
    %2873 = memref.load %arg1[%2872] : memref<128xf32, #tpu.memory_space<smem>>
    %2874 = vector.broadcast %2873 : f32 to vector<1x128xf32>
    %2875 = arith.addf %1, %2874 : vector<1x128xf32>
    %cst_959 = arith.constant 0.949999988 : f32
    %2876 = vector.broadcast %cst_959 : f32 to vector<1x128xf32>
    %2877 = arith.mulf %2876, %2856 : vector<1x128xf32>
    %cst_960 = arith.constant 5.000000e-02 : f32
    %2878 = vector.broadcast %cst_960 : f32 to vector<1x128xf32>
    %2879 = arith.mulf %2878, %2875 : vector<1x128xf32>
    %2880 = arith.addf %2877, %2879 : vector<1x128xf32>
    %cst_961 = arith.constant 0.949999988 : f32
    %2881 = vector.broadcast %cst_961 : f32 to vector<1x128xf32>
    %2882 = arith.mulf %2881, %2869 : vector<1x128xf32>
    %2883 = arith.mulf %2880, %9 : vector<1x128xf32>
    %2884 = arith.addf %2882, %2883 : vector<1x128xf32>
    %cst_962 = arith.constant 1.000000e+00 : f32
    %2885 = vector.broadcast %cst_962 : f32 to vector<1x128xf32>
    %2886 = arith.cmpf ogt, %2884, %2885 : vector<1x128xf32>
    %cst_963 = arith.constant 1.000000e+00 : f32
    %cst_964 = arith.constant 0.000000e+00 : f32
    %2887 = vector.broadcast %cst_963 : f32 to vector<1x128xf32>
    %2888 = vector.broadcast %cst_964 : f32 to vector<1x128xf32>
    %2889 = arith.select %2886, %2887, %2888 : vector<1x128xi1>, vector<1x128xf32>
    %2890 = arith.mulf %2889, %2870 : vector<1x128xf32>
    %2891 = arith.addf %2867, %2890 : vector<1x128xf32>
    %cst_965 = arith.constant 0.000000e+00 : f32
    %2892 = vector.broadcast %cst_965 : f32 to vector<1x128xf32>
    %2893 = arith.select %2886, %2892, %2884 : vector<1x128xi1>, vector<1x128xf32>
    %c1_i32_966 = arith.constant 1 : i32
    %2894 = tpu.dynamic_rotate %2870 by %c1_i32_966 dim 1 : vector<1x128xf32>, i32 -> vector<1x128xf32>
    %c120_i32 = arith.constant 120 : i32
    %2895 = arith.addi %0, %c120_i32 : i32
    %2896 = arith.index_cast %2895 : i32 to index
    %2897 = memref.load %arg1[%2896] : memref<128xf32, #tpu.memory_space<smem>>
    %2898 = vector.broadcast %2897 : f32 to vector<1x128xf32>
    %2899 = arith.addf %1, %2898 : vector<1x128xf32>
    %cst_967 = arith.constant 0.949999988 : f32
    %2900 = vector.broadcast %cst_967 : f32 to vector<1x128xf32>
    %2901 = arith.mulf %2900, %2880 : vector<1x128xf32>
    %cst_968 = arith.constant 5.000000e-02 : f32
    %2902 = vector.broadcast %cst_968 : f32 to vector<1x128xf32>
    %2903 = arith.mulf %2902, %2899 : vector<1x128xf32>
    %2904 = arith.addf %2901, %2903 : vector<1x128xf32>
    %cst_969 = arith.constant 0.949999988 : f32
    %2905 = vector.broadcast %cst_969 : f32 to vector<1x128xf32>
    %2906 = arith.mulf %2905, %2893 : vector<1x128xf32>
    %2907 = arith.mulf %2904, %9 : vector<1x128xf32>
    %2908 = arith.addf %2906, %2907 : vector<1x128xf32>
    %cst_970 = arith.constant 1.000000e+00 : f32
    %2909 = vector.broadcast %cst_970 : f32 to vector<1x128xf32>
    %2910 = arith.cmpf ogt, %2908, %2909 : vector<1x128xf32>
    %cst_971 = arith.constant 1.000000e+00 : f32
    %cst_972 = arith.constant 0.000000e+00 : f32
    %2911 = vector.broadcast %cst_971 : f32 to vector<1x128xf32>
    %2912 = vector.broadcast %cst_972 : f32 to vector<1x128xf32>
    %2913 = arith.select %2910, %2911, %2912 : vector<1x128xi1>, vector<1x128xf32>
    %2914 = arith.mulf %2913, %2894 : vector<1x128xf32>
    %2915 = arith.addf %2891, %2914 : vector<1x128xf32>
    %cst_973 = arith.constant 0.000000e+00 : f32
    %2916 = vector.broadcast %cst_973 : f32 to vector<1x128xf32>
    %2917 = arith.select %2910, %2916, %2908 : vector<1x128xi1>, vector<1x128xf32>
    %c1_i32_974 = arith.constant 1 : i32
    %2918 = tpu.dynamic_rotate %2894 by %c1_i32_974 dim 1 : vector<1x128xf32>, i32 -> vector<1x128xf32>
    %c121_i32 = arith.constant 121 : i32
    %2919 = arith.addi %0, %c121_i32 : i32
    %2920 = arith.index_cast %2919 : i32 to index
    %2921 = memref.load %arg1[%2920] : memref<128xf32, #tpu.memory_space<smem>>
    %2922 = vector.broadcast %2921 : f32 to vector<1x128xf32>
    %2923 = arith.addf %1, %2922 : vector<1x128xf32>
    %cst_975 = arith.constant 0.949999988 : f32
    %2924 = vector.broadcast %cst_975 : f32 to vector<1x128xf32>
    %2925 = arith.mulf %2924, %2904 : vector<1x128xf32>
    %cst_976 = arith.constant 5.000000e-02 : f32
    %2926 = vector.broadcast %cst_976 : f32 to vector<1x128xf32>
    %2927 = arith.mulf %2926, %2923 : vector<1x128xf32>
    %2928 = arith.addf %2925, %2927 : vector<1x128xf32>
    %cst_977 = arith.constant 0.949999988 : f32
    %2929 = vector.broadcast %cst_977 : f32 to vector<1x128xf32>
    %2930 = arith.mulf %2929, %2917 : vector<1x128xf32>
    %2931 = arith.mulf %2928, %9 : vector<1x128xf32>
    %2932 = arith.addf %2930, %2931 : vector<1x128xf32>
    %cst_978 = arith.constant 1.000000e+00 : f32
    %2933 = vector.broadcast %cst_978 : f32 to vector<1x128xf32>
    %2934 = arith.cmpf ogt, %2932, %2933 : vector<1x128xf32>
    %cst_979 = arith.constant 1.000000e+00 : f32
    %cst_980 = arith.constant 0.000000e+00 : f32
    %2935 = vector.broadcast %cst_979 : f32 to vector<1x128xf32>
    %2936 = vector.broadcast %cst_980 : f32 to vector<1x128xf32>
    %2937 = arith.select %2934, %2935, %2936 : vector<1x128xi1>, vector<1x128xf32>
    %2938 = arith.mulf %2937, %2918 : vector<1x128xf32>
    %2939 = arith.addf %2915, %2938 : vector<1x128xf32>
    %cst_981 = arith.constant 0.000000e+00 : f32
    %2940 = vector.broadcast %cst_981 : f32 to vector<1x128xf32>
    %2941 = arith.select %2934, %2940, %2932 : vector<1x128xi1>, vector<1x128xf32>
    %c1_i32_982 = arith.constant 1 : i32
    %2942 = tpu.dynamic_rotate %2918 by %c1_i32_982 dim 1 : vector<1x128xf32>, i32 -> vector<1x128xf32>
    %c122_i32 = arith.constant 122 : i32
    %2943 = arith.addi %0, %c122_i32 : i32
    %2944 = arith.index_cast %2943 : i32 to index
    %2945 = memref.load %arg1[%2944] : memref<128xf32, #tpu.memory_space<smem>>
    %2946 = vector.broadcast %2945 : f32 to vector<1x128xf32>
    %2947 = arith.addf %1, %2946 : vector<1x128xf32>
    %cst_983 = arith.constant 0.949999988 : f32
    %2948 = vector.broadcast %cst_983 : f32 to vector<1x128xf32>
    %2949 = arith.mulf %2948, %2928 : vector<1x128xf32>
    %cst_984 = arith.constant 5.000000e-02 : f32
    %2950 = vector.broadcast %cst_984 : f32 to vector<1x128xf32>
    %2951 = arith.mulf %2950, %2947 : vector<1x128xf32>
    %2952 = arith.addf %2949, %2951 : vector<1x128xf32>
    %cst_985 = arith.constant 0.949999988 : f32
    %2953 = vector.broadcast %cst_985 : f32 to vector<1x128xf32>
    %2954 = arith.mulf %2953, %2941 : vector<1x128xf32>
    %2955 = arith.mulf %2952, %9 : vector<1x128xf32>
    %2956 = arith.addf %2954, %2955 : vector<1x128xf32>
    %cst_986 = arith.constant 1.000000e+00 : f32
    %2957 = vector.broadcast %cst_986 : f32 to vector<1x128xf32>
    %2958 = arith.cmpf ogt, %2956, %2957 : vector<1x128xf32>
    %cst_987 = arith.constant 1.000000e+00 : f32
    %cst_988 = arith.constant 0.000000e+00 : f32
    %2959 = vector.broadcast %cst_987 : f32 to vector<1x128xf32>
    %2960 = vector.broadcast %cst_988 : f32 to vector<1x128xf32>
    %2961 = arith.select %2958, %2959, %2960 : vector<1x128xi1>, vector<1x128xf32>
    %2962 = arith.mulf %2961, %2942 : vector<1x128xf32>
    %2963 = arith.addf %2939, %2962 : vector<1x128xf32>
    %cst_989 = arith.constant 0.000000e+00 : f32
    %2964 = vector.broadcast %cst_989 : f32 to vector<1x128xf32>
    %2965 = arith.select %2958, %2964, %2956 : vector<1x128xi1>, vector<1x128xf32>
    %c1_i32_990 = arith.constant 1 : i32
    %2966 = tpu.dynamic_rotate %2942 by %c1_i32_990 dim 1 : vector<1x128xf32>, i32 -> vector<1x128xf32>
    %c123_i32 = arith.constant 123 : i32
    %2967 = arith.addi %0, %c123_i32 : i32
    %2968 = arith.index_cast %2967 : i32 to index
    %2969 = memref.load %arg1[%2968] : memref<128xf32, #tpu.memory_space<smem>>
    %2970 = vector.broadcast %2969 : f32 to vector<1x128xf32>
    %2971 = arith.addf %1, %2970 : vector<1x128xf32>
    %cst_991 = arith.constant 0.949999988 : f32
    %2972 = vector.broadcast %cst_991 : f32 to vector<1x128xf32>
    %2973 = arith.mulf %2972, %2952 : vector<1x128xf32>
    %cst_992 = arith.constant 5.000000e-02 : f32
    %2974 = vector.broadcast %cst_992 : f32 to vector<1x128xf32>
    %2975 = arith.mulf %2974, %2971 : vector<1x128xf32>
    %2976 = arith.addf %2973, %2975 : vector<1x128xf32>
    %cst_993 = arith.constant 0.949999988 : f32
    %2977 = vector.broadcast %cst_993 : f32 to vector<1x128xf32>
    %2978 = arith.mulf %2977, %2965 : vector<1x128xf32>
    %2979 = arith.mulf %2976, %9 : vector<1x128xf32>
    %2980 = arith.addf %2978, %2979 : vector<1x128xf32>
    %cst_994 = arith.constant 1.000000e+00 : f32
    %2981 = vector.broadcast %cst_994 : f32 to vector<1x128xf32>
    %2982 = arith.cmpf ogt, %2980, %2981 : vector<1x128xf32>
    %cst_995 = arith.constant 1.000000e+00 : f32
    %cst_996 = arith.constant 0.000000e+00 : f32
    %2983 = vector.broadcast %cst_995 : f32 to vector<1x128xf32>
    %2984 = vector.broadcast %cst_996 : f32 to vector<1x128xf32>
    %2985 = arith.select %2982, %2983, %2984 : vector<1x128xi1>, vector<1x128xf32>
    %2986 = arith.mulf %2985, %2966 : vector<1x128xf32>
    %2987 = arith.addf %2963, %2986 : vector<1x128xf32>
    %cst_997 = arith.constant 0.000000e+00 : f32
    %2988 = vector.broadcast %cst_997 : f32 to vector<1x128xf32>
    %2989 = arith.select %2982, %2988, %2980 : vector<1x128xi1>, vector<1x128xf32>
    %c1_i32_998 = arith.constant 1 : i32
    %2990 = tpu.dynamic_rotate %2966 by %c1_i32_998 dim 1 : vector<1x128xf32>, i32 -> vector<1x128xf32>
    %c124_i32 = arith.constant 124 : i32
    %2991 = arith.addi %0, %c124_i32 : i32
    %2992 = arith.index_cast %2991 : i32 to index
    %2993 = memref.load %arg1[%2992] : memref<128xf32, #tpu.memory_space<smem>>
    %2994 = vector.broadcast %2993 : f32 to vector<1x128xf32>
    %2995 = arith.addf %1, %2994 : vector<1x128xf32>
    %cst_999 = arith.constant 0.949999988 : f32
    %2996 = vector.broadcast %cst_999 : f32 to vector<1x128xf32>
    %2997 = arith.mulf %2996, %2976 : vector<1x128xf32>
    %cst_1000 = arith.constant 5.000000e-02 : f32
    %2998 = vector.broadcast %cst_1000 : f32 to vector<1x128xf32>
    %2999 = arith.mulf %2998, %2995 : vector<1x128xf32>
    %3000 = arith.addf %2997, %2999 : vector<1x128xf32>
    %cst_1001 = arith.constant 0.949999988 : f32
    %3001 = vector.broadcast %cst_1001 : f32 to vector<1x128xf32>
    %3002 = arith.mulf %3001, %2989 : vector<1x128xf32>
    %3003 = arith.mulf %3000, %9 : vector<1x128xf32>
    %3004 = arith.addf %3002, %3003 : vector<1x128xf32>
    %cst_1002 = arith.constant 1.000000e+00 : f32
    %3005 = vector.broadcast %cst_1002 : f32 to vector<1x128xf32>
    %3006 = arith.cmpf ogt, %3004, %3005 : vector<1x128xf32>
    %cst_1003 = arith.constant 1.000000e+00 : f32
    %cst_1004 = arith.constant 0.000000e+00 : f32
    %3007 = vector.broadcast %cst_1003 : f32 to vector<1x128xf32>
    %3008 = vector.broadcast %cst_1004 : f32 to vector<1x128xf32>
    %3009 = arith.select %3006, %3007, %3008 : vector<1x128xi1>, vector<1x128xf32>
    %3010 = arith.mulf %3009, %2990 : vector<1x128xf32>
    %3011 = arith.addf %2987, %3010 : vector<1x128xf32>
    %cst_1005 = arith.constant 0.000000e+00 : f32
    %3012 = vector.broadcast %cst_1005 : f32 to vector<1x128xf32>
    %3013 = arith.select %3006, %3012, %3004 : vector<1x128xi1>, vector<1x128xf32>
    %c1_i32_1006 = arith.constant 1 : i32
    %3014 = tpu.dynamic_rotate %2990 by %c1_i32_1006 dim 1 : vector<1x128xf32>, i32 -> vector<1x128xf32>
    %c125_i32 = arith.constant 125 : i32
    %3015 = arith.addi %0, %c125_i32 : i32
    %3016 = arith.index_cast %3015 : i32 to index
    %3017 = memref.load %arg1[%3016] : memref<128xf32, #tpu.memory_space<smem>>
    %3018 = vector.broadcast %3017 : f32 to vector<1x128xf32>
    %3019 = arith.addf %1, %3018 : vector<1x128xf32>
    %cst_1007 = arith.constant 0.949999988 : f32
    %3020 = vector.broadcast %cst_1007 : f32 to vector<1x128xf32>
    %3021 = arith.mulf %3020, %3000 : vector<1x128xf32>
    %cst_1008 = arith.constant 5.000000e-02 : f32
    %3022 = vector.broadcast %cst_1008 : f32 to vector<1x128xf32>
    %3023 = arith.mulf %3022, %3019 : vector<1x128xf32>
    %3024 = arith.addf %3021, %3023 : vector<1x128xf32>
    %cst_1009 = arith.constant 0.949999988 : f32
    %3025 = vector.broadcast %cst_1009 : f32 to vector<1x128xf32>
    %3026 = arith.mulf %3025, %3013 : vector<1x128xf32>
    %3027 = arith.mulf %3024, %9 : vector<1x128xf32>
    %3028 = arith.addf %3026, %3027 : vector<1x128xf32>
    %cst_1010 = arith.constant 1.000000e+00 : f32
    %3029 = vector.broadcast %cst_1010 : f32 to vector<1x128xf32>
    %3030 = arith.cmpf ogt, %3028, %3029 : vector<1x128xf32>
    %cst_1011 = arith.constant 1.000000e+00 : f32
    %cst_1012 = arith.constant 0.000000e+00 : f32
    %3031 = vector.broadcast %cst_1011 : f32 to vector<1x128xf32>
    %3032 = vector.broadcast %cst_1012 : f32 to vector<1x128xf32>
    %3033 = arith.select %3030, %3031, %3032 : vector<1x128xi1>, vector<1x128xf32>
    %3034 = arith.mulf %3033, %3014 : vector<1x128xf32>
    %3035 = arith.addf %3011, %3034 : vector<1x128xf32>
    %cst_1013 = arith.constant 0.000000e+00 : f32
    %3036 = vector.broadcast %cst_1013 : f32 to vector<1x128xf32>
    %3037 = arith.select %3030, %3036, %3028 : vector<1x128xi1>, vector<1x128xf32>
    %c1_i32_1014 = arith.constant 1 : i32
    %3038 = tpu.dynamic_rotate %3014 by %c1_i32_1014 dim 1 : vector<1x128xf32>, i32 -> vector<1x128xf32>
    %c126_i32 = arith.constant 126 : i32
    %3039 = arith.addi %0, %c126_i32 : i32
    %3040 = arith.index_cast %3039 : i32 to index
    %3041 = memref.load %arg1[%3040] : memref<128xf32, #tpu.memory_space<smem>>
    %3042 = vector.broadcast %3041 : f32 to vector<1x128xf32>
    %3043 = arith.addf %1, %3042 : vector<1x128xf32>
    %cst_1015 = arith.constant 0.949999988 : f32
    %3044 = vector.broadcast %cst_1015 : f32 to vector<1x128xf32>
    %3045 = arith.mulf %3044, %3024 : vector<1x128xf32>
    %cst_1016 = arith.constant 5.000000e-02 : f32
    %3046 = vector.broadcast %cst_1016 : f32 to vector<1x128xf32>
    %3047 = arith.mulf %3046, %3043 : vector<1x128xf32>
    %3048 = arith.addf %3045, %3047 : vector<1x128xf32>
    %cst_1017 = arith.constant 0.949999988 : f32
    %3049 = vector.broadcast %cst_1017 : f32 to vector<1x128xf32>
    %3050 = arith.mulf %3049, %3037 : vector<1x128xf32>
    %3051 = arith.mulf %3048, %9 : vector<1x128xf32>
    %3052 = arith.addf %3050, %3051 : vector<1x128xf32>
    %cst_1018 = arith.constant 1.000000e+00 : f32
    %3053 = vector.broadcast %cst_1018 : f32 to vector<1x128xf32>
    %3054 = arith.cmpf ogt, %3052, %3053 : vector<1x128xf32>
    %cst_1019 = arith.constant 1.000000e+00 : f32
    %cst_1020 = arith.constant 0.000000e+00 : f32
    %3055 = vector.broadcast %cst_1019 : f32 to vector<1x128xf32>
    %3056 = vector.broadcast %cst_1020 : f32 to vector<1x128xf32>
    %3057 = arith.select %3054, %3055, %3056 : vector<1x128xi1>, vector<1x128xf32>
    %3058 = arith.mulf %3057, %3038 : vector<1x128xf32>
    %3059 = arith.addf %3035, %3058 : vector<1x128xf32>
    %cst_1021 = arith.constant 0.000000e+00 : f32
    %3060 = vector.broadcast %cst_1021 : f32 to vector<1x128xf32>
    %3061 = arith.select %3054, %3060, %3052 : vector<1x128xi1>, vector<1x128xf32>
    %c1_i32_1022 = arith.constant 1 : i32
    %3062 = tpu.dynamic_rotate %3038 by %c1_i32_1022 dim 1 : vector<1x128xf32>, i32 -> vector<1x128xf32>
    %c127_i32 = arith.constant 127 : i32
    %3063 = arith.addi %0, %c127_i32 : i32
    %3064 = arith.index_cast %3063 : i32 to index
    %3065 = memref.load %arg1[%3064] : memref<128xf32, #tpu.memory_space<smem>>
    %3066 = vector.broadcast %3065 : f32 to vector<1x128xf32>
    %3067 = arith.addf %1, %3066 : vector<1x128xf32>
    %cst_1023 = arith.constant 0.949999988 : f32
    %3068 = vector.broadcast %cst_1023 : f32 to vector<1x128xf32>
    %3069 = arith.mulf %3068, %3048 : vector<1x128xf32>
    %cst_1024 = arith.constant 5.000000e-02 : f32
    %3070 = vector.broadcast %cst_1024 : f32 to vector<1x128xf32>
    %3071 = arith.mulf %3070, %3067 : vector<1x128xf32>
    %3072 = arith.addf %3069, %3071 : vector<1x128xf32>
    %cst_1025 = arith.constant 0.949999988 : f32
    %3073 = vector.broadcast %cst_1025 : f32 to vector<1x128xf32>
    %3074 = arith.mulf %3073, %3061 : vector<1x128xf32>
    %3075 = arith.mulf %3072, %9 : vector<1x128xf32>
    %3076 = arith.addf %3074, %3075 : vector<1x128xf32>
    %cst_1026 = arith.constant 1.000000e+00 : f32
    %3077 = vector.broadcast %cst_1026 : f32 to vector<1x128xf32>
    %3078 = arith.cmpf ogt, %3076, %3077 : vector<1x128xf32>
    %cst_1027 = arith.constant 1.000000e+00 : f32
    %cst_1028 = arith.constant 0.000000e+00 : f32
    %3079 = vector.broadcast %cst_1027 : f32 to vector<1x128xf32>
    %3080 = vector.broadcast %cst_1028 : f32 to vector<1x128xf32>
    %3081 = arith.select %3078, %3079, %3080 : vector<1x128xi1>, vector<1x128xf32>
    %3082 = arith.mulf %3081, %3062 : vector<1x128xf32>
    %3083 = arith.addf %3059, %3082 : vector<1x128xf32>
    %cst_1029 = arith.constant 0.000000e+00 : f32
    %3084 = vector.broadcast %cst_1029 : f32 to vector<1x128xf32>
    %3085 = arith.select %3078, %3084, %3076 : vector<1x128xi1>, vector<1x128xf32>
    %c1_i32_1030 = arith.constant 1 : i32
    %3086 = tpu.dynamic_rotate %3062 by %c1_i32_1030 dim 1 : vector<1x128xf32>, i32 -> vector<1x128xf32>
    %c64_i32_1031 = arith.constant 64 : i32
    %c0_1032 = arith.constant 0 : index
    %c0_1033 = arith.constant 0 : index
    %3087 = vector.load %arg3[%c0_1032, %c0_1033] : memref<1x128xf32, #tpu.memory_space<vmem>>, vector<1x128xf32>
    tpu.vector_store %arg3[%c0_1032, %c0_1033], %3083 {strides = array<i32>} : memref<1x128xf32, #tpu.memory_space<vmem>>, vector<1x128xf32>,
    %c0_i32_1034 = arith.constant 0 : i32
    %3088 = arith.cmpi slt, %arg0, %c0_i32_1034 : i32
    %3089 = arith.extui %3088 : i1 to i32
    %c0_i32_1035 = arith.constant 0 : i32
    %3090 = arith.cmpi ne, %3089, %c0_i32_1035 : i32
    scf.if %3090 {
      %3094 = tpu.concatenate %3085, %3072 in 0 : vector<1x128xf32>, vector<1x128xf32> -> vector<2x128xf32>
      %c0_1038 = arith.constant 0 : index
      %c0_1039 = arith.constant 0 : index
      %3095 = vector.load %arg4[%c0_1038, %c0_1039] : memref<2x128xf32, #tpu.memory_space<vmem>>, vector<2x128xf32>
      tpu.vector_store %arg4[%c0_1038, %c0_1039], %3094 {strides = array<i32>} : memref<2x128xf32, #tpu.memory_space<vmem>>, vector<2x128xf32>,
    } else {
    }
    %c0_i32_1036 = arith.constant 0 : i32
    %3091 = arith.cmpi eq, %arg0, %c0_i32_1036 : i32
    %3092 = arith.extui %3091 : i1 to i32
    %c0_i32_1037 = arith.constant 0 : i32
    %3093 = arith.cmpi ne, %3092, %c0_i32_1037 : i32
    scf.if %3093 {
      %3094 = tpu.concatenate %1549, %1536 in 0 : vector<1x128xf32>, vector<1x128xf32> -> vector<2x128xf32>
      %c0_1038 = arith.constant 0 : index
      %c0_1039 = arith.constant 0 : index
      %3095 = vector.load %arg4[%c0_1038, %c0_1039] : memref<2x128xf32, #tpu.memory_space<vmem>>, vector<2x128xf32>
      tpu.vector_store %arg4[%c0_1038, %c0_1039], %3094 {strides = array<i32>} : memref<2x128xf32, #tpu.memory_space<vmem>>, vector<2x128xf32>,
    } else {
    }
    return
  }
  func.func @transform_0(%arg0: i32) -> i32 {
    %c0_i32 = arith.constant 0 : i32
    %c0_i32_0 = arith.constant 0 : i32
    return %c0_i32 : i32
  }
  func.func @transform_1(%arg0: i32) -> i32 {
    %c0_i32 = arith.constant 0 : i32
    %c0_i32_0 = arith.constant 0 : i32
    return %c0_i32 : i32
  }
  func.func @transform_2(%arg0: i32) -> (i32, i32) {
    %c0_i32 = arith.constant 0 : i32
    %c0_i32_0 = arith.constant 0 : i32
    return %c0_i32, %arg0 : i32, i32
  }
  func.func @transform_3(%arg0: i32) -> (i32, i32) {
    %c0_i32 = arith.constant 0 : i32
    %c0_i32_0 = arith.constant 0 : i32
    %c0_i32_1 = arith.constant 0 : i32
    return %c0_i32, %c0_i32_0 : i32, i32
  }
}

</mosaic_0001>

<llo_original>
// kernel: tpu_custom_call.1
$region0: #{tpu_custom_call.1}
  #allocation0 [shape = 'u32[]', space=smem, size = 0x4, offset = 0x4, fixed_abs, tag = 'smem constant byte address 0x4 - core index']
  #allocation1 [shape = 'u32[144,128]{1,0:T(1,128)}', space=vmem, size = 0x12000, scoped, tag = 'internal scratch']
  %s0 = inlined_call_operand.hbm [shape: f32[128], index: 0, kind: input, shape index: {}]
  %s1 = inlined_call_operand.vmem [shape: f32[3], index: 1, kind: input, shape index: {}]
  %s2 = inlined_call_operand.hbm [shape: f32[1,128], index: 2, kind: output, shape index: {0}]
  %s3 = inlined_call_operand.hbm [shape: f32[2,128], index: 3, kind: output, shape index: {1}]
  %4 = xla_tuple %s2, %s3
  %s5 = sld [smem:[#allocation0]]
  $region46: #{tpu_custom_call.1} parent=0
    _
  %s7 = ssub.s32 1, %s5
  %s8 = scalar_select 0, %s7, %s5
  $region1: #{tpu_custom_call.1} parent=0
    #allocation2 [shape = 'u8[512]{0}', space=smem, size = 0x200, scoped, tag = 'input window, operand 0, single buffered']
    #allocation3 [shape = 's32[1]{0}', space=sflag, size = 0x4, scoped, tag = 'scoped memory for tpu_custom_call.1']
    #allocation4 [shape = 's32[1]{0}', space=sflag, size = 0x4, scoped, tag = 'scoped memory for tpu_custom_call.1']
    #allocation5 [shape = 's32[1]{0}', space=sflag, size = 0x4, scoped, tag = 'scoped memory for tpu_custom_call.1']
    #allocation6 [shape = 'u8[512]{0}', space=smem, size = 0x200, scoped, tag = 'input window, operand 1, single buffered']
    #allocation7 [shape = 'u8[512]{0}', space=vmem, size = 0x400, scoped, tag = 'output window, operand 0, single buffered']
    #allocation8 [shape = 'u8[1024]{0}', space=vmem, size = 0x400, scoped, tag = 'output window, operand 1, single buffered']
    #allocation9 [shape = 's32[1]{0}', space=sflag, size = 0x4, scoped, tag = 'scoped memory for tpu_custom_call.1']
    %9 = vsyncpa [#allocation4], 0
    %10 = vsyncpa [#allocation5], 0
    %11 = vsyncpa [#allocation3], 0
    %12 = vsyncpa [#allocation9], 0
    // Predicated region
    $region2: #{tpu_custom_call.1} parent=1 // pred_check
      _
    $region3: #{tpu_custom_call.1} parent=1 // pred_check_branch
      %14 = sbr.rel (0) target = $region5
    $region4: #{tpu_custom_call.1} parent=1 // pred_region
      %s16 = ssub.s32 16, 16
      %17 = vsyncadd [#allocation4], %s16
      %20 = dma.hbm_to_smem %s0, 16, [#allocation2], [#allocation4]
    $region5: #{tpu_custom_call.1} parent=1 // pred_fallthru
      _
    // Predicated region
    $region6: #{tpu_custom_call.1} parent=1 // pred_check
      _
    $region7: #{tpu_custom_call.1} parent=1 // pred_check_branch
      %22 = sbr.rel (0) target = $region9
    $region8: #{tpu_custom_call.1} parent=1 // pred_region
      %s24 = ssub.s32 16, 16
      %25 = vsyncadd [#allocation5], %s24
      %s27 = sshll.u32 %s1, 4
      %s28 = int_to_ptr.vmem [resolvable:$true] %s27
      %30 = dma.vmem_to_smem %s28, 16, [#allocation6], [#allocation5]
    $region9: #{tpu_custom_call.1} parent=1 // pred_fallthru
      _
    // Predicated region
    $region10: #{tpu_custom_call.1} parent=1 // pred_check
      _
    $region11: #{tpu_custom_call.1} parent=1 // pred_check_branch
      %32 = sbr.rel (0) target = $region13
    $region12: #{tpu_custom_call.1} parent=1 // pred_region
      %33 = dma.done [#allocation4], 16
    $region13: #{tpu_custom_call.1} parent=1 // pred_fallthru
      _
    // Predicated region
    $region14: #{tpu_custom_call.1} parent=1 // pred_check
      _
    $region15: #{tpu_custom_call.1} parent=1 // pred_check_branch
      %35 = sbr.rel (0) target = $region17
    $region16: #{tpu_custom_call.1} parent=1 // pred_region
      %36 = dma.done [#allocation5], 16
    $region17: #{tpu_custom_call.1} parent=1 // pred_fallthru
      _
    %37 = sfence
    %s38 = smul.u32 0, 128
    %v39 = vlaneseq
    %v40 = vand.u32 %v39, 127
    %vm41 = vcmp.eq.s32.totalorder %v40, 0
    %v42 = vsel %vm41, 1, 0
    %v43 = vcvt.s32.f32 %v42
    %s44 = sld [smem:[#allocation6]]
    %v45 = vstv %s44
    %v46 = vadd.f32 %v45, 0.0
    %p47 = scmp.eq.s32.totalorder 0, 0
    // Predicated region
    $region18: #{tpu_custom_call.1} parent=1 // pred_check
      %p48 = pneg %p47
    $region19: #{tpu_custom_call.1} parent=1 // pred_check_branch
      %50 = sbr.rel (%p48) target = $region21
    $region20: #{tpu_custom_call.1} parent=1 // pred_region
      %s51 = sld [smem:[#allocation6 + $0x1]]
      %v52 = vstv %s51
      %v53 = vadd.f32 %v52, 0.0
      %s54 = sld [smem:[#allocation6 + $0x2]]
      %v55 = vstv %s54
      %v56 = vadd.f32 %v55, 0.0
      %vm57 = vcmask 1040384
      %v58 = vsel %vm57, %v53, %v56
      %59 = vst [vmem:[#allocation8] sm:$0x3] %v58
    $region21: #{tpu_custom_call.1} parent=1 // pred_fallthru
      _
    %v60 = vld [vmem:[#allocation8] sm:$0x1]
    %v61 = vld [vmem:[#allocation8 + $0x1] sm:$0x1]
    %s62 = sld [smem:[#allocation2 + %s38]]
    %v63 = vstv %s62
    %v64 = vadd.f32 %v63, 0.0
    %v65 = vmul.f32 %v61, 0.95
    %v66 = vmul.f32 %v64, 0.05
    %v67 = vadd.f32 %v65, %v66
    %v68 = vmul.f32 %v60, 0.95
    %v69 = vmul.f32 %v67, %v46
    %v70 = vadd.f32 %v68, %v69
    %vm71 = vcmp.gt.f32.partialorder %v70, 1.0
    %v72 = vsel %vm71, 1.0, 0.0
    %v73 = vmul.f32 %v72, %v43
    %v74 = vadd.f32 %v73, 0.0
    %v75 = vsel %vm71, 0.0, %v70
    %76 = vrot.lane.b32.xlu0 %v43, 1
    %v77 = vpop.permute.xlu0 %76
    %s78 = sadd.s32 %s38, 1
    %s79 = sld [smem:[#allocation2 + %s78]]
    %v80 = vstv %s79
    %v81 = vadd.f32 %v80, 0.0
    %v82 = vmul.f32 %v67, 0.95
    %v83 = vmul.f32 %v81, 0.05
    %v84 = vadd.f32 %v82, %v83
    %v85 = vmul.f32 %v75, 0.95
    %v86 = vmul.f32 %v84, %v46
    %v87 = vadd.f32 %v85, %v86
    %vm88 = vcmp.gt.f32.partialorder %v87, 1.0
    %v89 = vsel %vm88, 1.0, 0.0
    %v90 = vmul.f32 %v89, %v77
    %v91 = vadd.f32 %v74, %v90
    %v92 = vsel %vm88, 0.0, %v87
    %93 = vrot.lane.b32.xlu0 %v77, 1
    %v94 = vpop.permute.xlu0 %93
    %s95 = sadd.s32 %s38, 2
    %s96 = sld [smem:[#allocation2 + %s95]]
    %v97 = vstv %s96
    %v98 = vadd.f32 %v97, 0.0
    %v99 = vmul.f32 %v84, 0.95
    %v100 = vmul.f32 %v98, 0.05
    %v101 = vadd.f32 %v99, %v100
    %v102 = vmul.f32 %v92, 0.95
    %v103 = vmul.f32 %v101, %v46
    %v104 = vadd.f32 %v102, %v103
    %vm105 = vcmp.gt.f32.partialorder %v104, 1.0
    %v106 = vsel %vm105, 1.0, 0.0
    %v107 = vmul.f32 %v106, %v94
    %v108 = vadd.f32 %v91, %v107
    %v109 = vsel %vm105, 0.0, %v104
    %110 = vrot.lane.b32.xlu0 %v94, 1
    %v111 = vpop.permute.xlu0 %110
    %s112 = sadd.s32 %s38, 3
    %s113 = sld [smem:[#allocation2 + %s112]]
    %v114 = vstv %s113
    %v115 = vadd.f32 %v114, 0.0
    %v116 = vmul.f32 %v101, 0.95
    %v117 = vmul.f32 %v115, 0.05
    %v118 = vadd.f32 %v116, %v117
    %v119 = vmul.f32 %v109, 0.95
    %v120 = vmul.f32 %v118, %v46
    %v121 = vadd.f32 %v119, %v120
    %vm122 = vcmp.gt.f32.partialorder %v121, 1.0
    %v123 = vsel %vm122, 1.0, 0.0
    %v124 = vmul.f32 %v123, %v111
    %v125 = vadd.f32 %v108, %v124
    %v126 = vsel %vm122, 0.0, %v121
    %127 = vrot.lane.b32.xlu0 %v111, 1
    %v128 = vpop.permute.xlu0 %127
    %s129 = sadd.s32 %s38, 4
    %s130 = sld [smem:[#allocation2 + %s129]]
    %v131 = vstv %s130
    %v132 = vadd.f32 %v131, 0.0
    %v133 = vmul.f32 %v118, 0.95
    %v134 = vmul.f32 %v132, 0.05
    %v135 = vadd.f32 %v133, %v134
    %v136 = vmul.f32 %v126, 0.95
    %v137 = vmul.f32 %v135, %v46
    %v138 = vadd.f32 %v136, %v137
    %vm139 = vcmp.gt.f32.partialorder %v138, 1.0
    %v140 = vsel %vm139, 1.0, 0.0
    %v141 = vmul.f32 %v140, %v128
    %v142 = vadd.f32 %v125, %v141
    %v143 = vsel %vm139, 0.0, %v138
    %144 = vrot.lane.b32.xlu0 %v128, 1
    %v145 = vpop.permute.xlu0 %144
    %s146 = sadd.s32 %s38, 5
    %s147 = sld [smem:[#allocation2 + %s146]]
    %v148 = vstv %s147
    %v149 = vadd.f32 %v148, 0.0
    %v150 = vmul.f32 %v135, 0.95
    %v151 = vmul.f32 %v149, 0.05
    %v152 = vadd.f32 %v150, %v151
    %v153 = vmul.f32 %v143, 0.95
    %v154 = vmul.f32 %v152, %v46
    %v155 = vadd.f32 %v153, %v154
    %vm156 = vcmp.gt.f32.partialorder %v155, 1.0
    %v157 = vsel %vm156, 1.0, 0.0
    %v158 = vmul.f32 %v157, %v145
    %v159 = vadd.f32 %v142, %v158
    %v160 = vsel %vm156, 0.0, %v155
    %161 = vrot.lane.b32.xlu0 %v145, 1
    %v162 = vpop.permute.xlu0 %161
    %s163 = sadd.s32 %s38, 6
    %s164 = sld [smem:[#allocation2 + %s163]]
    %v165 = vstv %s164
    %v166 = vadd.f32 %v165, 0.0
    %v167 = vmul.f32 %v152, 0.95
    %v168 = vmul.f32 %v166, 0.05
    %v169 = vadd.f32 %v167, %v168
    %v170 = vmul.f32 %v160, 0.95
    %v171 = vmul.f32 %v169, %v46
    %v172 = vadd.f32 %v170, %v171
    %vm173 = vcmp.gt.f32.partialorder %v172, 1.0
    %v174 = vsel %vm173, 1.0, 0.0
    %v175 = vmul.f32 %v174, %v162
    %v176 = vadd.f32 %v159, %v175
    %v177 = vsel %vm173, 0.0, %v172
    %178 = vrot.lane.b32.xlu0 %v162, 1
    %v179 = vpop.permute.xlu0 %178
    %s180 = sadd.s32 %s38, 7
    %s181 = sld [smem:[#allocation2 + %s180]]
    %v182 = vstv %s181
    %v183 = vadd.f32 %v182, 0.0
    %v184 = vmul.f32 %v169, 0.95
    %v185 = vmul.f32 %v183, 0.05
    %v186 = vadd.f32 %v184, %v185
    %v187 = vmul.f32 %v177, 0.95
    %v188 = vmul.f32 %v186, %v46
    %v189 = vadd.f32 %v187, %v188
    %vm190 = vcmp.gt.f32.partialorder %v189, 1.0
    %v191 = vsel %vm190, 1.0, 0.0
    %v192 = vmul.f32 %v191, %v179
    %v193 = vadd.f32 %v176, %v192
    %v194 = vsel %vm190, 0.0, %v189
    %195 = vrot.lane.b32.xlu0 %v179, 1
    %v196 = vpop.permute.xlu0 %195
    %s197 = sadd.s32 %s38, 8
    %s198 = sld [smem:[#allocation2 + %s197]]
    %v199 = vstv %s198
    %v200 = vadd.f32 %v199, 0.0
    %v201 = vmul.f32 %v186, 0.95
    %v202 = vmul.f32 %v200, 0.05
    %v203 = vadd.f32 %v201, %v202
    %v204 = vmul.f32 %v194, 0.95
    %v205 = vmul.f32 %v203, %v46
    %v206 = vadd.f32 %v204, %v205
    %vm207 = vcmp.gt.f32.partialorder %v206, 1.0
    %v208 = vsel %vm207, 1.0, 0.0
    %v209 = vmul.f32 %v208, %v196
    %v210 = vadd.f32 %v193, %v209
    %v211 = vsel %vm207, 0.0, %v206
    %212 = vrot.lane.b32.xlu0 %v196, 1
    %v213 = vpop.permute.xlu0 %212
    %s214 = sadd.s32 %s38, 9
    %s215 = sld [smem:[#allocation2 + %s214]]
    %v216 = vstv %s215
    %v217 = vadd.f32 %v216, 0.0
    %v218 = vmul.f32 %v203, 0.95
    %v219 = vmul.f32 %v217, 0.05
    %v220 = vadd.f32 %v218, %v219
    %v221 = vmul.f32 %v211, 0.95
    %v222 = vmul.f32 %v220, %v46
    %v223 = vadd.f32 %v221, %v222
    %vm224 = vcmp.gt.f32.partialorder %v223, 1.0
    %v225 = vsel %vm224, 1.0, 0.0
    %v226 = vmul.f32 %v225, %v213
    %v227 = vadd.f32 %v210, %v226
    %v228 = vsel %vm224, 0.0, %v223
    %229 = vrot.lane.b32.xlu0 %v213, 1
    %v230 = vpop.permute.xlu0 %229
    %s231 = sadd.s32 %s38, 10
    %s232 = sld [smem:[#allocation2 + %s231]]
    %v233 = vstv %s232
    %v234 = vadd.f32 %v233, 0.0
    %v235 = vmul.f32 %v220, 0.95
    %v236 = vmul.f32 %v234, 0.05
    %v237 = vadd.f32 %v235, %v236
    %v238 = vmul.f32 %v228, 0.95
    %v239 = vmul.f32 %v237, %v46
    %v240 = vadd.f32 %v238, %v239
    %vm241 = vcmp.gt.f32.partialorder %v240, 1.0
    %v242 = vsel %vm241, 1.0, 0.0
    %v243 = vmul.f32 %v242, %v230
    %v244 = vadd.f32 %v227, %v243
    %v245 = vsel %vm241, 0.0, %v240
    %246 = vrot.lane.b32.xlu0 %v230, 1
    %v247 = vpop.permute.xlu0 %246
    %s248 = sadd.s32 %s38, 11
    %s249 = sld [smem:[#allocation2 + %s248]]
    %v250 = vstv %s249
    %v251 = vadd.f32 %v250, 0.0
    %v252 = vmul.f32 %v237, 0.95
    %v253 = vmul.f32 %v251, 0.05
    %v254 = vadd.f32 %v252, %v253
    %v255 = vmul.f32 %v245, 0.95
    %v256 = vmul.f32 %v254, %v46
    %v257 = vadd.f32 %v255, %v256
    %vm258 = vcmp.gt.f32.partialorder %v257, 1.0
    %v259 = vsel %vm258, 1.0, 0.0
    %v260 = vmul.f32 %v259, %v247
    %v261 = vadd.f32 %v244, %v260
    %v262 = vsel %vm258, 0.0, %v257
    %263 = vrot.lane.b32.xlu0 %v247, 1
    %v264 = vpop.permute.xlu0 %263
    %s265 = sadd.s32 %s38, 12
    %s266 = sld [smem:[#allocation2 + %s265]]
    %v267 = vstv %s266
    %v268 = vadd.f32 %v267, 0.0
    %v269 = vmul.f32 %v254, 0.95
    %v270 = vmul.f32 %v268, 0.05
    %v271 = vadd.f32 %v269, %v270
    %v272 = vmul.f32 %v262, 0.95
    %v273 = vmul.f32 %v271, %v46
    %v274 = vadd.f32 %v272, %v273
    %vm275 = vcmp.gt.f32.partialorder %v274, 1.0
    %v276 = vsel %vm275, 1.0, 0.0
    %v277 = vmul.f32 %v276, %v264
    %v278 = vadd.f32 %v261, %v277
    %v279 = vsel %vm275, 0.0, %v274
    %280 = vrot.lane.b32.xlu0 %v264, 1
    %v281 = vpop.permute.xlu0 %280
    %s282 = sadd.s32 %s38, 13
    %s283 = sld [smem:[#allocation2 + %s282]]
    %v284 = vstv %s283
    %v285 = vadd.f32 %v284, 0.0
    %v286 = vmul.f32 %v271, 0.95
    %v287 = vmul.f32 %v285, 0.05
    %v288 = vadd.f32 %v286, %v287
    %v289 = vmul.f32 %v279, 0.95
    %v290 = vmul.f32 %v288, %v46
    %v291 = vadd.f32 %v289, %v290
    %vm292 = vcmp.gt.f32.partialorder %v291, 1.0
    %v293 = vsel %vm292, 1.0, 0.0
    %v294 = vmul.f32 %v293, %v281
    %v295 = vadd.f32 %v278, %v294
    %v296 = vsel %vm292, 0.0, %v291
    %297 = vrot.lane.b32.xlu0 %v281, 1
    %v298 = vpop.permute.xlu0 %297
    %s299 = sadd.s32 %s38, 14
    %s300 = sld [smem:[#allocation2 + %s299]]
    %v301 = vstv %s300
    %v302 = vadd.f32 %v301, 0.0
    %v303 = vmul.f32 %v288, 0.95
    %v304 = vmul.f32 %v302, 0.05
    %v305 = vadd.f32 %v303, %v304
    %v306 = vmul.f32 %v296, 0.95
    %v307 = vmul.f32 %v305, %v46
    %v308 = vadd.f32 %v306, %v307
    %vm309 = vcmp.gt.f32.partialorder %v308, 1.0
    %v310 = vsel %vm309, 1.0, 0.0
    %v311 = vmul.f32 %v310, %v298
    %v312 = vadd.f32 %v295, %v311
    %v313 = vsel %vm309, 0.0, %v308
    %314 = vrot.lane.b32.xlu0 %v298, 1
    %v315 = vpop.permute.xlu0 %314
    %s316 = sadd.s32 %s38, 15
    %s317 = sld [smem:[#allocation2 + %s316]]
    %v318 = vstv %s317
    %v319 = vadd.f32 %v318, 0.0
    %v320 = vmul.f32 %v305, 0.95
    %v321 = vmul.f32 %v319, 0.05
    %v322 = vadd.f32 %v320, %v321
    %v323 = vmul.f32 %v313, 0.95
    %v324 = vmul.f32 %v322, %v46
    %v325 = vadd.f32 %v323, %v324
    %vm326 = vcmp.gt.f32.partialorder %v325, 1.0
    %v327 = vsel %vm326, 1.0, 0.0
    %v328 = vmul.f32 %v327, %v315
    %v329 = vadd.f32 %v312, %v328
    %v330 = vsel %vm326, 0.0, %v325
    %331 = vrot.lane.b32.xlu0 %v315, 1
    %v332 = vpop.permute.xlu0 %331
    %s333 = sadd.s32 %s38, 16
    %s334 = sld [smem:[#allocation2 + %s333]]
    %v335 = vstv %s334
    %v336 = vadd.f32 %v335, 0.0
    %v337 = vmul.f32 %v322, 0.95
    %v338 = vmul.f32 %v336, 0.05
    %v339 = vadd.f32 %v337, %v338
    %v340 = vmul.f32 %v330, 0.95
    %v341 = vmul.f32 %v339, %v46
    %v342 = vadd.f32 %v340, %v341
    %vm343 = vcmp.gt.f32.partialorder %v342, 1.0
    %v344 = vsel %vm343, 1.0, 0.0
    %v345 = vmul.f32 %v344, %v332
    %v346 = vadd.f32 %v329, %v345
    %v347 = vsel %vm343, 0.0, %v342
    %348 = vrot.lane.b32.xlu0 %v332, 1
    %v349 = vpop.permute.xlu0 %348
    %s350 = sadd.s32 %s38, 17
    %s351 = sld [smem:[#allocation2 + %s350]]
    %v352 = vstv %s351
    %v353 = vadd.f32 %v352, 0.0
    %v354 = vmul.f32 %v339, 0.95
    %v355 = vmul.f32 %v353, 0.05
    %v356 = vadd.f32 %v354, %v355
    %v357 = vmul.f32 %v347, 0.95
    %v358 = vmul.f32 %v356, %v46
    %v359 = vadd.f32 %v357, %v358
    %vm360 = vcmp.gt.f32.partialorder %v359, 1.0
    %v361 = vsel %vm360, 1.0, 0.0
    %v362 = vmul.f32 %v361, %v349
    %v363 = vadd.f32 %v346, %v362
    %v364 = vsel %vm360, 0.0, %v359
    %365 = vrot.lane.b32.xlu0 %v349, 1
    %v366 = vpop.permute.xlu0 %365
    %s367 = sadd.s32 %s38, 18
    %s368 = sld [smem:[#allocation2 + %s367]]
    %v369 = vstv %s368
    %v370 = vadd.f32 %v369, 0.0
    %v371 = vmul.f32 %v356, 0.95
    %v372 = vmul.f32 %v370, 0.05
    %v373 = vadd.f32 %v371, %v372
    %v374 = vmul.f32 %v364, 0.95
    %v375 = vmul.f32 %v373, %v46
    %v376 = vadd.f32 %v374, %v375
    %vm377 = vcmp.gt.f32.partialorder %v376, 1.0
    %v378 = vsel %vm377, 1.0, 0.0
    %v379 = vmul.f32 %v378, %v366
    %v380 = vadd.f32 %v363, %v379
    %v381 = vsel %vm377, 0.0, %v376
    %382 = vrot.lane.b32.xlu0 %v366, 1
    %v383 = vpop.permute.xlu0 %382
    %s384 = sadd.s32 %s38, 19
    %s385 = sld [smem:[#allocation2 + %s384]]
    %v386 = vstv %s385
    %v387 = vadd.f32 %v386, 0.0
    %v388 = vmul.f32 %v373, 0.95
    %v389 = vmul.f32 %v387, 0.05
    %v390 = vadd.f32 %v388, %v389
    %v391 = vmul.f32 %v381, 0.95
    %v392 = vmul.f32 %v390, %v46
    %v393 = vadd.f32 %v391, %v392
    %vm394 = vcmp.gt.f32.partialorder %v393, 1.0
    %v395 = vsel %vm394, 1.0, 0.0
    %v396 = vmul.f32 %v395, %v383
    %v397 = vadd.f32 %v380, %v396
    %v398 = vsel %vm394, 0.0, %v393
    %399 = vrot.lane.b32.xlu0 %v383, 1
    %v400 = vpop.permute.xlu0 %399
    %s401 = sadd.s32 %s38, 20
    %s402 = sld [smem:[#allocation2 + %s401]]
    %v403 = vstv %s402
    %v404 = vadd.f32 %v403, 0.0
    %v405 = vmul.f32 %v390, 0.95
    %v406 = vmul.f32 %v404, 0.05
    %v407 = vadd.f32 %v405, %v406
    %v408 = vmul.f32 %v398, 0.95
    %v409 = vmul.f32 %v407, %v46
    %v410 = vadd.f32 %v408, %v409
    %vm411 = vcmp.gt.f32.partialorder %v410, 1.0
    %v412 = vsel %vm411, 1.0, 0.0
    %v413 = vmul.f32 %v412, %v400
    %v414 = vadd.f32 %v397, %v413
    %v415 = vsel %vm411, 0.0, %v410
    %416 = vrot.lane.b32.xlu0 %v400, 1
    %v417 = vpop.permute.xlu0 %416
    %s418 = sadd.s32 %s38, 21
    %s419 = sld [smem:[#allocation2 + %s418]]
    %v420 = vstv %s419
    %v421 = vadd.f32 %v420, 0.0
    %v422 = vmul.f32 %v407, 0.95
    %v423 = vmul.f32 %v421, 0.05
    %v424 = vadd.f32 %v422, %v423
    %v425 = vmul.f32 %v415, 0.95
    %v426 = vmul.f32 %v424, %v46
    %v427 = vadd.f32 %v425, %v426
    %vm428 = vcmp.gt.f32.partialorder %v427, 1.0
    %v429 = vsel %vm428, 1.0, 0.0
    %v430 = vmul.f32 %v429, %v417
    %v431 = vadd.f32 %v414, %v430
    %v432 = vsel %vm428, 0.0, %v427
    %433 = vrot.lane.b32.xlu0 %v417, 1
    %v434 = vpop.permute.xlu0 %433
    %s435 = sadd.s32 %s38, 22
    %s436 = sld [smem:[#allocation2 + %s435]]
    %v437 = vstv %s436
    %v438 = vadd.f32 %v437, 0.0
    %v439 = vmul.f32 %v424, 0.95
    %v440 = vmul.f32 %v438, 0.05
    %v441 = vadd.f32 %v439, %v440
    %v442 = vmul.f32 %v432, 0.95
    %v443 = vmul.f32 %v441, %v46
    %v444 = vadd.f32 %v442, %v443
    %vm445 = vcmp.gt.f32.partialorder %v444, 1.0
    %v446 = vsel %vm445, 1.0, 0.0
    %v447 = vmul.f32 %v446, %v434
    %v448 = vadd.f32 %v431, %v447
    %v449 = vsel %vm445, 0.0, %v444
    %450 = vrot.lane.b32.xlu0 %v434, 1
    %v451 = vpop.permute.xlu0 %450
    %s452 = sadd.s32 %s38, 23
    %s453 = sld [smem:[#allocation2 + %s452]]
    %v454 = vstv %s453
    %v455 = vadd.f32 %v454, 0.0
    %v456 = vmul.f32 %v441, 0.95
    %v457 = vmul.f32 %v455, 0.05
    %v458 = vadd.f32 %v456, %v457
    %v459 = vmul.f32 %v449, 0.95
    %v460 = vmul.f32 %v458, %v46
    %v461 = vadd.f32 %v459, %v460
    %vm462 = vcmp.gt.f32.partialorder %v461, 1.0
    %v463 = vsel %vm462, 1.0, 0.0
    %v464 = vmul.f32 %v463, %v451
    %v465 = vadd.f32 %v448, %v464
    %v466 = vsel %vm462, 0.0, %v461
    %467 = vrot.lane.b32.xlu0 %v451, 1
    %v468 = vpop.permute.xlu0 %467
    %s469 = sadd.s32 %s38, 24
    %s470 = sld [smem:[#allocation2 + %s469]]
    %v471 = vstv %s470
    %v472 = vadd.f32 %v471, 0.0
    %v473 = vmul.f32 %v458, 0.95
    %v474 = vmul.f32 %v472, 0.05
    %v475 = vadd.f32 %v473, %v474
    %v476 = vmul.f32 %v466, 0.95
    %v477 = vmul.f32 %v475, %v46
    %v478 = vadd.f32 %v476, %v477
    %vm479 = vcmp.gt.f32.partialorder %v478, 1.0
    %v480 = vsel %vm479, 1.0, 0.0
    %v481 = vmul.f32 %v480, %v468
    %v482 = vadd.f32 %v465, %v481
    %v483 = vsel %vm479, 0.0, %v478
    %484 = vrot.lane.b32.xlu0 %v468, 1
    %v485 = vpop.permute.xlu0 %484
    %s486 = sadd.s32 %s38, 25
    %s487 = sld [smem:[#allocation2 + %s486]]
    %v488 = vstv %s487
    %v489 = vadd.f32 %v488, 0.0
    %v490 = vmul.f32 %v475, 0.95
    %v491 = vmul.f32 %v489, 0.05
    %v492 = vadd.f32 %v490, %v491
    %v493 = vmul.f32 %v483, 0.95
    %v494 = vmul.f32 %v492, %v46
    %v495 = vadd.f32 %v493, %v494
    %vm496 = vcmp.gt.f32.partialorder %v495, 1.0
    %v497 = vsel %vm496, 1.0, 0.0
    %v498 = vmul.f32 %v497, %v485
    %v499 = vadd.f32 %v482, %v498
    %v500 = vsel %vm496, 0.0, %v495
    %501 = vrot.lane.b32.xlu0 %v485, 1
    %v502 = vpop.permute.xlu0 %501
    %s503 = sadd.s32 %s38, 26
    %s504 = sld [smem:[#allocation2 + %s503]]
    %v505 = vstv %s504
    %v506 = vadd.f32 %v505, 0.0
    %v507 = vmul.f32 %v492, 0.95
    %v508 = vmul.f32 %v506, 0.05
    %v509 = vadd.f32 %v507, %v508
    %v510 = vmul.f32 %v500, 0.95
    %v511 = vmul.f32 %v509, %v46
    %v512 = vadd.f32 %v510, %v511
    %vm513 = vcmp.gt.f32.partialorder %v512, 1.0
    %v514 = vsel %vm513, 1.0, 0.0
    %v515 = vmul.f32 %v514, %v502
    %v516 = vadd.f32 %v499, %v515
    %v517 = vsel %vm513, 0.0, %v512
    %518 = vrot.lane.b32.xlu0 %v502, 1
    %v519 = vpop.permute.xlu0 %518
    %s520 = sadd.s32 %s38, 27
    %s521 = sld [smem:[#allocation2 + %s520]]
    %v522 = vstv %s521
    %v523 = vadd.f32 %v522, 0.0
    %v524 = vmul.f32 %v509, 0.95
    %v525 = vmul.f32 %v523, 0.05
    %v526 = vadd.f32 %v524, %v525
    %v527 = vmul.f32 %v517, 0.95
    %v528 = vmul.f32 %v526, %v46
    %v529 = vadd.f32 %v527, %v528
    %vm530 = vcmp.gt.f32.partialorder %v529, 1.0
    %v531 = vsel %vm530, 1.0, 0.0
    %v532 = vmul.f32 %v531, %v519
    %v533 = vadd.f32 %v516, %v532
    %v534 = vsel %vm530, 0.0, %v529
    %535 = vrot.lane.b32.xlu0 %v519, 1
    %v536 = vpop.permute.xlu0 %535
    %s537 = sadd.s32 %s38, 28
    %s538 = sld [smem:[#allocation2 + %s537]]
    %v539 = vstv %s538
    %v540 = vadd.f32 %v539, 0.0
    %v541 = vmul.f32 %v526, 0.95
    %v542 = vmul.f32 %v540, 0.05
    %v543 = vadd.f32 %v541, %v542
    %v544 = vmul.f32 %v534, 0.95
    %v545 = vmul.f32 %v543, %v46
    %v546 = vadd.f32 %v544, %v545
    %vm547 = vcmp.gt.f32.partialorder %v546, 1.0
    %v548 = vsel %vm547, 1.0, 0.0
    %v549 = vmul.f32 %v548, %v536
    %v550 = vadd.f32 %v533, %v549
    %v551 = vsel %vm547, 0.0, %v546
    %552 = vrot.lane.b32.xlu0 %v536, 1
    %v553 = vpop.permute.xlu0 %552
    %s554 = sadd.s32 %s38, 29
    %s555 = sld [smem:[#allocation2 + %s554]]
    %v556 = vstv %s555
    %v557 = vadd.f32 %v556, 0.0
    %v558 = vmul.f32 %v543, 0.95
    %v559 = vmul.f32 %v557, 0.05
    %v560 = vadd.f32 %v558, %v559
    %v561 = vmul.f32 %v551, 0.95
    %v562 = vmul.f32 %v560, %v46
    %v563 = vadd.f32 %v561, %v562
    %vm564 = vcmp.gt.f32.partialorder %v563, 1.0
    %v565 = vsel %vm564, 1.0, 0.0
    %v566 = vmul.f32 %v565, %v553
    %v567 = vadd.f32 %v550, %v566
    %v568 = vsel %vm564, 0.0, %v563
    %569 = vrot.lane.b32.xlu0 %v553, 1
    %v570 = vpop.permute.xlu0 %569
    %s571 = sadd.s32 %s38, 30
    %s572 = sld [smem:[#allocation2 + %s571]]
    %v573 = vstv %s572
    %v574 = vadd.f32 %v573, 0.0
    %v575 = vmul.f32 %v560, 0.95
    %v576 = vmul.f32 %v574, 0.05
    %v577 = vadd.f32 %v575, %v576
    %v578 = vmul.f32 %v568, 0.95
    %v579 = vmul.f32 %v577, %v46
    %v580 = vadd.f32 %v578, %v579
    %vm581 = vcmp.gt.f32.partialorder %v580, 1.0
    %v582 = vsel %vm581, 1.0, 0.0
    %v583 = vmul.f32 %v582, %v570
    %v584 = vadd.f32 %v567, %v583
    %v585 = vsel %vm581, 0.0, %v580
    %586 = vrot.lane.b32.xlu0 %v570, 1
    %v587 = vpop.permute.xlu0 %586
    %s588 = sadd.s32 %s38, 31
    %s589 = sld [smem:[#allocation2 + %s588]]
    %v590 = vstv %s589
    %v591 = vadd.f32 %v590, 0.0
    %v592 = vmul.f32 %v577, 0.95
    %v593 = vmul.f32 %v591, 0.05
    %v594 = vadd.f32 %v592, %v593
    %v595 = vmul.f32 %v585, 0.95
    %v596 = vmul.f32 %v594, %v46
    %v597 = vadd.f32 %v595, %v596
    %vm598 = vcmp.gt.f32.partialorder %v597, 1.0
    %v599 = vsel %vm598, 1.0, 0.0
    %v600 = vmul.f32 %v599, %v587
    %v601 = vadd.f32 %v584, %v600
    %v602 = vsel %vm598, 0.0, %v597
    %603 = vrot.lane.b32.xlu0 %v587, 1
    %v604 = vpop.permute.xlu0 %603
    %s605 = sadd.s32 %s38, 32
    %s606 = sld [smem:[#allocation2 + %s605]]
    %v607 = vstv %s606
    %v608 = vadd.f32 %v607, 0.0
    %v609 = vmul.f32 %v594, 0.95
    %v610 = vmul.f32 %v608, 0.05
    %v611 = vadd.f32 %v609, %v610
    %v612 = vmul.f32 %v602, 0.95
    %v613 = vmul.f32 %v611, %v46
    %v614 = vadd.f32 %v612, %v613
    %vm615 = vcmp.gt.f32.partialorder %v614, 1.0
    %v616 = vsel %vm615, 1.0, 0.0
    %v617 = vmul.f32 %v616, %v604
    %v618 = vadd.f32 %v601, %v617
    %v619 = vsel %vm615, 0.0, %v614
    %620 = vrot.lane.b32.xlu0 %v604, 1
    %v621 = vpop.permute.xlu0 %620
    %s622 = sadd.s32 %s38, 33
    %s623 = sld [smem:[#allocation2 + %s622]]
    %v624 = vstv %s623
    %v625 = vadd.f32 %v624, 0.0
    %v626 = vmul.f32 %v611, 0.95
    %v627 = vmul.f32 %v625, 0.05
    %v628 = vadd.f32 %v626, %v627
    %v629 = vmul.f32 %v619, 0.95
    %v630 = vmul.f32 %v628, %v46
    %v631 = vadd.f32 %v629, %v630
    %vm632 = vcmp.gt.f32.partialorder %v631, 1.0
    %v633 = vsel %vm632, 1.0, 0.0
    %v634 = vmul.f32 %v633, %v621
    %v635 = vadd.f32 %v618, %v634
    %v636 = vsel %vm632, 0.0, %v631
    %637 = vrot.lane.b32.xlu0 %v621, 1
    %v638 = vpop.permute.xlu0 %637
    %s639 = sadd.s32 %s38, 34
    %s640 = sld [smem:[#allocation2 + %s639]]
    %v641 = vstv %s640
    %v642 = vadd.f32 %v641, 0.0
    %v643 = vmul.f32 %v628, 0.95
    %v644 = vmul.f32 %v642, 0.05
    %v645 = vadd.f32 %v643, %v644
    %v646 = vmul.f32 %v636, 0.95
    %v647 = vmul.f32 %v645, %v46
    %v648 = vadd.f32 %v646, %v647
    %vm649 = vcmp.gt.f32.partialorder %v648, 1.0
    %v650 = vsel %vm649, 1.0, 0.0
    %v651 = vmul.f32 %v650, %v638
    %v652 = vadd.f32 %v635, %v651
    %v653 = vsel %vm649, 0.0, %v648
    %654 = vrot.lane.b32.xlu0 %v638, 1
    %v655 = vpop.permute.xlu0 %654
    %s656 = sadd.s32 %s38, 35
    %s657 = sld [smem:[#allocation2 + %s656]]
    %v658 = vstv %s657
    %v659 = vadd.f32 %v658, 0.0
    %v660 = vmul.f32 %v645, 0.95
    %v661 = vmul.f32 %v659, 0.05
    %v662 = vadd.f32 %v660, %v661
    %v663 = vmul.f32 %v653, 0.95
    %v664 = vmul.f32 %v662, %v46
    %v665 = vadd.f32 %v663, %v664
    %vm666 = vcmp.gt.f32.partialorder %v665, 1.0
    %v667 = vsel %vm666, 1.0, 0.0
    %v668 = vmul.f32 %v667, %v655
    %v669 = vadd.f32 %v652, %v668
    %v670 = vsel %vm666, 0.0, %v665
    %671 = vrot.lane.b32.xlu0 %v655, 1
    %v672 = vpop.permute.xlu0 %671
    %s673 = sadd.s32 %s38, 36
    %s674 = sld [smem:[#allocation2 + %s673]]
    %v675 = vstv %s674
    %v676 = vadd.f32 %v675, 0.0
    %v677 = vmul.f32 %v662, 0.95
    %v678 = vmul.f32 %v676, 0.05
    %v679 = vadd.f32 %v677, %v678
    %v680 = vmul.f32 %v670, 0.95
    %v681 = vmul.f32 %v679, %v46
    %v682 = vadd.f32 %v680, %v681
    %vm683 = vcmp.gt.f32.partialorder %v682, 1.0
    %v684 = vsel %vm683, 1.0, 0.0
    %v685 = vmul.f32 %v684, %v672
    %v686 = vadd.f32 %v669, %v685
    %v687 = vsel %vm683, 0.0, %v682
    %688 = vrot.lane.b32.xlu0 %v672, 1
    %v689 = vpop.permute.xlu0 %688
    %s690 = sadd.s32 %s38, 37
    %s691 = sld [smem:[#allocation2 + %s690]]
    %v692 = vstv %s691
    %v693 = vadd.f32 %v692, 0.0
    %v694 = vmul.f32 %v679, 0.95
    %v695 = vmul.f32 %v693, 0.05
    %v696 = vadd.f32 %v694, %v695
    %v697 = vmul.f32 %v687, 0.95
    %v698 = vmul.f32 %v696, %v46
    %v699 = vadd.f32 %v697, %v698
    %vm700 = vcmp.gt.f32.partialorder %v699, 1.0
    %v701 = vsel %vm700, 1.0, 0.0
    %v702 = vmul.f32 %v701, %v689
    %v703 = vadd.f32 %v686, %v702
    %v704 = vsel %vm700, 0.0, %v699
    %705 = vrot.lane.b32.xlu0 %v689, 1
    %v706 = vpop.permute.xlu0 %705
    %s707 = sadd.s32 %s38, 38
    %s708 = sld [smem:[#allocation2 + %s707]]
    %v709 = vstv %s708
    %v710 = vadd.f32 %v709, 0.0
    %v711 = vmul.f32 %v696, 0.95
    %v712 = vmul.f32 %v710, 0.05
    %v713 = vadd.f32 %v711, %v712
    %v714 = vmul.f32 %v704, 0.95
    %v715 = vmul.f32 %v713, %v46
    %v716 = vadd.f32 %v714, %v715
    %vm717 = vcmp.gt.f32.partialorder %v716, 1.0
    %v718 = vsel %vm717, 1.0, 0.0
    %v719 = vmul.f32 %v718, %v706
    %v720 = vadd.f32 %v703, %v719
    %v721 = vsel %vm717, 0.0, %v716
    %722 = vrot.lane.b32.xlu0 %v706, 1
    %v723 = vpop.permute.xlu0 %722
    %s724 = sadd.s32 %s38, 39
    %s725 = sld [smem:[#allocation2 + %s724]]
    %v726 = vstv %s725
    %v727 = vadd.f32 %v726, 0.0
    %v728 = vmul.f32 %v713, 0.95
    %v729 = vmul.f32 %v727, 0.05
    %v730 = vadd.f32 %v728, %v729
    %v731 = vmul.f32 %v721, 0.95
    %v732 = vmul.f32 %v730, %v46
    %v733 = vadd.f32 %v731, %v732
    %vm734 = vcmp.gt.f32.partialorder %v733, 1.0
    %v735 = vsel %vm734, 1.0, 0.0
    %v736 = vmul.f32 %v735, %v723
    %v737 = vadd.f32 %v720, %v736
    %v738 = vsel %vm734, 0.0, %v733
    %739 = vrot.lane.b32.xlu0 %v723, 1
    %v740 = vpop.permute.xlu0 %739
    %s741 = sadd.s32 %s38, 40
    %s742 = sld [smem:[#allocation2 + %s741]]
    %v743 = vstv %s742
    %v744 = vadd.f32 %v743, 0.0
    %v745 = vmul.f32 %v730, 0.95
    %v746 = vmul.f32 %v744, 0.05
    %v747 = vadd.f32 %v745, %v746
    %v748 = vmul.f32 %v738, 0.95
    %v749 = vmul.f32 %v747, %v46
    %v750 = vadd.f32 %v748, %v749
    %vm751 = vcmp.gt.f32.partialorder %v750, 1.0
    %v752 = vsel %vm751, 1.0, 0.0
    %v753 = vmul.f32 %v752, %v740
    %v754 = vadd.f32 %v737, %v753
    %v755 = vsel %vm751, 0.0, %v750
    %756 = vrot.lane.b32.xlu0 %v740, 1
    %v757 = vpop.permute.xlu0 %756
    %s758 = sadd.s32 %s38, 41
    %s759 = sld [smem:[#allocation2 + %s758]]
    %v760 = vstv %s759
    %v761 = vadd.f32 %v760, 0.0
    %v762 = vmul.f32 %v747, 0.95
    %v763 = vmul.f32 %v761, 0.05
    %v764 = vadd.f32 %v762, %v763
    %v765 = vmul.f32 %v755, 0.95
    %v766 = vmul.f32 %v764, %v46
    %v767 = vadd.f32 %v765, %v766
    %vm768 = vcmp.gt.f32.partialorder %v767, 1.0
    %v769 = vsel %vm768, 1.0, 0.0
    %v770 = vmul.f32 %v769, %v757
    %v771 = vadd.f32 %v754, %v770
    %v772 = vsel %vm768, 0.0, %v767
    %773 = vrot.lane.b32.xlu0 %v757, 1
    %v774 = vpop.permute.xlu0 %773
    %s775 = sadd.s32 %s38, 42
    %s776 = sld [smem:[#allocation2 + %s775]]
    %v777 = vstv %s776
    %v778 = vadd.f32 %v777, 0.0
    %v779 = vmul.f32 %v764, 0.95
    %v780 = vmul.f32 %v778, 0.05
    %v781 = vadd.f32 %v779, %v780
    %v782 = vmul.f32 %v772, 0.95
    %v783 = vmul.f32 %v781, %v46
    %v784 = vadd.f32 %v782, %v783
    %vm785 = vcmp.gt.f32.partialorder %v784, 1.0
    %v786 = vsel %vm785, 1.0, 0.0
    %v787 = vmul.f32 %v786, %v774
    %v788 = vadd.f32 %v771, %v787
    %v789 = vsel %vm785, 0.0, %v784
    %790 = vrot.lane.b32.xlu0 %v774, 1
    %v791 = vpop.permute.xlu0 %790
    %s792 = sadd.s32 %s38, 43
    %s793 = sld [smem:[#allocation2 + %s792]]
    %v794 = vstv %s793
    %v795 = vadd.f32 %v794, 0.0
    %v796 = vmul.f32 %v781, 0.95
    %v797 = vmul.f32 %v795, 0.05
    %v798 = vadd.f32 %v796, %v797
    %v799 = vmul.f32 %v789, 0.95
    %v800 = vmul.f32 %v798, %v46
    %v801 = vadd.f32 %v799, %v800
    %vm802 = vcmp.gt.f32.partialorder %v801, 1.0
    %v803 = vsel %vm802, 1.0, 0.0
    %v804 = vmul.f32 %v803, %v791
    %v805 = vadd.f32 %v788, %v804
    %v806 = vsel %vm802, 0.0, %v801
    %807 = vrot.lane.b32.xlu0 %v791, 1
    %v808 = vpop.permute.xlu0 %807
    %s809 = sadd.s32 %s38, 44
    %s810 = sld [smem:[#allocation2 + %s809]]
    %v811 = vstv %s810
    %v812 = vadd.f32 %v811, 0.0
    %v813 = vmul.f32 %v798, 0.95
    %v814 = vmul.f32 %v812, 0.05
    %v815 = vadd.f32 %v813, %v814
    %v816 = vmul.f32 %v806, 0.95
    %v817 = vmul.f32 %v815, %v46
    %v818 = vadd.f32 %v816, %v817
    %vm819 = vcmp.gt.f32.partialorder %v818, 1.0
    %v820 = vsel %vm819, 1.0, 0.0
    %v821 = vmul.f32 %v820, %v808
    %v822 = vadd.f32 %v805, %v821
    %v823 = vsel %vm819, 0.0, %v818
    %824 = vrot.lane.b32.xlu0 %v808, 1
    %v825 = vpop.permute.xlu0 %824
    %s826 = sadd.s32 %s38, 45
    %s827 = sld [smem:[#allocation2 + %s826]]
    %v828 = vstv %s827
    %v829 = vadd.f32 %v828, 0.0
    %v830 = vmul.f32 %v815, 0.95
    %v831 = vmul.f32 %v829, 0.05
    %v832 = vadd.f32 %v830, %v831
    %v833 = vmul.f32 %v823, 0.95
    %v834 = vmul.f32 %v832, %v46
    %v835 = vadd.f32 %v833, %v834
    %vm836 = vcmp.gt.f32.partialorder %v835, 1.0
    %v837 = vsel %vm836, 1.0, 0.0
    %v838 = vmul.f32 %v837, %v825
    %v839 = vadd.f32 %v822, %v838
    %v840 = vsel %vm836, 0.0, %v835
    %841 = vrot.lane.b32.xlu0 %v825, 1
    %v842 = vpop.permute.xlu0 %841
    %s843 = sadd.s32 %s38, 46
    %s844 = sld [smem:[#allocation2 + %s843]]
    %v845 = vstv %s844
    %v846 = vadd.f32 %v845, 0.0
    %v847 = vmul.f32 %v832, 0.95
    %v848 = vmul.f32 %v846, 0.05
    %v849 = vadd.f32 %v847, %v848
    %v850 = vmul.f32 %v840, 0.95
    %v851 = vmul.f32 %v849, %v46
    %v852 = vadd.f32 %v850, %v851
    %vm853 = vcmp.gt.f32.partialorder %v852, 1.0
    %v854 = vsel %vm853, 1.0, 0.0
    %v855 = vmul.f32 %v854, %v842
    %v856 = vadd.f32 %v839, %v855
    %v857 = vsel %vm853, 0.0, %v852
    %858 = vrot.lane.b32.xlu0 %v842, 1
    %v859 = vpop.permute.xlu0 %858
    %s860 = sadd.s32 %s38, 47
    %s861 = sld [smem:[#allocation2 + %s860]]
    %v862 = vstv %s861
    %v863 = vadd.f32 %v862, 0.0
    %v864 = vmul.f32 %v849, 0.95
    %v865 = vmul.f32 %v863, 0.05
    %v866 = vadd.f32 %v864, %v865
    %v867 = vmul.f32 %v857, 0.95
    %v868 = vmul.f32 %v866, %v46
    %v869 = vadd.f32 %v867, %v868
    %vm870 = vcmp.gt.f32.partialorder %v869, 1.0
    %v871 = vsel %vm870, 1.0, 0.0
    %v872 = vmul.f32 %v871, %v859
    %v873 = vadd.f32 %v856, %v872
    %v874 = vsel %vm870, 0.0, %v869
    %875 = vrot.lane.b32.xlu0 %v859, 1
    %v876 = vpop.permute.xlu0 %875
    %s877 = sadd.s32 %s38, 48
    %s878 = sld [smem:[#allocation2 + %s877]]
    %v879 = vstv %s878
    %v880 = vadd.f32 %v879, 0.0
    %v881 = vmul.f32 %v866, 0.95
    %v882 = vmul.f32 %v880, 0.05
    %v883 = vadd.f32 %v881, %v882
    %v884 = vmul.f32 %v874, 0.95
    %v885 = vmul.f32 %v883, %v46
    %v886 = vadd.f32 %v884, %v885
    %vm887 = vcmp.gt.f32.partialorder %v886, 1.0
    %v888 = vsel %vm887, 1.0, 0.0
    %v889 = vmul.f32 %v888, %v876
    %v890 = vadd.f32 %v873, %v889
    %v891 = vsel %vm887, 0.0, %v886
    %892 = vrot.lane.b32.xlu0 %v876, 1
    %v893 = vpop.permute.xlu0 %892
    %s894 = sadd.s32 %s38, 49
    %s895 = sld [smem:[#allocation2 + %s894]]
    %v896 = vstv %s895
    %v897 = vadd.f32 %v896, 0.0
    %v898 = vmul.f32 %v883, 0.95
    %v899 = vmul.f32 %v897, 0.05
    %v900 = vadd.f32 %v898, %v899
    %v901 = vmul.f32 %v891, 0.95
    %v902 = vmul.f32 %v900, %v46
    %v903 = vadd.f32 %v901, %v902
    %vm904 = vcmp.gt.f32.partialorder %v903, 1.0
    %v905 = vsel %vm904, 1.0, 0.0
    %v906 = vmul.f32 %v905, %v893
    %v907 = vadd.f32 %v890, %v906
    %v908 = vsel %vm904, 0.0, %v903
    %909 = vrot.lane.b32.xlu0 %v893, 1
    %v910 = vpop.permute.xlu0 %909
    %s911 = sadd.s32 %s38, 50
    %s912 = sld [smem:[#allocation2 + %s911]]
    %v913 = vstv %s912
    %v914 = vadd.f32 %v913, 0.0
    %v915 = vmul.f32 %v900, 0.95
    %v916 = vmul.f32 %v914, 0.05
    %v917 = vadd.f32 %v915, %v916
    %v918 = vmul.f32 %v908, 0.95
    %v919 = vmul.f32 %v917, %v46
    %v920 = vadd.f32 %v918, %v919
    %vm921 = vcmp.gt.f32.partialorder %v920, 1.0
    %v922 = vsel %vm921, 1.0, 0.0
    %v923 = vmul.f32 %v922, %v910
    %v924 = vadd.f32 %v907, %v923
    %v925 = vsel %vm921, 0.0, %v920
    %926 = vrot.lane.b32.xlu0 %v910, 1
    %v927 = vpop.permute.xlu0 %926
    %s928 = sadd.s32 %s38, 51
    %s929 = sld [smem:[#allocation2 + %s928]]
    %v930 = vstv %s929
    %v931 = vadd.f32 %v930, 0.0
    %v932 = vmul.f32 %v917, 0.95
    %v933 = vmul.f32 %v931, 0.05
    %v934 = vadd.f32 %v932, %v933
    %v935 = vmul.f32 %v925, 0.95
    %v936 = vmul.f32 %v934, %v46
    %v937 = vadd.f32 %v935, %v936
    %vm938 = vcmp.gt.f32.partialorder %v937, 1.0
    %v939 = vsel %vm938, 1.0, 0.0
    %v940 = vmul.f32 %v939, %v927
    %v941 = vadd.f32 %v924, %v940
    %v942 = vsel %vm938, 0.0, %v937
    %943 = vrot.lane.b32.xlu0 %v927, 1
    %v944 = vpop.permute.xlu0 %943
    %s945 = sadd.s32 %s38, 52
    %s946 = sld [smem:[#allocation2 + %s945]]
    %v947 = vstv %s946
    %v948 = vadd.f32 %v947, 0.0
    %v949 = vmul.f32 %v934, 0.95
    %v950 = vmul.f32 %v948, 0.05
    %v951 = vadd.f32 %v949, %v950
    %v952 = vmul.f32 %v942, 0.95
    %v953 = vmul.f32 %v951, %v46
    %v954 = vadd.f32 %v952, %v953
    %vm955 = vcmp.gt.f32.partialorder %v954, 1.0
    %v956 = vsel %vm955, 1.0, 0.0
    %v957 = vmul.f32 %v956, %v944
    %v958 = vadd.f32 %v941, %v957
    %v959 = vsel %vm955, 0.0, %v954
    %960 = vrot.lane.b32.xlu0 %v944, 1
    %v961 = vpop.permute.xlu0 %960
    %s962 = sadd.s32 %s38, 53
    %s963 = sld [smem:[#allocation2 + %s962]]
    %v964 = vstv %s963
    %v965 = vadd.f32 %v964, 0.0
    %v966 = vmul.f32 %v951, 0.95
    %v967 = vmul.f32 %v965, 0.05
    %v968 = vadd.f32 %v966, %v967
    %v969 = vmul.f32 %v959, 0.95
    %v970 = vmul.f32 %v968, %v46
    %v971 = vadd.f32 %v969, %v970
    %vm972 = vcmp.gt.f32.partialorder %v971, 1.0
    %v973 = vsel %vm972, 1.0, 0.0
    %v974 = vmul.f32 %v973, %v961
    %v975 = vadd.f32 %v958, %v974
    %v976 = vsel %vm972, 0.0, %v971
    %977 = vrot.lane.b32.xlu0 %v961, 1
    %v978 = vpop.permute.xlu0 %977
    %s979 = sadd.s32 %s38, 54
    %s980 = sld [smem:[#allocation2 + %s979]]
    %v981 = vstv %s980
    %v982 = vadd.f32 %v981, 0.0
    %v983 = vmul.f32 %v968, 0.95
    %v984 = vmul.f32 %v982, 0.05
    %v985 = vadd.f32 %v983, %v984
    %v986 = vmul.f32 %v976, 0.95
    %v987 = vmul.f32 %v985, %v46
    %v988 = vadd.f32 %v986, %v987
    %vm989 = vcmp.gt.f32.partialorder %v988, 1.0
    %v990 = vsel %vm989, 1.0, 0.0
    %v991 = vmul.f32 %v990, %v978
    %v992 = vadd.f32 %v975, %v991
    %v993 = vsel %vm989, 0.0, %v988
    %994 = vrot.lane.b32.xlu0 %v978, 1
    %v995 = vpop.permute.xlu0 %994
    %s996 = sadd.s32 %s38, 55
    %s997 = sld [smem:[#allocation2 + %s996]]
    %v998 = vstv %s997
    %v999 = vadd.f32 %v998, 0.0
    %v1000 = vmul.f32 %v985, 0.95
    %v1001 = vmul.f32 %v999, 0.05
    %v1002 = vadd.f32 %v1000, %v1001
    %v1003 = vmul.f32 %v993, 0.95
    %v1004 = vmul.f32 %v1002, %v46
    %v1005 = vadd.f32 %v1003, %v1004
    %vm1006 = vcmp.gt.f32.partialorder %v1005, 1.0
    %v1007 = vsel %vm1006, 1.0, 0.0
    %v1008 = vmul.f32 %v1007, %v995
    %v1009 = vadd.f32 %v992, %v1008
    %v1010 = vsel %vm1006, 0.0, %v1005
    %1011 = vrot.lane.b32.xlu0 %v995, 1
    %v1012 = vpop.permute.xlu0 %1011
    %s1013 = sadd.s32 %s38, 56
    %s1014 = sld [smem:[#allocation2 + %s1013]]
    %v1015 = vstv %s1014
    %v1016 = vadd.f32 %v1015, 0.0
    %v1017 = vmul.f32 %v1002, 0.95
    %v1018 = vmul.f32 %v1016, 0.05
    %v1019 = vadd.f32 %v1017, %v1018
    %v1020 = vmul.f32 %v1010, 0.95
    %v1021 = vmul.f32 %v1019, %v46
    %v1022 = vadd.f32 %v1020, %v1021
    %vm1023 = vcmp.gt.f32.partialorder %v1022, 1.0
    %v1024 = vsel %vm1023, 1.0, 0.0
    %v1025 = vmul.f32 %v1024, %v1012
    %v1026 = vadd.f32 %v1009, %v1025
    %v1027 = vsel %vm1023, 0.0, %v1022
    %1028 = vrot.lane.b32.xlu0 %v1012, 1
    %v1029 = vpop.permute.xlu0 %1028
    %s1030 = sadd.s32 %s38, 57
    %s1031 = sld [smem:[#allocation2 + %s1030]]
    %v1032 = vstv %s1031
    %v1033 = vadd.f32 %v1032, 0.0
    %v1034 = vmul.f32 %v1019, 0.95
    %v1035 = vmul.f32 %v1033, 0.05
    %v1036 = vadd.f32 %v1034, %v1035
    %v1037 = vmul.f32 %v1027, 0.95
    %v1038 = vmul.f32 %v1036, %v46
    %v1039 = vadd.f32 %v1037, %v1038
    %vm1040 = vcmp.gt.f32.partialorder %v1039, 1.0
    %v1041 = vsel %vm1040, 1.0, 0.0
    %v1042 = vmul.f32 %v1041, %v1029
    %v1043 = vadd.f32 %v1026, %v1042
    %v1044 = vsel %vm1040, 0.0, %v1039
    %1045 = vrot.lane.b32.xlu0 %v1029, 1
    %v1046 = vpop.permute.xlu0 %1045
    %s1047 = sadd.s32 %s38, 58
    %s1048 = sld [smem:[#allocation2 + %s1047]]
    %v1049 = vstv %s1048
    %v1050 = vadd.f32 %v1049, 0.0
    %v1051 = vmul.f32 %v1036, 0.95
    %v1052 = vmul.f32 %v1050, 0.05
    %v1053 = vadd.f32 %v1051, %v1052
    %v1054 = vmul.f32 %v1044, 0.95
    %v1055 = vmul.f32 %v1053, %v46
    %v1056 = vadd.f32 %v1054, %v1055
    %vm1057 = vcmp.gt.f32.partialorder %v1056, 1.0
    %v1058 = vsel %vm1057, 1.0, 0.0
    %v1059 = vmul.f32 %v1058, %v1046
    %v1060 = vadd.f32 %v1043, %v1059
    %v1061 = vsel %vm1057, 0.0, %v1056
    %1062 = vrot.lane.b32.xlu0 %v1046, 1
    %v1063 = vpop.permute.xlu0 %1062
    %s1064 = sadd.s32 %s38, 59
    %s1065 = sld [smem:[#allocation2 + %s1064]]
    %v1066 = vstv %s1065
    %v1067 = vadd.f32 %v1066, 0.0
    %v1068 = vmul.f32 %v1053, 0.95
    %v1069 = vmul.f32 %v1067, 0.05
    %v1070 = vadd.f32 %v1068, %v1069
    %v1071 = vmul.f32 %v1061, 0.95
    %v1072 = vmul.f32 %v1070, %v46
    %v1073 = vadd.f32 %v1071, %v1072
    %vm1074 = vcmp.gt.f32.partialorder %v1073, 1.0
    %v1075 = vsel %vm1074, 1.0, 0.0
    %v1076 = vmul.f32 %v1075, %v1063
    %v1077 = vadd.f32 %v1060, %v1076
    %v1078 = vsel %vm1074, 0.0, %v1073
    %1079 = vrot.lane.b32.xlu0 %v1063, 1
    %v1080 = vpop.permute.xlu0 %1079
    %s1081 = sadd.s32 %s38, 60
    %s1082 = sld [smem:[#allocation2 + %s1081]]
    %v1083 = vstv %s1082
    %v1084 = vadd.f32 %v1083, 0.0
    %v1085 = vmul.f32 %v1070, 0.95
    %v1086 = vmul.f32 %v1084, 0.05
    %v1087 = vadd.f32 %v1085, %v1086
    %v1088 = vmul.f32 %v1078, 0.95
    %v1089 = vmul.f32 %v1087, %v46
    %v1090 = vadd.f32 %v1088, %v1089
    %vm1091 = vcmp.gt.f32.partialorder %v1090, 1.0
    %v1092 = vsel %vm1091, 1.0, 0.0
    %v1093 = vmul.f32 %v1092, %v1080
    %v1094 = vadd.f32 %v1077, %v1093
    %v1095 = vsel %vm1091, 0.0, %v1090
    %1096 = vrot.lane.b32.xlu0 %v1080, 1
    %v1097 = vpop.permute.xlu0 %1096
    %s1098 = sadd.s32 %s38, 61
    %s1099 = sld [smem:[#allocation2 + %s1098]]
    %v1100 = vstv %s1099
    %v1101 = vadd.f32 %v1100, 0.0
    %v1102 = vmul.f32 %v1087, 0.95
    %v1103 = vmul.f32 %v1101, 0.05
    %v1104 = vadd.f32 %v1102, %v1103
    %v1105 = vmul.f32 %v1095, 0.95
    %v1106 = vmul.f32 %v1104, %v46
    %v1107 = vadd.f32 %v1105, %v1106
    %vm1108 = vcmp.gt.f32.partialorder %v1107, 1.0
    %v1109 = vsel %vm1108, 1.0, 0.0
    %v1110 = vmul.f32 %v1109, %v1097
    %v1111 = vadd.f32 %v1094, %v1110
    %v1112 = vsel %vm1108, 0.0, %v1107
    %1113 = vrot.lane.b32.xlu0 %v1097, 1
    %v1114 = vpop.permute.xlu0 %1113
    %s1115 = sadd.s32 %s38, 62
    %s1116 = sld [smem:[#allocation2 + %s1115]]
    %v1117 = vstv %s1116
    %v1118 = vadd.f32 %v1117, 0.0
    %v1119 = vmul.f32 %v1104, 0.95
    %v1120 = vmul.f32 %v1118, 0.05
    %v1121 = vadd.f32 %v1119, %v1120
    %v1122 = vmul.f32 %v1112, 0.95
    %v1123 = vmul.f32 %v1121, %v46
    %v1124 = vadd.f32 %v1122, %v1123
    %vm1125 = vcmp.gt.f32.partialorder %v1124, 1.0
    %v1126 = vsel %vm1125, 1.0, 0.0
    %v1127 = vmul.f32 %v1126, %v1114
    %v1128 = vadd.f32 %v1111, %v1127
    %v1129 = vsel %vm1125, 0.0, %v1124
    %1130 = vrot.lane.b32.xlu0 %v1114, 1
    %v1131 = vpop.permute.xlu0 %1130
    %s1132 = sadd.s32 %s38, 63
    %s1133 = sld [smem:[#allocation2 + %s1132]]
    %v1134 = vstv %s1133
    %v1135 = vadd.f32 %v1134, 0.0
    %v1136 = vmul.f32 %v1121, 0.95
    %v1137 = vmul.f32 %v1135, 0.05
    %v1138 = vadd.f32 %v1136, %v1137
    %v1139 = vmul.f32 %v1129, 0.95
    %v1140 = vmul.f32 %v1138, %v46
    %v1141 = vadd.f32 %v1139, %v1140
    %vm1142 = vcmp.gt.f32.partialorder %v1141, 1.0
    %v1143 = vsel %vm1142, 1.0, 0.0
    %v1144 = vmul.f32 %v1143, %v1131
    %v1145 = vadd.f32 %v1128, %v1144
    %v1146 = vsel %vm1142, 0.0, %v1141
    %1147 = vrot.lane.b32.xlu0 %v1131, 1
    %v1148 = vpop.permute.xlu0 %1147
    %s1149 = sadd.s32 %s38, 64
    %s1150 = sld [smem:[#allocation2 + %s1149]]
    %v1151 = vstv %s1150
    %v1152 = vadd.f32 %v1151, 0.0
    %v1153 = vmul.f32 %v1138, 0.95
    %v1154 = vmul.f32 %v1152, 0.05
    %v1155 = vadd.f32 %v1153, %v1154
    %v1156 = vmul.f32 %v1146, 0.95
    %v1157 = vmul.f32 %v1155, %v46
    %v1158 = vadd.f32 %v1156, %v1157
    %vm1159 = vcmp.gt.f32.partialorder %v1158, 1.0
    %v1160 = vsel %vm1159, 1.0, 0.0
    %v1161 = vmul.f32 %v1160, %v1148
    %v1162 = vadd.f32 %v1145, %v1161
    %v1163 = vsel %vm1159, 0.0, %v1158
    %1164 = vrot.lane.b32.xlu0 %v1148, 1
    %v1165 = vpop.permute.xlu0 %1164
    %s1166 = sadd.s32 %s38, 65
    %s1167 = sld [smem:[#allocation2 + %s1166]]
    %v1168 = vstv %s1167
    %v1169 = vadd.f32 %v1168, 0.0
    %v1170 = vmul.f32 %v1155, 0.95
    %v1171 = vmul.f32 %v1169, 0.05
    %v1172 = vadd.f32 %v1170, %v1171
    %v1173 = vmul.f32 %v1163, 0.95
    %v1174 = vmul.f32 %v1172, %v46
    %v1175 = vadd.f32 %v1173, %v1174
    %vm1176 = vcmp.gt.f32.partialorder %v1175, 1.0
    %v1177 = vsel %vm1176, 1.0, 0.0
    %v1178 = vmul.f32 %v1177, %v1165
    %v1179 = vadd.f32 %v1162, %v1178
    %v1180 = vsel %vm1176, 0.0, %v1175
    %1181 = vrot.lane.b32.xlu0 %v1165, 1
    %v1182 = vpop.permute.xlu0 %1181
    %s1183 = sadd.s32 %s38, 66
    %s1184 = sld [smem:[#allocation2 + %s1183]]
    %v1185 = vstv %s1184
    %v1186 = vadd.f32 %v1185, 0.0
    %v1187 = vmul.f32 %v1172, 0.95
    %v1188 = vmul.f32 %v1186, 0.05
    %v1189 = vadd.f32 %v1187, %v1188
    %v1190 = vmul.f32 %v1180, 0.95
    %v1191 = vmul.f32 %v1189, %v46
    %v1192 = vadd.f32 %v1190, %v1191
    %vm1193 = vcmp.gt.f32.partialorder %v1192, 1.0
    %v1194 = vsel %vm1193, 1.0, 0.0
    %v1195 = vmul.f32 %v1194, %v1182
    %v1196 = vadd.f32 %v1179, %v1195
    %v1197 = vsel %vm1193, 0.0, %v1192
    %1198 = vrot.lane.b32.xlu0 %v1182, 1
    %v1199 = vpop.permute.xlu0 %1198
    %s1200 = sadd.s32 %s38, 67
    %s1201 = sld [smem:[#allocation2 + %s1200]]
    %v1202 = vstv %s1201
    %v1203 = vadd.f32 %v1202, 0.0
    %v1204 = vmul.f32 %v1189, 0.95
    %v1205 = vmul.f32 %v1203, 0.05
    %v1206 = vadd.f32 %v1204, %v1205
    %v1207 = vmul.f32 %v1197, 0.95
    %v1208 = vmul.f32 %v1206, %v46
    %v1209 = vadd.f32 %v1207, %v1208
    %vm1210 = vcmp.gt.f32.partialorder %v1209, 1.0
    %v1211 = vsel %vm1210, 1.0, 0.0
    %v1212 = vmul.f32 %v1211, %v1199
    %v1213 = vadd.f32 %v1196, %v1212
    %v1214 = vsel %vm1210, 0.0, %v1209
    %1215 = vrot.lane.b32.xlu0 %v1199, 1
    %v1216 = vpop.permute.xlu0 %1215
    %s1217 = sadd.s32 %s38, 68
    %s1218 = sld [smem:[#allocation2 + %s1217]]
    %v1219 = vstv %s1218
    %v1220 = vadd.f32 %v1219, 0.0
    %v1221 = vmul.f32 %v1206, 0.95
    %v1222 = vmul.f32 %v1220, 0.05
    %v1223 = vadd.f32 %v1221, %v1222
    %v1224 = vmul.f32 %v1214, 0.95
    %v1225 = vmul.f32 %v1223, %v46
    %v1226 = vadd.f32 %v1224, %v1225
    %vm1227 = vcmp.gt.f32.partialorder %v1226, 1.0
    %v1228 = vsel %vm1227, 1.0, 0.0
    %v1229 = vmul.f32 %v1228, %v1216
    %v1230 = vadd.f32 %v1213, %v1229
    %v1231 = vsel %vm1227, 0.0, %v1226
    %1232 = vrot.lane.b32.xlu0 %v1216, 1
    %v1233 = vpop.permute.xlu0 %1232
    %s1234 = sadd.s32 %s38, 69
    %s1235 = sld [smem:[#allocation2 + %s1234]]
    %v1236 = vstv %s1235
    %v1237 = vadd.f32 %v1236, 0.0
    %v1238 = vmul.f32 %v1223, 0.95
    %v1239 = vmul.f32 %v1237, 0.05
    %v1240 = vadd.f32 %v1238, %v1239
    %v1241 = vmul.f32 %v1231, 0.95
    %v1242 = vmul.f32 %v1240, %v46
    %v1243 = vadd.f32 %v1241, %v1242
    %vm1244 = vcmp.gt.f32.partialorder %v1243, 1.0
    %v1245 = vsel %vm1244, 1.0, 0.0
    %v1246 = vmul.f32 %v1245, %v1233
    %v1247 = vadd.f32 %v1230, %v1246
    %v1248 = vsel %vm1244, 0.0, %v1243
    %1249 = vrot.lane.b32.xlu0 %v1233, 1
    %v1250 = vpop.permute.xlu0 %1249
    %s1251 = sadd.s32 %s38, 70
    %s1252 = sld [smem:[#allocation2 + %s1251]]
    %v1253 = vstv %s1252
    %v1254 = vadd.f32 %v1253, 0.0
    %v1255 = vmul.f32 %v1240, 0.95
    %v1256 = vmul.f32 %v1254, 0.05
    %v1257 = vadd.f32 %v1255, %v1256
    %v1258 = vmul.f32 %v1248, 0.95
    %v1259 = vmul.f32 %v1257, %v46
    %v1260 = vadd.f32 %v1258, %v1259
    %vm1261 = vcmp.gt.f32.partialorder %v1260, 1.0
    %v1262 = vsel %vm1261, 1.0, 0.0
    %v1263 = vmul.f32 %v1262, %v1250
    %v1264 = vadd.f32 %v1247, %v1263
    %v1265 = vsel %vm1261, 0.0, %v1260
    %1266 = vrot.lane.b32.xlu0 %v1250, 1
    %v1267 = vpop.permute.xlu0 %1266
    %s1268 = sadd.s32 %s38, 71
    %s1269 = sld [smem:[#allocation2 + %s1268]]
    %v1270 = vstv %s1269
    %v1271 = vadd.f32 %v1270, 0.0
    %v1272 = vmul.f32 %v1257, 0.95
    %v1273 = vmul.f32 %v1271, 0.05
    %v1274 = vadd.f32 %v1272, %v1273
    %v1275 = vmul.f32 %v1265, 0.95
    %v1276 = vmul.f32 %v1274, %v46
    %v1277 = vadd.f32 %v1275, %v1276
    %vm1278 = vcmp.gt.f32.partialorder %v1277, 1.0
    %v1279 = vsel %vm1278, 1.0, 0.0
    %v1280 = vmul.f32 %v1279, %v1267
    %v1281 = vadd.f32 %v1264, %v1280
    %v1282 = vsel %vm1278, 0.0, %v1277
    %1283 = vrot.lane.b32.xlu0 %v1267, 1
    %v1284 = vpop.permute.xlu0 %1283
    %s1285 = sadd.s32 %s38, 72
    %s1286 = sld [smem:[#allocation2 + %s1285]]
    %v1287 = vstv %s1286
    %v1288 = vadd.f32 %v1287, 0.0
    %v1289 = vmul.f32 %v1274, 0.95
    %v1290 = vmul.f32 %v1288, 0.05
    %v1291 = vadd.f32 %v1289, %v1290
    %v1292 = vmul.f32 %v1282, 0.95
    %v1293 = vmul.f32 %v1291, %v46
    %v1294 = vadd.f32 %v1292, %v1293
    %vm1295 = vcmp.gt.f32.partialorder %v1294, 1.0
    %v1296 = vsel %vm1295, 1.0, 0.0
    %v1297 = vmul.f32 %v1296, %v1284
    %v1298 = vadd.f32 %v1281, %v1297
    %v1299 = vsel %vm1295, 0.0, %v1294
    %1300 = vrot.lane.b32.xlu0 %v1284, 1
    %v1301 = vpop.permute.xlu0 %1300
    %s1302 = sadd.s32 %s38, 73
    %s1303 = sld [smem:[#allocation2 + %s1302]]
    %v1304 = vstv %s1303
    %v1305 = vadd.f32 %v1304, 0.0
    %v1306 = vmul.f32 %v1291, 0.95
    %v1307 = vmul.f32 %v1305, 0.05
    %v1308 = vadd.f32 %v1306, %v1307
    %v1309 = vmul.f32 %v1299, 0.95
    %v1310 = vmul.f32 %v1308, %v46
    %v1311 = vadd.f32 %v1309, %v1310
    %vm1312 = vcmp.gt.f32.partialorder %v1311, 1.0
    %v1313 = vsel %vm1312, 1.0, 0.0
    %v1314 = vmul.f32 %v1313, %v1301
    %v1315 = vadd.f32 %v1298, %v1314
    %v1316 = vsel %vm1312, 0.0, %v1311
    %1317 = vrot.lane.b32.xlu0 %v1301, 1
    %v1318 = vpop.permute.xlu0 %1317
    %s1319 = sadd.s32 %s38, 74
    %s1320 = sld [smem:[#allocation2 + %s1319]]
    %v1321 = vstv %s1320
    %v1322 = vadd.f32 %v1321, 0.0
    %v1323 = vmul.f32 %v1308, 0.95
    %v1324 = vmul.f32 %v1322, 0.05
    %v1325 = vadd.f32 %v1323, %v1324
    %v1326 = vmul.f32 %v1316, 0.95
    %v1327 = vmul.f32 %v1325, %v46
    %v1328 = vadd.f32 %v1326, %v1327
    %vm1329 = vcmp.gt.f32.partialorder %v1328, 1.0
    %v1330 = vsel %vm1329, 1.0, 0.0
    %v1331 = vmul.f32 %v1330, %v1318
    %v1332 = vadd.f32 %v1315, %v1331
    %v1333 = vsel %vm1329, 0.0, %v1328
    %1334 = vrot.lane.b32.xlu0 %v1318, 1
    %v1335 = vpop.permute.xlu0 %1334
    %s1336 = sadd.s32 %s38, 75
    %s1337 = sld [smem:[#allocation2 + %s1336]]
    %v1338 = vstv %s1337
    %v1339 = vadd.f32 %v1338, 0.0
    %v1340 = vmul.f32 %v1325, 0.95
    %v1341 = vmul.f32 %v1339, 0.05
    %v1342 = vadd.f32 %v1340, %v1341
    %v1343 = vmul.f32 %v1333, 0.95
    %v1344 = vmul.f32 %v1342, %v46
    %v1345 = vadd.f32 %v1343, %v1344
    %vm1346 = vcmp.gt.f32.partialorder %v1345, 1.0
    %v1347 = vsel %vm1346, 1.0, 0.0
    %v1348 = vmul.f32 %v1347, %v1335
    %v1349 = vadd.f32 %v1332, %v1348
    %v1350 = vsel %vm1346, 0.0, %v1345
    %1351 = vrot.lane.b32.xlu0 %v1335, 1
    %v1352 = vpop.permute.xlu0 %1351
    %s1353 = sadd.s32 %s38, 76
    %s1354 = sld [smem:[#allocation2 + %s1353]]
    %v1355 = vstv %s1354
    %v1356 = vadd.f32 %v1355, 0.0
    %v1357 = vmul.f32 %v1342, 0.95
    %v1358 = vmul.f32 %v1356, 0.05
    %v1359 = vadd.f32 %v1357, %v1358
    %v1360 = vmul.f32 %v1350, 0.95
    %v1361 = vmul.f32 %v1359, %v46
    %v1362 = vadd.f32 %v1360, %v1361
    %vm1363 = vcmp.gt.f32.partialorder %v1362, 1.0
    %v1364 = vsel %vm1363, 1.0, 0.0
    %v1365 = vmul.f32 %v1364, %v1352
    %v1366 = vadd.f32 %v1349, %v1365
    %v1367 = vsel %vm1363, 0.0, %v1362
    %1368 = vrot.lane.b32.xlu0 %v1352, 1
    %v1369 = vpop.permute.xlu0 %1368
    %s1370 = sadd.s32 %s38, 77
    %s1371 = sld [smem:[#allocation2 + %s1370]]
    %v1372 = vstv %s1371
    %v1373 = vadd.f32 %v1372, 0.0
    %v1374 = vmul.f32 %v1359, 0.95
    %v1375 = vmul.f32 %v1373, 0.05
    %v1376 = vadd.f32 %v1374, %v1375
    %v1377 = vmul.f32 %v1367, 0.95
    %v1378 = vmul.f32 %v1376, %v46
    %v1379 = vadd.f32 %v1377, %v1378
    %vm1380 = vcmp.gt.f32.partialorder %v1379, 1.0
    %v1381 = vsel %vm1380, 1.0, 0.0
    %v1382 = vmul.f32 %v1381, %v1369
    %v1383 = vadd.f32 %v1366, %v1382
    %v1384 = vsel %vm1380, 0.0, %v1379
    %1385 = vrot.lane.b32.xlu0 %v1369, 1
    %v1386 = vpop.permute.xlu0 %1385
    %s1387 = sadd.s32 %s38, 78
    %s1388 = sld [smem:[#allocation2 + %s1387]]
    %v1389 = vstv %s1388
    %v1390 = vadd.f32 %v1389, 0.0
    %v1391 = vmul.f32 %v1376, 0.95
    %v1392 = vmul.f32 %v1390, 0.05
    %v1393 = vadd.f32 %v1391, %v1392
    %v1394 = vmul.f32 %v1384, 0.95
    %v1395 = vmul.f32 %v1393, %v46
    %v1396 = vadd.f32 %v1394, %v1395
    %vm1397 = vcmp.gt.f32.partialorder %v1396, 1.0
    %v1398 = vsel %vm1397, 1.0, 0.0
    %v1399 = vmul.f32 %v1398, %v1386
    %v1400 = vadd.f32 %v1383, %v1399
    %v1401 = vsel %vm1397, 0.0, %v1396
    %1402 = vrot.lane.b32.xlu0 %v1386, 1
    %v1403 = vpop.permute.xlu0 %1402
    %s1404 = sadd.s32 %s38, 79
    %s1405 = sld [smem:[#allocation2 + %s1404]]
    %v1406 = vstv %s1405
    %v1407 = vadd.f32 %v1406, 0.0
    %v1408 = vmul.f32 %v1393, 0.95
    %v1409 = vmul.f32 %v1407, 0.05
    %v1410 = vadd.f32 %v1408, %v1409
    %v1411 = vmul.f32 %v1401, 0.95
    %v1412 = vmul.f32 %v1410, %v46
    %v1413 = vadd.f32 %v1411, %v1412
    %vm1414 = vcmp.gt.f32.partialorder %v1413, 1.0
    %v1415 = vsel %vm1414, 1.0, 0.0
    %v1416 = vmul.f32 %v1415, %v1403
    %v1417 = vadd.f32 %v1400, %v1416
    %v1418 = vsel %vm1414, 0.0, %v1413
    %1419 = vrot.lane.b32.xlu0 %v1403, 1
    %v1420 = vpop.permute.xlu0 %1419
    %s1421 = sadd.s32 %s38, 80
    %s1422 = sld [smem:[#allocation2 + %s1421]]
    %v1423 = vstv %s1422
    %v1424 = vadd.f32 %v1423, 0.0
    %v1425 = vmul.f32 %v1410, 0.95
    %v1426 = vmul.f32 %v1424, 0.05
    %v1427 = vadd.f32 %v1425, %v1426
    %v1428 = vmul.f32 %v1418, 0.95
    %v1429 = vmul.f32 %v1427, %v46
    %v1430 = vadd.f32 %v1428, %v1429
    %vm1431 = vcmp.gt.f32.partialorder %v1430, 1.0
    %v1432 = vsel %vm1431, 1.0, 0.0
    %v1433 = vmul.f32 %v1432, %v1420
    %v1434 = vadd.f32 %v1417, %v1433
    %v1435 = vsel %vm1431, 0.0, %v1430
    %1436 = vrot.lane.b32.xlu0 %v1420, 1
    %v1437 = vpop.permute.xlu0 %1436
    %s1438 = sadd.s32 %s38, 81
    %s1439 = sld [smem:[#allocation2 + %s1438]]
    %v1440 = vstv %s1439
    %v1441 = vadd.f32 %v1440, 0.0
    %v1442 = vmul.f32 %v1427, 0.95
    %v1443 = vmul.f32 %v1441, 0.05
    %v1444 = vadd.f32 %v1442, %v1443
    %v1445 = vmul.f32 %v1435, 0.95
    %v1446 = vmul.f32 %v1444, %v46
    %v1447 = vadd.f32 %v1445, %v1446
    %vm1448 = vcmp.gt.f32.partialorder %v1447, 1.0
    %v1449 = vsel %vm1448, 1.0, 0.0
    %v1450 = vmul.f32 %v1449, %v1437
    %v1451 = vadd.f32 %v1434, %v1450
    %v1452 = vsel %vm1448, 0.0, %v1447
    %1453 = vrot.lane.b32.xlu0 %v1437, 1
    %v1454 = vpop.permute.xlu0 %1453
    %s1455 = sadd.s32 %s38, 82
    %s1456 = sld [smem:[#allocation2 + %s1455]]
    %v1457 = vstv %s1456
    %v1458 = vadd.f32 %v1457, 0.0
    %v1459 = vmul.f32 %v1444, 0.95
    %v1460 = vmul.f32 %v1458, 0.05
    %v1461 = vadd.f32 %v1459, %v1460
    %v1462 = vmul.f32 %v1452, 0.95
    %v1463 = vmul.f32 %v1461, %v46
    %v1464 = vadd.f32 %v1462, %v1463
    %vm1465 = vcmp.gt.f32.partialorder %v1464, 1.0
    %v1466 = vsel %vm1465, 1.0, 0.0
    %v1467 = vmul.f32 %v1466, %v1454
    %v1468 = vadd.f32 %v1451, %v1467
    %v1469 = vsel %vm1465, 0.0, %v1464
    %1470 = vrot.lane.b32.xlu0 %v1454, 1
    %v1471 = vpop.permute.xlu0 %1470
    %s1472 = sadd.s32 %s38, 83
    %s1473 = sld [smem:[#allocation2 + %s1472]]
    %v1474 = vstv %s1473
    %v1475 = vadd.f32 %v1474, 0.0
    %v1476 = vmul.f32 %v1461, 0.95
    %v1477 = vmul.f32 %v1475, 0.05
    %v1478 = vadd.f32 %v1476, %v1477
    %v1479 = vmul.f32 %v1469, 0.95
    %v1480 = vmul.f32 %v1478, %v46
    %v1481 = vadd.f32 %v1479, %v1480
    %vm1482 = vcmp.gt.f32.partialorder %v1481, 1.0
    %v1483 = vsel %vm1482, 1.0, 0.0
    %v1484 = vmul.f32 %v1483, %v1471
    %v1485 = vadd.f32 %v1468, %v1484
    %v1486 = vsel %vm1482, 0.0, %v1481
    %1487 = vrot.lane.b32.xlu0 %v1471, 1
    %v1488 = vpop.permute.xlu0 %1487
    %s1489 = sadd.s32 %s38, 84
    %s1490 = sld [smem:[#allocation2 + %s1489]]
    %v1491 = vstv %s1490
    %v1492 = vadd.f32 %v1491, 0.0
    %v1493 = vmul.f32 %v1478, 0.95
    %v1494 = vmul.f32 %v1492, 0.05
    %v1495 = vadd.f32 %v1493, %v1494
    %v1496 = vmul.f32 %v1486, 0.95
    %v1497 = vmul.f32 %v1495, %v46
    %v1498 = vadd.f32 %v1496, %v1497
    %vm1499 = vcmp.gt.f32.partialorder %v1498, 1.0
    %v1500 = vsel %vm1499, 1.0, 0.0
    %v1501 = vmul.f32 %v1500, %v1488
    %v1502 = vadd.f32 %v1485, %v1501
    %v1503 = vsel %vm1499, 0.0, %v1498
    %1504 = vrot.lane.b32.xlu0 %v1488, 1
    %v1505 = vpop.permute.xlu0 %1504
    %s1506 = sadd.s32 %s38, 85
    %s1507 = sld [smem:[#allocation2 + %s1506]]
    %v1508 = vstv %s1507
    %v1509 = vadd.f32 %v1508, 0.0
    %v1510 = vmul.f32 %v1495, 0.95
    %v1511 = vmul.f32 %v1509, 0.05
    %v1512 = vadd.f32 %v1510, %v1511
    %v1513 = vmul.f32 %v1503, 0.95
    %v1514 = vmul.f32 %v1512, %v46
    %v1515 = vadd.f32 %v1513, %v1514
    %vm1516 = vcmp.gt.f32.partialorder %v1515, 1.0
    %v1517 = vsel %vm1516, 1.0, 0.0
    %v1518 = vmul.f32 %v1517, %v1505
    %v1519 = vadd.f32 %v1502, %v1518
    %v1520 = vsel %vm1516, 0.0, %v1515
    %1521 = vrot.lane.b32.xlu0 %v1505, 1
    %v1522 = vpop.permute.xlu0 %1521
    %s1523 = sadd.s32 %s38, 86
    %s1524 = sld [smem:[#allocation2 + %s1523]]
    %v1525 = vstv %s1524
    %v1526 = vadd.f32 %v1525, 0.0
    %v1527 = vmul.f32 %v1512, 0.95
    %v1528 = vmul.f32 %v1526, 0.05
    %v1529 = vadd.f32 %v1527, %v1528
    %v1530 = vmul.f32 %v1520, 0.95
    %v1531 = vmul.f32 %v1529, %v46
    %v1532 = vadd.f32 %v1530, %v1531
    %vm1533 = vcmp.gt.f32.partialorder %v1532, 1.0
    %v1534 = vsel %vm1533, 1.0, 0.0
    %v1535 = vmul.f32 %v1534, %v1522
    %v1536 = vadd.f32 %v1519, %v1535
    %v1537 = vsel %vm1533, 0.0, %v1532
    %1538 = vrot.lane.b32.xlu0 %v1522, 1
    %v1539 = vpop.permute.xlu0 %1538
    %s1540 = sadd.s32 %s38, 87
    %s1541 = sld [smem:[#allocation2 + %s1540]]
    %v1542 = vstv %s1541
    %v1543 = vadd.f32 %v1542, 0.0
    %v1544 = vmul.f32 %v1529, 0.95
    %v1545 = vmul.f32 %v1543, 0.05
    %v1546 = vadd.f32 %v1544, %v1545
    %v1547 = vmul.f32 %v1537, 0.95
    %v1548 = vmul.f32 %v1546, %v46
    %v1549 = vadd.f32 %v1547, %v1548
    %vm1550 = vcmp.gt.f32.partialorder %v1549, 1.0
    %v1551 = vsel %vm1550, 1.0, 0.0
    %v1552 = vmul.f32 %v1551, %v1539
    %v1553 = vadd.f32 %v1536, %v1552
    %v1554 = vsel %vm1550, 0.0, %v1549
    %1555 = vrot.lane.b32.xlu0 %v1539, 1
    %v1556 = vpop.permute.xlu0 %1555
    %s1557 = sadd.s32 %s38, 88
    %s1558 = sld [smem:[#allocation2 + %s1557]]
    %v1559 = vstv %s1558
    %v1560 = vadd.f32 %v1559, 0.0
    %v1561 = vmul.f32 %v1546, 0.95
    %v1562 = vmul.f32 %v1560, 0.05
    %v1563 = vadd.f32 %v1561, %v1562
    %v1564 = vmul.f32 %v1554, 0.95
    %v1565 = vmul.f32 %v1563, %v46
    %v1566 = vadd.f32 %v1564, %v1565
    %vm1567 = vcmp.gt.f32.partialorder %v1566, 1.0
    %v1568 = vsel %vm1567, 1.0, 0.0
    %v1569 = vmul.f32 %v1568, %v1556
    %v1570 = vadd.f32 %v1553, %v1569
    %v1571 = vsel %vm1567, 0.0, %v1566
    %1572 = vrot.lane.b32.xlu0 %v1556, 1
    %v1573 = vpop.permute.xlu0 %1572
    %s1574 = sadd.s32 %s38, 89
    %s1575 = sld [smem:[#allocation2 + %s1574]]
    %v1576 = vstv %s1575
    %v1577 = vadd.f32 %v1576, 0.0
    %v1578 = vmul.f32 %v1563, 0.95
    %v1579 = vmul.f32 %v1577, 0.05
    %v1580 = vadd.f32 %v1578, %v1579
    %v1581 = vmul.f32 %v1571, 0.95
    %v1582 = vmul.f32 %v1580, %v46
    %v1583 = vadd.f32 %v1581, %v1582
    %vm1584 = vcmp.gt.f32.partialorder %v1583, 1.0
    %v1585 = vsel %vm1584, 1.0, 0.0
    %v1586 = vmul.f32 %v1585, %v1573
    %v1587 = vadd.f32 %v1570, %v1586
    %v1588 = vsel %vm1584, 0.0, %v1583
    %1589 = vrot.lane.b32.xlu0 %v1573, 1
    %v1590 = vpop.permute.xlu0 %1589
    %s1591 = sadd.s32 %s38, 90
    %s1592 = sld [smem:[#allocation2 + %s1591]]
    %v1593 = vstv %s1592
    %v1594 = vadd.f32 %v1593, 0.0
    %v1595 = vmul.f32 %v1580, 0.95
    %v1596 = vmul.f32 %v1594, 0.05
    %v1597 = vadd.f32 %v1595, %v1596
    %v1598 = vmul.f32 %v1588, 0.95
    %v1599 = vmul.f32 %v1597, %v46
    %v1600 = vadd.f32 %v1598, %v1599
    %vm1601 = vcmp.gt.f32.partialorder %v1600, 1.0
    %v1602 = vsel %vm1601, 1.0, 0.0
    %v1603 = vmul.f32 %v1602, %v1590
    %v1604 = vadd.f32 %v1587, %v1603
    %v1605 = vsel %vm1601, 0.0, %v1600
    %1606 = vrot.lane.b32.xlu0 %v1590, 1
    %v1607 = vpop.permute.xlu0 %1606
    %s1608 = sadd.s32 %s38, 91
    %s1609 = sld [smem:[#allocation2 + %s1608]]
    %v1610 = vstv %s1609
    %v1611 = vadd.f32 %v1610, 0.0
    %v1612 = vmul.f32 %v1597, 0.95
    %v1613 = vmul.f32 %v1611, 0.05
    %v1614 = vadd.f32 %v1612, %v1613
    %v1615 = vmul.f32 %v1605, 0.95
    %v1616 = vmul.f32 %v1614, %v46
    %v1617 = vadd.f32 %v1615, %v1616
    %vm1618 = vcmp.gt.f32.partialorder %v1617, 1.0
    %v1619 = vsel %vm1618, 1.0, 0.0
    %v1620 = vmul.f32 %v1619, %v1607
    %v1621 = vadd.f32 %v1604, %v1620
    %v1622 = vsel %vm1618, 0.0, %v1617
    %1623 = vrot.lane.b32.xlu0 %v1607, 1
    %v1624 = vpop.permute.xlu0 %1623
    %s1625 = sadd.s32 %s38, 92
    %s1626 = sld [smem:[#allocation2 + %s1625]]
    %v1627 = vstv %s1626
    %v1628 = vadd.f32 %v1627, 0.0
    %v1629 = vmul.f32 %v1614, 0.95
    %v1630 = vmul.f32 %v1628, 0.05
    %v1631 = vadd.f32 %v1629, %v1630
    %v1632 = vmul.f32 %v1622, 0.95
    %v1633 = vmul.f32 %v1631, %v46
    %v1634 = vadd.f32 %v1632, %v1633
    %vm1635 = vcmp.gt.f32.partialorder %v1634, 1.0
    %v1636 = vsel %vm1635, 1.0, 0.0
    %v1637 = vmul.f32 %v1636, %v1624
    %v1638 = vadd.f32 %v1621, %v1637
    %v1639 = vsel %vm1635, 0.0, %v1634
    %1640 = vrot.lane.b32.xlu0 %v1624, 1
    %v1641 = vpop.permute.xlu0 %1640
    %s1642 = sadd.s32 %s38, 93
    %s1643 = sld [smem:[#allocation2 + %s1642]]
    %v1644 = vstv %s1643
    %v1645 = vadd.f32 %v1644, 0.0
    %v1646 = vmul.f32 %v1631, 0.95
    %v1647 = vmul.f32 %v1645, 0.05
    %v1648 = vadd.f32 %v1646, %v1647
    %v1649 = vmul.f32 %v1639, 0.95
    %v1650 = vmul.f32 %v1648, %v46
    %v1651 = vadd.f32 %v1649, %v1650
    %vm1652 = vcmp.gt.f32.partialorder %v1651, 1.0
    %v1653 = vsel %vm1652, 1.0, 0.0
    %v1654 = vmul.f32 %v1653, %v1641
    %v1655 = vadd.f32 %v1638, %v1654
    %v1656 = vsel %vm1652, 0.0, %v1651
    %1657 = vrot.lane.b32.xlu0 %v1641, 1
    %v1658 = vpop.permute.xlu0 %1657
    %s1659 = sadd.s32 %s38, 94
    %s1660 = sld [smem:[#allocation2 + %s1659]]
    %v1661 = vstv %s1660
    %v1662 = vadd.f32 %v1661, 0.0
    %v1663 = vmul.f32 %v1648, 0.95
    %v1664 = vmul.f32 %v1662, 0.05
    %v1665 = vadd.f32 %v1663, %v1664
    %v1666 = vmul.f32 %v1656, 0.95
    %v1667 = vmul.f32 %v1665, %v46
    %v1668 = vadd.f32 %v1666, %v1667
    %vm1669 = vcmp.gt.f32.partialorder %v1668, 1.0
    %v1670 = vsel %vm1669, 1.0, 0.0
    %v1671 = vmul.f32 %v1670, %v1658
    %v1672 = vadd.f32 %v1655, %v1671
    %v1673 = vsel %vm1669, 0.0, %v1668
    %1674 = vrot.lane.b32.xlu0 %v1658, 1
    %v1675 = vpop.permute.xlu0 %1674
    %s1676 = sadd.s32 %s38, 95
    %s1677 = sld [smem:[#allocation2 + %s1676]]
    %v1678 = vstv %s1677
    %v1679 = vadd.f32 %v1678, 0.0
    %v1680 = vmul.f32 %v1665, 0.95
    %v1681 = vmul.f32 %v1679, 0.05
    %v1682 = vadd.f32 %v1680, %v1681
    %v1683 = vmul.f32 %v1673, 0.95
    %v1684 = vmul.f32 %v1682, %v46
    %v1685 = vadd.f32 %v1683, %v1684
    %vm1686 = vcmp.gt.f32.partialorder %v1685, 1.0
    %v1687 = vsel %vm1686, 1.0, 0.0
    %v1688 = vmul.f32 %v1687, %v1675
    %v1689 = vadd.f32 %v1672, %v1688
    %v1690 = vsel %vm1686, 0.0, %v1685
    %1691 = vrot.lane.b32.xlu0 %v1675, 1
    %v1692 = vpop.permute.xlu0 %1691
    %s1693 = sadd.s32 %s38, 96
    %s1694 = sld [smem:[#allocation2 + %s1693]]
    %v1695 = vstv %s1694
    %v1696 = vadd.f32 %v1695, 0.0
    %v1697 = vmul.f32 %v1682, 0.95
    %v1698 = vmul.f32 %v1696, 0.05
    %v1699 = vadd.f32 %v1697, %v1698
    %v1700 = vmul.f32 %v1690, 0.95
    %v1701 = vmul.f32 %v1699, %v46
    %v1702 = vadd.f32 %v1700, %v1701
    %vm1703 = vcmp.gt.f32.partialorder %v1702, 1.0
    %v1704 = vsel %vm1703, 1.0, 0.0
    %v1705 = vmul.f32 %v1704, %v1692
    %v1706 = vadd.f32 %v1689, %v1705
    %v1707 = vsel %vm1703, 0.0, %v1702
    %1708 = vrot.lane.b32.xlu0 %v1692, 1
    %v1709 = vpop.permute.xlu0 %1708
    %s1710 = sadd.s32 %s38, 97
    %s1711 = sld [smem:[#allocation2 + %s1710]]
    %v1712 = vstv %s1711
    %v1713 = vadd.f32 %v1712, 0.0
    %v1714 = vmul.f32 %v1699, 0.95
    %v1715 = vmul.f32 %v1713, 0.05
    %v1716 = vadd.f32 %v1714, %v1715
    %v1717 = vmul.f32 %v1707, 0.95
    %v1718 = vmul.f32 %v1716, %v46
    %v1719 = vadd.f32 %v1717, %v1718
    %vm1720 = vcmp.gt.f32.partialorder %v1719, 1.0
    %v1721 = vsel %vm1720, 1.0, 0.0
    %v1722 = vmul.f32 %v1721, %v1709
    %v1723 = vadd.f32 %v1706, %v1722
    %v1724 = vsel %vm1720, 0.0, %v1719
    %1725 = vrot.lane.b32.xlu0 %v1709, 1
    %v1726 = vpop.permute.xlu0 %1725
    %s1727 = sadd.s32 %s38, 98
    %s1728 = sld [smem:[#allocation2 + %s1727]]
    %v1729 = vstv %s1728
    %v1730 = vadd.f32 %v1729, 0.0
    %v1731 = vmul.f32 %v1716, 0.95
    %v1732 = vmul.f32 %v1730, 0.05
    %v1733 = vadd.f32 %v1731, %v1732
    %v1734 = vmul.f32 %v1724, 0.95
    %v1735 = vmul.f32 %v1733, %v46
    %v1736 = vadd.f32 %v1734, %v1735
    %vm1737 = vcmp.gt.f32.partialorder %v1736, 1.0
    %v1738 = vsel %vm1737, 1.0, 0.0
    %v1739 = vmul.f32 %v1738, %v1726
    %v1740 = vadd.f32 %v1723, %v1739
    %v1741 = vsel %vm1737, 0.0, %v1736
    %1742 = vrot.lane.b32.xlu0 %v1726, 1
    %v1743 = vpop.permute.xlu0 %1742
    %s1744 = sadd.s32 %s38, 99
    %s1745 = sld [smem:[#allocation2 + %s1744]]
    %v1746 = vstv %s1745
    %v1747 = vadd.f32 %v1746, 0.0
    %v1748 = vmul.f32 %v1733, 0.95
    %v1749 = vmul.f32 %v1747, 0.05
    %v1750 = vadd.f32 %v1748, %v1749
    %v1751 = vmul.f32 %v1741, 0.95
    %v1752 = vmul.f32 %v1750, %v46
    %v1753 = vadd.f32 %v1751, %v1752
    %vm1754 = vcmp.gt.f32.partialorder %v1753, 1.0
    %v1755 = vsel %vm1754, 1.0, 0.0
    %v1756 = vmul.f32 %v1755, %v1743
    %v1757 = vadd.f32 %v1740, %v1756
    %v1758 = vsel %vm1754, 0.0, %v1753
    %1759 = vrot.lane.b32.xlu0 %v1743, 1
    %v1760 = vpop.permute.xlu0 %1759
    %s1761 = sadd.s32 %s38, 100
    %s1762 = sld [smem:[#allocation2 + %s1761]]
    %v1763 = vstv %s1762
    %v1764 = vadd.f32 %v1763, 0.0
    %v1765 = vmul.f32 %v1750, 0.95
    %v1766 = vmul.f32 %v1764, 0.05
    %v1767 = vadd.f32 %v1765, %v1766
    %v1768 = vmul.f32 %v1758, 0.95
    %v1769 = vmul.f32 %v1767, %v46
    %v1770 = vadd.f32 %v1768, %v1769
    %vm1771 = vcmp.gt.f32.partialorder %v1770, 1.0
    %v1772 = vsel %vm1771, 1.0, 0.0
    %v1773 = vmul.f32 %v1772, %v1760
    %v1774 = vadd.f32 %v1757, %v1773
    %v1775 = vsel %vm1771, 0.0, %v1770
    %1776 = vrot.lane.b32.xlu0 %v1760, 1
    %v1777 = vpop.permute.xlu0 %1776
    %s1778 = sadd.s32 %s38, 101
    %s1779 = sld [smem:[#allocation2 + %s1778]]
    %v1780 = vstv %s1779
    %v1781 = vadd.f32 %v1780, 0.0
    %v1782 = vmul.f32 %v1767, 0.95
    %v1783 = vmul.f32 %v1781, 0.05
    %v1784 = vadd.f32 %v1782, %v1783
    %v1785 = vmul.f32 %v1775, 0.95
    %v1786 = vmul.f32 %v1784, %v46
    %v1787 = vadd.f32 %v1785, %v1786
    %vm1788 = vcmp.gt.f32.partialorder %v1787, 1.0
    %v1789 = vsel %vm1788, 1.0, 0.0
    %v1790 = vmul.f32 %v1789, %v1777
    %v1791 = vadd.f32 %v1774, %v1790
    %v1792 = vsel %vm1788, 0.0, %v1787
    %1793 = vrot.lane.b32.xlu0 %v1777, 1
    %v1794 = vpop.permute.xlu0 %1793
    %s1795 = sadd.s32 %s38, 102
    %s1796 = sld [smem:[#allocation2 + %s1795]]
    %v1797 = vstv %s1796
    %v1798 = vadd.f32 %v1797, 0.0
    %v1799 = vmul.f32 %v1784, 0.95
    %v1800 = vmul.f32 %v1798, 0.05
    %v1801 = vadd.f32 %v1799, %v1800
    %v1802 = vmul.f32 %v1792, 0.95
    %v1803 = vmul.f32 %v1801, %v46
    %v1804 = vadd.f32 %v1802, %v1803
    %vm1805 = vcmp.gt.f32.partialorder %v1804, 1.0
    %v1806 = vsel %vm1805, 1.0, 0.0
    %v1807 = vmul.f32 %v1806, %v1794
    %v1808 = vadd.f32 %v1791, %v1807
    %v1809 = vsel %vm1805, 0.0, %v1804
    %1810 = vrot.lane.b32.xlu0 %v1794, 1
    %v1811 = vpop.permute.xlu0 %1810
    %s1812 = sadd.s32 %s38, 103
    %s1813 = sld [smem:[#allocation2 + %s1812]]
    %v1814 = vstv %s1813
    %v1815 = vadd.f32 %v1814, 0.0
    %v1816 = vmul.f32 %v1801, 0.95
    %v1817 = vmul.f32 %v1815, 0.05
    %v1818 = vadd.f32 %v1816, %v1817
    %v1819 = vmul.f32 %v1809, 0.95
    %v1820 = vmul.f32 %v1818, %v46
    %v1821 = vadd.f32 %v1819, %v1820
    %vm1822 = vcmp.gt.f32.partialorder %v1821, 1.0
    %v1823 = vsel %vm1822, 1.0, 0.0
    %v1824 = vmul.f32 %v1823, %v1811
    %v1825 = vadd.f32 %v1808, %v1824
    %v1826 = vsel %vm1822, 0.0, %v1821
    %1827 = vrot.lane.b32.xlu0 %v1811, 1
    %v1828 = vpop.permute.xlu0 %1827
    %s1829 = sadd.s32 %s38, 104
    %s1830 = sld [smem:[#allocation2 + %s1829]]
    %v1831 = vstv %s1830
    %v1832 = vadd.f32 %v1831, 0.0
    %v1833 = vmul.f32 %v1818, 0.95
    %v1834 = vmul.f32 %v1832, 0.05
    %v1835 = vadd.f32 %v1833, %v1834
    %v1836 = vmul.f32 %v1826, 0.95
    %v1837 = vmul.f32 %v1835, %v46
    %v1838 = vadd.f32 %v1836, %v1837
    %vm1839 = vcmp.gt.f32.partialorder %v1838, 1.0
    %v1840 = vsel %vm1839, 1.0, 0.0
    %v1841 = vmul.f32 %v1840, %v1828
    %v1842 = vadd.f32 %v1825, %v1841
    %v1843 = vsel %vm1839, 0.0, %v1838
    %1844 = vrot.lane.b32.xlu0 %v1828, 1
    %v1845 = vpop.permute.xlu0 %1844
    %s1846 = sadd.s32 %s38, 105
    %s1847 = sld [smem:[#allocation2 + %s1846]]
    %v1848 = vstv %s1847
    %v1849 = vadd.f32 %v1848, 0.0
    %v1850 = vmul.f32 %v1835, 0.95
    %v1851 = vmul.f32 %v1849, 0.05
    %v1852 = vadd.f32 %v1850, %v1851
    %v1853 = vmul.f32 %v1843, 0.95
    %v1854 = vmul.f32 %v1852, %v46
    %v1855 = vadd.f32 %v1853, %v1854
    %vm1856 = vcmp.gt.f32.partialorder %v1855, 1.0
    %v1857 = vsel %vm1856, 1.0, 0.0
    %v1858 = vmul.f32 %v1857, %v1845
    %v1859 = vadd.f32 %v1842, %v1858
    %v1860 = vsel %vm1856, 0.0, %v1855
    %1861 = vrot.lane.b32.xlu0 %v1845, 1
    %v1862 = vpop.permute.xlu0 %1861
    %s1863 = sadd.s32 %s38, 106
    %s1864 = sld [smem:[#allocation2 + %s1863]]
    %v1865 = vstv %s1864
    %v1866 = vadd.f32 %v1865, 0.0
    %v1867 = vmul.f32 %v1852, 0.95
    %v1868 = vmul.f32 %v1866, 0.05
    %v1869 = vadd.f32 %v1867, %v1868
    %v1870 = vmul.f32 %v1860, 0.95
    %v1871 = vmul.f32 %v1869, %v46
    %v1872 = vadd.f32 %v1870, %v1871
    %vm1873 = vcmp.gt.f32.partialorder %v1872, 1.0
    %v1874 = vsel %vm1873, 1.0, 0.0
    %v1875 = vmul.f32 %v1874, %v1862
    %v1876 = vadd.f32 %v1859, %v1875
    %v1877 = vsel %vm1873, 0.0, %v1872
    %1878 = vrot.lane.b32.xlu0 %v1862, 1
    %v1879 = vpop.permute.xlu0 %1878
    %s1880 = sadd.s32 %s38, 107
    %s1881 = sld [smem:[#allocation2 + %s1880]]
    %v1882 = vstv %s1881
    %v1883 = vadd.f32 %v1882, 0.0
    %v1884 = vmul.f32 %v1869, 0.95
    %v1885 = vmul.f32 %v1883, 0.05
    %v1886 = vadd.f32 %v1884, %v1885
    %v1887 = vmul.f32 %v1877, 0.95
    %v1888 = vmul.f32 %v1886, %v46
    %v1889 = vadd.f32 %v1887, %v1888
    %vm1890 = vcmp.gt.f32.partialorder %v1889, 1.0
    %v1891 = vsel %vm1890, 1.0, 0.0
    %v1892 = vmul.f32 %v1891, %v1879
    %v1893 = vadd.f32 %v1876, %v1892
    %v1894 = vsel %vm1890, 0.0, %v1889
    %1895 = vrot.lane.b32.xlu0 %v1879, 1
    %v1896 = vpop.permute.xlu0 %1895
    %s1897 = sadd.s32 %s38, 108
    %s1898 = sld [smem:[#allocation2 + %s1897]]
    %v1899 = vstv %s1898
    %v1900 = vadd.f32 %v1899, 0.0
    %v1901 = vmul.f32 %v1886, 0.95
    %v1902 = vmul.f32 %v1900, 0.05
    %v1903 = vadd.f32 %v1901, %v1902
    %v1904 = vmul.f32 %v1894, 0.95
    %v1905 = vmul.f32 %v1903, %v46
    %v1906 = vadd.f32 %v1904, %v1905
    %vm1907 = vcmp.gt.f32.partialorder %v1906, 1.0
    %v1908 = vsel %vm1907, 1.0, 0.0
    %v1909 = vmul.f32 %v1908, %v1896
    %v1910 = vadd.f32 %v1893, %v1909
    %v1911 = vsel %vm1907, 0.0, %v1906
    %1912 = vrot.lane.b32.xlu0 %v1896, 1
    %v1913 = vpop.permute.xlu0 %1912
    %s1914 = sadd.s32 %s38, 109
    %s1915 = sld [smem:[#allocation2 + %s1914]]
    %v1916 = vstv %s1915
    %v1917 = vadd.f32 %v1916, 0.0
    %v1918 = vmul.f32 %v1903, 0.95
    %v1919 = vmul.f32 %v1917, 0.05
    %v1920 = vadd.f32 %v1918, %v1919
    %v1921 = vmul.f32 %v1911, 0.95
    %v1922 = vmul.f32 %v1920, %v46
    %v1923 = vadd.f32 %v1921, %v1922
    %vm1924 = vcmp.gt.f32.partialorder %v1923, 1.0
    %v1925 = vsel %vm1924, 1.0, 0.0
    %v1926 = vmul.f32 %v1925, %v1913
    %v1927 = vadd.f32 %v1910, %v1926
    %v1928 = vsel %vm1924, 0.0, %v1923
    %1929 = vrot.lane.b32.xlu0 %v1913, 1
    %v1930 = vpop.permute.xlu0 %1929
    %s1931 = sadd.s32 %s38, 110
    %s1932 = sld [smem:[#allocation2 + %s1931]]
    %v1933 = vstv %s1932
    %v1934 = vadd.f32 %v1933, 0.0
    %v1935 = vmul.f32 %v1920, 0.95
    %v1936 = vmul.f32 %v1934, 0.05
    %v1937 = vadd.f32 %v1935, %v1936
    %v1938 = vmul.f32 %v1928, 0.95
    %v1939 = vmul.f32 %v1937, %v46
    %v1940 = vadd.f32 %v1938, %v1939
    %vm1941 = vcmp.gt.f32.partialorder %v1940, 1.0
    %v1942 = vsel %vm1941, 1.0, 0.0
    %v1943 = vmul.f32 %v1942, %v1930
    %v1944 = vadd.f32 %v1927, %v1943
    %v1945 = vsel %vm1941, 0.0, %v1940
    %1946 = vrot.lane.b32.xlu0 %v1930, 1
    %v1947 = vpop.permute.xlu0 %1946
    %s1948 = sadd.s32 %s38, 111
    %s1949 = sld [smem:[#allocation2 + %s1948]]
    %v1950 = vstv %s1949
    %v1951 = vadd.f32 %v1950, 0.0
    %v1952 = vmul.f32 %v1937, 0.95
    %v1953 = vmul.f32 %v1951, 0.05
    %v1954 = vadd.f32 %v1952, %v1953
    %v1955 = vmul.f32 %v1945, 0.95
    %v1956 = vmul.f32 %v1954, %v46
    %v1957 = vadd.f32 %v1955, %v1956
    %vm1958 = vcmp.gt.f32.partialorder %v1957, 1.0
    %v1959 = vsel %vm1958, 1.0, 0.0
    %v1960 = vmul.f32 %v1959, %v1947
    %v1961 = vadd.f32 %v1944, %v1960
    %v1962 = vsel %vm1958, 0.0, %v1957
    %1963 = vrot.lane.b32.xlu0 %v1947, 1
    %v1964 = vpop.permute.xlu0 %1963
    %s1965 = sadd.s32 %s38, 112
    %s1966 = sld [smem:[#allocation2 + %s1965]]
    %v1967 = vstv %s1966
    %v1968 = vadd.f32 %v1967, 0.0
    %v1969 = vmul.f32 %v1954, 0.95
    %v1970 = vmul.f32 %v1968, 0.05
    %v1971 = vadd.f32 %v1969, %v1970
    %v1972 = vmul.f32 %v1962, 0.95
    %v1973 = vmul.f32 %v1971, %v46
    %v1974 = vadd.f32 %v1972, %v1973
    %vm1975 = vcmp.gt.f32.partialorder %v1974, 1.0
    %v1976 = vsel %vm1975, 1.0, 0.0
    %v1977 = vmul.f32 %v1976, %v1964
    %v1978 = vadd.f32 %v1961, %v1977
    %v1979 = vsel %vm1975, 0.0, %v1974
    %1980 = vrot.lane.b32.xlu0 %v1964, 1
    %v1981 = vpop.permute.xlu0 %1980
    %s1982 = sadd.s32 %s38, 113
    %s1983 = sld [smem:[#allocation2 + %s1982]]
    %v1984 = vstv %s1983
    %v1985 = vadd.f32 %v1984, 0.0
    %v1986 = vmul.f32 %v1971, 0.95
    %v1987 = vmul.f32 %v1985, 0.05
    %v1988 = vadd.f32 %v1986, %v1987
    %v1989 = vmul.f32 %v1979, 0.95
    %v1990 = vmul.f32 %v1988, %v46
    %v1991 = vadd.f32 %v1989, %v1990
    %vm1992 = vcmp.gt.f32.partialorder %v1991, 1.0
    %v1993 = vsel %vm1992, 1.0, 0.0
    %v1994 = vmul.f32 %v1993, %v1981
    %v1995 = vadd.f32 %v1978, %v1994
    %v1996 = vsel %vm1992, 0.0, %v1991
    %1997 = vrot.lane.b32.xlu0 %v1981, 1
    %v1998 = vpop.permute.xlu0 %1997
    %s1999 = sadd.s32 %s38, 114
    %s2000 = sld [smem:[#allocation2 + %s1999]]
    %v2001 = vstv %s2000
    %v2002 = vadd.f32 %v2001, 0.0
    %v2003 = vmul.f32 %v1988, 0.95
    %v2004 = vmul.f32 %v2002, 0.05
    %v2005 = vadd.f32 %v2003, %v2004
    %v2006 = vmul.f32 %v1996, 0.95
    %v2007 = vmul.f32 %v2005, %v46
    %v2008 = vadd.f32 %v2006, %v2007
    %vm2009 = vcmp.gt.f32.partialorder %v2008, 1.0
    %v2010 = vsel %vm2009, 1.0, 0.0
    %v2011 = vmul.f32 %v2010, %v1998
    %v2012 = vadd.f32 %v1995, %v2011
    %v2013 = vsel %vm2009, 0.0, %v2008
    %2014 = vrot.lane.b32.xlu0 %v1998, 1
    %v2015 = vpop.permute.xlu0 %2014
    %s2016 = sadd.s32 %s38, 115
    %s2017 = sld [smem:[#allocation2 + %s2016]]
    %v2018 = vstv %s2017
    %v2019 = vadd.f32 %v2018, 0.0
    %v2020 = vmul.f32 %v2005, 0.95
    %v2021 = vmul.f32 %v2019, 0.05
    %v2022 = vadd.f32 %v2020, %v2021
    %v2023 = vmul.f32 %v2013, 0.95
    %v2024 = vmul.f32 %v2022, %v46
    %v2025 = vadd.f32 %v2023, %v2024
    %vm2026 = vcmp.gt.f32.partialorder %v2025, 1.0
    %v2027 = vsel %vm2026, 1.0, 0.0
    %v2028 = vmul.f32 %v2027, %v2015
    %v2029 = vadd.f32 %v2012, %v2028
    %v2030 = vsel %vm2026, 0.0, %v2025
    %2031 = vrot.lane.b32.xlu0 %v2015, 1
    %v2032 = vpop.permute.xlu0 %2031
    %s2033 = sadd.s32 %s38, 116
    %s2034 = sld [smem:[#allocation2 + %s2033]]
    %v2035 = vstv %s2034
    %v2036 = vadd.f32 %v2035, 0.0
    %v2037 = vmul.f32 %v2022, 0.95
    %v2038 = vmul.f32 %v2036, 0.05
    %v2039 = vadd.f32 %v2037, %v2038
    %v2040 = vmul.f32 %v2030, 0.95
    %v2041 = vmul.f32 %v2039, %v46
    %v2042 = vadd.f32 %v2040, %v2041
    %vm2043 = vcmp.gt.f32.partialorder %v2042, 1.0
    %v2044 = vsel %vm2043, 1.0, 0.0
    %v2045 = vmul.f32 %v2044, %v2032
    %v2046 = vadd.f32 %v2029, %v2045
    %v2047 = vsel %vm2043, 0.0, %v2042
    %2048 = vrot.lane.b32.xlu0 %v2032, 1
    %v2049 = vpop.permute.xlu0 %2048
    %s2050 = sadd.s32 %s38, 117
    %s2051 = sld [smem:[#allocation2 + %s2050]]
    %v2052 = vstv %s2051
    %v2053 = vadd.f32 %v2052, 0.0
    %v2054 = vmul.f32 %v2039, 0.95
    %v2055 = vmul.f32 %v2053, 0.05
    %v2056 = vadd.f32 %v2054, %v2055
    %v2057 = vmul.f32 %v2047, 0.95
    %v2058 = vmul.f32 %v2056, %v46
    %v2059 = vadd.f32 %v2057, %v2058
    %vm2060 = vcmp.gt.f32.partialorder %v2059, 1.0
    %v2061 = vsel %vm2060, 1.0, 0.0
    %v2062 = vmul.f32 %v2061, %v2049
    %v2063 = vadd.f32 %v2046, %v2062
    %v2064 = vsel %vm2060, 0.0, %v2059
    %2065 = vrot.lane.b32.xlu0 %v2049, 1
    %v2066 = vpop.permute.xlu0 %2065
    %s2067 = sadd.s32 %s38, 118
    %s2068 = sld [smem:[#allocation2 + %s2067]]
    %v2069 = vstv %s2068
    %v2070 = vadd.f32 %v2069, 0.0
    %v2071 = vmul.f32 %v2056, 0.95
    %v2072 = vmul.f32 %v2070, 0.05
    %v2073 = vadd.f32 %v2071, %v2072
    %v2074 = vmul.f32 %v2064, 0.95
    %v2075 = vmul.f32 %v2073, %v46
    %v2076 = vadd.f32 %v2074, %v2075
    %vm2077 = vcmp.gt.f32.partialorder %v2076, 1.0
    %v2078 = vsel %vm2077, 1.0, 0.0
    %v2079 = vmul.f32 %v2078, %v2066
    %v2080 = vadd.f32 %v2063, %v2079
    %v2081 = vsel %vm2077, 0.0, %v2076
    %2082 = vrot.lane.b32.xlu0 %v2066, 1
    %v2083 = vpop.permute.xlu0 %2082
    %s2084 = sadd.s32 %s38, 119
    %s2085 = sld [smem:[#allocation2 + %s2084]]
    %v2086 = vstv %s2085
    %v2087 = vadd.f32 %v2086, 0.0
    %v2088 = vmul.f32 %v2073, 0.95
    %v2089 = vmul.f32 %v2087, 0.05
    %v2090 = vadd.f32 %v2088, %v2089
    %v2091 = vmul.f32 %v2081, 0.95
    %v2092 = vmul.f32 %v2090, %v46
    %v2093 = vadd.f32 %v2091, %v2092
    %vm2094 = vcmp.gt.f32.partialorder %v2093, 1.0
    %v2095 = vsel %vm2094, 1.0, 0.0
    %v2096 = vmul.f32 %v2095, %v2083
    %v2097 = vadd.f32 %v2080, %v2096
    %v2098 = vsel %vm2094, 0.0, %v2093
    %2099 = vrot.lane.b32.xlu0 %v2083, 1
    %v2100 = vpop.permute.xlu0 %2099
    %s2101 = sadd.s32 %s38, 120
    %s2102 = sld [smem:[#allocation2 + %s2101]]
    %v2103 = vstv %s2102
    %v2104 = vadd.f32 %v2103, 0.0
    %v2105 = vmul.f32 %v2090, 0.95
    %v2106 = vmul.f32 %v2104, 0.05
    %v2107 = vadd.f32 %v2105, %v2106
    %v2108 = vmul.f32 %v2098, 0.95
    %v2109 = vmul.f32 %v2107, %v46
    %v2110 = vadd.f32 %v2108, %v2109
    %vm2111 = vcmp.gt.f32.partialorder %v2110, 1.0
    %v2112 = vsel %vm2111, 1.0, 0.0
    %v2113 = vmul.f32 %v2112, %v2100
    %v2114 = vadd.f32 %v2097, %v2113
    %v2115 = vsel %vm2111, 0.0, %v2110
    %2116 = vrot.lane.b32.xlu0 %v2100, 1
    %v2117 = vpop.permute.xlu0 %2116
    %s2118 = sadd.s32 %s38, 121
    %s2119 = sld [smem:[#allocation2 + %s2118]]
    %v2120 = vstv %s2119
    %v2121 = vadd.f32 %v2120, 0.0
    %v2122 = vmul.f32 %v2107, 0.95
    %v2123 = vmul.f32 %v2121, 0.05
    %v2124 = vadd.f32 %v2122, %v2123
    %v2125 = vmul.f32 %v2115, 0.95
    %v2126 = vmul.f32 %v2124, %v46
    %v2127 = vadd.f32 %v2125, %v2126
    %vm2128 = vcmp.gt.f32.partialorder %v2127, 1.0
    %v2129 = vsel %vm2128, 1.0, 0.0
    %v2130 = vmul.f32 %v2129, %v2117
    %v2131 = vadd.f32 %v2114, %v2130
    %v2132 = vsel %vm2128, 0.0, %v2127
    %2133 = vrot.lane.b32.xlu0 %v2117, 1
    %v2134 = vpop.permute.xlu0 %2133
    %s2135 = sadd.s32 %s38, 122
    %s2136 = sld [smem:[#allocation2 + %s2135]]
    %v2137 = vstv %s2136
    %v2138 = vadd.f32 %v2137, 0.0
    %v2139 = vmul.f32 %v2124, 0.95
    %v2140 = vmul.f32 %v2138, 0.05
    %v2141 = vadd.f32 %v2139, %v2140
    %v2142 = vmul.f32 %v2132, 0.95
    %v2143 = vmul.f32 %v2141, %v46
    %v2144 = vadd.f32 %v2142, %v2143
    %vm2145 = vcmp.gt.f32.partialorder %v2144, 1.0
    %v2146 = vsel %vm2145, 1.0, 0.0
    %v2147 = vmul.f32 %v2146, %v2134
    %v2148 = vadd.f32 %v2131, %v2147
    %v2149 = vsel %vm2145, 0.0, %v2144
    %2150 = vrot.lane.b32.xlu0 %v2134, 1
    %v2151 = vpop.permute.xlu0 %2150
    %s2152 = sadd.s32 %s38, 123
    %s2153 = sld [smem:[#allocation2 + %s2152]]
    %v2154 = vstv %s2153
    %v2155 = vadd.f32 %v2154, 0.0
    %v2156 = vmul.f32 %v2141, 0.95
    %v2157 = vmul.f32 %v2155, 0.05
    %v2158 = vadd.f32 %v2156, %v2157
    %v2159 = vmul.f32 %v2149, 0.95
    %v2160 = vmul.f32 %v2158, %v46
    %v2161 = vadd.f32 %v2159, %v2160
    %vm2162 = vcmp.gt.f32.partialorder %v2161, 1.0
    %v2163 = vsel %vm2162, 1.0, 0.0
    %v2164 = vmul.f32 %v2163, %v2151
    %v2165 = vadd.f32 %v2148, %v2164
    %v2166 = vsel %vm2162, 0.0, %v2161
    %2167 = vrot.lane.b32.xlu0 %v2151, 1
    %v2168 = vpop.permute.xlu0 %2167
    %s2169 = sadd.s32 %s38, 124
    %s2170 = sld [smem:[#allocation2 + %s2169]]
    %v2171 = vstv %s2170
    %v2172 = vadd.f32 %v2171, 0.0
    %v2173 = vmul.f32 %v2158, 0.95
    %v2174 = vmul.f32 %v2172, 0.05
    %v2175 = vadd.f32 %v2173, %v2174
    %v2176 = vmul.f32 %v2166, 0.95
    %v2177 = vmul.f32 %v2175, %v46
    %v2178 = vadd.f32 %v2176, %v2177
    %vm2179 = vcmp.gt.f32.partialorder %v2178, 1.0
    %v2180 = vsel %vm2179, 1.0, 0.0
    %v2181 = vmul.f32 %v2180, %v2168
    %v2182 = vadd.f32 %v2165, %v2181
    %v2183 = vsel %vm2179, 0.0, %v2178
    %2184 = vrot.lane.b32.xlu0 %v2168, 1
    %v2185 = vpop.permute.xlu0 %2184
    %s2186 = sadd.s32 %s38, 125
    %s2187 = sld [smem:[#allocation2 + %s2186]]
    %v2188 = vstv %s2187
    %v2189 = vadd.f32 %v2188, 0.0
    %v2190 = vmul.f32 %v2175, 0.95
    %v2191 = vmul.f32 %v2189, 0.05
    %v2192 = vadd.f32 %v2190, %v2191
    %v2193 = vmul.f32 %v2183, 0.95
    %v2194 = vmul.f32 %v2192, %v46
    %v2195 = vadd.f32 %v2193, %v2194
    %vm2196 = vcmp.gt.f32.partialorder %v2195, 1.0
    %v2197 = vsel %vm2196, 1.0, 0.0
    %v2198 = vmul.f32 %v2197, %v2185
    %v2199 = vadd.f32 %v2182, %v2198
    %v2200 = vsel %vm2196, 0.0, %v2195
    %2201 = vrot.lane.b32.xlu0 %v2185, 1
    %v2202 = vpop.permute.xlu0 %2201
    %s2203 = sadd.s32 %s38, 126
    %s2204 = sld [smem:[#allocation2 + %s2203]]
    %v2205 = vstv %s2204
    %v2206 = vadd.f32 %v2205, 0.0
    %v2207 = vmul.f32 %v2192, 0.95
    %v2208 = vmul.f32 %v2206, 0.05
    %v2209 = vadd.f32 %v2207, %v2208
    %v2210 = vmul.f32 %v2200, 0.95
    %v2211 = vmul.f32 %v2209, %v46
    %v2212 = vadd.f32 %v2210, %v2211
    %vm2213 = vcmp.gt.f32.partialorder %v2212, 1.0
    %v2214 = vsel %vm2213, 1.0, 0.0
    %v2215 = vmul.f32 %v2214, %v2202
    %v2216 = vadd.f32 %v2199, %v2215
    %v2217 = vsel %vm2213, 0.0, %v2212
    %2218 = vrot.lane.b32.xlu0 %v2202, 1
    %v2219 = vpop.permute.xlu0 %2218
    %s2220 = sadd.s32 %s38, 127
    %s2221 = sld [smem:[#allocation2 + %s2220]]
    %v2222 = vstv %s2221
    %v2223 = vadd.f32 %v2222, 0.0
    %v2224 = vmul.f32 %v2209, 0.95
    %v2225 = vmul.f32 %v2223, 0.05
    %v2226 = vadd.f32 %v2224, %v2225
    %v2227 = vmul.f32 %v2217, 0.95
    %v2228 = vmul.f32 %v2226, %v46
    %v2229 = vadd.f32 %v2227, %v2228
    %vm2230 = vcmp.gt.f32.partialorder %v2229, 1.0
    %v2231 = vsel %vm2230, 1.0, 0.0
    %v2232 = vmul.f32 %v2231, %v2219
    %v2233 = vadd.f32 %v2216, %v2232
    %v2234 = vsel %vm2230, 0.0, %v2229
    %2235 = vst [vmem:[#allocation7] sm:$0x1] %v2233
    %p2236 = scmp.lt.s32.totalorder 0, 0
    // Predicated region
    $region22: #{tpu_custom_call.1} parent=1 // pred_check
      %p2237 = pneg %p2236
    $region23: #{tpu_custom_call.1} parent=1 // pred_check_branch
      %2239 = sbr.rel (%p2237) target = $region25
    $region24: #{tpu_custom_call.1} parent=1 // pred_region
      %v2241 = vrot.slane %v2226, 7
      %vm2243 = vcmask 1040384
      %v2244 = vsel %vm2243, %v2234, %v2241
      %2245 = vst [vmem:[#allocation8] sm:$0x3] %v2244
    $region25: #{tpu_custom_call.1} parent=1 // pred_fallthru
      _
    // Predicated region
    $region26: #{tpu_custom_call.1} parent=1 // pred_check
      %p2246 = pneg %p47
    $region27: #{tpu_custom_call.1} parent=1 // pred_check_branch
      %2248 = sbr.rel (%p2246) target = $region29
    $region28: #{tpu_custom_call.1} parent=1 // pred_region
      %v2250 = vrot.slane %v1138, 7
      %vm2252 = vcmask 1040384
      %v2253 = vsel %vm2252, %v1146, %v2250
      %2254 = vst [vmem:[#allocation8] sm:$0x3] %v2253
    $region29: #{tpu_custom_call.1} parent=1 // pred_fallthru
      _
    // Predicated region
    $region30: #{tpu_custom_call.1} parent=1 // pred_check
      _
    $region31: #{tpu_custom_call.1} parent=1 // pred_check_branch
      %2256 = sbr.rel (0) target = $region33
    $region32: #{tpu_custom_call.1} parent=1 // pred_region
      %s2258 = ssub.s32 16, 16
      %2259 = vsyncadd [#allocation3], %s2258
      %s2261 = sshll.u32 [#allocation7], 4
      %s2262 = int_to_ptr.vmem [resolvable:$true] %s2261
      %2264 = dma.vmem_to_hbm [thread:$0]  %s2262, 16, %s2, [#allocation3]
    $region33: #{tpu_custom_call.1} parent=1 // pred_fallthru
      _
    // Predicated region
    $region34: #{tpu_custom_call.1} parent=1 // pred_check
      _
    $region35: #{tpu_custom_call.1} parent=1 // pred_check_branch
      %2266 = sbr.rel (0) target = $region37
    $region36: #{tpu_custom_call.1} parent=1 // pred_region
      %s2268 = ssub.s32 32, 32
      %2269 = vsyncadd [#allocation9], %s2268
      %s2271 = sshll.u32 [#allocation8], 4
      %s2272 = int_to_ptr.vmem [resolvable:$true] %s2271
      %2274 = dma.vmem_to_hbm [thread:$0]  %s2272, 32, %s3, [#allocation9]
    $region37: #{tpu_custom_call.1} parent=1 // pred_fallthru
      _
    // Predicated region
    $region38: #{tpu_custom_call.1} parent=1 // pred_check
      _
    $region39: #{tpu_custom_call.1} parent=1 // pred_check_branch
      %2276 = sbr.rel (0) target = $region41
    $region40: #{tpu_custom_call.1} parent=1 // pred_region
      %2277 = dma.done [#allocation3], 16
    $region41: #{tpu_custom_call.1} parent=1 // pred_fallthru
      _
    // Predicated region
    $region42: #{tpu_custom_call.1} parent=1 // pred_check
      _
    $region43: #{tpu_custom_call.1} parent=1 // pred_check_branch
      %2279 = sbr.rel (0) target = $region45
    $region44: #{tpu_custom_call.1} parent=1 // pred_region
      %2280 = dma.done [#allocation9], 32
    $region45: #{tpu_custom_call.1} parent=1 // pred_fallthru
      _
    %2281 = vsyncpa [#allocation3], 1
    %2282 = vsyncpa [#allocation9], 1
    %2283 = vsyncpa [#allocation4], 1
    %2284 = vsyncpa [#allocation5], 1

</llo_original>
